<compile_context>
chip_gen: v6e
topology: v6e:2x2x1
jax: 0.10.0
libtpu: 0.0.40
codegen_flags: <defaults>
</compile_context>

<pallas_src>
import jax
import jax.numpy as jnp
from jax.experimental import pallas as pl
from jax.experimental.pallas import tpu as pltpu

IN_DIM = 8000
IN_PAD = 8192            # 64 * 128: lane-dense loads/stores, multiple of 256 for MXU
ENC_DIM = 3
DEC_CHUNK = 2048         # decoder output computed / sigmoided / stored per slab
LAYER_DIMS = [
    (8000, 128), (128, 64), (64, 12), (12, 3),      # encoder
    (3, 12), (12, 64), (64, 128), (128, 8000),      # decoder
]


def _autoencoder_kernel(x_ref,
                        w1, b1, w2, b2, w3, b3, w4, b4,
                        w5, b5, w6, b6, w7, b7, w8, b8,
                        enc_ref, dec_ref):
    """Fused forward for one batch tile: all 8 Linear layers + activations."""

    def linear(h, w_ref, b_ref):
        # Big layers (1 and 8) get bf16 operands for native MXU rate; activations
        # already arrive in the weight dtype so no large in-kernel cast happens.
        # Accumulation is f32; bias / ReLU / sigmoid stay f32 (v5e-safe).
        return jnp.dot(h.astype(w_ref.dtype), w_ref[...],
                       preferred_element_type=jnp.float32) + b_ref[...]

    # --- encoder ---
    h = jnp.maximum(linear(x_ref[...], w1, b1), 0.0)     # bf16 x bf16 -> f32
    h = jnp.maximum(linear(h, w2, b2), 0.0)
    h = jnp.maximum(linear(h, w3, b3), 0.0)
    enc = linear(h, w4, b4)                               # no activation on bottleneck
    enc_ref[...] = enc.astype(enc_ref.dtype)

    # --- decoder (small layers) ---
    h = jnp.maximum(linear(enc, w5, b5), 0.0)
    h = jnp.maximum(linear(h, w6, b6), 0.0)
    h = jnp.maximum(linear(h, w7, b7), 0.0)               # (tb, 128) f32
    h8 = h.astype(w8.dtype)                                # one small bf16 cast

    # --- decoder tail: layer 8 + sigmoid + bf16 store, per 2048-wide slab ---
    n_chunks = w8.shape[1] // DEC_CHUNK                    # static (4)
    for c in range(n_chunks):
        lo, hi = c * DEC_CHUNK, (c + 1) * DEC_CHUNK
        z = jnp.dot(h8, w8[:, lo:hi], preferred_element_type=jnp.float32)
        z = z + b8[:, lo:hi]
        # sigmoid(z) = 1 / (1 + exp(-z)); exp + approx reciprocal both on the EUP.
        s = pl.reciprocal(1.0 + jnp.exp(-z), approx=True)
        dec_ref[:, lo:hi] = s.astype(dec_ref.dtype)


def _vmem_limit_bytes():
    """Generation-aware VMEM limit (v7x only has 64 MiB per TensorCore)."""
    try:
        phys = pltpu.get_tpu_info().vmem_capacity_bytes
    except Exception:                              # older jax / abstract trace
        phys = 64 * 1024 * 1024
    return int(min(phys - 16 * 1024 * 1024, 96 * 1024 * 1024))


def prepare_params(params):
    """One-time parameter prep: pad the 8000 dim to 8192, cast the two big
    weights to bf16 (halves dominant HBM traffic), biases as 2-D [1, out] f32."""
    prepared = []
    for li, (w, b) in enumerate(params):
        w = jnp.asarray(w, jnp.float32)
        b = jnp.asarray(b, jnp.float32)
        if li == 0:    # (8000,128) -> (8192,128), zero-pad K rows, bf16
            w = jnp.pad(w, ((0, IN_PAD - IN_DIM), (0, 0))).astype(jnp.bfloat16)
        elif li == 7:  # (128,8000) -> (128,8192), zero-pad N cols, bf16
            w = jnp.pad(w, ((0, 0), (0, IN_PAD - IN_DIM))).astype(jnp.bfloat16)
            b = jnp.pad(b, (0, IN_PAD - IN_DIM))
        prepared.append((w, b.reshape(1, -1)))
    return prepared


def autoencoder_forward(x, prepared_params, *, batch_tile=128):
    """x: [B, 8000] f32; prepared_params: output of prepare_params().
    Returns (encoded [B,3] f32, decoded [B,8000] f32)."""
    B = x.shape[0]
    tb = min(batch_tile, B)
    nb = pl.cdiv(B, tb)
    B_pad = nb * tb            # pad batch so every grid step is a full tile

    x16 = jnp.pad(x.astype(jnp.bfloat16),
                  ((0, B_pad - B), (0, IN_PAD - IN_DIM)))

    flat_inputs = [x16]
    in_specs = [pl.BlockSpec((tb, IN_PAD), lambda i: (i, 0))]
    for w, b2d in prepared_params:
        flat_inputs += [w, b2d]
        # Constant block index -> DMA'd once, resident in VMEM across all tiles.
        in_specs += [pl.BlockSpec(w.shape, lambda i: (0, 0)),
                     pl.BlockSpec(b2d.shape, lambda i: (0, 0))]

    out_specs = (pl.BlockSpec((tb, ENC_DIM), lambda i: (i, 0)),
                 pl.BlockSpec((tb, IN_PAD), lambda i: (i, 0)))

    flops = 2 * B_pad * sum(fi * fo for fi, fo in LAYER_DIMS)
    bytes_accessed = (
        sum(int(a.size) * a.dtype.itemsize for a in flat_inputs)
        + B_pad * ENC_DIM * 4          # encoded f32 out
        + B_pad * IN_PAD * 2)          # decoded bf16 out

    enc, dec = pl.pallas_call(
        _autoencoder_kernel,
        grid=(nb,),
        in_specs=in_specs,
        out_specs=out_specs,
        out_shape=(
            jax.ShapeDtypeStruct((B_pad, ENC_DIM), jnp.float32),   # encoded
            jax.ShapeDtypeStruct((B_pad, IN_PAD), jnp.bfloat16),   # decoded (bf16 stream)
        ),
        compiler_params=pltpu.CompilerParams(
            dimension_semantics=("parallel",),       # batch tiles across cores
            vmem_limit_bytes=_vmem_limit_bytes(),
        ),
        cost_estimate=pl.CostEstimate(
            flops=flops,
            transcendentals=2 * B_pad * IN_PAD,      # exp + reciprocal per element
            bytes_accessed=bytes_accessed,
        ),
    )(*flat_inputs)

    enc = enc[:B]
    dec = dec[:B, :IN_DIM].astype(jnp.float32)
    return enc, dec


def init_params(key):
    """Deterministic PyTorch-style init: U(-1/sqrt(fan_in), +1/sqrt(fan_in))."""
    params = []
    for fan_in, fan_out in LAYER_DIMS:
        key, kw, kb = jax.random.split(key, 3)
        bound = 1.0 / float(fan_in) ** 0.5
        w = jax.random.uniform(kw, (fan_in, fan_out), jnp.float32, -bound, bound)
        b = jax.random.uniform(kb, (fan_out,), jnp.float32, -bound, bound)
        params.append((w, b))
    return params


def ref_forward(x, prepared_params):
    """Pure-JAX reference with the same dtypes as the kernel (bf16 x / w1 / w8,
    f32 accumulation and f32 elementwise); exact sigmoid, f32 output."""
    h = jnp.pad(x.astype(jnp.bfloat16), ((0, 0), (0, IN_PAD - IN_DIM)))
    for i, (w, b) in enumerate(prepared_params[:4]):
        h = jnp.dot(h.astype(w.dtype), w, preferred_element_type=jnp.float32) + b
        if i < 3:
            h = jnp.maximum(h, 0.0)
    enc = h
    h = enc
    for i, (w, b) in enumerate(prepared_params[4:]):
        h = jnp.dot(h.astype(w.dtype), w, preferred_element_type=jnp.float32) + b
        if i < 3:
            h = jnp.maximum(h, 0.0)
    dec = jax.nn.sigmoid(h)[:, :IN_DIM]
    return enc, dec


if __name__ == "__main__":
    key = jax.random.PRNGKey(0)
    key, kx = jax.random.split(key)

    B = 8
    x = jax.random.normal(kx, (B, IN_DIM), dtype=jnp.float32)
    params = init_params(key)
    prepared = prepare_params(params)

    enc, dec = jax.block_until_ready(autoencoder_forward(x, prepared))

    enc_ref, dec_ref = ref_forward(x, prepared)
    assert enc.shape == (B, ENC_DIM) and dec.shape == (B, IN_DIM)
    # encoder path: identical dtypes/ops, tight tolerance
    assert jnp.allclose(enc, enc_ref, rtol=5e-3, atol=2e-3), "encoded mismatch"
    # decoder: kernel uses approx reciprocal + bf16 decoded store -> looser
    assert jnp.allclose(dec, dec_ref, rtol=2e-2, atol=1e-2), "decoded mismatch"

    print("KERNEL_OK")
</pallas_src>

<mosaic_0001>
module attributes {stable_mosaic.version = 11 : i64} {
  func.func @_autoencoder_kernel(%arg0: i32, %arg1: memref<8x8192xbf16, #tpu.memory_space<vmem>>, %arg2: memref<8192x128xbf16, #tpu.memory_space<vmem>>, %arg3: memref<1x128xf32, #tpu.memory_space<vmem>>, %arg4: memref<128x64xf32, #tpu.memory_space<vmem>>, %arg5: memref<1x64xf32, #tpu.memory_space<vmem>>, %arg6: memref<64x12xf32, #tpu.memory_space<vmem>>, %arg7: memref<1x12xf32, #tpu.memory_space<vmem>>, %arg8: memref<12x3xf32, #tpu.memory_space<vmem>>, %arg9: memref<1x3xf32, #tpu.memory_space<vmem>>, %arg10: memref<3x12xf32, #tpu.memory_space<vmem>>, %arg11: memref<1x12xf32, #tpu.memory_space<vmem>>, %arg12: memref<12x64xf32, #tpu.memory_space<vmem>>, %arg13: memref<1x64xf32, #tpu.memory_space<vmem>>, %arg14: memref<64x128xf32, #tpu.memory_space<vmem>>, %arg15: memref<1x128xf32, #tpu.memory_space<vmem>>, %arg16: memref<128x8192xbf16, #tpu.memory_space<vmem>>, %arg17: memref<1x8192xf32, #tpu.memory_space<vmem>>, %arg18: memref<8x3xf32, #tpu.memory_space<vmem>>, %arg19: memref<8x8192xbf16, #tpu.memory_space<vmem>>) attributes {dimension_semantics = [#tpu.dimension_semantics<parallel>], iteration_bounds = array<i64: 1>, scalar_prefetch = 0 : i64, scratch_operands = 0 : i64, tpu.core_type = #tpu.core_type<tc>, window_params = [{transform_indices = @transform_0, window_bounds = array<i64: 8, 8192>}, {pipeline_mode = #tpu.pipeline_mode<synchronous>, transform_indices = @transform_1, window_bounds = array<i64: 8192, 128>}, {pipeline_mode = #tpu.pipeline_mode<synchronous>, transform_indices = @transform_2, window_bounds = array<i64: 1, 128>}, {pipeline_mode = #tpu.pipeline_mode<synchronous>, transform_indices = @transform_3, window_bounds = array<i64: 128, 64>}, {pipeline_mode = #tpu.pipeline_mode<synchronous>, transform_indices = @transform_4, window_bounds = array<i64: 1, 64>}, {pipeline_mode = #tpu.pipeline_mode<synchronous>, transform_indices = @transform_5, window_bounds = array<i64: 64, 12>}, {pipeline_mode = #tpu.pipeline_mode<synchronous>, transform_indices = @transform_6, window_bounds = array<i64: 1, 12>}, {pipeline_mode = #tpu.pipeline_mode<synchronous>, transform_indices = @transform_7, window_bounds = array<i64: 12, 3>}, {pipeline_mode = #tpu.pipeline_mode<synchronous>, transform_indices = @transform_8, window_bounds = array<i64: 1, 3>}, {pipeline_mode = #tpu.pipeline_mode<synchronous>, transform_indices = @transform_9, window_bounds = array<i64: 3, 12>}, {pipeline_mode = #tpu.pipeline_mode<synchronous>, transform_indices = @transform_10, window_bounds = array<i64: 1, 12>}, {pipeline_mode = #tpu.pipeline_mode<synchronous>, transform_indices = @transform_11, window_bounds = array<i64: 12, 64>}, {pipeline_mode = #tpu.pipeline_mode<synchronous>, transform_indices = @transform_12, window_bounds = array<i64: 1, 64>}, {pipeline_mode = #tpu.pipeline_mode<synchronous>, transform_indices = @transform_13, window_bounds = array<i64: 64, 128>}, {pipeline_mode = #tpu.pipeline_mode<synchronous>, transform_indices = @transform_14, window_bounds = array<i64: 1, 128>}, {pipeline_mode = #tpu.pipeline_mode<synchronous>, transform_indices = @transform_15, window_bounds = array<i64: 128, 8192>}, {pipeline_mode = #tpu.pipeline_mode<synchronous>, transform_indices = @transform_16, window_bounds = array<i64: 1, 8192>}, {transform_indices = @transform_17, window_bounds = array<i64: 8, 3>}, {transform_indices = @transform_18, window_bounds = array<i64: 8, 8192>}]} {
    %c0 = arith.constant 0 : index
    %c0_0 = arith.constant 0 : index
    %0 = vector.load %arg1[%c0, %c0_0] : memref<8x8192xbf16, #tpu.memory_space<vmem>>, vector<8x8192xbf16>
    %c0_1 = arith.constant 0 : index
    %c0_2 = arith.constant 0 : index
    %1 = vector.load %arg2[%c0_1, %c0_2] : memref<8192x128xbf16, #tpu.memory_space<vmem>>, vector<8192x128xbf16>
    %cst = arith.constant dense<0.000000e+00> : vector<8x128xf32>
    %2 = tpu.matmul %0, %1, %cst {dimension_numbers = #tpu.dot_dimension_numbers<[1], [0], [0], [1], [0, 0, 1, 1], [], []>} : vector<8x8192xbf16>, vector<8192x128xbf16>, vector<8x128xf32> -> vector<8x128xf32>
    %c0_3 = arith.constant 0 : index
    %c0_4 = arith.constant 0 : index
    %3 = vector.load %arg3[%c0_3, %c0_4] : memref<1x128xf32, #tpu.memory_space<vmem>>, vector<1x128xf32>
    %4 = vector.broadcast %3 : vector<1x128xf32> to vector<8x128xf32>
    %5 = arith.addf %2, %4 : vector<8x128xf32>
    %cst_5 = arith.constant 0.000000e+00 : f32
    %6 = vector.broadcast %cst_5 : f32 to vector<8x128xf32>
    %7 = arith.maximumf %5, %6 : vector<8x128xf32>
    %c0_6 = arith.constant 0 : index
    %c0_7 = arith.constant 0 : index
    %8 = vector.load %arg4[%c0_6, %c0_7] : memref<128x64xf32, #tpu.memory_space<vmem>>, vector<128x64xf32>
    %cst_8 = arith.constant dense<0.000000e+00> : vector<8x64xf32>
    %9 = tpu.matmul %7, %8, %cst_8 {dimension_numbers = #tpu.dot_dimension_numbers<[1], [0], [0], [1], [0, 0, 1, 1], [], []>} : vector<8x128xf32>, vector<128x64xf32>, vector<8x64xf32> -> vector<8x64xf32>
    %c0_9 = arith.constant 0 : index
    %c0_10 = arith.constant 0 : index
    %10 = vector.load %arg5[%c0_9, %c0_10] : memref<1x64xf32, #tpu.memory_space<vmem>>, vector<1x64xf32>
    %11 = vector.broadcast %10 : vector<1x64xf32> to vector<8x64xf32>
    %12 = arith.addf %9, %11 : vector<8x64xf32>
    %cst_11 = arith.constant 0.000000e+00 : f32
    %13 = vector.broadcast %cst_11 : f32 to vector<8x64xf32>
    %14 = arith.maximumf %12, %13 : vector<8x64xf32>
    %c0_12 = arith.constant 0 : index
    %c0_13 = arith.constant 0 : index
    %15 = vector.load %arg6[%c0_12, %c0_13] : memref<64x12xf32, #tpu.memory_space<vmem>>, vector<64x12xf32>
    %cst_14 = arith.constant dense<0.000000e+00> : vector<8x12xf32>
    %16 = tpu.matmul %14, %15, %cst_14 {dimension_numbers = #tpu.dot_dimension_numbers<[1], [0], [0], [1], [0, 0, 1, 1], [], []>} : vector<8x64xf32>, vector<64x12xf32>, vector<8x12xf32> -> vector<8x12xf32>
    %c0_15 = arith.constant 0 : index
    %c0_16 = arith.constant 0 : index
    %17 = vector.load %arg7[%c0_15, %c0_16] : memref<1x12xf32, #tpu.memory_space<vmem>>, vector<1x12xf32>
    %18 = vector.broadcast %17 : vector<1x12xf32> to vector<8x12xf32>
    %19 = arith.addf %16, %18 : vector<8x12xf32>
    %cst_17 = arith.constant 0.000000e+00 : f32
    %20 = vector.broadcast %cst_17 : f32 to vector<8x12xf32>
    %21 = arith.maximumf %19, %20 : vector<8x12xf32>
    %c0_18 = arith.constant 0 : index
    %c0_19 = arith.constant 0 : index
    %22 = vector.load %arg8[%c0_18, %c0_19] : memref<12x3xf32, #tpu.memory_space<vmem>>, vector<12x3xf32>
    %cst_20 = arith.constant dense<0.000000e+00> : vector<8x3xf32>
    %23 = tpu.matmul %21, %22, %cst_20 {dimension_numbers = #tpu.dot_dimension_numbers<[1], [0], [0], [1], [0, 0, 1, 1], [], []>} : vector<8x12xf32>, vector<12x3xf32>, vector<8x3xf32> -> vector<8x3xf32>
    %c0_21 = arith.constant 0 : index
    %c0_22 = arith.constant 0 : index
    %24 = vector.load %arg9[%c0_21, %c0_22] : memref<1x3xf32, #tpu.memory_space<vmem>>, vector<1x3xf32>
    %25 = vector.broadcast %24 : vector<1x3xf32> to vector<8x3xf32>
    %26 = arith.addf %23, %25 : vector<8x3xf32>
    %c0_23 = arith.constant 0 : index
    %c0_24 = arith.constant 0 : index
    %27 = vector.load %arg18[%c0_23, %c0_24] : memref<8x3xf32, #tpu.memory_space<vmem>>, vector<8x3xf32>
    tpu.vector_store %arg18[%c0_23, %c0_24], %26 {strides = array<i32>} : memref<8x3xf32, #tpu.memory_space<vmem>>, vector<8x3xf32>,
    %c0_25 = arith.constant 0 : index
    %c0_26 = arith.constant 0 : index
    %28 = vector.load %arg10[%c0_25, %c0_26] : memref<3x12xf32, #tpu.memory_space<vmem>>, vector<3x12xf32>
    %cst_27 = arith.constant dense<0.000000e+00> : vector<8x12xf32>
    %29 = tpu.matmul %26, %28, %cst_27 {dimension_numbers = #tpu.dot_dimension_numbers<[1], [0], [0], [1], [0, 0, 1, 1], [], []>} : vector<8x3xf32>, vector<3x12xf32>, vector<8x12xf32> -> vector<8x12xf32>
    %c0_28 = arith.constant 0 : index
    %c0_29 = arith.constant 0 : index
    %30 = vector.load %arg11[%c0_28, %c0_29] : memref<1x12xf32, #tpu.memory_space<vmem>>, vector<1x12xf32>
    %31 = vector.broadcast %30 : vector<1x12xf32> to vector<8x12xf32>
    %32 = arith.addf %29, %31 : vector<8x12xf32>
    %cst_30 = arith.constant 0.000000e+00 : f32
    %33 = vector.broadcast %cst_30 : f32 to vector<8x12xf32>
    %34 = arith.maximumf %32, %33 : vector<8x12xf32>
    %c0_31 = arith.constant 0 : index
    %c0_32 = arith.constant 0 : index
    %35 = vector.load %arg12[%c0_31, %c0_32] : memref<12x64xf32, #tpu.memory_space<vmem>>, vector<12x64xf32>
    %cst_33 = arith.constant dense<0.000000e+00> : vector<8x64xf32>
    %36 = tpu.matmul %34, %35, %cst_33 {dimension_numbers = #tpu.dot_dimension_numbers<[1], [0], [0], [1], [0, 0, 1, 1], [], []>} : vector<8x12xf32>, vector<12x64xf32>, vector<8x64xf32> -> vector<8x64xf32>
    %c0_34 = arith.constant 0 : index
    %c0_35 = arith.constant 0 : index
    %37 = vector.load %arg13[%c0_34, %c0_35] : memref<1x64xf32, #tpu.memory_space<vmem>>, vector<1x64xf32>
    %38 = vector.broadcast %37 : vector<1x64xf32> to vector<8x64xf32>
    %39 = arith.addf %36, %38 : vector<8x64xf32>
    %cst_36 = arith.constant 0.000000e+00 : f32
    %40 = vector.broadcast %cst_36 : f32 to vector<8x64xf32>
    %41 = arith.maximumf %39, %40 : vector<8x64xf32>
    %c0_37 = arith.constant 0 : index
    %c0_38 = arith.constant 0 : index
    %42 = vector.load %arg14[%c0_37, %c0_38] : memref<64x128xf32, #tpu.memory_space<vmem>>, vector<64x128xf32>
    %cst_39 = arith.constant dense<0.000000e+00> : vector<8x128xf32>
    %43 = tpu.matmul %41, %42, %cst_39 {dimension_numbers = #tpu.dot_dimension_numbers<[1], [0], [0], [1], [0, 0, 1, 1], [], []>} : vector<8x64xf32>, vector<64x128xf32>, vector<8x128xf32> -> vector<8x128xf32>
    %c0_40 = arith.constant 0 : index
    %c0_41 = arith.constant 0 : index
    %44 = vector.load %arg15[%c0_40, %c0_41] : memref<1x128xf32, #tpu.memory_space<vmem>>, vector<1x128xf32>
    %45 = vector.broadcast %44 : vector<1x128xf32> to vector<8x128xf32>
    %46 = arith.addf %43, %45 : vector<8x128xf32>
    %cst_42 = arith.constant 0.000000e+00 : f32
    %47 = vector.broadcast %cst_42 : f32 to vector<8x128xf32>
    %48 = arith.maximumf %46, %47 : vector<8x128xf32>
    %49 = arith.truncf %48 : vector<8x128xf32> to vector<8x128xbf16>
    %c0_43 = arith.constant 0 : index
    %c0_44 = arith.constant 0 : index
    %50 = vector.load %arg16[%c0_43, %c0_44] : memref<128x8192xbf16, #tpu.memory_space<vmem>>, vector<128x2048xbf16>
    %cst_45 = arith.constant dense<0.000000e+00> : vector<8x2048xf32>
    %51 = tpu.matmul %49, %50, %cst_45 {dimension_numbers = #tpu.dot_dimension_numbers<[1], [0], [0], [1], [0, 0, 1, 1], [], []>} : vector<8x128xbf16>, vector<128x2048xbf16>, vector<8x2048xf32> -> vector<8x2048xf32>
    %c0_46 = arith.constant 0 : index
    %c0_47 = arith.constant 0 : index
    %52 = vector.load %arg17[%c0_46, %c0_47] : memref<1x8192xf32, #tpu.memory_space<vmem>>, vector<1x2048xf32>
    %53 = vector.broadcast %52 : vector<1x2048xf32> to vector<8x2048xf32>
    %54 = arith.addf %51, %53 : vector<8x2048xf32>
    %cst_48 = arith.constant 0.000000e+00 : f32
    %55 = vector.broadcast %cst_48 : f32 to vector<8x2048xf32>
    %56 = arith.subf %55, %54 : vector<8x2048xf32>
    %57 = math.exp %56 : vector<8x2048xf32>
    %cst_49 = arith.constant 1.000000e+00 : f32
    %58 = vector.broadcast %cst_49 : f32 to vector<8x2048xf32>
    %59 = arith.addf %58, %57 : vector<8x2048xf32>
    %60 = tpu.reciprocal %59 {approx = true} : vector<8x2048xf32> -> vector<8x2048xf32>
    %61 = arith.truncf %60 : vector<8x2048xf32> to vector<8x2048xbf16>
    %c0_50 = arith.constant 0 : index
    %c0_51 = arith.constant 0 : index
    %62 = vector.load %arg19[%c0_50, %c0_51] : memref<8x8192xbf16, #tpu.memory_space<vmem>>, vector<8x2048xbf16>
    tpu.vector_store %arg19[%c0_50, %c0_51], %61 {strides = array<i32>} : memref<8x8192xbf16, #tpu.memory_space<vmem>>, vector<8x2048xbf16>,
    %c0_52 = arith.constant 0 : index
    %c2048 = arith.constant 2048 : index
    %63 = vector.load %arg16[%c0_52, %c2048] : memref<128x8192xbf16, #tpu.memory_space<vmem>>, vector<128x2048xbf16>
    %cst_53 = arith.constant dense<0.000000e+00> : vector<8x2048xf32>
    %64 = tpu.matmul %49, %63, %cst_53 {dimension_numbers = #tpu.dot_dimension_numbers<[1], [0], [0], [1], [0, 0, 1, 1], [], []>} : vector<8x128xbf16>, vector<128x2048xbf16>, vector<8x2048xf32> -> vector<8x2048xf32>
    %c0_54 = arith.constant 0 : index
    %c2048_55 = arith.constant 2048 : index
    %65 = vector.load %arg17[%c0_54, %c2048_55] : memref<1x8192xf32, #tpu.memory_space<vmem>>, vector<1x2048xf32>
    %66 = vector.broadcast %65 : vector<1x2048xf32> to vector<8x2048xf32>
    %67 = arith.addf %64, %66 : vector<8x2048xf32>
    %cst_56 = arith.constant 0.000000e+00 : f32
    %68 = vector.broadcast %cst_56 : f32 to vector<8x2048xf32>
    %69 = arith.subf %68, %67 : vector<8x2048xf32>
    %70 = math.exp %69 : vector<8x2048xf32>
    %cst_57 = arith.constant 1.000000e+00 : f32
    %71 = vector.broadcast %cst_57 : f32 to vector<8x2048xf32>
    %72 = arith.addf %71, %70 : vector<8x2048xf32>
    %73 = tpu.reciprocal %72 {approx = true} : vector<8x2048xf32> -> vector<8x2048xf32>
    %74 = arith.truncf %73 : vector<8x2048xf32> to vector<8x2048xbf16>
    %c0_58 = arith.constant 0 : index
    %c2048_59 = arith.constant 2048 : index
    %75 = vector.load %arg19[%c0_58, %c2048_59] : memref<8x8192xbf16, #tpu.memory_space<vmem>>, vector<8x2048xbf16>
    tpu.vector_store %arg19[%c0_58, %c2048_59], %74 {strides = array<i32>} : memref<8x8192xbf16, #tpu.memory_space<vmem>>, vector<8x2048xbf16>,
    %c0_60 = arith.constant 0 : index
    %c4096 = arith.constant 4096 : index
    %76 = vector.load %arg16[%c0_60, %c4096] : memref<128x8192xbf16, #tpu.memory_space<vmem>>, vector<128x2048xbf16>
    %cst_61 = arith.constant dense<0.000000e+00> : vector<8x2048xf32>
    %77 = tpu.matmul %49, %76, %cst_61 {dimension_numbers = #tpu.dot_dimension_numbers<[1], [0], [0], [1], [0, 0, 1, 1], [], []>} : vector<8x128xbf16>, vector<128x2048xbf16>, vector<8x2048xf32> -> vector<8x2048xf32>
    %c0_62 = arith.constant 0 : index
    %c4096_63 = arith.constant 4096 : index
    %78 = vector.load %arg17[%c0_62, %c4096_63] : memref<1x8192xf32, #tpu.memory_space<vmem>>, vector<1x2048xf32>
    %79 = vector.broadcast %78 : vector<1x2048xf32> to vector<8x2048xf32>
    %80 = arith.addf %77, %79 : vector<8x2048xf32>
    %cst_64 = arith.constant 0.000000e+00 : f32
    %81 = vector.broadcast %cst_64 : f32 to vector<8x2048xf32>
    %82 = arith.subf %81, %80 : vector<8x2048xf32>
    %83 = math.exp %82 : vector<8x2048xf32>
    %cst_65 = arith.constant 1.000000e+00 : f32
    %84 = vector.broadcast %cst_65 : f32 to vector<8x2048xf32>
    %85 = arith.addf %84, %83 : vector<8x2048xf32>
    %86 = tpu.reciprocal %85 {approx = true} : vector<8x2048xf32> -> vector<8x2048xf32>
    %87 = arith.truncf %86 : vector<8x2048xf32> to vector<8x2048xbf16>
    %c0_66 = arith.constant 0 : index
    %c4096_67 = arith.constant 4096 : index
    %88 = vector.load %arg19[%c0_66, %c4096_67] : memref<8x8192xbf16, #tpu.memory_space<vmem>>, vector<8x2048xbf16>
    tpu.vector_store %arg19[%c0_66, %c4096_67], %87 {strides = array<i32>} : memref<8x8192xbf16, #tpu.memory_space<vmem>>, vector<8x2048xbf16>,
    %c0_68 = arith.constant 0 : index
    %c6144 = arith.constant 6144 : index
    %89 = vector.load %arg16[%c0_68, %c6144] : memref<128x8192xbf16, #tpu.memory_space<vmem>>, vector<128x2048xbf16>
    %cst_69 = arith.constant dense<0.000000e+00> : vector<8x2048xf32>
    %90 = tpu.matmul %49, %89, %cst_69 {dimension_numbers = #tpu.dot_dimension_numbers<[1], [0], [0], [1], [0, 0, 1, 1], [], []>} : vector<8x128xbf16>, vector<128x2048xbf16>, vector<8x2048xf32> -> vector<8x2048xf32>
    %c0_70 = arith.constant 0 : index
    %c6144_71 = arith.constant 6144 : index
    %91 = vector.load %arg17[%c0_70, %c6144_71] : memref<1x8192xf32, #tpu.memory_space<vmem>>, vector<1x2048xf32>
    %92 = vector.broadcast %91 : vector<1x2048xf32> to vector<8x2048xf32>
    %93 = arith.addf %90, %92 : vector<8x2048xf32>
    %cst_72 = arith.constant 0.000000e+00 : f32
    %94 = vector.broadcast %cst_72 : f32 to vector<8x2048xf32>
    %95 = arith.subf %94, %93 : vector<8x2048xf32>
    %96 = math.exp %95 : vector<8x2048xf32>
    %cst_73 = arith.constant 1.000000e+00 : f32
    %97 = vector.broadcast %cst_73 : f32 to vector<8x2048xf32>
    %98 = arith.addf %97, %96 : vector<8x2048xf32>
    %99 = tpu.reciprocal %98 {approx = true} : vector<8x2048xf32> -> vector<8x2048xf32>
    %100 = arith.truncf %99 : vector<8x2048xf32> to vector<8x2048xbf16>
    %c0_74 = arith.constant 0 : index
    %c6144_75 = arith.constant 6144 : index
    %101 = vector.load %arg19[%c0_74, %c6144_75] : memref<8x8192xbf16, #tpu.memory_space<vmem>>, vector<8x2048xbf16>
    tpu.vector_store %arg19[%c0_74, %c6144_75], %100 {strides = array<i32>} : memref<8x8192xbf16, #tpu.memory_space<vmem>>, vector<8x2048xbf16>,
    return
  }
  func.func @transform_0(%arg0: i32) -> (i32, i32) {
    %c0_i32 = arith.constant 0 : i32
    %c0_i32_0 = arith.constant 0 : i32
    return %arg0, %c0_i32 : i32, i32
  }
  func.func @transform_1(%arg0: i32) -> (i32, i32) {
    %c0_i32 = arith.constant 0 : i32
    %c0_i32_0 = arith.constant 0 : i32
    %c0_i32_1 = arith.constant 0 : i32
    return %c0_i32, %c0_i32_0 : i32, i32
  }
  func.func @transform_2(%arg0: i32) -> (i32, i32) {
    %c0_i32 = arith.constant 0 : i32
    %c0_i32_0 = arith.constant 0 : i32
    %c0_i32_1 = arith.constant 0 : i32
    return %c0_i32, %c0_i32_0 : i32, i32
  }
  func.func @transform_3(%arg0: i32) -> (i32, i32) {
    %c0_i32 = arith.constant 0 : i32
    %c0_i32_0 = arith.constant 0 : i32
    %c0_i32_1 = arith.constant 0 : i32
    return %c0_i32, %c0_i32_0 : i32, i32
  }
  func.func @transform_4(%arg0: i32) -> (i32, i32) {
    %c0_i32 = arith.constant 0 : i32
    %c0_i32_0 = arith.constant 0 : i32
    %c0_i32_1 = arith.constant 0 : i32
    return %c0_i32, %c0_i32_0 : i32, i32
  }
  func.func @transform_5(%arg0: i32) -> (i32, i32) {
    %c0_i32 = arith.constant 0 : i32
    %c0_i32_0 = arith.constant 0 : i32
    %c0_i32_1 = arith.constant 0 : i32
    return %c0_i32, %c0_i32_0 : i32, i32
  }
  func.func @transform_6(%arg0: i32) -> (i32, i32) {
    %c0_i32 = arith.constant 0 : i32
    %c0_i32_0 = arith.constant 0 : i32
    %c0_i32_1 = arith.constant 0 : i32
    return %c0_i32, %c0_i32_0 : i32, i32
  }
  func.func @transform_7(%arg0: i32) -> (i32, i32) {
    %c0_i32 = arith.constant 0 : i32
    %c0_i32_0 = arith.constant 0 : i32
    %c0_i32_1 = arith.constant 0 : i32
    return %c0_i32, %c0_i32_0 : i32, i32
  }
  func.func @transform_8(%arg0: i32) -> (i32, i32) {
    %c0_i32 = arith.constant 0 : i32
    %c0_i32_0 = arith.constant 0 : i32
    %c0_i32_1 = arith.constant 0 : i32
    return %c0_i32, %c0_i32_0 : i32, i32
  }
  func.func @transform_9(%arg0: i32) -> (i32, i32) {
    %c0_i32 = arith.constant 0 : i32
    %c0_i32_0 = arith.constant 0 : i32
    %c0_i32_1 = arith.constant 0 : i32
    return %c0_i32, %c0_i32_0 : i32, i32
  }
  func.func @transform_10(%arg0: i32) -> (i32, i32) {
    %c0_i32 = arith.constant 0 : i32
    %c0_i32_0 = arith.constant 0 : i32
    %c0_i32_1 = arith.constant 0 : i32
    return %c0_i32, %c0_i32_0 : i32, i32
  }
  func.func @transform_11(%arg0: i32) -> (i32, i32) {
    %c0_i32 = arith.constant 0 : i32
    %c0_i32_0 = arith.constant 0 : i32
    %c0_i32_1 = arith.constant 0 : i32
    return %c0_i32, %c0_i32_0 : i32, i32
  }
  func.func @transform_12(%arg0: i32) -> (i32, i32) {
    %c0_i32 = arith.constant 0 : i32
    %c0_i32_0 = arith.constant 0 : i32
    %c0_i32_1 = arith.constant 0 : i32
    return %c0_i32, %c0_i32_0 : i32, i32
  }
  func.func @transform_13(%arg0: i32) -> (i32, i32) {
    %c0_i32 = arith.constant 0 : i32
    %c0_i32_0 = arith.constant 0 : i32
    %c0_i32_1 = arith.constant 0 : i32
    return %c0_i32, %c0_i32_0 : i32, i32
  }
  func.func @transform_14(%arg0: i32) -> (i32, i32) {
    %c0_i32 = arith.constant 0 : i32
    %c0_i32_0 = arith.constant 0 : i32
    %c0_i32_1 = arith.constant 0 : i32
    return %c0_i32, %c0_i32_0 : i32, i32
  }
  func.func @transform_15(%arg0: i32) -> (i32, i32) {
    %c0_i32 = arith.constant 0 : i32
    %c0_i32_0 = arith.constant 0 : i32
    %c0_i32_1 = arith.constant 0 : i32
    return %c0_i32, %c0_i32_0 : i32, i32
  }
  func.func @transform_16(%arg0: i32) -> (i32, i32) {
    %c0_i32 = arith.constant 0 : i32
    %c0_i32_0 = arith.constant 0 : i32
    %c0_i32_1 = arith.constant 0 : i32
    return %c0_i32, %c0_i32_0 : i32, i32
  }
  func.func @transform_17(%arg0: i32) -> (i32, i32) {
    %c0_i32 = arith.constant 0 : i32
    %c0_i32_0 = arith.constant 0 : i32
    return %arg0, %c0_i32 : i32, i32
  }
  func.func @transform_18(%arg0: i32) -> (i32, i32) {
    %c0_i32 = arith.constant 0 : i32
    %c0_i32_0 = arith.constant 0 : i32
    return %arg0, %c0_i32 : i32, i32
  }
}

</mosaic_0001>

<llo_original>
// kernel: tpu_custom_call.1
$region0: #{tpu_custom_call.1}
  #allocation0 [shape = 'u32[]', space=smem, size = 0x4, offset = 0x4, fixed_abs, tag = 'smem constant byte address 0x4 - core index']
  #allocation1 [shape = 'u32[144,128]{1,0:T(1,128)}', space=vmem, size = 0x12000, scoped, tag = 'internal scratch']
  %s0 = inlined_call_operand.hbm [shape: bf16[8,8192], index: 0, kind: input, shape index: {}]
  %s1 = inlined_call_operand.hbm [shape: bf16[8192,128], index: 1, kind: input, shape index: {}]
  %s2 = inlined_call_operand.hbm [shape: f32[1,128], index: 2, kind: input, shape index: {}]
  %s3 = inlined_call_operand.vmem [shape: f32[128,64], index: 3, kind: input, shape index: {}]
  %s4 = inlined_call_operand.hbm [shape: f32[1,64], index: 4, kind: input, shape index: {}]
  %s5 = inlined_call_operand.vmem [shape: f32[64,12], index: 5, kind: input, shape index: {}]
  %s6 = inlined_call_operand.hbm [shape: f32[1,12], index: 6, kind: input, shape index: {}]
  %s7 = inlined_call_operand.vmem [shape: f32[12,3], index: 7, kind: input, shape index: {}]
  %s8 = inlined_call_operand.hbm [shape: f32[1,3], index: 8, kind: input, shape index: {}]
  %s9 = inlined_call_operand.hbm [shape: f32[3,12], index: 9, kind: input, shape index: {}]
  %s10 = inlined_call_operand.hbm [shape: f32[1,12], index: 10, kind: input, shape index: {}]
  %s11 = inlined_call_operand.hbm [shape: f32[12,64], index: 11, kind: input, shape index: {}]
  %s12 = inlined_call_operand.hbm [shape: f32[1,64], index: 12, kind: input, shape index: {}]
  %s13 = inlined_call_operand.hbm [shape: f32[64,128], index: 13, kind: input, shape index: {}]
  %s14 = inlined_call_operand.hbm [shape: f32[1,128], index: 14, kind: input, shape index: {}]
  %s15 = inlined_call_operand.hbm [shape: bf16[128,8192], index: 15, kind: input, shape index: {}]
  %s16 = inlined_call_operand.hbm [shape: f32[1,8192], index: 16, kind: input, shape index: {}]
  %s17 = inlined_call_operand.vmem [shape: f32[8,3], index: 17, kind: output, shape index: {0}]
  %s18 = inlined_call_operand.hbm [shape: bf16[8,8192], index: 18, kind: output, shape index: {1}]
  %19 = xla_tuple %s17, %s18
  %s20 = sld [smem:[#allocation0]]
  $region142: #{tpu_custom_call.1} parent=0
    _
  %s22 = ssub.s32 1, %s20
  %s23 = scalar_select 0, %s22, %s20
  $region1: #{tpu_custom_call.1} parent=0
    #allocation2 [shape = 'u8[131072]{0}', space=vmem, size = 0x20000, scoped, tag = 'input window, operand 0, single buffered']
    #allocation3 [shape = 's32[1]{0}', space=sflag, size = 0x4, scoped, tag = 'scoped memory for tpu_custom_call.1']
    #allocation4 [shape = 's32[1]{0}', space=sflag, size = 0x4, scoped, tag = 'scoped memory for tpu_custom_call.1']
    #allocation5 [shape = 'u8[2097152]{0}', space=vmem, size = 0x200000, scoped, tag = 'input window, operand 1, single buffered']
    #allocation6 [shape = 's32[1]{0}', space=sflag, size = 0x4, scoped, tag = 'scoped memory for tpu_custom_call.1']
    #allocation7 [shape = 'u8[512]{0}', space=vmem, size = 0x400, scoped, tag = 'input window, operand 2, single buffered']
    #allocation8 [shape = 'u8[512]{0}', space=vmem, size = 0x400, scoped, tag = 'input window, operand 4, single buffered']
    #allocation9 [shape = 's32[1]{0}', space=sflag, size = 0x4, scoped, tag = 'scoped memory for tpu_custom_call.1']
    #allocation10 [shape = 'u8[512]{0}', space=vmem, size = 0x400, scoped, tag = 'input window, operand 6, single buffered']
    #allocation11 [shape = 'u8[512]{0}', space=vmem, size = 0x400, scoped, tag = 'input window, operand 8, single buffered']
    #allocation12 [shape = 's32[1]{0}', space=sflag, size = 0x4, scoped, tag = 'scoped memory for tpu_custom_call.1']
    #allocation13 [shape = 'u8[2048]{0}', space=vmem, size = 0x800, scoped, tag = 'input window, operand 9, single buffered']
    #allocation14 [shape = 'u8[512]{0}', space=vmem, size = 0x400, scoped, tag = 'input window, operand 10, single buffered']
    #allocation15 [shape = 's32[1]{0}', space=sflag, size = 0x4, scoped, tag = 'scoped memory for tpu_custom_call.1']
    #allocation16 [shape = 'u8[8192]{0}', space=vmem, size = 0x2000, scoped, tag = 'input window, operand 11, single buffered']
    #allocation17 [shape = 'u8[512]{0}', space=vmem, size = 0x400, scoped, tag = 'input window, operand 12, single buffered']
    #allocation18 [shape = 's32[1]{0}', space=sflag, size = 0x4, scoped, tag = 'scoped memory for tpu_custom_call.1']
    #allocation19 [shape = 'u8[32768]{0}', space=vmem, size = 0x8000, scoped, tag = 'input window, operand 13, single buffered']
    #allocation20 [shape = 'u8[512]{0}', space=vmem, size = 0x400, scoped, tag = 'input window, operand 14, single buffered']
    #allocation21 [shape = 's32[1]{0}', space=sflag, size = 0x4, scoped, tag = 'scoped memory for tpu_custom_call.1']
    #allocation22 [shape = 'u8[2097152]{0}', space=vmem, size = 0x200000, scoped, tag = 'input window, operand 15, single buffered']
    #allocation23 [shape = 'u8[32768]{0}', space=vmem, size = 0x8000, scoped, tag = 'input window, operand 16, single buffered']
    #allocation24 [shape = 's32[1]{0}', space=sflag, size = 0x4, scoped, tag = 'scoped memory for tpu_custom_call.1']
    #allocation25 [shape = 'u8[131072]{0}', space=vmem, size = 0x20000, scoped, tag = 'output window, operand 1, single buffered']
    %24 = vsyncpa [#allocation3], 0
    %25 = vsyncpa [#allocation6], 0
    %26 = vsyncpa [#allocation9], 0
    %27 = vsyncpa [#allocation12], 0
    %28 = vsyncpa [#allocation15], 0
    %29 = vsyncpa [#allocation18], 0
    %30 = vsyncpa [#allocation21], 0
    %31 = vsyncpa [#allocation24], 0
    %32 = vsyncpa [#allocation4], 0
    // Predicated region
    $region2: #{tpu_custom_call.1} parent=1 // pred_check
      _
    $region3: #{tpu_custom_call.1} parent=1 // pred_check_branch
      %34 = sbr.rel (0) target = $region5
    $region4: #{tpu_custom_call.1} parent=1 // pred_region
      %s36 = ssub.s32 4096, 4096
      %37 = vsyncadd [#allocation3], %s36
      %s39 = sshll.u32 [#allocation2], 4
      %s40 = int_to_ptr.vmem [resolvable:$true] %s39
      %42 = dma.hbm_to_vmem [thread:$0]  %s0, 4096, %s40, [#allocation3]
    $region5: #{tpu_custom_call.1} parent=1 // pred_fallthru
      _
    // Predicated region
    $region6: #{tpu_custom_call.1} parent=1 // pred_check
      _
    $region7: #{tpu_custom_call.1} parent=1 // pred_check_branch
      %44 = sbr.rel (0) target = $region9
    $region8: #{tpu_custom_call.1} parent=1 // pred_region
      %s46 = ssub.s32 65536, 65536
      %47 = vsyncadd [#allocation6], %s46
      %s48 = sshll.u32 [#allocation5], 4
      %s49 = int_to_ptr.vmem [resolvable:$true] %s48
      %54 = dma.hbm_to_vmem [thread:$0]  %s1, 65536, %s49, [#allocation6], 64, 64, 4
    $region9: #{tpu_custom_call.1} parent=1 // pred_fallthru
      _
    // Predicated region
    $region10: #{tpu_custom_call.1} parent=1 // pred_check
      _
    $region11: #{tpu_custom_call.1} parent=1 // pred_check_branch
      %56 = sbr.rel (0) target = $region13
    $region12: #{tpu_custom_call.1} parent=1 // pred_region
      %s58 = ssub.s32 16, 16
      %59 = vsyncadd [#allocation6], %s58
      %s61 = sshll.u32 [#allocation7], 4
      %s62 = int_to_ptr.vmem [resolvable:$true] %s61
      %64 = dma.hbm_to_vmem [thread:$0]  %s2, 16, %s62, [#allocation6]
    $region13: #{tpu_custom_call.1} parent=1 // pred_fallthru
      _
    // Predicated region
    $region14: #{tpu_custom_call.1} parent=1 // pred_check
      _
    $region15: #{tpu_custom_call.1} parent=1 // pred_check_branch
      %66 = sbr.rel (0) target = $region17
    $region16: #{tpu_custom_call.1} parent=1 // pred_region
      _
    $region17: #{tpu_custom_call.1} parent=1 // pred_fallthru
      _
    // Predicated region
    $region18: #{tpu_custom_call.1} parent=1 // pred_check
      _
    $region19: #{tpu_custom_call.1} parent=1 // pred_check_branch
      %68 = sbr.rel (0) target = $region21
    $region20: #{tpu_custom_call.1} parent=1 // pred_region
      %s70 = ssub.s32 16, 16
      %71 = vsyncadd [#allocation9], %s70
      %s73 = sshll.u32 [#allocation8], 4
      %s74 = int_to_ptr.vmem [resolvable:$true] %s73
      %76 = dma.hbm_to_vmem [thread:$0]  %s4, 16, %s74, [#allocation9]
    $region21: #{tpu_custom_call.1} parent=1 // pred_fallthru
      _
    // Predicated region
    $region22: #{tpu_custom_call.1} parent=1 // pred_check
      _
    $region23: #{tpu_custom_call.1} parent=1 // pred_check_branch
      %78 = sbr.rel (0) target = $region25
    $region24: #{tpu_custom_call.1} parent=1 // pred_region
      _
    $region25: #{tpu_custom_call.1} parent=1 // pred_fallthru
      _
    // Predicated region
    $region26: #{tpu_custom_call.1} parent=1 // pred_check
      _
    $region27: #{tpu_custom_call.1} parent=1 // pred_check_branch
      %80 = sbr.rel (0) target = $region29
    $region28: #{tpu_custom_call.1} parent=1 // pred_region
      %s82 = ssub.s32 16, 16
      %83 = vsyncadd [#allocation9], %s82
      %s85 = sshll.u32 [#allocation10], 4
      %s86 = int_to_ptr.vmem [resolvable:$true] %s85
      %88 = dma.hbm_to_vmem [thread:$0]  %s6, 16, %s86, [#allocation9]
    $region29: #{tpu_custom_call.1} parent=1 // pred_fallthru
      _
    // Predicated region
    $region30: #{tpu_custom_call.1} parent=1 // pred_check
      _
    $region31: #{tpu_custom_call.1} parent=1 // pred_check_branch
      %90 = sbr.rel (0) target = $region33
    $region32: #{tpu_custom_call.1} parent=1 // pred_region
      _
    $region33: #{tpu_custom_call.1} parent=1 // pred_fallthru
      _
    // Predicated region
    $region34: #{tpu_custom_call.1} parent=1 // pred_check
      _
    $region35: #{tpu_custom_call.1} parent=1 // pred_check_branch
      %92 = sbr.rel (0) target = $region37
    $region36: #{tpu_custom_call.1} parent=1 // pred_region
      %s94 = ssub.s32 16, 16
      %95 = vsyncadd [#allocation12], %s94
      %s97 = sshll.u32 [#allocation11], 4
      %s98 = int_to_ptr.vmem [resolvable:$true] %s97
      %100 = dma.hbm_to_vmem [thread:$0]  %s8, 16, %s98, [#allocation12]
    $region37: #{tpu_custom_call.1} parent=1 // pred_fallthru
      _
    // Predicated region
    $region38: #{tpu_custom_call.1} parent=1 // pred_check
      _
    $region39: #{tpu_custom_call.1} parent=1 // pred_check_branch
      %102 = sbr.rel (0) target = $region41
    $region40: #{tpu_custom_call.1} parent=1 // pred_region
      %s104 = ssub.s32 64, 64
      %105 = vsyncadd [#allocation12], %s104
      %s107 = sshll.u32 [#allocation13], 4
      %s108 = int_to_ptr.vmem [resolvable:$true] %s107
      %110 = dma.hbm_to_vmem [thread:$0]  %s9, 64, %s108, [#allocation12]
    $region41: #{tpu_custom_call.1} parent=1 // pred_fallthru
      _
    // Predicated region
    $region42: #{tpu_custom_call.1} parent=1 // pred_check
      _
    $region43: #{tpu_custom_call.1} parent=1 // pred_check_branch
      %112 = sbr.rel (0) target = $region45
    $region44: #{tpu_custom_call.1} parent=1 // pred_region
      %s114 = ssub.s32 16, 16
      %115 = vsyncadd [#allocation15], %s114
      %s117 = sshll.u32 [#allocation14], 4
      %s118 = int_to_ptr.vmem [resolvable:$true] %s117
      %120 = dma.hbm_to_vmem [thread:$0]  %s10, 16, %s118, [#allocation15]
    $region45: #{tpu_custom_call.1} parent=1 // pred_fallthru
      _
    // Predicated region
    $region46: #{tpu_custom_call.1} parent=1 // pred_check
      _
    $region47: #{tpu_custom_call.1} parent=1 // pred_check_branch
      %122 = sbr.rel (0) target = $region49
    $region48: #{tpu_custom_call.1} parent=1 // pred_region
      %s124 = ssub.s32 256, 256
      %125 = vsyncadd [#allocation15], %s124
      %s126 = sshll.u32 [#allocation16], 4
      %s127 = int_to_ptr.vmem [resolvable:$true] %s126
      %132 = dma.hbm_to_vmem [thread:$0]  %s11, 256, %s127, [#allocation15], 128, 128, 8
    $region49: #{tpu_custom_call.1} parent=1 // pred_fallthru
      _
    // Predicated region
    $region50: #{tpu_custom_call.1} parent=1 // pred_check
      _
    $region51: #{tpu_custom_call.1} parent=1 // pred_check_branch
      %134 = sbr.rel (0) target = $region53
    $region52: #{tpu_custom_call.1} parent=1 // pred_region
      %s136 = ssub.s32 16, 16
      %137 = vsyncadd [#allocation18], %s136
      %s139 = sshll.u32 [#allocation17], 4
      %s140 = int_to_ptr.vmem [resolvable:$true] %s139
      %142 = dma.hbm_to_vmem [thread:$0]  %s12, 16, %s140, [#allocation18]
    $region53: #{tpu_custom_call.1} parent=1 // pred_fallthru
      _
    // Predicated region
    $region54: #{tpu_custom_call.1} parent=1 // pred_check
      _
    $region55: #{tpu_custom_call.1} parent=1 // pred_check_branch
      %144 = sbr.rel (0) target = $region57
    $region56: #{tpu_custom_call.1} parent=1 // pred_region
      %s146 = ssub.s32 1024, 1024
      %147 = vsyncadd [#allocation18], %s146
      %s148 = sshll.u32 [#allocation19], 4
      %s149 = int_to_ptr.vmem [resolvable:$true] %s148
      %154 = dma.hbm_to_vmem [thread:$0]  %s13, 1024, %s149, [#allocation18], 128, 128, 8
    $region57: #{tpu_custom_call.1} parent=1 // pred_fallthru
      _
    // Predicated region
    $region58: #{tpu_custom_call.1} parent=1 // pred_check
      _
    $region59: #{tpu_custom_call.1} parent=1 // pred_check_branch
      %156 = sbr.rel (0) target = $region61
    $region60: #{tpu_custom_call.1} parent=1 // pred_region
      %s158 = ssub.s32 16, 16
      %159 = vsyncadd [#allocation21], %s158
      %s161 = sshll.u32 [#allocation20], 4
      %s162 = int_to_ptr.vmem [resolvable:$true] %s161
      %164 = dma.hbm_to_vmem [thread:$0]  %s14, 16, %s162, [#allocation21]
    $region61: #{tpu_custom_call.1} parent=1 // pred_fallthru
      _
    // Predicated region
    $region62: #{tpu_custom_call.1} parent=1 // pred_check
      _
    $region63: #{tpu_custom_call.1} parent=1 // pred_check_branch
      %166 = sbr.rel (0) target = $region65
    $region64: #{tpu_custom_call.1} parent=1 // pred_region
      %s168 = ssub.s32 65536, 65536
      %169 = vsyncadd [#allocation21], %s168
      %s170 = sshll.u32 [#allocation22], 4
      %s171 = int_to_ptr.vmem [resolvable:$true] %s170
      %176 = dma.hbm_to_vmem [thread:$0]  %s15, 65536, %s171, [#allocation21], 4096, 4096, 256
    $region65: #{tpu_custom_call.1} parent=1 // pred_fallthru
      _
    // Predicated region
    $region66: #{tpu_custom_call.1} parent=1 // pred_check
      _
    $region67: #{tpu_custom_call.1} parent=1 // pred_check_branch
      %178 = sbr.rel (0) target = $region69
    $region68: #{tpu_custom_call.1} parent=1 // pred_region
      %s180 = ssub.s32 1024, 1024
      %181 = vsyncadd [#allocation24], %s180
      %s183 = sshll.u32 [#allocation23], 4
      %s184 = int_to_ptr.vmem [resolvable:$true] %s183
      %186 = dma.hbm_to_vmem [thread:$0]  %s16, 1024, %s184, [#allocation24]
    $region69: #{tpu_custom_call.1} parent=1 // pred_fallthru
      _
    // Predicated region
    $region70: #{tpu_custom_call.1} parent=1 // pred_check
      _
    $region71: #{tpu_custom_call.1} parent=1 // pred_check_branch
      %188 = sbr.rel (0) target = $region73
    $region72: #{tpu_custom_call.1} parent=1 // pred_region
      %189 = dma.done [#allocation3], 4096
    $region73: #{tpu_custom_call.1} parent=1 // pred_fallthru
      _
    // Predicated region
    $region74: #{tpu_custom_call.1} parent=1 // pred_check
      _
    $region75: #{tpu_custom_call.1} parent=1 // pred_check_branch
      %191 = sbr.rel (0) target = $region77
    $region76: #{tpu_custom_call.1} parent=1 // pred_region
      %192 = dma.done [#allocation6], 65536
    $region77: #{tpu_custom_call.1} parent=1 // pred_fallthru
      _
    // Predicated region
    $region78: #{tpu_custom_call.1} parent=1 // pred_check
      _
    $region79: #{tpu_custom_call.1} parent=1 // pred_check_branch
      %194 = sbr.rel (0) target = $region81
    $region80: #{tpu_custom_call.1} parent=1 // pred_region
      %195 = dma.done [#allocation6], 16
    $region81: #{tpu_custom_call.1} parent=1 // pred_fallthru
      _
    // Predicated region
    $region82: #{tpu_custom_call.1} parent=1 // pred_check
      _
    $region83: #{tpu_custom_call.1} parent=1 // pred_check_branch
      %197 = sbr.rel (0) target = $region85
    $region84: #{tpu_custom_call.1} parent=1 // pred_region
      %198 = dma.done [#allocation9], 16
    $region85: #{tpu_custom_call.1} parent=1 // pred_fallthru
      _
    // Predicated region
    $region86: #{tpu_custom_call.1} parent=1 // pred_check
      _
    $region87: #{tpu_custom_call.1} parent=1 // pred_check_branch
      %200 = sbr.rel (0) target = $region89
    $region88: #{tpu_custom_call.1} parent=1 // pred_region
      %201 = dma.done [#allocation9], 16
    $region89: #{tpu_custom_call.1} parent=1 // pred_fallthru
      _
    // Predicated region
    $region90: #{tpu_custom_call.1} parent=1 // pred_check
      _
    $region91: #{tpu_custom_call.1} parent=1 // pred_check_branch
      %203 = sbr.rel (0) target = $region93
    $region92: #{tpu_custom_call.1} parent=1 // pred_region
      %204 = dma.done [#allocation12], 16
    $region93: #{tpu_custom_call.1} parent=1 // pred_fallthru
      _
    // Predicated region
    $region94: #{tpu_custom_call.1} parent=1 // pred_check
      _
    $region95: #{tpu_custom_call.1} parent=1 // pred_check_branch
      %206 = sbr.rel (0) target = $region97
    $region96: #{tpu_custom_call.1} parent=1 // pred_region
      %207 = dma.done [#allocation12], 64
    $region97: #{tpu_custom_call.1} parent=1 // pred_fallthru
      _
    // Predicated region
    $region98: #{tpu_custom_call.1} parent=1 // pred_check
      _
    $region99: #{tpu_custom_call.1} parent=1 // pred_check_branch
      %209 = sbr.rel (0) target = $region101
    $region100: #{tpu_custom_call.1} parent=1 // pred_region
      %210 = dma.done [#allocation15], 16
    $region101: #{tpu_custom_call.1} parent=1 // pred_fallthru
      _
    // Predicated region
    $region102: #{tpu_custom_call.1} parent=1 // pred_check
      _
    $region103: #{tpu_custom_call.1} parent=1 // pred_check_branch
      %212 = sbr.rel (0) target = $region105
    $region104: #{tpu_custom_call.1} parent=1 // pred_region
      %213 = dma.done [#allocation15], 256
    $region105: #{tpu_custom_call.1} parent=1 // pred_fallthru
      _
    // Predicated region
    $region106: #{tpu_custom_call.1} parent=1 // pred_check
      _
    $region107: #{tpu_custom_call.1} parent=1 // pred_check_branch
      %215 = sbr.rel (0) target = $region109
    $region108: #{tpu_custom_call.1} parent=1 // pred_region
      %216 = dma.done [#allocation18], 16
    $region109: #{tpu_custom_call.1} parent=1 // pred_fallthru
      _
    // Predicated region
    $region110: #{tpu_custom_call.1} parent=1 // pred_check
      _
    $region111: #{tpu_custom_call.1} parent=1 // pred_check_branch
      %218 = sbr.rel (0) target = $region113
    $region112: #{tpu_custom_call.1} parent=1 // pred_region
      %219 = dma.done [#allocation18], 1024
    $region113: #{tpu_custom_call.1} parent=1 // pred_fallthru
      _
    // Predicated region
    $region114: #{tpu_custom_call.1} parent=1 // pred_check
      _
    $region115: #{tpu_custom_call.1} parent=1 // pred_check_branch
      %221 = sbr.rel (0) target = $region117
    $region116: #{tpu_custom_call.1} parent=1 // pred_region
      %222 = dma.done [#allocation21], 16
    $region117: #{tpu_custom_call.1} parent=1 // pred_fallthru
      _
    // Predicated region
    $region118: #{tpu_custom_call.1} parent=1 // pred_check
      _
    $region119: #{tpu_custom_call.1} parent=1 // pred_check_branch
      %224 = sbr.rel (0) target = $region121
    $region120: #{tpu_custom_call.1} parent=1 // pred_region
      %225 = dma.done [#allocation21], 65536
    $region121: #{tpu_custom_call.1} parent=1 // pred_fallthru
      _
    // Predicated region
    $region122: #{tpu_custom_call.1} parent=1 // pred_check
      _
    $region123: #{tpu_custom_call.1} parent=1 // pred_check_branch
      %227 = sbr.rel (0) target = $region125
    $region124: #{tpu_custom_call.1} parent=1 // pred_region
      %228 = dma.done [#allocation24], 1024
    $region125: #{tpu_custom_call.1} parent=1 // pred_fallthru
      _
    %v230 = vld [vmem:[#allocation2] sm:$0xff]
    %v231 = vld [vmem:[#allocation2 + $0x8] sm:$0xff]
    %v232 = vld [vmem:[#allocation2 + $0x10] sm:$0xff]
    %v233 = vld [vmem:[#allocation2 + $0x18] sm:$0xff]
    %v234 = vld [vmem:[#allocation2 + $0x20] sm:$0xff]
    %v235 = vld [vmem:[#allocation2 + $0x28] sm:$0xff]
    %v236 = vld [vmem:[#allocation2 + $0x30] sm:$0xff]
    %v237 = vld [vmem:[#allocation2 + $0x38] sm:$0xff]
    %v238 = vld [vmem:[#allocation2 + $0x40] sm:$0xff]
    %v239 = vld [vmem:[#allocation2 + $0x48] sm:$0xff]
    %v240 = vld [vmem:[#allocation2 + $0x50] sm:$0xff]
    %v241 = vld [vmem:[#allocation2 + $0x58] sm:$0xff]
    %v242 = vld [vmem:[#allocation2 + $0x60] sm:$0xff]
    %v243 = vld [vmem:[#allocation2 + $0x68] sm:$0xff]
    %v244 = vld [vmem:[#allocation2 + $0x70] sm:$0xff]
    %v245 = vld [vmem:[#allocation2 + $0x78] sm:$0xff]
    %v246 = vld [vmem:[#allocation2 + $0x80] sm:$0xff]
    %v247 = vld [vmem:[#allocation2 + $0x88] sm:$0xff]
    %v248 = vld [vmem:[#allocation2 + $0x90] sm:$0xff]
    %v249 = vld [vmem:[#allocation2 + $0x98] sm:$0xff]
    %v250 = vld [vmem:[#allocation2 + $0xa0] sm:$0xff]
    %v251 = vld [vmem:[#allocation2 + $0xa8] sm:$0xff]
    %v252 = vld [vmem:[#allocation2 + $0xb0] sm:$0xff]
    %v253 = vld [vmem:[#allocation2 + $0xb8] sm:$0xff]
    %v254 = vld [vmem:[#allocation2 + $0xc0] sm:$0xff]
    %v255 = vld [vmem:[#allocation2 + $0xc8] sm:$0xff]
    %v256 = vld [vmem:[#allocation2 + $0xd0] sm:$0xff]
    %v257 = vld [vmem:[#allocation2 + $0xd8] sm:$0xff]
    %v258 = vld [vmem:[#allocation2 + $0xe0] sm:$0xff]
    %v259 = vld [vmem:[#allocation2 + $0xe8] sm:$0xff]
    %v260 = vld [vmem:[#allocation2 + $0xf0] sm:$0xff]
    %v261 = vld [vmem:[#allocation2 + $0xf8] sm:$0xff]
    %v262 = vld [vmem:[#allocation5] sm:$0xf]
    %v263 = vld [vmem:[#allocation5 + $0x4] sm:$0xf]
    %v264 = vld [vmem:[#allocation5 + $0x8] sm:$0xf]
    %v265 = vld [vmem:[#allocation5 + $0xc] sm:$0xf]
    %v266 = vld [vmem:[#allocation5 + $0x10] sm:$0xf]
    %v267 = vld [vmem:[#allocation5 + $0x14] sm:$0xf]
    %v268 = vld [vmem:[#allocation5 + $0x18] sm:$0xf]
    %v269 = vld [vmem:[#allocation5 + $0x1c] sm:$0xf]
    %v270 = vld [vmem:[#allocation5 + $0x20] sm:$0xf]
    %v271 = vld [vmem:[#allocation5 + $0x24] sm:$0xf]
    %v272 = vld [vmem:[#allocation5 + $0x28] sm:$0xf]
    %v273 = vld [vmem:[#allocation5 + $0x2c] sm:$0xf]
    %v274 = vld [vmem:[#allocation5 + $0x30] sm:$0xf]
    %v275 = vld [vmem:[#allocation5 + $0x34] sm:$0xf]
    %v276 = vld [vmem:[#allocation5 + $0x38] sm:$0xf]
    %v277 = vld [vmem:[#allocation5 + $0x3c] sm:$0xf]
    %v278 = vld [vmem:[#allocation5 + $0x40] sm:$0xf]
    %v279 = vld [vmem:[#allocation5 + $0x44] sm:$0xf]
    %v280 = vld [vmem:[#allocation5 + $0x48] sm:$0xf]
    %v281 = vld [vmem:[#allocation5 + $0x4c] sm:$0xf]
    %v282 = vld [vmem:[#allocation5 + $0x50] sm:$0xf]
    %v283 = vld [vmem:[#allocation5 + $0x54] sm:$0xf]
    %v284 = vld [vmem:[#allocation5 + $0x58] sm:$0xf]
    %v285 = vld [vmem:[#allocation5 + $0x5c] sm:$0xf]
    %v286 = vld [vmem:[#allocation5 + $0x60] sm:$0xf]
    %v287 = vld [vmem:[#allocation5 + $0x64] sm:$0xf]
    %v288 = vld [vmem:[#allocation5 + $0x68] sm:$0xf]
    %v289 = vld [vmem:[#allocation5 + $0x6c] sm:$0xf]
    %v290 = vld [vmem:[#allocation5 + $0x70] sm:$0xf]
    %v291 = vld [vmem:[#allocation5 + $0x74] sm:$0xf]
    %v292 = vld [vmem:[#allocation5 + $0x78] sm:$0xf]
    %v293 = vld [vmem:[#allocation5 + $0x7c] sm:$0xf]
    %v294 = vld [vmem:[#allocation5 + $0x80] sm:$0xf]
    %v295 = vld [vmem:[#allocation5 + $0x84] sm:$0xf]
    %v296 = vld [vmem:[#allocation5 + $0x88] sm:$0xf]
    %v297 = vld [vmem:[#allocation5 + $0x8c] sm:$0xf]
    %v298 = vld [vmem:[#allocation5 + $0x90] sm:$0xf]
    %v299 = vld [vmem:[#allocation5 + $0x94] sm:$0xf]
    %v300 = vld [vmem:[#allocation5 + $0x98] sm:$0xf]
    %v301 = vld [vmem:[#allocation5 + $0x9c] sm:$0xf]
    %v302 = vld [vmem:[#allocation5 + $0xa0] sm:$0xf]
    %v303 = vld [vmem:[#allocation5 + $0xa4] sm:$0xf]
    %v304 = vld [vmem:[#allocation5 + $0xa8] sm:$0xf]
    %v305 = vld [vmem:[#allocation5 + $0xac] sm:$0xf]
    %v306 = vld [vmem:[#allocation5 + $0xb0] sm:$0xf]
    %v307 = vld [vmem:[#allocation5 + $0xb4] sm:$0xf]
    %v308 = vld [vmem:[#allocation5 + $0xb8] sm:$0xf]
    %v309 = vld [vmem:[#allocation5 + $0xbc] sm:$0xf]
    %v310 = vld [vmem:[#allocation5 + $0xc0] sm:$0xf]
    %v311 = vld [vmem:[#allocation5 + $0xc4] sm:$0xf]
    %v312 = vld [vmem:[#allocation5 + $0xc8] sm:$0xf]
    %v313 = vld [vmem:[#allocation5 + $0xcc] sm:$0xf]
    %v314 = vld [vmem:[#allocation5 + $0xd0] sm:$0xf]
    %v315 = vld [vmem:[#allocation5 + $0xd4] sm:$0xf]
    %v316 = vld [vmem:[#allocation5 + $0xd8] sm:$0xf]
    %v317 = vld [vmem:[#allocation5 + $0xdc] sm:$0xf]
    %v318 = vld [vmem:[#allocation5 + $0xe0] sm:$0xf]
    %v319 = vld [vmem:[#allocation5 + $0xe4] sm:$0xf]
    %v320 = vld [vmem:[#allocation5 + $0xe8] sm:$0xf]
    %v321 = vld [vmem:[#allocation5 + $0xec] sm:$0xf]
    %v322 = vld [vmem:[#allocation5 + $0xf0] sm:$0xf]
    %v323 = vld [vmem:[#allocation5 + $0xf4] sm:$0xf]
    %v324 = vld [vmem:[#allocation5 + $0xf8] sm:$0xf]
    %v325 = vld [vmem:[#allocation5 + $0xfc] sm:$0xf]
    %v326 = vld [vmem:[#allocation5 + $0x100] sm:$0xf]
    %v327 = vld [vmem:[#allocation5 + $0x104] sm:$0xf]
    %v328 = vld [vmem:[#allocation5 + $0x108] sm:$0xf]
    %v329 = vld [vmem:[#allocation5 + $0x10c] sm:$0xf]
    %v330 = vld [vmem:[#allocation5 + $0x110] sm:$0xf]
    %v331 = vld [vmem:[#allocation5 + $0x114] sm:$0xf]
    %v332 = vld [vmem:[#allocation5 + $0x118] sm:$0xf]
    %v333 = vld [vmem:[#allocation5 + $0x11c] sm:$0xf]
    %v334 = vld [vmem:[#allocation5 + $0x120] sm:$0xf]
    %v335 = vld [vmem:[#allocation5 + $0x124] sm:$0xf]
    %v336 = vld [vmem:[#allocation5 + $0x128] sm:$0xf]
    %v337 = vld [vmem:[#allocation5 + $0x12c] sm:$0xf]
    %v338 = vld [vmem:[#allocation5 + $0x130] sm:$0xf]
    %v339 = vld [vmem:[#allocation5 + $0x134] sm:$0xf]
    %v340 = vld [vmem:[#allocation5 + $0x138] sm:$0xf]
    %v341 = vld [vmem:[#allocation5 + $0x13c] sm:$0xf]
    %v342 = vld [vmem:[#allocation5 + $0x140] sm:$0xf]
    %v343 = vld [vmem:[#allocation5 + $0x144] sm:$0xf]
    %v344 = vld [vmem:[#allocation5 + $0x148] sm:$0xf]
    %v345 = vld [vmem:[#allocation5 + $0x14c] sm:$0xf]
    %v346 = vld [vmem:[#allocation5 + $0x150] sm:$0xf]
    %v347 = vld [vmem:[#allocation5 + $0x154] sm:$0xf]
    %v348 = vld [vmem:[#allocation5 + $0x158] sm:$0xf]
    %v349 = vld [vmem:[#allocation5 + $0x15c] sm:$0xf]
    %v350 = vld [vmem:[#allocation5 + $0x160] sm:$0xf]
    %v351 = vld [vmem:[#allocation5 + $0x164] sm:$0xf]
    %v352 = vld [vmem:[#allocation5 + $0x168] sm:$0xf]
    %v353 = vld [vmem:[#allocation5 + $0x16c] sm:$0xf]
    %v354 = vld [vmem:[#allocation5 + $0x170] sm:$0xf]
    %v355 = vld [vmem:[#allocation5 + $0x174] sm:$0xf]
    %v356 = vld [vmem:[#allocation5 + $0x178] sm:$0xf]
    %v357 = vld [vmem:[#allocation5 + $0x17c] sm:$0xf]
    %v358 = vld [vmem:[#allocation5 + $0x180] sm:$0xf]
    %v359 = vld [vmem:[#allocation5 + $0x184] sm:$0xf]
    %v360 = vld [vmem:[#allocation5 + $0x188] sm:$0xf]
    %v361 = vld [vmem:[#allocation5 + $0x18c] sm:$0xf]
    %v362 = vld [vmem:[#allocation5 + $0x190] sm:$0xf]
    %v363 = vld [vmem:[#allocation5 + $0x194] sm:$0xf]
    %v364 = vld [vmem:[#allocation5 + $0x198] sm:$0xf]
    %v365 = vld [vmem:[#allocation5 + $0x19c] sm:$0xf]
    %v366 = vld [vmem:[#allocation5 + $0x1a0] sm:$0xf]
    %v367 = vld [vmem:[#allocation5 + $0x1a4] sm:$0xf]
    %v368 = vld [vmem:[#allocation5 + $0x1a8] sm:$0xf]
    %v369 = vld [vmem:[#allocation5 + $0x1ac] sm:$0xf]
    %v370 = vld [vmem:[#allocation5 + $0x1b0] sm:$0xf]
    %v371 = vld [vmem:[#allocation5 + $0x1b4] sm:$0xf]
    %v372 = vld [vmem:[#allocation5 + $0x1b8] sm:$0xf]
    %v373 = vld [vmem:[#allocation5 + $0x1bc] sm:$0xf]
    %v374 = vld [vmem:[#allocation5 + $0x1c0] sm:$0xf]
    %v375 = vld [vmem:[#allocation5 + $0x1c4] sm:$0xf]
    %v376 = vld [vmem:[#allocation5 + $0x1c8] sm:$0xf]
    %v377 = vld [vmem:[#allocation5 + $0x1cc] sm:$0xf]
    %v378 = vld [vmem:[#allocation5 + $0x1d0] sm:$0xf]
    %v379 = vld [vmem:[#allocation5 + $0x1d4] sm:$0xf]
    %v380 = vld [vmem:[#allocation5 + $0x1d8] sm:$0xf]
    %v381 = vld [vmem:[#allocation5 + $0x1dc] sm:$0xf]
    %v382 = vld [vmem:[#allocation5 + $0x1e0] sm:$0xf]
    %v383 = vld [vmem:[#allocation5 + $0x1e4] sm:$0xf]
    %v384 = vld [vmem:[#allocation5 + $0x1e8] sm:$0xf]
    %v385 = vld [vmem:[#allocation5 + $0x1ec] sm:$0xf]
    %v386 = vld [vmem:[#allocation5 + $0x1f0] sm:$0xf]
    %v387 = vld [vmem:[#allocation5 + $0x1f4] sm:$0xf]
    %v388 = vld [vmem:[#allocation5 + $0x1f8] sm:$0xf]
    %v389 = vld [vmem:[#allocation5 + $0x1fc] sm:$0xf]
    %v390 = vld [vmem:[#allocation5 + $0x200] sm:$0xf]
    %v391 = vld [vmem:[#allocation5 + $0x204] sm:$0xf]
    %v392 = vld [vmem:[#allocation5 + $0x208] sm:$0xf]
    %v393 = vld [vmem:[#allocation5 + $0x20c] sm:$0xf]
    %v394 = vld [vmem:[#allocation5 + $0x210] sm:$0xf]
    %v395 = vld [vmem:[#allocation5 + $0x214] sm:$0xf]
    %v396 = vld [vmem:[#allocation5 + $0x218] sm:$0xf]
    %v397 = vld [vmem:[#allocation5 + $0x21c] sm:$0xf]
    %v398 = vld [vmem:[#allocation5 + $0x220] sm:$0xf]
    %v399 = vld [vmem:[#allocation5 + $0x224] sm:$0xf]
    %v400 = vld [vmem:[#allocation5 + $0x228] sm:$0xf]
    %v401 = vld [vmem:[#allocation5 + $0x22c] sm:$0xf]
    %v402 = vld [vmem:[#allocation5 + $0x230] sm:$0xf]
    %v403 = vld [vmem:[#allocation5 + $0x234] sm:$0xf]
    %v404 = vld [vmem:[#allocation5 + $0x238] sm:$0xf]
    %v405 = vld [vmem:[#allocation5 + $0x23c] sm:$0xf]
    %v406 = vld [vmem:[#allocation5 + $0x240] sm:$0xf]
    %v407 = vld [vmem:[#allocation5 + $0x244] sm:$0xf]
    %v408 = vld [vmem:[#allocation5 + $0x248] sm:$0xf]
    %v409 = vld [vmem:[#allocation5 + $0x24c] sm:$0xf]
    %v410 = vld [vmem:[#allocation5 + $0x250] sm:$0xf]
    %v411 = vld [vmem:[#allocation5 + $0x254] sm:$0xf]
    %v412 = vld [vmem:[#allocation5 + $0x258] sm:$0xf]
    %v413 = vld [vmem:[#allocation5 + $0x25c] sm:$0xf]
    %v414 = vld [vmem:[#allocation5 + $0x260] sm:$0xf]
    %v415 = vld [vmem:[#allocation5 + $0x264] sm:$0xf]
    %v416 = vld [vmem:[#allocation5 + $0x268] sm:$0xf]
    %v417 = vld [vmem:[#allocation5 + $0x26c] sm:$0xf]
    %v418 = vld [vmem:[#allocation5 + $0x270] sm:$0xf]
    %v419 = vld [vmem:[#allocation5 + $0x274] sm:$0xf]
    %v420 = vld [vmem:[#allocation5 + $0x278] sm:$0xf]
    %v421 = vld [vmem:[#allocation5 + $0x27c] sm:$0xf]
    %v422 = vld [vmem:[#allocation5 + $0x280] sm:$0xf]
    %v423 = vld [vmem:[#allocation5 + $0x284] sm:$0xf]
    %v424 = vld [vmem:[#allocation5 + $0x288] sm:$0xf]
    %v425 = vld [vmem:[#allocation5 + $0x28c] sm:$0xf]
    %v426 = vld [vmem:[#allocation5 + $0x290] sm:$0xf]
    %v427 = vld [vmem:[#allocation5 + $0x294] sm:$0xf]
    %v428 = vld [vmem:[#allocation5 + $0x298] sm:$0xf]
    %v429 = vld [vmem:[#allocation5 + $0x29c] sm:$0xf]
    %v430 = vld [vmem:[#allocation5 + $0x2a0] sm:$0xf]
    %v431 = vld [vmem:[#allocation5 + $0x2a4] sm:$0xf]
    %v432 = vld [vmem:[#allocation5 + $0x2a8] sm:$0xf]
    %v433 = vld [vmem:[#allocation5 + $0x2ac] sm:$0xf]
    %v434 = vld [vmem:[#allocation5 + $0x2b0] sm:$0xf]
    %v435 = vld [vmem:[#allocation5 + $0x2b4] sm:$0xf]
    %v436 = vld [vmem:[#allocation5 + $0x2b8] sm:$0xf]
    %v437 = vld [vmem:[#allocation5 + $0x2bc] sm:$0xf]
    %v438 = vld [vmem:[#allocation5 + $0x2c0] sm:$0xf]
    %v439 = vld [vmem:[#allocation5 + $0x2c4] sm:$0xf]
    %v440 = vld [vmem:[#allocation5 + $0x2c8] sm:$0xf]
    %v441 = vld [vmem:[#allocation5 + $0x2cc] sm:$0xf]
    %v442 = vld [vmem:[#allocation5 + $0x2d0] sm:$0xf]
    %v443 = vld [vmem:[#allocation5 + $0x2d4] sm:$0xf]
    %v444 = vld [vmem:[#allocation5 + $0x2d8] sm:$0xf]
    %v445 = vld [vmem:[#allocation5 + $0x2dc] sm:$0xf]
    %v446 = vld [vmem:[#allocation5 + $0x2e0] sm:$0xf]
    %v447 = vld [vmem:[#allocation5 + $0x2e4] sm:$0xf]
    %v448 = vld [vmem:[#allocation5 + $0x2e8] sm:$0xf]
    %v449 = vld [vmem:[#allocation5 + $0x2ec] sm:$0xf]
    %v450 = vld [vmem:[#allocation5 + $0x2f0] sm:$0xf]
    %v451 = vld [vmem:[#allocation5 + $0x2f4] sm:$0xf]
    %v452 = vld [vmem:[#allocation5 + $0x2f8] sm:$0xf]
    %v453 = vld [vmem:[#allocation5 + $0x2fc] sm:$0xf]
    %v454 = vld [vmem:[#allocation5 + $0x300] sm:$0xf]
    %v455 = vld [vmem:[#allocation5 + $0x304] sm:$0xf]
    %v456 = vld [vmem:[#allocation5 + $0x308] sm:$0xf]
    %v457 = vld [vmem:[#allocation5 + $0x30c] sm:$0xf]
    %v458 = vld [vmem:[#allocation5 + $0x310] sm:$0xf]
    %v459 = vld [vmem:[#allocation5 + $0x314] sm:$0xf]
    %v460 = vld [vmem:[#allocation5 + $0x318] sm:$0xf]
    %v461 = vld [vmem:[#allocation5 + $0x31c] sm:$0xf]
    %v462 = vld [vmem:[#allocation5 + $0x320] sm:$0xf]
    %v463 = vld [vmem:[#allocation5 + $0x324] sm:$0xf]
    %v464 = vld [vmem:[#allocation5 + $0x328] sm:$0xf]
    %v465 = vld [vmem:[#allocation5 + $0x32c] sm:$0xf]
    %v466 = vld [vmem:[#allocation5 + $0x330] sm:$0xf]
    %v467 = vld [vmem:[#allocation5 + $0x334] sm:$0xf]
    %v468 = vld [vmem:[#allocation5 + $0x338] sm:$0xf]
    %v469 = vld [vmem:[#allocation5 + $0x33c] sm:$0xf]
    %v470 = vld [vmem:[#allocation5 + $0x340] sm:$0xf]
    %v471 = vld [vmem:[#allocation5 + $0x344] sm:$0xf]
    %v472 = vld [vmem:[#allocation5 + $0x348] sm:$0xf]
    %v473 = vld [vmem:[#allocation5 + $0x34c] sm:$0xf]
    %v474 = vld [vmem:[#allocation5 + $0x350] sm:$0xf]
    %v475 = vld [vmem:[#allocation5 + $0x354] sm:$0xf]
    %v476 = vld [vmem:[#allocation5 + $0x358] sm:$0xf]
    %v477 = vld [vmem:[#allocation5 + $0x35c] sm:$0xf]
    %v478 = vld [vmem:[#allocation5 + $0x360] sm:$0xf]
    %v479 = vld [vmem:[#allocation5 + $0x364] sm:$0xf]
    %v480 = vld [vmem:[#allocation5 + $0x368] sm:$0xf]
    %v481 = vld [vmem:[#allocation5 + $0x36c] sm:$0xf]
    %v482 = vld [vmem:[#allocation5 + $0x370] sm:$0xf]
    %v483 = vld [vmem:[#allocation5 + $0x374] sm:$0xf]
    %v484 = vld [vmem:[#allocation5 + $0x378] sm:$0xf]
    %v485 = vld [vmem:[#allocation5 + $0x37c] sm:$0xf]
    %v486 = vld [vmem:[#allocation5 + $0x380] sm:$0xf]
    %v487 = vld [vmem:[#allocation5 + $0x384] sm:$0xf]
    %v488 = vld [vmem:[#allocation5 + $0x388] sm:$0xf]
    %v489 = vld [vmem:[#allocation5 + $0x38c] sm:$0xf]
    %v490 = vld [vmem:[#allocation5 + $0x390] sm:$0xf]
    %v491 = vld [vmem:[#allocation5 + $0x394] sm:$0xf]
    %v492 = vld [vmem:[#allocation5 + $0x398] sm:$0xf]
    %v493 = vld [vmem:[#allocation5 + $0x39c] sm:$0xf]
    %v494 = vld [vmem:[#allocation5 + $0x3a0] sm:$0xf]
    %v495 = vld [vmem:[#allocation5 + $0x3a4] sm:$0xf]
    %v496 = vld [vmem:[#allocation5 + $0x3a8] sm:$0xf]
    %v497 = vld [vmem:[#allocation5 + $0x3ac] sm:$0xf]
    %v498 = vld [vmem:[#allocation5 + $0x3b0] sm:$0xf]
    %v499 = vld [vmem:[#allocation5 + $0x3b4] sm:$0xf]
    %v500 = vld [vmem:[#allocation5 + $0x3b8] sm:$0xf]
    %v501 = vld [vmem:[#allocation5 + $0x3bc] sm:$0xf]
    %v502 = vld [vmem:[#allocation5 + $0x3c0] sm:$0xf]
    %v503 = vld [vmem:[#allocation5 + $0x3c4] sm:$0xf]
    %v504 = vld [vmem:[#allocation5 + $0x3c8] sm:$0xf]
    %v505 = vld [vmem:[#allocation5 + $0x3cc] sm:$0xf]
    %v506 = vld [vmem:[#allocation5 + $0x3d0] sm:$0xf]
    %v507 = vld [vmem:[#allocation5 + $0x3d4] sm:$0xf]
    %v508 = vld [vmem:[#allocation5 + $0x3d8] sm:$0xf]
    %v509 = vld [vmem:[#allocation5 + $0x3dc] sm:$0xf]
    %v510 = vld [vmem:[#allocation5 + $0x3e0] sm:$0xf]
    %v511 = vld [vmem:[#allocation5 + $0x3e4] sm:$0xf]
    %v512 = vld [vmem:[#allocation5 + $0x3e8] sm:$0xf]
    %v513 = vld [vmem:[#allocation5 + $0x3ec] sm:$0xf]
    %v514 = vld [vmem:[#allocation5 + $0x3f0] sm:$0xf]
    %v515 = vld [vmem:[#allocation5 + $0x3f4] sm:$0xf]
    %v516 = vld [vmem:[#allocation5 + $0x3f8] sm:$0xf]
    %v517 = vld [vmem:[#allocation5 + $0x3fc] sm:$0xf]
    %v518 = vld [vmem:[#allocation5 + $0x400] sm:$0xf]
    %v519 = vld [vmem:[#allocation5 + $0x404] sm:$0xf]
    %v520 = vld [vmem:[#allocation5 + $0x408] sm:$0xf]
    %v521 = vld [vmem:[#allocation5 + $0x40c] sm:$0xf]
    %v522 = vld [vmem:[#allocation5 + $0x410] sm:$0xf]
    %v523 = vld [vmem:[#allocation5 + $0x414] sm:$0xf]
    %v524 = vld [vmem:[#allocation5 + $0x418] sm:$0xf]
    %v525 = vld [vmem:[#allocation5 + $0x41c] sm:$0xf]
    %v526 = vld [vmem:[#allocation5 + $0x420] sm:$0xf]
    %v527 = vld [vmem:[#allocation5 + $0x424] sm:$0xf]
    %v528 = vld [vmem:[#allocation5 + $0x428] sm:$0xf]
    %v529 = vld [vmem:[#allocation5 + $0x42c] sm:$0xf]
    %v530 = vld [vmem:[#allocation5 + $0x430] sm:$0xf]
    %v531 = vld [vmem:[#allocation5 + $0x434] sm:$0xf]
    %v532 = vld [vmem:[#allocation5 + $0x438] sm:$0xf]
    %v533 = vld [vmem:[#allocation5 + $0x43c] sm:$0xf]
    %v534 = vld [vmem:[#allocation5 + $0x440] sm:$0xf]
    %v535 = vld [vmem:[#allocation5 + $0x444] sm:$0xf]
    %v536 = vld [vmem:[#allocation5 + $0x448] sm:$0xf]
    %v537 = vld [vmem:[#allocation5 + $0x44c] sm:$0xf]
    %v538 = vld [vmem:[#allocation5 + $0x450] sm:$0xf]
    %v539 = vld [vmem:[#allocation5 + $0x454] sm:$0xf]
    %v540 = vld [vmem:[#allocation5 + $0x458] sm:$0xf]
    %v541 = vld [vmem:[#allocation5 + $0x45c] sm:$0xf]
    %v542 = vld [vmem:[#allocation5 + $0x460] sm:$0xf]
    %v543 = vld [vmem:[#allocation5 + $0x464] sm:$0xf]
    %v544 = vld [vmem:[#allocation5 + $0x468] sm:$0xf]
    %v545 = vld [vmem:[#allocation5 + $0x46c] sm:$0xf]
    %v546 = vld [vmem:[#allocation5 + $0x470] sm:$0xf]
    %v547 = vld [vmem:[#allocation5 + $0x474] sm:$0xf]
    %v548 = vld [vmem:[#allocation5 + $0x478] sm:$0xf]
    %v549 = vld [vmem:[#allocation5 + $0x47c] sm:$0xf]
    %v550 = vld [vmem:[#allocation5 + $0x480] sm:$0xf]
    %v551 = vld [vmem:[#allocation5 + $0x484] sm:$0xf]
    %v552 = vld [vmem:[#allocation5 + $0x488] sm:$0xf]
    %v553 = vld [vmem:[#allocation5 + $0x48c] sm:$0xf]
    %v554 = vld [vmem:[#allocation5 + $0x490] sm:$0xf]
    %v555 = vld [vmem:[#allocation5 + $0x494] sm:$0xf]
    %v556 = vld [vmem:[#allocation5 + $0x498] sm:$0xf]
    %v557 = vld [vmem:[#allocation5 + $0x49c] sm:$0xf]
    %v558 = vld [vmem:[#allocation5 + $0x4a0] sm:$0xf]
    %v559 = vld [vmem:[#allocation5 + $0x4a4] sm:$0xf]
    %v560 = vld [vmem:[#allocation5 + $0x4a8] sm:$0xf]
    %v561 = vld [vmem:[#allocation5 + $0x4ac] sm:$0xf]
    %v562 = vld [vmem:[#allocation5 + $0x4b0] sm:$0xf]
    %v563 = vld [vmem:[#allocation5 + $0x4b4] sm:$0xf]
    %v564 = vld [vmem:[#allocation5 + $0x4b8] sm:$0xf]
    %v565 = vld [vmem:[#allocation5 + $0x4bc] sm:$0xf]
    %v566 = vld [vmem:[#allocation5 + $0x4c0] sm:$0xf]
    %v567 = vld [vmem:[#allocation5 + $0x4c4] sm:$0xf]
    %v568 = vld [vmem:[#allocation5 + $0x4c8] sm:$0xf]
    %v569 = vld [vmem:[#allocation5 + $0x4cc] sm:$0xf]
    %v570 = vld [vmem:[#allocation5 + $0x4d0] sm:$0xf]
    %v571 = vld [vmem:[#allocation5 + $0x4d4] sm:$0xf]
    %v572 = vld [vmem:[#allocation5 + $0x4d8] sm:$0xf]
    %v573 = vld [vmem:[#allocation5 + $0x4dc] sm:$0xf]
    %v574 = vld [vmem:[#allocation5 + $0x4e0] sm:$0xf]
    %v575 = vld [vmem:[#allocation5 + $0x4e4] sm:$0xf]
    %v576 = vld [vmem:[#allocation5 + $0x4e8] sm:$0xf]
    %v577 = vld [vmem:[#allocation5 + $0x4ec] sm:$0xf]
    %v578 = vld [vmem:[#allocation5 + $0x4f0] sm:$0xf]
    %v579 = vld [vmem:[#allocation5 + $0x4f4] sm:$0xf]
    %v580 = vld [vmem:[#allocation5 + $0x4f8] sm:$0xf]
    %v581 = vld [vmem:[#allocation5 + $0x4fc] sm:$0xf]
    %v582 = vld [vmem:[#allocation5 + $0x500] sm:$0xf]
    %v583 = vld [vmem:[#allocation5 + $0x504] sm:$0xf]
    %v584 = vld [vmem:[#allocation5 + $0x508] sm:$0xf]
    %v585 = vld [vmem:[#allocation5 + $0x50c] sm:$0xf]
    %v586 = vld [vmem:[#allocation5 + $0x510] sm:$0xf]
    %v587 = vld [vmem:[#allocation5 + $0x514] sm:$0xf]
    %v588 = vld [vmem:[#allocation5 + $0x518] sm:$0xf]
    %v589 = vld [vmem:[#allocation5 + $0x51c] sm:$0xf]
    %v590 = vld [vmem:[#allocation5 + $0x520] sm:$0xf]
    %v591 = vld [vmem:[#allocation5 + $0x524] sm:$0xf]
    %v592 = vld [vmem:[#allocation5 + $0x528] sm:$0xf]
    %v593 = vld [vmem:[#allocation5 + $0x52c] sm:$0xf]
    %v594 = vld [vmem:[#allocation5 + $0x530] sm:$0xf]
    %v595 = vld [vmem:[#allocation5 + $0x534] sm:$0xf]
    %v596 = vld [vmem:[#allocation5 + $0x538] sm:$0xf]
    %v597 = vld [vmem:[#allocation5 + $0x53c] sm:$0xf]
    %v598 = vld [vmem:[#allocation5 + $0x540] sm:$0xf]
    %v599 = vld [vmem:[#allocation5 + $0x544] sm:$0xf]
    %v600 = vld [vmem:[#allocation5 + $0x548] sm:$0xf]
    %v601 = vld [vmem:[#allocation5 + $0x54c] sm:$0xf]
    %v602 = vld [vmem:[#allocation5 + $0x550] sm:$0xf]
    %v603 = vld [vmem:[#allocation5 + $0x554] sm:$0xf]
    %v604 = vld [vmem:[#allocation5 + $0x558] sm:$0xf]
    %v605 = vld [vmem:[#allocation5 + $0x55c] sm:$0xf]
    %v606 = vld [vmem:[#allocation5 + $0x560] sm:$0xf]
    %v607 = vld [vmem:[#allocation5 + $0x564] sm:$0xf]
    %v608 = vld [vmem:[#allocation5 + $0x568] sm:$0xf]
    %v609 = vld [vmem:[#allocation5 + $0x56c] sm:$0xf]
    %v610 = vld [vmem:[#allocation5 + $0x570] sm:$0xf]
    %v611 = vld [vmem:[#allocation5 + $0x574] sm:$0xf]
    %v612 = vld [vmem:[#allocation5 + $0x578] sm:$0xf]
    %v613 = vld [vmem:[#allocation5 + $0x57c] sm:$0xf]
    %v614 = vld [vmem:[#allocation5 + $0x580] sm:$0xf]
    %v615 = vld [vmem:[#allocation5 + $0x584] sm:$0xf]
    %v616 = vld [vmem:[#allocation5 + $0x588] sm:$0xf]
    %v617 = vld [vmem:[#allocation5 + $0x58c] sm:$0xf]
    %v618 = vld [vmem:[#allocation5 + $0x590] sm:$0xf]
    %v619 = vld [vmem:[#allocation5 + $0x594] sm:$0xf]
    %v620 = vld [vmem:[#allocation5 + $0x598] sm:$0xf]
    %v621 = vld [vmem:[#allocation5 + $0x59c] sm:$0xf]
    %v622 = vld [vmem:[#allocation5 + $0x5a0] sm:$0xf]
    %v623 = vld [vmem:[#allocation5 + $0x5a4] sm:$0xf]
    %v624 = vld [vmem:[#allocation5 + $0x5a8] sm:$0xf]
    %v625 = vld [vmem:[#allocation5 + $0x5ac] sm:$0xf]
    %v626 = vld [vmem:[#allocation5 + $0x5b0] sm:$0xf]
    %v627 = vld [vmem:[#allocation5 + $0x5b4] sm:$0xf]
    %v628 = vld [vmem:[#allocation5 + $0x5b8] sm:$0xf]
    %v629 = vld [vmem:[#allocation5 + $0x5bc] sm:$0xf]
    %v630 = vld [vmem:[#allocation5 + $0x5c0] sm:$0xf]
    %v631 = vld [vmem:[#allocation5 + $0x5c4] sm:$0xf]
    %v632 = vld [vmem:[#allocation5 + $0x5c8] sm:$0xf]
    %v633 = vld [vmem:[#allocation5 + $0x5cc] sm:$0xf]
    %v634 = vld [vmem:[#allocation5 + $0x5d0] sm:$0xf]
    %v635 = vld [vmem:[#allocation5 + $0x5d4] sm:$0xf]
    %v636 = vld [vmem:[#allocation5 + $0x5d8] sm:$0xf]
    %v637 = vld [vmem:[#allocation5 + $0x5dc] sm:$0xf]
    %v638 = vld [vmem:[#allocation5 + $0x5e0] sm:$0xf]
    %v639 = vld [vmem:[#allocation5 + $0x5e4] sm:$0xf]
    %v640 = vld [vmem:[#allocation5 + $0x5e8] sm:$0xf]
    %v641 = vld [vmem:[#allocation5 + $0x5ec] sm:$0xf]
    %v642 = vld [vmem:[#allocation5 + $0x5f0] sm:$0xf]
    %v643 = vld [vmem:[#allocation5 + $0x5f4] sm:$0xf]
    %v644 = vld [vmem:[#allocation5 + $0x5f8] sm:$0xf]
    %v645 = vld [vmem:[#allocation5 + $0x5fc] sm:$0xf]
    %v646 = vld [vmem:[#allocation5 + $0x600] sm:$0xf]
    %v647 = vld [vmem:[#allocation5 + $0x604] sm:$0xf]
    %v648 = vld [vmem:[#allocation5 + $0x608] sm:$0xf]
    %v649 = vld [vmem:[#allocation5 + $0x60c] sm:$0xf]
    %v650 = vld [vmem:[#allocation5 + $0x610] sm:$0xf]
    %v651 = vld [vmem:[#allocation5 + $0x614] sm:$0xf]
    %v652 = vld [vmem:[#allocation5 + $0x618] sm:$0xf]
    %v653 = vld [vmem:[#allocation5 + $0x61c] sm:$0xf]
    %v654 = vld [vmem:[#allocation5 + $0x620] sm:$0xf]
    %v655 = vld [vmem:[#allocation5 + $0x624] sm:$0xf]
    %v656 = vld [vmem:[#allocation5 + $0x628] sm:$0xf]
    %v657 = vld [vmem:[#allocation5 + $0x62c] sm:$0xf]
    %v658 = vld [vmem:[#allocation5 + $0x630] sm:$0xf]
    %v659 = vld [vmem:[#allocation5 + $0x634] sm:$0xf]
    %v660 = vld [vmem:[#allocation5 + $0x638] sm:$0xf]
    %v661 = vld [vmem:[#allocation5 + $0x63c] sm:$0xf]
    %v662 = vld [vmem:[#allocation5 + $0x640] sm:$0xf]
    %v663 = vld [vmem:[#allocation5 + $0x644] sm:$0xf]
    %v664 = vld [vmem:[#allocation5 + $0x648] sm:$0xf]
    %v665 = vld [vmem:[#allocation5 + $0x64c] sm:$0xf]
    %v666 = vld [vmem:[#allocation5 + $0x650] sm:$0xf]
    %v667 = vld [vmem:[#allocation5 + $0x654] sm:$0xf]
    %v668 = vld [vmem:[#allocation5 + $0x658] sm:$0xf]
    %v669 = vld [vmem:[#allocation5 + $0x65c] sm:$0xf]
    %v670 = vld [vmem:[#allocation5 + $0x660] sm:$0xf]
    %v671 = vld [vmem:[#allocation5 + $0x664] sm:$0xf]
    %v672 = vld [vmem:[#allocation5 + $0x668] sm:$0xf]
    %v673 = vld [vmem:[#allocation5 + $0x66c] sm:$0xf]
    %v674 = vld [vmem:[#allocation5 + $0x670] sm:$0xf]
    %v675 = vld [vmem:[#allocation5 + $0x674] sm:$0xf]
    %v676 = vld [vmem:[#allocation5 + $0x678] sm:$0xf]
    %v677 = vld [vmem:[#allocation5 + $0x67c] sm:$0xf]
    %v678 = vld [vmem:[#allocation5 + $0x680] sm:$0xf]
    %v679 = vld [vmem:[#allocation5 + $0x684] sm:$0xf]
    %v680 = vld [vmem:[#allocation5 + $0x688] sm:$0xf]
    %v681 = vld [vmem:[#allocation5 + $0x68c] sm:$0xf]
    %v682 = vld [vmem:[#allocation5 + $0x690] sm:$0xf]
    %v683 = vld [vmem:[#allocation5 + $0x694] sm:$0xf]
    %v684 = vld [vmem:[#allocation5 + $0x698] sm:$0xf]
    %v685 = vld [vmem:[#allocation5 + $0x69c] sm:$0xf]
    %v686 = vld [vmem:[#allocation5 + $0x6a0] sm:$0xf]
    %v687 = vld [vmem:[#allocation5 + $0x6a4] sm:$0xf]
    %v688 = vld [vmem:[#allocation5 + $0x6a8] sm:$0xf]
    %v689 = vld [vmem:[#allocation5 + $0x6ac] sm:$0xf]
    %v690 = vld [vmem:[#allocation5 + $0x6b0] sm:$0xf]
    %v691 = vld [vmem:[#allocation5 + $0x6b4] sm:$0xf]
    %v692 = vld [vmem:[#allocation5 + $0x6b8] sm:$0xf]
    %v693 = vld [vmem:[#allocation5 + $0x6bc] sm:$0xf]
    %v694 = vld [vmem:[#allocation5 + $0x6c0] sm:$0xf]
    %v695 = vld [vmem:[#allocation5 + $0x6c4] sm:$0xf]
    %v696 = vld [vmem:[#allocation5 + $0x6c8] sm:$0xf]
    %v697 = vld [vmem:[#allocation5 + $0x6cc] sm:$0xf]
    %v698 = vld [vmem:[#allocation5 + $0x6d0] sm:$0xf]
    %v699 = vld [vmem:[#allocation5 + $0x6d4] sm:$0xf]
    %v700 = vld [vmem:[#allocation5 + $0x6d8] sm:$0xf]
    %v701 = vld [vmem:[#allocation5 + $0x6dc] sm:$0xf]
    %v702 = vld [vmem:[#allocation5 + $0x6e0] sm:$0xf]
    %v703 = vld [vmem:[#allocation5 + $0x6e4] sm:$0xf]
    %v704 = vld [vmem:[#allocation5 + $0x6e8] sm:$0xf]
    %v705 = vld [vmem:[#allocation5 + $0x6ec] sm:$0xf]
    %v706 = vld [vmem:[#allocation5 + $0x6f0] sm:$0xf]
    %v707 = vld [vmem:[#allocation5 + $0x6f4] sm:$0xf]
    %v708 = vld [vmem:[#allocation5 + $0x6f8] sm:$0xf]
    %v709 = vld [vmem:[#allocation5 + $0x6fc] sm:$0xf]
    %v710 = vld [vmem:[#allocation5 + $0x700] sm:$0xf]
    %v711 = vld [vmem:[#allocation5 + $0x704] sm:$0xf]
    %v712 = vld [vmem:[#allocation5 + $0x708] sm:$0xf]
    %v713 = vld [vmem:[#allocation5 + $0x70c] sm:$0xf]
    %v714 = vld [vmem:[#allocation5 + $0x710] sm:$0xf]
    %v715 = vld [vmem:[#allocation5 + $0x714] sm:$0xf]
    %v716 = vld [vmem:[#allocation5 + $0x718] sm:$0xf]
    %v717 = vld [vmem:[#allocation5 + $0x71c] sm:$0xf]
    %v718 = vld [vmem:[#allocation5 + $0x720] sm:$0xf]
    %v719 = vld [vmem:[#allocation5 + $0x724] sm:$0xf]
    %v720 = vld [vmem:[#allocation5 + $0x728] sm:$0xf]
    %v721 = vld [vmem:[#allocation5 + $0x72c] sm:$0xf]
    %v722 = vld [vmem:[#allocation5 + $0x730] sm:$0xf]
    %v723 = vld [vmem:[#allocation5 + $0x734] sm:$0xf]
    %v724 = vld [vmem:[#allocation5 + $0x738] sm:$0xf]
    %v725 = vld [vmem:[#allocation5 + $0x73c] sm:$0xf]
    %v726 = vld [vmem:[#allocation5 + $0x740] sm:$0xf]
    %v727 = vld [vmem:[#allocation5 + $0x744] sm:$0xf]
    %v728 = vld [vmem:[#allocation5 + $0x748] sm:$0xf]
    %v729 = vld [vmem:[#allocation5 + $0x74c] sm:$0xf]
    %v730 = vld [vmem:[#allocation5 + $0x750] sm:$0xf]
    %v731 = vld [vmem:[#allocation5 + $0x754] sm:$0xf]
    %v732 = vld [vmem:[#allocation5 + $0x758] sm:$0xf]
    %v733 = vld [vmem:[#allocation5 + $0x75c] sm:$0xf]
    %v734 = vld [vmem:[#allocation5 + $0x760] sm:$0xf]
    %v735 = vld [vmem:[#allocation5 + $0x764] sm:$0xf]
    %v736 = vld [vmem:[#allocation5 + $0x768] sm:$0xf]
    %v737 = vld [vmem:[#allocation5 + $0x76c] sm:$0xf]
    %v738 = vld [vmem:[#allocation5 + $0x770] sm:$0xf]
    %v739 = vld [vmem:[#allocation5 + $0x774] sm:$0xf]
    %v740 = vld [vmem:[#allocation5 + $0x778] sm:$0xf]
    %v741 = vld [vmem:[#allocation5 + $0x77c] sm:$0xf]
    %v742 = vld [vmem:[#allocation5 + $0x780] sm:$0xf]
    %v743 = vld [vmem:[#allocation5 + $0x784] sm:$0xf]
    %v744 = vld [vmem:[#allocation5 + $0x788] sm:$0xf]
    %v745 = vld [vmem:[#allocation5 + $0x78c] sm:$0xf]
    %v746 = vld [vmem:[#allocation5 + $0x790] sm:$0xf]
    %v747 = vld [vmem:[#allocation5 + $0x794] sm:$0xf]
    %v748 = vld [vmem:[#allocation5 + $0x798] sm:$0xf]
    %v749 = vld [vmem:[#allocation5 + $0x79c] sm:$0xf]
    %v750 = vld [vmem:[#allocation5 + $0x7a0] sm:$0xf]
    %v751 = vld [vmem:[#allocation5 + $0x7a4] sm:$0xf]
    %v752 = vld [vmem:[#allocation5 + $0x7a8] sm:$0xf]
    %v753 = vld [vmem:[#allocation5 + $0x7ac] sm:$0xf]
    %v754 = vld [vmem:[#allocation5 + $0x7b0] sm:$0xf]
    %v755 = vld [vmem:[#allocation5 + $0x7b4] sm:$0xf]
    %v756 = vld [vmem:[#allocation5 + $0x7b8] sm:$0xf]
    %v757 = vld [vmem:[#allocation5 + $0x7bc] sm:$0xf]
    %v758 = vld [vmem:[#allocation5 + $0x7c0] sm:$0xf]
    %v759 = vld [vmem:[#allocation5 + $0x7c4] sm:$0xf]
    %v760 = vld [vmem:[#allocation5 + $0x7c8] sm:$0xf]
    %v761 = vld [vmem:[#allocation5 + $0x7cc] sm:$0xf]
    %v762 = vld [vmem:[#allocation5 + $0x7d0] sm:$0xf]
    %v763 = vld [vmem:[#allocation5 + $0x7d4] sm:$0xf]
    %v764 = vld [vmem:[#allocation5 + $0x7d8] sm:$0xf]
    %v765 = vld [vmem:[#allocation5 + $0x7dc] sm:$0xf]
    %v766 = vld [vmem:[#allocation5 + $0x7e0] sm:$0xf]
    %v767 = vld [vmem:[#allocation5 + $0x7e4] sm:$0xf]
    %v768 = vld [vmem:[#allocation5 + $0x7e8] sm:$0xf]
    %v769 = vld [vmem:[#allocation5 + $0x7ec] sm:$0xf]
    %v770 = vld [vmem:[#allocation5 + $0x7f0] sm:$0xf]
    %v771 = vld [vmem:[#allocation5 + $0x7f4] sm:$0xf]
    %v772 = vld [vmem:[#allocation5 + $0x7f8] sm:$0xf]
    %v773 = vld [vmem:[#allocation5 + $0x7fc] sm:$0xf]
    %v774 = vld [vmem:[#allocation5 + $0x800] sm:$0xf]
    %v775 = vld [vmem:[#allocation5 + $0x804] sm:$0xf]
    %v776 = vld [vmem:[#allocation5 + $0x808] sm:$0xf]
    %v777 = vld [vmem:[#allocation5 + $0x80c] sm:$0xf]
    %v778 = vld [vmem:[#allocation5 + $0x810] sm:$0xf]
    %v779 = vld [vmem:[#allocation5 + $0x814] sm:$0xf]
    %v780 = vld [vmem:[#allocation5 + $0x818] sm:$0xf]
    %v781 = vld [vmem:[#allocation5 + $0x81c] sm:$0xf]
    %v782 = vld [vmem:[#allocation5 + $0x820] sm:$0xf]
    %v783 = vld [vmem:[#allocation5 + $0x824] sm:$0xf]
    %v784 = vld [vmem:[#allocation5 + $0x828] sm:$0xf]
    %v785 = vld [vmem:[#allocation5 + $0x82c] sm:$0xf]
    %v786 = vld [vmem:[#allocation5 + $0x830] sm:$0xf]
    %v787 = vld [vmem:[#allocation5 + $0x834] sm:$0xf]
    %v788 = vld [vmem:[#allocation5 + $0x838] sm:$0xf]
    %v789 = vld [vmem:[#allocation5 + $0x83c] sm:$0xf]
    %v790 = vld [vmem:[#allocation5 + $0x840] sm:$0xf]
    %v791 = vld [vmem:[#allocation5 + $0x844] sm:$0xf]
    %v792 = vld [vmem:[#allocation5 + $0x848] sm:$0xf]
    %v793 = vld [vmem:[#allocation5 + $0x84c] sm:$0xf]
    %v794 = vld [vmem:[#allocation5 + $0x850] sm:$0xf]
    %v795 = vld [vmem:[#allocation5 + $0x854] sm:$0xf]
    %v796 = vld [vmem:[#allocation5 + $0x858] sm:$0xf]
    %v797 = vld [vmem:[#allocation5 + $0x85c] sm:$0xf]
    %v798 = vld [vmem:[#allocation5 + $0x860] sm:$0xf]
    %v799 = vld [vmem:[#allocation5 + $0x864] sm:$0xf]
    %v800 = vld [vmem:[#allocation5 + $0x868] sm:$0xf]
    %v801 = vld [vmem:[#allocation5 + $0x86c] sm:$0xf]
    %v802 = vld [vmem:[#allocation5 + $0x870] sm:$0xf]
    %v803 = vld [vmem:[#allocation5 + $0x874] sm:$0xf]
    %v804 = vld [vmem:[#allocation5 + $0x878] sm:$0xf]
    %v805 = vld [vmem:[#allocation5 + $0x87c] sm:$0xf]
    %v806 = vld [vmem:[#allocation5 + $0x880] sm:$0xf]
    %v807 = vld [vmem:[#allocation5 + $0x884] sm:$0xf]
    %v808 = vld [vmem:[#allocation5 + $0x888] sm:$0xf]
    %v809 = vld [vmem:[#allocation5 + $0x88c] sm:$0xf]
    %v810 = vld [vmem:[#allocation5 + $0x890] sm:$0xf]
    %v811 = vld [vmem:[#allocation5 + $0x894] sm:$0xf]
    %v812 = vld [vmem:[#allocation5 + $0x898] sm:$0xf]
    %v813 = vld [vmem:[#allocation5 + $0x89c] sm:$0xf]
    %v814 = vld [vmem:[#allocation5 + $0x8a0] sm:$0xf]
    %v815 = vld [vmem:[#allocation5 + $0x8a4] sm:$0xf]
    %v816 = vld [vmem:[#allocation5 + $0x8a8] sm:$0xf]
    %v817 = vld [vmem:[#allocation5 + $0x8ac] sm:$0xf]
    %v818 = vld [vmem:[#allocation5 + $0x8b0] sm:$0xf]
    %v819 = vld [vmem:[#allocation5 + $0x8b4] sm:$0xf]
    %v820 = vld [vmem:[#allocation5 + $0x8b8] sm:$0xf]
    %v821 = vld [vmem:[#allocation5 + $0x8bc] sm:$0xf]
    %v822 = vld [vmem:[#allocation5 + $0x8c0] sm:$0xf]
    %v823 = vld [vmem:[#allocation5 + $0x8c4] sm:$0xf]
    %v824 = vld [vmem:[#allocation5 + $0x8c8] sm:$0xf]
    %v825 = vld [vmem:[#allocation5 + $0x8cc] sm:$0xf]
    %v826 = vld [vmem:[#allocation5 + $0x8d0] sm:$0xf]
    %v827 = vld [vmem:[#allocation5 + $0x8d4] sm:$0xf]
    %v828 = vld [vmem:[#allocation5 + $0x8d8] sm:$0xf]
    %v829 = vld [vmem:[#allocation5 + $0x8dc] sm:$0xf]
    %v830 = vld [vmem:[#allocation5 + $0x8e0] sm:$0xf]
    %v831 = vld [vmem:[#allocation5 + $0x8e4] sm:$0xf]
    %v832 = vld [vmem:[#allocation5 + $0x8e8] sm:$0xf]
    %v833 = vld [vmem:[#allocation5 + $0x8ec] sm:$0xf]
    %v834 = vld [vmem:[#allocation5 + $0x8f0] sm:$0xf]
    %v835 = vld [vmem:[#allocation5 + $0x8f4] sm:$0xf]
    %v836 = vld [vmem:[#allocation5 + $0x8f8] sm:$0xf]
    %v837 = vld [vmem:[#allocation5 + $0x8fc] sm:$0xf]
    %v838 = vld [vmem:[#allocation5 + $0x900] sm:$0xf]
    %v839 = vld [vmem:[#allocation5 + $0x904] sm:$0xf]
    %v840 = vld [vmem:[#allocation5 + $0x908] sm:$0xf]
    %v841 = vld [vmem:[#allocation5 + $0x90c] sm:$0xf]
    %v842 = vld [vmem:[#allocation5 + $0x910] sm:$0xf]
    %v843 = vld [vmem:[#allocation5 + $0x914] sm:$0xf]
    %v844 = vld [vmem:[#allocation5 + $0x918] sm:$0xf]
    %v845 = vld [vmem:[#allocation5 + $0x91c] sm:$0xf]
    %v846 = vld [vmem:[#allocation5 + $0x920] sm:$0xf]
    %v847 = vld [vmem:[#allocation5 + $0x924] sm:$0xf]
    %v848 = vld [vmem:[#allocation5 + $0x928] sm:$0xf]
    %v849 = vld [vmem:[#allocation5 + $0x92c] sm:$0xf]
    %v850 = vld [vmem:[#allocation5 + $0x930] sm:$0xf]
    %v851 = vld [vmem:[#allocation5 + $0x934] sm:$0xf]
    %v852 = vld [vmem:[#allocation5 + $0x938] sm:$0xf]
    %v853 = vld [vmem:[#allocation5 + $0x93c] sm:$0xf]
    %v854 = vld [vmem:[#allocation5 + $0x940] sm:$0xf]
    %v855 = vld [vmem:[#allocation5 + $0x944] sm:$0xf]
    %v856 = vld [vmem:[#allocation5 + $0x948] sm:$0xf]
    %v857 = vld [vmem:[#allocation5 + $0x94c] sm:$0xf]
    %v858 = vld [vmem:[#allocation5 + $0x950] sm:$0xf]
    %v859 = vld [vmem:[#allocation5 + $0x954] sm:$0xf]
    %v860 = vld [vmem:[#allocation5 + $0x958] sm:$0xf]
    %v861 = vld [vmem:[#allocation5 + $0x95c] sm:$0xf]
    %v862 = vld [vmem:[#allocation5 + $0x960] sm:$0xf]
    %v863 = vld [vmem:[#allocation5 + $0x964] sm:$0xf]
    %v864 = vld [vmem:[#allocation5 + $0x968] sm:$0xf]
    %v865 = vld [vmem:[#allocation5 + $0x96c] sm:$0xf]
    %v866 = vld [vmem:[#allocation5 + $0x970] sm:$0xf]
    %v867 = vld [vmem:[#allocation5 + $0x974] sm:$0xf]
    %v868 = vld [vmem:[#allocation5 + $0x978] sm:$0xf]
    %v869 = vld [vmem:[#allocation5 + $0x97c] sm:$0xf]
    %v870 = vld [vmem:[#allocation5 + $0x980] sm:$0xf]
    %v871 = vld [vmem:[#allocation5 + $0x984] sm:$0xf]
    %v872 = vld [vmem:[#allocation5 + $0x988] sm:$0xf]
    %v873 = vld [vmem:[#allocation5 + $0x98c] sm:$0xf]
    %v874 = vld [vmem:[#allocation5 + $0x990] sm:$0xf]
    %v875 = vld [vmem:[#allocation5 + $0x994] sm:$0xf]
    %v876 = vld [vmem:[#allocation5 + $0x998] sm:$0xf]
    %v877 = vld [vmem:[#allocation5 + $0x99c] sm:$0xf]
    %v878 = vld [vmem:[#allocation5 + $0x9a0] sm:$0xf]
    %v879 = vld [vmem:[#allocation5 + $0x9a4] sm:$0xf]
    %v880 = vld [vmem:[#allocation5 + $0x9a8] sm:$0xf]
    %v881 = vld [vmem:[#allocation5 + $0x9ac] sm:$0xf]
    %v882 = vld [vmem:[#allocation5 + $0x9b0] sm:$0xf]
    %v883 = vld [vmem:[#allocation5 + $0x9b4] sm:$0xf]
    %v884 = vld [vmem:[#allocation5 + $0x9b8] sm:$0xf]
    %v885 = vld [vmem:[#allocation5 + $0x9bc] sm:$0xf]
    %v886 = vld [vmem:[#allocation5 + $0x9c0] sm:$0xf]
    %v887 = vld [vmem:[#allocation5 + $0x9c4] sm:$0xf]
    %v888 = vld [vmem:[#allocation5 + $0x9c8] sm:$0xf]
    %v889 = vld [vmem:[#allocation5 + $0x9cc] sm:$0xf]
    %v890 = vld [vmem:[#allocation5 + $0x9d0] sm:$0xf]
    %v891 = vld [vmem:[#allocation5 + $0x9d4] sm:$0xf]
    %v892 = vld [vmem:[#allocation5 + $0x9d8] sm:$0xf]
    %v893 = vld [vmem:[#allocation5 + $0x9dc] sm:$0xf]
    %v894 = vld [vmem:[#allocation5 + $0x9e0] sm:$0xf]
    %v895 = vld [vmem:[#allocation5 + $0x9e4] sm:$0xf]
    %v896 = vld [vmem:[#allocation5 + $0x9e8] sm:$0xf]
    %v897 = vld [vmem:[#allocation5 + $0x9ec] sm:$0xf]
    %v898 = vld [vmem:[#allocation5 + $0x9f0] sm:$0xf]
    %v899 = vld [vmem:[#allocation5 + $0x9f4] sm:$0xf]
    %v900 = vld [vmem:[#allocation5 + $0x9f8] sm:$0xf]
    %v901 = vld [vmem:[#allocation5 + $0x9fc] sm:$0xf]
    %v902 = vld [vmem:[#allocation5 + $0xa00] sm:$0xf]
    %v903 = vld [vmem:[#allocation5 + $0xa04] sm:$0xf]
    %v904 = vld [vmem:[#allocation5 + $0xa08] sm:$0xf]
    %v905 = vld [vmem:[#allocation5 + $0xa0c] sm:$0xf]
    %v906 = vld [vmem:[#allocation5 + $0xa10] sm:$0xf]
    %v907 = vld [vmem:[#allocation5 + $0xa14] sm:$0xf]
    %v908 = vld [vmem:[#allocation5 + $0xa18] sm:$0xf]
    %v909 = vld [vmem:[#allocation5 + $0xa1c] sm:$0xf]
    %v910 = vld [vmem:[#allocation5 + $0xa20] sm:$0xf]
    %v911 = vld [vmem:[#allocation5 + $0xa24] sm:$0xf]
    %v912 = vld [vmem:[#allocation5 + $0xa28] sm:$0xf]
    %v913 = vld [vmem:[#allocation5 + $0xa2c] sm:$0xf]
    %v914 = vld [vmem:[#allocation5 + $0xa30] sm:$0xf]
    %v915 = vld [vmem:[#allocation5 + $0xa34] sm:$0xf]
    %v916 = vld [vmem:[#allocation5 + $0xa38] sm:$0xf]
    %v917 = vld [vmem:[#allocation5 + $0xa3c] sm:$0xf]
    %v918 = vld [vmem:[#allocation5 + $0xa40] sm:$0xf]
    %v919 = vld [vmem:[#allocation5 + $0xa44] sm:$0xf]
    %v920 = vld [vmem:[#allocation5 + $0xa48] sm:$0xf]
    %v921 = vld [vmem:[#allocation5 + $0xa4c] sm:$0xf]
    %v922 = vld [vmem:[#allocation5 + $0xa50] sm:$0xf]
    %v923 = vld [vmem:[#allocation5 + $0xa54] sm:$0xf]
    %v924 = vld [vmem:[#allocation5 + $0xa58] sm:$0xf]
    %v925 = vld [vmem:[#allocation5 + $0xa5c] sm:$0xf]
    %v926 = vld [vmem:[#allocation5 + $0xa60] sm:$0xf]
    %v927 = vld [vmem:[#allocation5 + $0xa64] sm:$0xf]
    %v928 = vld [vmem:[#allocation5 + $0xa68] sm:$0xf]
    %v929 = vld [vmem:[#allocation5 + $0xa6c] sm:$0xf]
    %v930 = vld [vmem:[#allocation5 + $0xa70] sm:$0xf]
    %v931 = vld [vmem:[#allocation5 + $0xa74] sm:$0xf]
    %v932 = vld [vmem:[#allocation5 + $0xa78] sm:$0xf]
    %v933 = vld [vmem:[#allocation5 + $0xa7c] sm:$0xf]
    %v934 = vld [vmem:[#allocation5 + $0xa80] sm:$0xf]
    %v935 = vld [vmem:[#allocation5 + $0xa84] sm:$0xf]
    %v936 = vld [vmem:[#allocation5 + $0xa88] sm:$0xf]
    %v937 = vld [vmem:[#allocation5 + $0xa8c] sm:$0xf]
    %v938 = vld [vmem:[#allocation5 + $0xa90] sm:$0xf]
    %v939 = vld [vmem:[#allocation5 + $0xa94] sm:$0xf]
    %v940 = vld [vmem:[#allocation5 + $0xa98] sm:$0xf]
    %v941 = vld [vmem:[#allocation5 + $0xa9c] sm:$0xf]
    %v942 = vld [vmem:[#allocation5 + $0xaa0] sm:$0xf]
    %v943 = vld [vmem:[#allocation5 + $0xaa4] sm:$0xf]
    %v944 = vld [vmem:[#allocation5 + $0xaa8] sm:$0xf]
    %v945 = vld [vmem:[#allocation5 + $0xaac] sm:$0xf]
    %v946 = vld [vmem:[#allocation5 + $0xab0] sm:$0xf]
    %v947 = vld [vmem:[#allocation5 + $0xab4] sm:$0xf]
    %v948 = vld [vmem:[#allocation5 + $0xab8] sm:$0xf]
    %v949 = vld [vmem:[#allocation5 + $0xabc] sm:$0xf]
    %v950 = vld [vmem:[#allocation5 + $0xac0] sm:$0xf]
    %v951 = vld [vmem:[#allocation5 + $0xac4] sm:$0xf]
    %v952 = vld [vmem:[#allocation5 + $0xac8] sm:$0xf]
    %v953 = vld [vmem:[#allocation5 + $0xacc] sm:$0xf]
    %v954 = vld [vmem:[#allocation5 + $0xad0] sm:$0xf]
    %v955 = vld [vmem:[#allocation5 + $0xad4] sm:$0xf]
    %v956 = vld [vmem:[#allocation5 + $0xad8] sm:$0xf]
    %v957 = vld [vmem:[#allocation5 + $0xadc] sm:$0xf]
    %v958 = vld [vmem:[#allocation5 + $0xae0] sm:$0xf]
    %v959 = vld [vmem:[#allocation5 + $0xae4] sm:$0xf]
    %v960 = vld [vmem:[#allocation5 + $0xae8] sm:$0xf]
    %v961 = vld [vmem:[#allocation5 + $0xaec] sm:$0xf]
    %v962 = vld [vmem:[#allocation5 + $0xaf0] sm:$0xf]
    %v963 = vld [vmem:[#allocation5 + $0xaf4] sm:$0xf]
    %v964 = vld [vmem:[#allocation5 + $0xaf8] sm:$0xf]
    %v965 = vld [vmem:[#allocation5 + $0xafc] sm:$0xf]
    %v966 = vld [vmem:[#allocation5 + $0xb00] sm:$0xf]
    %v967 = vld [vmem:[#allocation5 + $0xb04] sm:$0xf]
    %v968 = vld [vmem:[#allocation5 + $0xb08] sm:$0xf]
    %v969 = vld [vmem:[#allocation5 + $0xb0c] sm:$0xf]
    %v970 = vld [vmem:[#allocation5 + $0xb10] sm:$0xf]
    %v971 = vld [vmem:[#allocation5 + $0xb14] sm:$0xf]
    %v972 = vld [vmem:[#allocation5 + $0xb18] sm:$0xf]
    %v973 = vld [vmem:[#allocation5 + $0xb1c] sm:$0xf]
    %v974 = vld [vmem:[#allocation5 + $0xb20] sm:$0xf]
    %v975 = vld [vmem:[#allocation5 + $0xb24] sm:$0xf]
    %v976 = vld [vmem:[#allocation5 + $0xb28] sm:$0xf]
    %v977 = vld [vmem:[#allocation5 + $0xb2c] sm:$0xf]
    %v978 = vld [vmem:[#allocation5 + $0xb30] sm:$0xf]
    %v979 = vld [vmem:[#allocation5 + $0xb34] sm:$0xf]
    %v980 = vld [vmem:[#allocation5 + $0xb38] sm:$0xf]
    %v981 = vld [vmem:[#allocation5 + $0xb3c] sm:$0xf]
    %v982 = vld [vmem:[#allocation5 + $0xb40] sm:$0xf]
    %v983 = vld [vmem:[#allocation5 + $0xb44] sm:$0xf]
    %v984 = vld [vmem:[#allocation5 + $0xb48] sm:$0xf]
    %v985 = vld [vmem:[#allocation5 + $0xb4c] sm:$0xf]
    %v986 = vld [vmem:[#allocation5 + $0xb50] sm:$0xf]
    %v987 = vld [vmem:[#allocation5 + $0xb54] sm:$0xf]
    %v988 = vld [vmem:[#allocation5 + $0xb58] sm:$0xf]
    %v989 = vld [vmem:[#allocation5 + $0xb5c] sm:$0xf]
    %v990 = vld [vmem:[#allocation5 + $0xb60] sm:$0xf]
    %v991 = vld [vmem:[#allocation5 + $0xb64] sm:$0xf]
    %v992 = vld [vmem:[#allocation5 + $0xb68] sm:$0xf]
    %v993 = vld [vmem:[#allocation5 + $0xb6c] sm:$0xf]
    %v994 = vld [vmem:[#allocation5 + $0xb70] sm:$0xf]
    %v995 = vld [vmem:[#allocation5 + $0xb74] sm:$0xf]
    %v996 = vld [vmem:[#allocation5 + $0xb78] sm:$0xf]
    %v997 = vld [vmem:[#allocation5 + $0xb7c] sm:$0xf]
    %v998 = vld [vmem:[#allocation5 + $0xb80] sm:$0xf]
    %v999 = vld [vmem:[#allocation5 + $0xb84] sm:$0xf]
    %v1000 = vld [vmem:[#allocation5 + $0xb88] sm:$0xf]
    %v1001 = vld [vmem:[#allocation5 + $0xb8c] sm:$0xf]
    %v1002 = vld [vmem:[#allocation5 + $0xb90] sm:$0xf]
    %v1003 = vld [vmem:[#allocation5 + $0xb94] sm:$0xf]
    %v1004 = vld [vmem:[#allocation5 + $0xb98] sm:$0xf]
    %v1005 = vld [vmem:[#allocation5 + $0xb9c] sm:$0xf]
    %v1006 = vld [vmem:[#allocation5 + $0xba0] sm:$0xf]
    %v1007 = vld [vmem:[#allocation5 + $0xba4] sm:$0xf]
    %v1008 = vld [vmem:[#allocation5 + $0xba8] sm:$0xf]
    %v1009 = vld [vmem:[#allocation5 + $0xbac] sm:$0xf]
    %v1010 = vld [vmem:[#allocation5 + $0xbb0] sm:$0xf]
    %v1011 = vld [vmem:[#allocation5 + $0xbb4] sm:$0xf]
    %v1012 = vld [vmem:[#allocation5 + $0xbb8] sm:$0xf]
    %v1013 = vld [vmem:[#allocation5 + $0xbbc] sm:$0xf]
    %v1014 = vld [vmem:[#allocation5 + $0xbc0] sm:$0xf]
    %v1015 = vld [vmem:[#allocation5 + $0xbc4] sm:$0xf]
    %v1016 = vld [vmem:[#allocation5 + $0xbc8] sm:$0xf]
    %v1017 = vld [vmem:[#allocation5 + $0xbcc] sm:$0xf]
    %v1018 = vld [vmem:[#allocation5 + $0xbd0] sm:$0xf]
    %v1019 = vld [vmem:[#allocation5 + $0xbd4] sm:$0xf]
    %v1020 = vld [vmem:[#allocation5 + $0xbd8] sm:$0xf]
    %v1021 = vld [vmem:[#allocation5 + $0xbdc] sm:$0xf]
    %v1022 = vld [vmem:[#allocation5 + $0xbe0] sm:$0xf]
    %v1023 = vld [vmem:[#allocation5 + $0xbe4] sm:$0xf]
    %v1024 = vld [vmem:[#allocation5 + $0xbe8] sm:$0xf]
    %v1025 = vld [vmem:[#allocation5 + $0xbec] sm:$0xf]
    %v1026 = vld [vmem:[#allocation5 + $0xbf0] sm:$0xf]
    %v1027 = vld [vmem:[#allocation5 + $0xbf4] sm:$0xf]
    %v1028 = vld [vmem:[#allocation5 + $0xbf8] sm:$0xf]
    %v1029 = vld [vmem:[#allocation5 + $0xbfc] sm:$0xf]
    %v1030 = vld [vmem:[#allocation5 + $0xc00] sm:$0xf]
    %v1031 = vld [vmem:[#allocation5 + $0xc04] sm:$0xf]
    %v1032 = vld [vmem:[#allocation5 + $0xc08] sm:$0xf]
    %v1033 = vld [vmem:[#allocation5 + $0xc0c] sm:$0xf]
    %v1034 = vld [vmem:[#allocation5 + $0xc10] sm:$0xf]
    %v1035 = vld [vmem:[#allocation5 + $0xc14] sm:$0xf]
    %v1036 = vld [vmem:[#allocation5 + $0xc18] sm:$0xf]
    %v1037 = vld [vmem:[#allocation5 + $0xc1c] sm:$0xf]
    %v1038 = vld [vmem:[#allocation5 + $0xc20] sm:$0xf]
    %v1039 = vld [vmem:[#allocation5 + $0xc24] sm:$0xf]
    %v1040 = vld [vmem:[#allocation5 + $0xc28] sm:$0xf]
    %v1041 = vld [vmem:[#allocation5 + $0xc2c] sm:$0xf]
    %v1042 = vld [vmem:[#allocation5 + $0xc30] sm:$0xf]
    %v1043 = vld [vmem:[#allocation5 + $0xc34] sm:$0xf]
    %v1044 = vld [vmem:[#allocation5 + $0xc38] sm:$0xf]
    %v1045 = vld [vmem:[#allocation5 + $0xc3c] sm:$0xf]
    %v1046 = vld [vmem:[#allocation5 + $0xc40] sm:$0xf]
    %v1047 = vld [vmem:[#allocation5 + $0xc44] sm:$0xf]
    %v1048 = vld [vmem:[#allocation5 + $0xc48] sm:$0xf]
    %v1049 = vld [vmem:[#allocation5 + $0xc4c] sm:$0xf]
    %v1050 = vld [vmem:[#allocation5 + $0xc50] sm:$0xf]
    %v1051 = vld [vmem:[#allocation5 + $0xc54] sm:$0xf]
    %v1052 = vld [vmem:[#allocation5 + $0xc58] sm:$0xf]
    %v1053 = vld [vmem:[#allocation5 + $0xc5c] sm:$0xf]
    %v1054 = vld [vmem:[#allocation5 + $0xc60] sm:$0xf]
    %v1055 = vld [vmem:[#allocation5 + $0xc64] sm:$0xf]
    %v1056 = vld [vmem:[#allocation5 + $0xc68] sm:$0xf]
    %v1057 = vld [vmem:[#allocation5 + $0xc6c] sm:$0xf]
    %v1058 = vld [vmem:[#allocation5 + $0xc70] sm:$0xf]
    %v1059 = vld [vmem:[#allocation5 + $0xc74] sm:$0xf]
    %v1060 = vld [vmem:[#allocation5 + $0xc78] sm:$0xf]
    %v1061 = vld [vmem:[#allocation5 + $0xc7c] sm:$0xf]
    %v1062 = vld [vmem:[#allocation5 + $0xc80] sm:$0xf]
    %v1063 = vld [vmem:[#allocation5 + $0xc84] sm:$0xf]
    %v1064 = vld [vmem:[#allocation5 + $0xc88] sm:$0xf]
    %v1065 = vld [vmem:[#allocation5 + $0xc8c] sm:$0xf]
    %v1066 = vld [vmem:[#allocation5 + $0xc90] sm:$0xf]
    %v1067 = vld [vmem:[#allocation5 + $0xc94] sm:$0xf]
    %v1068 = vld [vmem:[#allocation5 + $0xc98] sm:$0xf]
    %v1069 = vld [vmem:[#allocation5 + $0xc9c] sm:$0xf]
    %v1070 = vld [vmem:[#allocation5 + $0xca0] sm:$0xf]
    %v1071 = vld [vmem:[#allocation5 + $0xca4] sm:$0xf]
    %v1072 = vld [vmem:[#allocation5 + $0xca8] sm:$0xf]
    %v1073 = vld [vmem:[#allocation5 + $0xcac] sm:$0xf]
    %v1074 = vld [vmem:[#allocation5 + $0xcb0] sm:$0xf]
    %v1075 = vld [vmem:[#allocation5 + $0xcb4] sm:$0xf]
    %v1076 = vld [vmem:[#allocation5 + $0xcb8] sm:$0xf]
    %v1077 = vld [vmem:[#allocation5 + $0xcbc] sm:$0xf]
    %v1078 = vld [vmem:[#allocation5 + $0xcc0] sm:$0xf]
    %v1079 = vld [vmem:[#allocation5 + $0xcc4] sm:$0xf]
    %v1080 = vld [vmem:[#allocation5 + $0xcc8] sm:$0xf]
    %v1081 = vld [vmem:[#allocation5 + $0xccc] sm:$0xf]
    %v1082 = vld [vmem:[#allocation5 + $0xcd0] sm:$0xf]
    %v1083 = vld [vmem:[#allocation5 + $0xcd4] sm:$0xf]
    %v1084 = vld [vmem:[#allocation5 + $0xcd8] sm:$0xf]
    %v1085 = vld [vmem:[#allocation5 + $0xcdc] sm:$0xf]
    %v1086 = vld [vmem:[#allocation5 + $0xce0] sm:$0xf]
    %v1087 = vld [vmem:[#allocation5 + $0xce4] sm:$0xf]
    %v1088 = vld [vmem:[#allocation5 + $0xce8] sm:$0xf]
    %v1089 = vld [vmem:[#allocation5 + $0xcec] sm:$0xf]
    %v1090 = vld [vmem:[#allocation5 + $0xcf0] sm:$0xf]
    %v1091 = vld [vmem:[#allocation5 + $0xcf4] sm:$0xf]
    %v1092 = vld [vmem:[#allocation5 + $0xcf8] sm:$0xf]
    %v1093 = vld [vmem:[#allocation5 + $0xcfc] sm:$0xf]
    %v1094 = vld [vmem:[#allocation5 + $0xd00] sm:$0xf]
    %v1095 = vld [vmem:[#allocation5 + $0xd04] sm:$0xf]
    %v1096 = vld [vmem:[#allocation5 + $0xd08] sm:$0xf]
    %v1097 = vld [vmem:[#allocation5 + $0xd0c] sm:$0xf]
    %v1098 = vld [vmem:[#allocation5 + $0xd10] sm:$0xf]
    %v1099 = vld [vmem:[#allocation5 + $0xd14] sm:$0xf]
    %v1100 = vld [vmem:[#allocation5 + $0xd18] sm:$0xf]
    %v1101 = vld [vmem:[#allocation5 + $0xd1c] sm:$0xf]
    %v1102 = vld [vmem:[#allocation5 + $0xd20] sm:$0xf]
    %v1103 = vld [vmem:[#allocation5 + $0xd24] sm:$0xf]
    %v1104 = vld [vmem:[#allocation5 + $0xd28] sm:$0xf]
    %v1105 = vld [vmem:[#allocation5 + $0xd2c] sm:$0xf]
    %v1106 = vld [vmem:[#allocation5 + $0xd30] sm:$0xf]
    %v1107 = vld [vmem:[#allocation5 + $0xd34] sm:$0xf]
    %v1108 = vld [vmem:[#allocation5 + $0xd38] sm:$0xf]
    %v1109 = vld [vmem:[#allocation5 + $0xd3c] sm:$0xf]
    %v1110 = vld [vmem:[#allocation5 + $0xd40] sm:$0xf]
    %v1111 = vld [vmem:[#allocation5 + $0xd44] sm:$0xf]
    %v1112 = vld [vmem:[#allocation5 + $0xd48] sm:$0xf]
    %v1113 = vld [vmem:[#allocation5 + $0xd4c] sm:$0xf]
    %v1114 = vld [vmem:[#allocation5 + $0xd50] sm:$0xf]
    %v1115 = vld [vmem:[#allocation5 + $0xd54] sm:$0xf]
    %v1116 = vld [vmem:[#allocation5 + $0xd58] sm:$0xf]
    %v1117 = vld [vmem:[#allocation5 + $0xd5c] sm:$0xf]
    %v1118 = vld [vmem:[#allocation5 + $0xd60] sm:$0xf]
    %v1119 = vld [vmem:[#allocation5 + $0xd64] sm:$0xf]
    %v1120 = vld [vmem:[#allocation5 + $0xd68] sm:$0xf]
    %v1121 = vld [vmem:[#allocation5 + $0xd6c] sm:$0xf]
    %v1122 = vld [vmem:[#allocation5 + $0xd70] sm:$0xf]
    %v1123 = vld [vmem:[#allocation5 + $0xd74] sm:$0xf]
    %v1124 = vld [vmem:[#allocation5 + $0xd78] sm:$0xf]
    %v1125 = vld [vmem:[#allocation5 + $0xd7c] sm:$0xf]
    %v1126 = vld [vmem:[#allocation5 + $0xd80] sm:$0xf]
    %v1127 = vld [vmem:[#allocation5 + $0xd84] sm:$0xf]
    %v1128 = vld [vmem:[#allocation5 + $0xd88] sm:$0xf]
    %v1129 = vld [vmem:[#allocation5 + $0xd8c] sm:$0xf]
    %v1130 = vld [vmem:[#allocation5 + $0xd90] sm:$0xf]
    %v1131 = vld [vmem:[#allocation5 + $0xd94] sm:$0xf]
    %v1132 = vld [vmem:[#allocation5 + $0xd98] sm:$0xf]
    %v1133 = vld [vmem:[#allocation5 + $0xd9c] sm:$0xf]
    %v1134 = vld [vmem:[#allocation5 + $0xda0] sm:$0xf]
    %v1135 = vld [vmem:[#allocation5 + $0xda4] sm:$0xf]
    %v1136 = vld [vmem:[#allocation5 + $0xda8] sm:$0xf]
    %v1137 = vld [vmem:[#allocation5 + $0xdac] sm:$0xf]
    %v1138 = vld [vmem:[#allocation5 + $0xdb0] sm:$0xf]
    %v1139 = vld [vmem:[#allocation5 + $0xdb4] sm:$0xf]
    %v1140 = vld [vmem:[#allocation5 + $0xdb8] sm:$0xf]
    %v1141 = vld [vmem:[#allocation5 + $0xdbc] sm:$0xf]
    %v1142 = vld [vmem:[#allocation5 + $0xdc0] sm:$0xf]
    %v1143 = vld [vmem:[#allocation5 + $0xdc4] sm:$0xf]
    %v1144 = vld [vmem:[#allocation5 + $0xdc8] sm:$0xf]
    %v1145 = vld [vmem:[#allocation5 + $0xdcc] sm:$0xf]
    %v1146 = vld [vmem:[#allocation5 + $0xdd0] sm:$0xf]
    %v1147 = vld [vmem:[#allocation5 + $0xdd4] sm:$0xf]
    %v1148 = vld [vmem:[#allocation5 + $0xdd8] sm:$0xf]
    %v1149 = vld [vmem:[#allocation5 + $0xddc] sm:$0xf]
    %v1150 = vld [vmem:[#allocation5 + $0xde0] sm:$0xf]
    %v1151 = vld [vmem:[#allocation5 + $0xde4] sm:$0xf]
    %v1152 = vld [vmem:[#allocation5 + $0xde8] sm:$0xf]
    %v1153 = vld [vmem:[#allocation5 + $0xdec] sm:$0xf]
    %v1154 = vld [vmem:[#allocation5 + $0xdf0] sm:$0xf]
    %v1155 = vld [vmem:[#allocation5 + $0xdf4] sm:$0xf]
    %v1156 = vld [vmem:[#allocation5 + $0xdf8] sm:$0xf]
    %v1157 = vld [vmem:[#allocation5 + $0xdfc] sm:$0xf]
    %v1158 = vld [vmem:[#allocation5 + $0xe00] sm:$0xf]
    %v1159 = vld [vmem:[#allocation5 + $0xe04] sm:$0xf]
    %v1160 = vld [vmem:[#allocation5 + $0xe08] sm:$0xf]
    %v1161 = vld [vmem:[#allocation5 + $0xe0c] sm:$0xf]
    %v1162 = vld [vmem:[#allocation5 + $0xe10] sm:$0xf]
    %v1163 = vld [vmem:[#allocation5 + $0xe14] sm:$0xf]
    %v1164 = vld [vmem:[#allocation5 + $0xe18] sm:$0xf]
    %v1165 = vld [vmem:[#allocation5 + $0xe1c] sm:$0xf]
    %v1166 = vld [vmem:[#allocation5 + $0xe20] sm:$0xf]
    %v1167 = vld [vmem:[#allocation5 + $0xe24] sm:$0xf]
    %v1168 = vld [vmem:[#allocation5 + $0xe28] sm:$0xf]
    %v1169 = vld [vmem:[#allocation5 + $0xe2c] sm:$0xf]
    %v1170 = vld [vmem:[#allocation5 + $0xe30] sm:$0xf]
    %v1171 = vld [vmem:[#allocation5 + $0xe34] sm:$0xf]
    %v1172 = vld [vmem:[#allocation5 + $0xe38] sm:$0xf]
    %v1173 = vld [vmem:[#allocation5 + $0xe3c] sm:$0xf]
    %v1174 = vld [vmem:[#allocation5 + $0xe40] sm:$0xf]
    %v1175 = vld [vmem:[#allocation5 + $0xe44] sm:$0xf]
    %v1176 = vld [vmem:[#allocation5 + $0xe48] sm:$0xf]
    %v1177 = vld [vmem:[#allocation5 + $0xe4c] sm:$0xf]
    %v1178 = vld [vmem:[#allocation5 + $0xe50] sm:$0xf]
    %v1179 = vld [vmem:[#allocation5 + $0xe54] sm:$0xf]
    %v1180 = vld [vmem:[#allocation5 + $0xe58] sm:$0xf]
    %v1181 = vld [vmem:[#allocation5 + $0xe5c] sm:$0xf]
    %v1182 = vld [vmem:[#allocation5 + $0xe60] sm:$0xf]
    %v1183 = vld [vmem:[#allocation5 + $0xe64] sm:$0xf]
    %v1184 = vld [vmem:[#allocation5 + $0xe68] sm:$0xf]
    %v1185 = vld [vmem:[#allocation5 + $0xe6c] sm:$0xf]
    %v1186 = vld [vmem:[#allocation5 + $0xe70] sm:$0xf]
    %v1187 = vld [vmem:[#allocation5 + $0xe74] sm:$0xf]
    %v1188 = vld [vmem:[#allocation5 + $0xe78] sm:$0xf]
    %v1189 = vld [vmem:[#allocation5 + $0xe7c] sm:$0xf]
    %v1190 = vld [vmem:[#allocation5 + $0xe80] sm:$0xf]
    %v1191 = vld [vmem:[#allocation5 + $0xe84] sm:$0xf]
    %v1192 = vld [vmem:[#allocation5 + $0xe88] sm:$0xf]
    %v1193 = vld [vmem:[#allocation5 + $0xe8c] sm:$0xf]
    %v1194 = vld [vmem:[#allocation5 + $0xe90] sm:$0xf]
    %v1195 = vld [vmem:[#allocation5 + $0xe94] sm:$0xf]
    %v1196 = vld [vmem:[#allocation5 + $0xe98] sm:$0xf]
    %v1197 = vld [vmem:[#allocation5 + $0xe9c] sm:$0xf]
    %v1198 = vld [vmem:[#allocation5 + $0xea0] sm:$0xf]
    %v1199 = vld [vmem:[#allocation5 + $0xea4] sm:$0xf]
    %v1200 = vld [vmem:[#allocation5 + $0xea8] sm:$0xf]
    %v1201 = vld [vmem:[#allocation5 + $0xeac] sm:$0xf]
    %v1202 = vld [vmem:[#allocation5 + $0xeb0] sm:$0xf]
    %v1203 = vld [vmem:[#allocation5 + $0xeb4] sm:$0xf]
    %v1204 = vld [vmem:[#allocation5 + $0xeb8] sm:$0xf]
    %v1205 = vld [vmem:[#allocation5 + $0xebc] sm:$0xf]
    %v1206 = vld [vmem:[#allocation5 + $0xec0] sm:$0xf]
    %v1207 = vld [vmem:[#allocation5 + $0xec4] sm:$0xf]
    %v1208 = vld [vmem:[#allocation5 + $0xec8] sm:$0xf]
    %v1209 = vld [vmem:[#allocation5 + $0xecc] sm:$0xf]
    %v1210 = vld [vmem:[#allocation5 + $0xed0] sm:$0xf]
    %v1211 = vld [vmem:[#allocation5 + $0xed4] sm:$0xf]
    %v1212 = vld [vmem:[#allocation5 + $0xed8] sm:$0xf]
    %v1213 = vld [vmem:[#allocation5 + $0xedc] sm:$0xf]
    %v1214 = vld [vmem:[#allocation5 + $0xee0] sm:$0xf]
    %v1215 = vld [vmem:[#allocation5 + $0xee4] sm:$0xf]
    %v1216 = vld [vmem:[#allocation5 + $0xee8] sm:$0xf]
    %v1217 = vld [vmem:[#allocation5 + $0xeec] sm:$0xf]
    %v1218 = vld [vmem:[#allocation5 + $0xef0] sm:$0xf]
    %v1219 = vld [vmem:[#allocation5 + $0xef4] sm:$0xf]
    %v1220 = vld [vmem:[#allocation5 + $0xef8] sm:$0xf]
    %v1221 = vld [vmem:[#allocation5 + $0xefc] sm:$0xf]
    %v1222 = vld [vmem:[#allocation5 + $0xf00] sm:$0xf]
    %v1223 = vld [vmem:[#allocation5 + $0xf04] sm:$0xf]
    %v1224 = vld [vmem:[#allocation5 + $0xf08] sm:$0xf]
    %v1225 = vld [vmem:[#allocation5 + $0xf0c] sm:$0xf]
    %v1226 = vld [vmem:[#allocation5 + $0xf10] sm:$0xf]
    %v1227 = vld [vmem:[#allocation5 + $0xf14] sm:$0xf]
    %v1228 = vld [vmem:[#allocation5 + $0xf18] sm:$0xf]
    %v1229 = vld [vmem:[#allocation5 + $0xf1c] sm:$0xf]
    %v1230 = vld [vmem:[#allocation5 + $0xf20] sm:$0xf]
    %v1231 = vld [vmem:[#allocation5 + $0xf24] sm:$0xf]
    %v1232 = vld [vmem:[#allocation5 + $0xf28] sm:$0xf]
    %v1233 = vld [vmem:[#allocation5 + $0xf2c] sm:$0xf]
    %v1234 = vld [vmem:[#allocation5 + $0xf30] sm:$0xf]
    %v1235 = vld [vmem:[#allocation5 + $0xf34] sm:$0xf]
    %v1236 = vld [vmem:[#allocation5 + $0xf38] sm:$0xf]
    %v1237 = vld [vmem:[#allocation5 + $0xf3c] sm:$0xf]
    %v1238 = vld [vmem:[#allocation5 + $0xf40] sm:$0xf]
    %v1239 = vld [vmem:[#allocation5 + $0xf44] sm:$0xf]
    %v1240 = vld [vmem:[#allocation5 + $0xf48] sm:$0xf]
    %v1241 = vld [vmem:[#allocation5 + $0xf4c] sm:$0xf]
    %v1242 = vld [vmem:[#allocation5 + $0xf50] sm:$0xf]
    %v1243 = vld [vmem:[#allocation5 + $0xf54] sm:$0xf]
    %v1244 = vld [vmem:[#allocation5 + $0xf58] sm:$0xf]
    %v1245 = vld [vmem:[#allocation5 + $0xf5c] sm:$0xf]
    %v1246 = vld [vmem:[#allocation5 + $0xf60] sm:$0xf]
    %v1247 = vld [vmem:[#allocation5 + $0xf64] sm:$0xf]
    %v1248 = vld [vmem:[#allocation5 + $0xf68] sm:$0xf]
    %v1249 = vld [vmem:[#allocation5 + $0xf6c] sm:$0xf]
    %v1250 = vld [vmem:[#allocation5 + $0xf70] sm:$0xf]
    %v1251 = vld [vmem:[#allocation5 + $0xf74] sm:$0xf]
    %v1252 = vld [vmem:[#allocation5 + $0xf78] sm:$0xf]
    %v1253 = vld [vmem:[#allocation5 + $0xf7c] sm:$0xf]
    %v1254 = vld [vmem:[#allocation5 + $0xf80] sm:$0xf]
    %v1255 = vld [vmem:[#allocation5 + $0xf84] sm:$0xf]
    %v1256 = vld [vmem:[#allocation5 + $0xf88] sm:$0xf]
    %v1257 = vld [vmem:[#allocation5 + $0xf8c] sm:$0xf]
    %v1258 = vld [vmem:[#allocation5 + $0xf90] sm:$0xf]
    %v1259 = vld [vmem:[#allocation5 + $0xf94] sm:$0xf]
    %v1260 = vld [vmem:[#allocation5 + $0xf98] sm:$0xf]
    %v1261 = vld [vmem:[#allocation5 + $0xf9c] sm:$0xf]
    %v1262 = vld [vmem:[#allocation5 + $0xfa0] sm:$0xf]
    %v1263 = vld [vmem:[#allocation5 + $0xfa4] sm:$0xf]
    %v1264 = vld [vmem:[#allocation5 + $0xfa8] sm:$0xf]
    %v1265 = vld [vmem:[#allocation5 + $0xfac] sm:$0xf]
    %v1266 = vld [vmem:[#allocation5 + $0xfb0] sm:$0xf]
    %v1267 = vld [vmem:[#allocation5 + $0xfb4] sm:$0xf]
    %v1268 = vld [vmem:[#allocation5 + $0xfb8] sm:$0xf]
    %v1269 = vld [vmem:[#allocation5 + $0xfbc] sm:$0xf]
    %v1270 = vld [vmem:[#allocation5 + $0xfc0] sm:$0xf]
    %v1271 = vld [vmem:[#allocation5 + $0xfc4] sm:$0xf]
    %v1272 = vld [vmem:[#allocation5 + $0xfc8] sm:$0xf]
    %v1273 = vld [vmem:[#allocation5 + $0xfcc] sm:$0xf]
    %v1274 = vld [vmem:[#allocation5 + $0xfd0] sm:$0xf]
    %v1275 = vld [vmem:[#allocation5 + $0xfd4] sm:$0xf]
    %v1276 = vld [vmem:[#allocation5 + $0xfd8] sm:$0xf]
    %v1277 = vld [vmem:[#allocation5 + $0xfdc] sm:$0xf]
    %v1278 = vld [vmem:[#allocation5 + $0xfe0] sm:$0xf]
    %v1279 = vld [vmem:[#allocation5 + $0xfe4] sm:$0xf]
    %v1280 = vld [vmem:[#allocation5 + $0xfe8] sm:$0xf]
    %v1281 = vld [vmem:[#allocation5 + $0xfec] sm:$0xf]
    %v1282 = vld [vmem:[#allocation5 + $0xff0] sm:$0xf]
    %v1283 = vld [vmem:[#allocation5 + $0xff4] sm:$0xf]
    %v1284 = vld [vmem:[#allocation5 + $0xff8] sm:$0xf]
    %v1285 = vld [vmem:[#allocation5 + $0xffc] sm:$0xf]
    %v1286 = vld [vmem:[#allocation7] sm:$0x1]
    %v1288 = vlaneseq
    %v1289 = vshrl.u32 %v1288, 7
    %v1290 = vsub.s32 0, %v1289
    %v1291 = vrot.slane %v1286, %v1290
    %v1325 = vunpack.c.l.b16 %v230
    %v1326 = vunpack.c.h.b16 %v230
    %v1327 = vunpack.c.l.b16 %v231
    %v1328 = vunpack.c.h.b16 %v231
    %v1329 = vunpack.c.l.b16 %v232
    %v1330 = vunpack.c.h.b16 %v232
    %v1331 = vunpack.c.l.b16 %v233
    %v1332 = vunpack.c.h.b16 %v233
    %v1333 = vunpack.c.l.b16 %v234
    %v1334 = vunpack.c.h.b16 %v234
    %v1335 = vunpack.c.l.b16 %v235
    %v1336 = vunpack.c.h.b16 %v235
    %v1337 = vunpack.c.l.b16 %v236
    %v1338 = vunpack.c.h.b16 %v236
    %v1339 = vunpack.c.l.b16 %v237
    %v1340 = vunpack.c.h.b16 %v237
    %v1341 = vunpack.c.l.b16 %v238
    %v1342 = vunpack.c.h.b16 %v238
    %v1343 = vunpack.c.l.b16 %v239
    %v1344 = vunpack.c.h.b16 %v239
    %v1345 = vunpack.c.l.b16 %v240
    %v1346 = vunpack.c.h.b16 %v240
    %v1347 = vunpack.c.l.b16 %v241
    %v1348 = vunpack.c.h.b16 %v241
    %v1349 = vunpack.c.l.b16 %v242
    %v1350 = vunpack.c.h.b16 %v242
    %v1351 = vunpack.c.l.b16 %v243
    %v1352 = vunpack.c.h.b16 %v243
    %v1353 = vunpack.c.l.b16 %v244
    %v1354 = vunpack.c.h.b16 %v244
    %v1355 = vunpack.c.l.b16 %v245
    %v1356 = vunpack.c.h.b16 %v245
    %v1357 = vunpack.c.l.b16 %v246
    %v1358 = vunpack.c.h.b16 %v246
    %v1359 = vunpack.c.l.b16 %v247
    %v1360 = vunpack.c.h.b16 %v247
    %v1361 = vunpack.c.l.b16 %v248
    %v1362 = vunpack.c.h.b16 %v248
    %v1363 = vunpack.c.l.b16 %v249
    %v1364 = vunpack.c.h.b16 %v249
    %v1365 = vunpack.c.l.b16 %v250
    %v1366 = vunpack.c.h.b16 %v250
    %v1367 = vunpack.c.l.b16 %v251
    %v1368 = vunpack.c.h.b16 %v251
    %v1369 = vunpack.c.l.b16 %v252
    %v1370 = vunpack.c.h.b16 %v252
    %v1371 = vunpack.c.l.b16 %v253
    %v1372 = vunpack.c.h.b16 %v253
    %v1373 = vunpack.c.l.b16 %v254
    %v1374 = vunpack.c.h.b16 %v254
    %v1375 = vunpack.c.l.b16 %v255
    %v1376 = vunpack.c.h.b16 %v255
    %v1377 = vunpack.c.l.b16 %v256
    %v1378 = vunpack.c.h.b16 %v256
    %v1379 = vunpack.c.l.b16 %v257
    %v1380 = vunpack.c.h.b16 %v257
    %v1381 = vunpack.c.l.b16 %v258
    %v1382 = vunpack.c.h.b16 %v258
    %v1383 = vunpack.c.l.b16 %v259
    %v1384 = vunpack.c.h.b16 %v259
    %v1385 = vunpack.c.l.b16 %v260
    %v1386 = vunpack.c.h.b16 %v260
    %v1387 = vunpack.c.l.b16 %v261
    %v1388 = vunpack.c.h.b16 %v261
    %v1389 = vpack.c.b16 %v1325, %v1325
    %v1390 = vpack.c.b16 %v1326, %v1326
    %v1391 = vpack.c.b16 %v1327, %v1327
    %v1392 = vpack.c.b16 %v1328, %v1328
    %v1393 = vpack.c.b16 %v1329, %v1329
    %v1394 = vpack.c.b16 %v1330, %v1330
    %v1395 = vpack.c.b16 %v1331, %v1331
    %v1396 = vpack.c.b16 %v1332, %v1332
    %v1397 = vpack.c.b16 %v1333, %v1333
    %v1398 = vpack.c.b16 %v1334, %v1334
    %v1399 = vpack.c.b16 %v1335, %v1335
    %v1400 = vpack.c.b16 %v1336, %v1336
    %v1401 = vpack.c.b16 %v1337, %v1337
    %v1402 = vpack.c.b16 %v1338, %v1338
    %v1403 = vpack.c.b16 %v1339, %v1339
    %v1404 = vpack.c.b16 %v1340, %v1340
    %v1405 = vpack.c.b16 %v1341, %v1341
    %v1406 = vpack.c.b16 %v1342, %v1342
    %v1407 = vpack.c.b16 %v1343, %v1343
    %v1408 = vpack.c.b16 %v1344, %v1344
    %v1409 = vpack.c.b16 %v1345, %v1345
    %v1410 = vpack.c.b16 %v1346, %v1346
    %v1411 = vpack.c.b16 %v1347, %v1347
    %v1412 = vpack.c.b16 %v1348, %v1348
    %v1413 = vpack.c.b16 %v1349, %v1349
    %v1414 = vpack.c.b16 %v1350, %v1350
    %v1415 = vpack.c.b16 %v1351, %v1351
    %v1416 = vpack.c.b16 %v1352, %v1352
    %v1417 = vpack.c.b16 %v1353, %v1353
    %v1418 = vpack.c.b16 %v1354, %v1354
    %v1419 = vpack.c.b16 %v1355, %v1355
    %v1420 = vpack.c.b16 %v1356, %v1356
    %v1421 = vpack.c.b16 %v1357, %v1357
    %v1422 = vpack.c.b16 %v1358, %v1358
    %v1423 = vpack.c.b16 %v1359, %v1359
    %v1424 = vpack.c.b16 %v1360, %v1360
    %v1425 = vpack.c.b16 %v1361, %v1361
    %v1426 = vpack.c.b16 %v1362, %v1362
    %v1427 = vpack.c.b16 %v1363, %v1363
    %v1428 = vpack.c.b16 %v1364, %v1364
    %v1429 = vpack.c.b16 %v1365, %v1365
    %v1430 = vpack.c.b16 %v1366, %v1366
    %v1431 = vpack.c.b16 %v1367, %v1367
    %v1432 = vpack.c.b16 %v1368, %v1368
    %v1433 = vpack.c.b16 %v1369, %v1369
    %v1434 = vpack.c.b16 %v1370, %v1370
    %v1435 = vpack.c.b16 %v1371, %v1371
    %v1436 = vpack.c.b16 %v1372, %v1372
    %v1437 = vpack.c.b16 %v1373, %v1373
    %v1438 = vpack.c.b16 %v1374, %v1374
    %v1439 = vpack.c.b16 %v1375, %v1375
    %v1440 = vpack.c.b16 %v1376, %v1376
    %v1441 = vpack.c.b16 %v1377, %v1377
    %v1442 = vpack.c.b16 %v1378, %v1378
    %v1443 = vpack.c.b16 %v1379, %v1379
    %v1444 = vpack.c.b16 %v1380, %v1380
    %v1445 = vpack.c.b16 %v1381, %v1381
    %v1446 = vpack.c.b16 %v1382, %v1382
    %v1447 = vpack.c.b16 %v1383, %v1383
    %v1448 = vpack.c.b16 %v1384, %v1384
    %v1449 = vpack.c.b16 %v1385, %v1385
    %v1450 = vpack.c.b16 %v1386, %v1386
    %v1451 = vpack.c.b16 %v1387, %v1387
    %v1452 = vpack.c.b16 %v1388, %v1388
    %v2541 = vunpack.c.l.b16 %v262
    %v2542 = vunpack.c.l.b16 %v263
    %v2543 = vunpack.c.l.b16 %v264
    %v2544 = vunpack.c.l.b16 %v265
    %v2545 = vunpack.c.l.b16 %v266
    %v2546 = vunpack.c.l.b16 %v267
    %v2547 = vunpack.c.l.b16 %v268
    %v2548 = vunpack.c.l.b16 %v269
    %v2549 = vunpack.c.l.b16 %v270
    %v2550 = vunpack.c.l.b16 %v271
    %v2551 = vunpack.c.l.b16 %v272
    %v2552 = vunpack.c.l.b16 %v273
    %v2553 = vunpack.c.l.b16 %v274
    %v2554 = vunpack.c.l.b16 %v275
    %v2555 = vunpack.c.l.b16 %v276
    %v2556 = vunpack.c.l.b16 %v277
    %v2557 = vunpack.c.l.b16 %v278
    %v2558 = vunpack.c.l.b16 %v279
    %v2559 = vunpack.c.l.b16 %v280
    %v2560 = vunpack.c.l.b16 %v281
    %v2561 = vunpack.c.l.b16 %v282
    %v2562 = vunpack.c.l.b16 %v283
    %v2563 = vunpack.c.l.b16 %v284
    %v2564 = vunpack.c.l.b16 %v285
    %v2565 = vunpack.c.l.b16 %v286
    %v2566 = vunpack.c.l.b16 %v287
    %v2567 = vunpack.c.l.b16 %v288
    %v2568 = vunpack.c.l.b16 %v289
    %v2569 = vunpack.c.l.b16 %v290
    %v2570 = vunpack.c.l.b16 %v291
    %v2571 = vunpack.c.l.b16 %v292
    %v2572 = vunpack.c.l.b16 %v293
    %v2573 = vunpack.c.l.b16 %v294
    %v2574 = vunpack.c.l.b16 %v295
    %v2575 = vunpack.c.l.b16 %v296
    %v2576 = vunpack.c.l.b16 %v297
    %v2577 = vunpack.c.l.b16 %v298
    %v2578 = vunpack.c.l.b16 %v299
    %v2579 = vunpack.c.l.b16 %v300
    %v2580 = vunpack.c.l.b16 %v301
    %v2581 = vunpack.c.l.b16 %v302
    %v2582 = vunpack.c.l.b16 %v303
    %v2583 = vunpack.c.l.b16 %v304
    %v2584 = vunpack.c.l.b16 %v305
    %v2585 = vunpack.c.l.b16 %v306
    %v2586 = vunpack.c.l.b16 %v307
    %v2587 = vunpack.c.l.b16 %v308
    %v2588 = vunpack.c.l.b16 %v309
    %v2589 = vunpack.c.l.b16 %v310
    %v2590 = vunpack.c.l.b16 %v311
    %v2591 = vunpack.c.l.b16 %v312
    %v2592 = vunpack.c.l.b16 %v313
    %v2593 = vunpack.c.l.b16 %v314
    %v2594 = vunpack.c.l.b16 %v315
    %v2595 = vunpack.c.l.b16 %v316
    %v2596 = vunpack.c.l.b16 %v317
    %v2597 = vunpack.c.l.b16 %v318
    %v2598 = vunpack.c.l.b16 %v319
    %v2599 = vunpack.c.l.b16 %v320
    %v2600 = vunpack.c.l.b16 %v321
    %v2601 = vunpack.c.l.b16 %v322
    %v2602 = vunpack.c.l.b16 %v323
    %v2603 = vunpack.c.l.b16 %v324
    %v2604 = vunpack.c.l.b16 %v325
    %v2605 = vunpack.c.l.b16 %v326
    %v2606 = vunpack.c.l.b16 %v327
    %v2607 = vunpack.c.l.b16 %v328
    %v2608 = vunpack.c.l.b16 %v329
    %v2609 = vunpack.c.l.b16 %v330
    %v2610 = vunpack.c.l.b16 %v331
    %v2611 = vunpack.c.l.b16 %v332
    %v2612 = vunpack.c.l.b16 %v333
    %v2613 = vunpack.c.l.b16 %v334
    %v2614 = vunpack.c.l.b16 %v335
    %v2615 = vunpack.c.l.b16 %v336
    %v2616 = vunpack.c.l.b16 %v337
    %v2617 = vunpack.c.l.b16 %v338
    %v2618 = vunpack.c.l.b16 %v339
    %v2619 = vunpack.c.l.b16 %v340
    %v2620 = vunpack.c.l.b16 %v341
    %v2621 = vunpack.c.l.b16 %v342
    %v2622 = vunpack.c.l.b16 %v343
    %v2623 = vunpack.c.l.b16 %v344
    %v2624 = vunpack.c.l.b16 %v345
    %v2625 = vunpack.c.l.b16 %v346
    %v2626 = vunpack.c.l.b16 %v347
    %v2627 = vunpack.c.l.b16 %v348
    %v2628 = vunpack.c.l.b16 %v349
    %v2629 = vunpack.c.l.b16 %v350
    %v2630 = vunpack.c.l.b16 %v351
    %v2631 = vunpack.c.l.b16 %v352
    %v2632 = vunpack.c.l.b16 %v353
    %v2633 = vunpack.c.l.b16 %v354
    %v2634 = vunpack.c.l.b16 %v355
    %v2635 = vunpack.c.l.b16 %v356
    %v2636 = vunpack.c.l.b16 %v357
    %v2637 = vunpack.c.l.b16 %v358
    %v2638 = vunpack.c.l.b16 %v359
    %v2639 = vunpack.c.l.b16 %v360
    %v2640 = vunpack.c.l.b16 %v361
    %v2641 = vunpack.c.l.b16 %v362
    %v2642 = vunpack.c.l.b16 %v363
    %v2643 = vunpack.c.l.b16 %v364
    %v2644 = vunpack.c.l.b16 %v365
    %v2645 = vunpack.c.l.b16 %v366
    %v2646 = vunpack.c.l.b16 %v367
    %v2647 = vunpack.c.l.b16 %v368
    %v2648 = vunpack.c.l.b16 %v369
    %v2649 = vunpack.c.l.b16 %v370
    %v2650 = vunpack.c.l.b16 %v371
    %v2651 = vunpack.c.l.b16 %v372
    %v2652 = vunpack.c.l.b16 %v373
    %v2653 = vunpack.c.l.b16 %v374
    %v2654 = vunpack.c.l.b16 %v375
    %v2655 = vunpack.c.l.b16 %v376
    %v2656 = vunpack.c.l.b16 %v377
    %v2657 = vunpack.c.l.b16 %v378
    %v2658 = vunpack.c.l.b16 %v379
    %v2659 = vunpack.c.l.b16 %v380
    %v2660 = vunpack.c.l.b16 %v381
    %v2661 = vunpack.c.l.b16 %v382
    %v2662 = vunpack.c.l.b16 %v383
    %v2663 = vunpack.c.l.b16 %v384
    %v2664 = vunpack.c.l.b16 %v385
    %v2665 = vunpack.c.l.b16 %v386
    %v2666 = vunpack.c.l.b16 %v387
    %v2667 = vunpack.c.l.b16 %v388
    %v2668 = vunpack.c.l.b16 %v389
    %v2669 = vunpack.c.l.b16 %v390
    %v2670 = vunpack.c.l.b16 %v391
    %v2671 = vunpack.c.l.b16 %v392
    %v2672 = vunpack.c.l.b16 %v393
    %v2673 = vunpack.c.l.b16 %v394
    %v2674 = vunpack.c.l.b16 %v395
    %v2675 = vunpack.c.l.b16 %v396
    %v2676 = vunpack.c.l.b16 %v397
    %v2677 = vunpack.c.l.b16 %v398
    %v2678 = vunpack.c.l.b16 %v399
    %v2679 = vunpack.c.l.b16 %v400
    %v2680 = vunpack.c.l.b16 %v401
    %v2681 = vunpack.c.l.b16 %v402
    %v2682 = vunpack.c.l.b16 %v403
    %v2683 = vunpack.c.l.b16 %v404
    %v2684 = vunpack.c.l.b16 %v405
    %v2685 = vunpack.c.l.b16 %v406
    %v2686 = vunpack.c.l.b16 %v407
    %v2687 = vunpack.c.l.b16 %v408
    %v2688 = vunpack.c.l.b16 %v409
    %v2689 = vunpack.c.l.b16 %v410
    %v2690 = vunpack.c.l.b16 %v411
    %v2691 = vunpack.c.l.b16 %v412
    %v2692 = vunpack.c.l.b16 %v413
    %v2693 = vunpack.c.l.b16 %v414
    %v2694 = vunpack.c.l.b16 %v415
    %v2695 = vunpack.c.l.b16 %v416
    %v2696 = vunpack.c.l.b16 %v417
    %v2697 = vunpack.c.l.b16 %v418
    %v2698 = vunpack.c.l.b16 %v419
    %v2699 = vunpack.c.l.b16 %v420
    %v2700 = vunpack.c.l.b16 %v421
    %v2701 = vunpack.c.l.b16 %v422
    %v2702 = vunpack.c.l.b16 %v423
    %v2703 = vunpack.c.l.b16 %v424
    %v2704 = vunpack.c.l.b16 %v425
    %v2705 = vunpack.c.l.b16 %v426
    %v2706 = vunpack.c.l.b16 %v427
    %v2707 = vunpack.c.l.b16 %v428
    %v2708 = vunpack.c.l.b16 %v429
    %v2709 = vunpack.c.l.b16 %v430
    %v2710 = vunpack.c.l.b16 %v431
    %v2711 = vunpack.c.l.b16 %v432
    %v2712 = vunpack.c.l.b16 %v433
    %v2713 = vunpack.c.l.b16 %v434
    %v2714 = vunpack.c.l.b16 %v435
    %v2715 = vunpack.c.l.b16 %v436
    %v2716 = vunpack.c.l.b16 %v437
    %v2717 = vunpack.c.l.b16 %v438
    %v2718 = vunpack.c.l.b16 %v439
    %v2719 = vunpack.c.l.b16 %v440
    %v2720 = vunpack.c.l.b16 %v441
    %v2721 = vunpack.c.l.b16 %v442
    %v2722 = vunpack.c.l.b16 %v443
    %v2723 = vunpack.c.l.b16 %v444
    %v2724 = vunpack.c.l.b16 %v445
    %v2725 = vunpack.c.l.b16 %v446
    %v2726 = vunpack.c.l.b16 %v447
    %v2727 = vunpack.c.l.b16 %v448
    %v2728 = vunpack.c.l.b16 %v449
    %v2729 = vunpack.c.l.b16 %v450
    %v2730 = vunpack.c.l.b16 %v451
    %v2731 = vunpack.c.l.b16 %v452
    %v2732 = vunpack.c.l.b16 %v453
    %v2733 = vunpack.c.l.b16 %v454
    %v2734 = vunpack.c.l.b16 %v455
    %v2735 = vunpack.c.l.b16 %v456
    %v2736 = vunpack.c.l.b16 %v457
    %v2737 = vunpack.c.l.b16 %v458
    %v2738 = vunpack.c.l.b16 %v459
    %v2739 = vunpack.c.l.b16 %v460
    %v2740 = vunpack.c.l.b16 %v461
    %v2741 = vunpack.c.l.b16 %v462
    %v2742 = vunpack.c.l.b16 %v463
    %v2743 = vunpack.c.l.b16 %v464
    %v2744 = vunpack.c.l.b16 %v465
    %v2745 = vunpack.c.l.b16 %v466
    %v2746 = vunpack.c.l.b16 %v467
    %v2747 = vunpack.c.l.b16 %v468
    %v2748 = vunpack.c.l.b16 %v469
    %v2749 = vunpack.c.l.b16 %v470
    %v2750 = vunpack.c.l.b16 %v471
    %v2751 = vunpack.c.l.b16 %v472
    %v2752 = vunpack.c.l.b16 %v473
    %v2753 = vunpack.c.l.b16 %v474
    %v2754 = vunpack.c.l.b16 %v475
    %v2755 = vunpack.c.l.b16 %v476
    %v2756 = vunpack.c.l.b16 %v477
    %v2757 = vunpack.c.l.b16 %v478
    %v2758 = vunpack.c.l.b16 %v479
    %v2759 = vunpack.c.l.b16 %v480
    %v2760 = vunpack.c.l.b16 %v481
    %v2761 = vunpack.c.l.b16 %v482
    %v2762 = vunpack.c.l.b16 %v483
    %v2763 = vunpack.c.l.b16 %v484
    %v2764 = vunpack.c.l.b16 %v485
    %v2765 = vunpack.c.l.b16 %v486
    %v2766 = vunpack.c.l.b16 %v487
    %v2767 = vunpack.c.l.b16 %v488
    %v2768 = vunpack.c.l.b16 %v489
    %v2769 = vunpack.c.l.b16 %v490
    %v2770 = vunpack.c.l.b16 %v491
    %v2771 = vunpack.c.l.b16 %v492
    %v2772 = vunpack.c.l.b16 %v493
    %v2773 = vunpack.c.l.b16 %v494
    %v2774 = vunpack.c.l.b16 %v495
    %v2775 = vunpack.c.l.b16 %v496
    %v2776 = vunpack.c.l.b16 %v497
    %v2777 = vunpack.c.l.b16 %v498
    %v2778 = vunpack.c.l.b16 %v499
    %v2779 = vunpack.c.l.b16 %v500
    %v2780 = vunpack.c.l.b16 %v501
    %v2781 = vunpack.c.l.b16 %v502
    %v2782 = vunpack.c.l.b16 %v503
    %v2783 = vunpack.c.l.b16 %v504
    %v2784 = vunpack.c.l.b16 %v505
    %v2785 = vunpack.c.l.b16 %v506
    %v2786 = vunpack.c.l.b16 %v507
    %v2787 = vunpack.c.l.b16 %v508
    %v2788 = vunpack.c.l.b16 %v509
    %v2789 = vunpack.c.l.b16 %v510
    %v2790 = vunpack.c.l.b16 %v511
    %v2791 = vunpack.c.l.b16 %v512
    %v2792 = vunpack.c.l.b16 %v513
    %v2793 = vunpack.c.l.b16 %v514
    %v2794 = vunpack.c.l.b16 %v515
    %v2795 = vunpack.c.l.b16 %v516
    %v2796 = vunpack.c.l.b16 %v517
    %v2797 = vunpack.c.l.b16 %v518
    %v2798 = vunpack.c.l.b16 %v519
    %v2799 = vunpack.c.l.b16 %v520
    %v2800 = vunpack.c.l.b16 %v521
    %v2801 = vunpack.c.l.b16 %v522
    %v2802 = vunpack.c.l.b16 %v523
    %v2803 = vunpack.c.l.b16 %v524
    %v2804 = vunpack.c.l.b16 %v525
    %v2805 = vunpack.c.l.b16 %v526
    %v2806 = vunpack.c.l.b16 %v527
    %v2807 = vunpack.c.l.b16 %v528
    %v2808 = vunpack.c.l.b16 %v529
    %v2809 = vunpack.c.l.b16 %v530
    %v2810 = vunpack.c.l.b16 %v531
    %v2811 = vunpack.c.l.b16 %v532
    %v2812 = vunpack.c.l.b16 %v533
    %v2813 = vunpack.c.l.b16 %v534
    %v2814 = vunpack.c.l.b16 %v535
    %v2815 = vunpack.c.l.b16 %v536
    %v2816 = vunpack.c.l.b16 %v537
    %v2817 = vunpack.c.l.b16 %v538
    %v2818 = vunpack.c.l.b16 %v539
    %v2819 = vunpack.c.l.b16 %v540
    %v2820 = vunpack.c.l.b16 %v541
    %v2821 = vunpack.c.l.b16 %v542
    %v2822 = vunpack.c.l.b16 %v543
    %v2823 = vunpack.c.l.b16 %v544
    %v2824 = vunpack.c.l.b16 %v545
    %v2825 = vunpack.c.l.b16 %v546
    %v2826 = vunpack.c.l.b16 %v547
    %v2827 = vunpack.c.l.b16 %v548
    %v2828 = vunpack.c.l.b16 %v549
    %v2829 = vunpack.c.l.b16 %v550
    %v2830 = vunpack.c.l.b16 %v551
    %v2831 = vunpack.c.l.b16 %v552
    %v2832 = vunpack.c.l.b16 %v553
    %v2833 = vunpack.c.l.b16 %v554
    %v2834 = vunpack.c.l.b16 %v555
    %v2835 = vunpack.c.l.b16 %v556
    %v2836 = vunpack.c.l.b16 %v557
    %v2837 = vunpack.c.l.b16 %v558
    %v2838 = vunpack.c.l.b16 %v559
    %v2839 = vunpack.c.l.b16 %v560
    %v2840 = vunpack.c.l.b16 %v561
    %v2841 = vunpack.c.l.b16 %v562
    %v2842 = vunpack.c.l.b16 %v563
    %v2843 = vunpack.c.l.b16 %v564
    %v2844 = vunpack.c.l.b16 %v565
    %v2845 = vunpack.c.l.b16 %v566
    %v2846 = vunpack.c.l.b16 %v567
    %v2847 = vunpack.c.l.b16 %v568
    %v2848 = vunpack.c.l.b16 %v569
    %v2849 = vunpack.c.l.b16 %v570
    %v2850 = vunpack.c.l.b16 %v571
    %v2851 = vunpack.c.l.b16 %v572
    %v2852 = vunpack.c.l.b16 %v573
    %v2853 = vunpack.c.l.b16 %v574
    %v2854 = vunpack.c.l.b16 %v575
    %v2855 = vunpack.c.l.b16 %v576
    %v2856 = vunpack.c.l.b16 %v577
    %v2857 = vunpack.c.l.b16 %v578
    %v2858 = vunpack.c.l.b16 %v579
    %v2859 = vunpack.c.l.b16 %v580
    %v2860 = vunpack.c.l.b16 %v581
    %v2861 = vunpack.c.l.b16 %v582
    %v2862 = vunpack.c.l.b16 %v583
    %v2863 = vunpack.c.l.b16 %v584
    %v2864 = vunpack.c.l.b16 %v585
    %v2865 = vunpack.c.l.b16 %v586
    %v2866 = vunpack.c.l.b16 %v587
    %v2867 = vunpack.c.l.b16 %v588
    %v2868 = vunpack.c.l.b16 %v589
    %v2869 = vunpack.c.l.b16 %v590
    %v2870 = vunpack.c.l.b16 %v591
    %v2871 = vunpack.c.l.b16 %v592
    %v2872 = vunpack.c.l.b16 %v593
    %v2873 = vunpack.c.l.b16 %v594
    %v2874 = vunpack.c.l.b16 %v595
    %v2875 = vunpack.c.l.b16 %v596
    %v2876 = vunpack.c.l.b16 %v597
    %v2877 = vunpack.c.l.b16 %v598
    %v2878 = vunpack.c.l.b16 %v599
    %v2879 = vunpack.c.l.b16 %v600
    %v2880 = vunpack.c.l.b16 %v601
    %v2881 = vunpack.c.l.b16 %v602
    %v2882 = vunpack.c.l.b16 %v603
    %v2883 = vunpack.c.l.b16 %v604
    %v2884 = vunpack.c.l.b16 %v605
    %v2885 = vunpack.c.l.b16 %v606
    %v2886 = vunpack.c.l.b16 %v607
    %v2887 = vunpack.c.l.b16 %v608
    %v2888 = vunpack.c.l.b16 %v609
    %v2889 = vunpack.c.l.b16 %v610
    %v2890 = vunpack.c.l.b16 %v611
    %v2891 = vunpack.c.l.b16 %v612
    %v2892 = vunpack.c.l.b16 %v613
    %v2893 = vunpack.c.l.b16 %v614
    %v2894 = vunpack.c.l.b16 %v615
    %v2895 = vunpack.c.l.b16 %v616
    %v2896 = vunpack.c.l.b16 %v617
    %v2897 = vunpack.c.l.b16 %v618
    %v2898 = vunpack.c.l.b16 %v619
    %v2899 = vunpack.c.l.b16 %v620
    %v2900 = vunpack.c.l.b16 %v621
    %v2901 = vunpack.c.l.b16 %v622
    %v2902 = vunpack.c.l.b16 %v623
    %v2903 = vunpack.c.l.b16 %v624
    %v2904 = vunpack.c.l.b16 %v625
    %v2905 = vunpack.c.l.b16 %v626
    %v2906 = vunpack.c.l.b16 %v627
    %v2907 = vunpack.c.l.b16 %v628
    %v2908 = vunpack.c.l.b16 %v629
    %v2909 = vunpack.c.l.b16 %v630
    %v2910 = vunpack.c.l.b16 %v631
    %v2911 = vunpack.c.l.b16 %v632
    %v2912 = vunpack.c.l.b16 %v633
    %v2913 = vunpack.c.l.b16 %v634
    %v2914 = vunpack.c.l.b16 %v635
    %v2915 = vunpack.c.l.b16 %v636
    %v2916 = vunpack.c.l.b16 %v637
    %v2917 = vunpack.c.l.b16 %v638
    %v2918 = vunpack.c.l.b16 %v639
    %v2919 = vunpack.c.l.b16 %v640
    %v2920 = vunpack.c.l.b16 %v641
    %v2921 = vunpack.c.l.b16 %v642
    %v2922 = vunpack.c.l.b16 %v643
    %v2923 = vunpack.c.l.b16 %v644
    %v2924 = vunpack.c.l.b16 %v645
    %v2925 = vunpack.c.l.b16 %v646
    %v2926 = vunpack.c.l.b16 %v647
    %v2927 = vunpack.c.l.b16 %v648
    %v2928 = vunpack.c.l.b16 %v649
    %v2929 = vunpack.c.l.b16 %v650
    %v2930 = vunpack.c.l.b16 %v651
    %v2931 = vunpack.c.l.b16 %v652
    %v2932 = vunpack.c.l.b16 %v653
    %v2933 = vunpack.c.l.b16 %v654
    %v2934 = vunpack.c.l.b16 %v655
    %v2935 = vunpack.c.l.b16 %v656
    %v2936 = vunpack.c.l.b16 %v657
    %v2937 = vunpack.c.l.b16 %v658
    %v2938 = vunpack.c.l.b16 %v659
    %v2939 = vunpack.c.l.b16 %v660
    %v2940 = vunpack.c.l.b16 %v661
    %v2941 = vunpack.c.l.b16 %v662
    %v2942 = vunpack.c.l.b16 %v663
    %v2943 = vunpack.c.l.b16 %v664
    %v2944 = vunpack.c.l.b16 %v665
    %v2945 = vunpack.c.l.b16 %v666
    %v2946 = vunpack.c.l.b16 %v667
    %v2947 = vunpack.c.l.b16 %v668
    %v2948 = vunpack.c.l.b16 %v669
    %v2949 = vunpack.c.l.b16 %v670
    %v2950 = vunpack.c.l.b16 %v671
    %v2951 = vunpack.c.l.b16 %v672
    %v2952 = vunpack.c.l.b16 %v673
    %v2953 = vunpack.c.l.b16 %v674
    %v2954 = vunpack.c.l.b16 %v675
    %v2955 = vunpack.c.l.b16 %v676
    %v2956 = vunpack.c.l.b16 %v677
    %v2957 = vunpack.c.l.b16 %v678
    %v2958 = vunpack.c.l.b16 %v679
    %v2959 = vunpack.c.l.b16 %v680
    %v2960 = vunpack.c.l.b16 %v681
    %v2961 = vunpack.c.l.b16 %v682
    %v2962 = vunpack.c.l.b16 %v683
    %v2963 = vunpack.c.l.b16 %v684
    %v2964 = vunpack.c.l.b16 %v685
    %v2965 = vunpack.c.l.b16 %v686
    %v2966 = vunpack.c.l.b16 %v687
    %v2967 = vunpack.c.l.b16 %v688
    %v2968 = vunpack.c.l.b16 %v689
    %v2969 = vunpack.c.l.b16 %v690
    %v2970 = vunpack.c.l.b16 %v691
    %v2971 = vunpack.c.l.b16 %v692
    %v2972 = vunpack.c.l.b16 %v693
    %v2973 = vunpack.c.l.b16 %v694
    %v2974 = vunpack.c.l.b16 %v695
    %v2975 = vunpack.c.l.b16 %v696
    %v2976 = vunpack.c.l.b16 %v697
    %v2977 = vunpack.c.l.b16 %v698
    %v2978 = vunpack.c.l.b16 %v699
    %v2979 = vunpack.c.l.b16 %v700
    %v2980 = vunpack.c.l.b16 %v701
    %v2981 = vunpack.c.l.b16 %v702
    %v2982 = vunpack.c.l.b16 %v703
    %v2983 = vunpack.c.l.b16 %v704
    %v2984 = vunpack.c.l.b16 %v705
    %v2985 = vunpack.c.l.b16 %v706
    %v2986 = vunpack.c.l.b16 %v707
    %v2987 = vunpack.c.l.b16 %v708
    %v2988 = vunpack.c.l.b16 %v709
    %v2989 = vunpack.c.l.b16 %v710
    %v2990 = vunpack.c.l.b16 %v711
    %v2991 = vunpack.c.l.b16 %v712
    %v2992 = vunpack.c.l.b16 %v713
    %v2993 = vunpack.c.l.b16 %v714
    %v2994 = vunpack.c.l.b16 %v715
    %v2995 = vunpack.c.l.b16 %v716
    %v2996 = vunpack.c.l.b16 %v717
    %v2997 = vunpack.c.l.b16 %v718
    %v2998 = vunpack.c.l.b16 %v719
    %v2999 = vunpack.c.l.b16 %v720
    %v3000 = vunpack.c.l.b16 %v721
    %v3001 = vunpack.c.l.b16 %v722
    %v3002 = vunpack.c.l.b16 %v723
    %v3003 = vunpack.c.l.b16 %v724
    %v3004 = vunpack.c.l.b16 %v725
    %v3005 = vunpack.c.l.b16 %v726
    %v3006 = vunpack.c.l.b16 %v727
    %v3007 = vunpack.c.l.b16 %v728
    %v3008 = vunpack.c.l.b16 %v729
    %v3009 = vunpack.c.l.b16 %v730
    %v3010 = vunpack.c.l.b16 %v731
    %v3011 = vunpack.c.l.b16 %v732
    %v3012 = vunpack.c.l.b16 %v733
    %v3013 = vunpack.c.l.b16 %v734
    %v3014 = vunpack.c.l.b16 %v735
    %v3015 = vunpack.c.l.b16 %v736
    %v3016 = vunpack.c.l.b16 %v737
    %v3017 = vunpack.c.l.b16 %v738
    %v3018 = vunpack.c.l.b16 %v739
    %v3019 = vunpack.c.l.b16 %v740
    %v3020 = vunpack.c.l.b16 %v741
    %v3021 = vunpack.c.l.b16 %v742
    %v3022 = vunpack.c.l.b16 %v743
    %v3023 = vunpack.c.l.b16 %v744
    %v3024 = vunpack.c.l.b16 %v745
    %v3025 = vunpack.c.l.b16 %v746
    %v3026 = vunpack.c.l.b16 %v747
    %v3027 = vunpack.c.l.b16 %v748
    %v3028 = vunpack.c.l.b16 %v749
    %v3029 = vunpack.c.l.b16 %v750
    %v3030 = vunpack.c.l.b16 %v751
    %v3031 = vunpack.c.l.b16 %v752
    %v3032 = vunpack.c.l.b16 %v753
    %v3033 = vunpack.c.l.b16 %v754
    %v3034 = vunpack.c.l.b16 %v755
    %v3035 = vunpack.c.l.b16 %v756
    %v3036 = vunpack.c.l.b16 %v757
    %v3037 = vunpack.c.l.b16 %v758
    %v3038 = vunpack.c.l.b16 %v759
    %v3039 = vunpack.c.l.b16 %v760
    %v3040 = vunpack.c.l.b16 %v761
    %v3041 = vunpack.c.l.b16 %v762
    %v3042 = vunpack.c.l.b16 %v763
    %v3043 = vunpack.c.l.b16 %v764
    %v3044 = vunpack.c.l.b16 %v765
    %v3045 = vunpack.c.l.b16 %v766
    %v3046 = vunpack.c.l.b16 %v767
    %v3047 = vunpack.c.l.b16 %v768
    %v3048 = vunpack.c.l.b16 %v769
    %v3049 = vunpack.c.l.b16 %v770
    %v3050 = vunpack.c.l.b16 %v771
    %v3051 = vunpack.c.l.b16 %v772
    %v3052 = vunpack.c.l.b16 %v773
    %v3053 = vunpack.c.l.b16 %v774
    %v3054 = vunpack.c.l.b16 %v775
    %v3055 = vunpack.c.l.b16 %v776
    %v3056 = vunpack.c.l.b16 %v777
    %v3057 = vunpack.c.l.b16 %v778
    %v3058 = vunpack.c.l.b16 %v779
    %v3059 = vunpack.c.l.b16 %v780
    %v3060 = vunpack.c.l.b16 %v781
    %v3061 = vunpack.c.l.b16 %v782
    %v3062 = vunpack.c.l.b16 %v783
    %v3063 = vunpack.c.l.b16 %v784
    %v3064 = vunpack.c.l.b16 %v785
    %v3065 = vunpack.c.l.b16 %v786
    %v3066 = vunpack.c.l.b16 %v787
    %v3067 = vunpack.c.l.b16 %v788
    %v3068 = vunpack.c.l.b16 %v789
    %v3069 = vunpack.c.l.b16 %v790
    %v3070 = vunpack.c.l.b16 %v791
    %v3071 = vunpack.c.l.b16 %v792
    %v3072 = vunpack.c.l.b16 %v793
    %v3073 = vunpack.c.l.b16 %v794
    %v3074 = vunpack.c.l.b16 %v795
    %v3075 = vunpack.c.l.b16 %v796
    %v3076 = vunpack.c.l.b16 %v797
    %v3077 = vunpack.c.l.b16 %v798
    %v3078 = vunpack.c.l.b16 %v799
    %v3079 = vunpack.c.l.b16 %v800
    %v3080 = vunpack.c.l.b16 %v801
    %v3081 = vunpack.c.l.b16 %v802
    %v3082 = vunpack.c.l.b16 %v803
    %v3083 = vunpack.c.l.b16 %v804
    %v3084 = vunpack.c.l.b16 %v805
    %v3085 = vunpack.c.l.b16 %v806
    %v3086 = vunpack.c.l.b16 %v807
    %v3087 = vunpack.c.l.b16 %v808
    %v3088 = vunpack.c.l.b16 %v809
    %v3089 = vunpack.c.l.b16 %v810
    %v3090 = vunpack.c.l.b16 %v811
    %v3091 = vunpack.c.l.b16 %v812
    %v3092 = vunpack.c.l.b16 %v813
    %v3093 = vunpack.c.l.b16 %v814
    %v3094 = vunpack.c.l.b16 %v815
    %v3095 = vunpack.c.l.b16 %v816
    %v3096 = vunpack.c.l.b16 %v817
    %v3097 = vunpack.c.l.b16 %v818
    %v3098 = vunpack.c.l.b16 %v819
    %v3099 = vunpack.c.l.b16 %v820
    %v3100 = vunpack.c.l.b16 %v821
    %v3101 = vunpack.c.l.b16 %v822
    %v3102 = vunpack.c.l.b16 %v823
    %v3103 = vunpack.c.l.b16 %v824
    %v3104 = vunpack.c.l.b16 %v825
    %v3105 = vunpack.c.l.b16 %v826
    %v3106 = vunpack.c.l.b16 %v827
    %v3107 = vunpack.c.l.b16 %v828
    %v3108 = vunpack.c.l.b16 %v829
    %v3109 = vunpack.c.l.b16 %v830
    %v3110 = vunpack.c.l.b16 %v831
    %v3111 = vunpack.c.l.b16 %v832
    %v3112 = vunpack.c.l.b16 %v833
    %v3113 = vunpack.c.l.b16 %v834
    %v3114 = vunpack.c.l.b16 %v835
    %v3115 = vunpack.c.l.b16 %v836
    %v3116 = vunpack.c.l.b16 %v837
    %v3117 = vunpack.c.l.b16 %v838
    %v3118 = vunpack.c.l.b16 %v839
    %v3119 = vunpack.c.l.b16 %v840
    %v3120 = vunpack.c.l.b16 %v841
    %v3121 = vunpack.c.l.b16 %v842
    %v3122 = vunpack.c.l.b16 %v843
    %v3123 = vunpack.c.l.b16 %v844
    %v3124 = vunpack.c.l.b16 %v845
    %v3125 = vunpack.c.l.b16 %v846
    %v3126 = vunpack.c.l.b16 %v847
    %v3127 = vunpack.c.l.b16 %v848
    %v3128 = vunpack.c.l.b16 %v849
    %v3129 = vunpack.c.l.b16 %v850
    %v3130 = vunpack.c.l.b16 %v851
    %v3131 = vunpack.c.l.b16 %v852
    %v3132 = vunpack.c.l.b16 %v853
    %v3133 = vunpack.c.l.b16 %v854
    %v3134 = vunpack.c.l.b16 %v855
    %v3135 = vunpack.c.l.b16 %v856
    %v3136 = vunpack.c.l.b16 %v857
    %v3137 = vunpack.c.l.b16 %v858
    %v3138 = vunpack.c.l.b16 %v859
    %v3139 = vunpack.c.l.b16 %v860
    %v3140 = vunpack.c.l.b16 %v861
    %v3141 = vunpack.c.l.b16 %v862
    %v3142 = vunpack.c.l.b16 %v863
    %v3143 = vunpack.c.l.b16 %v864
    %v3144 = vunpack.c.l.b16 %v865
    %v3145 = vunpack.c.l.b16 %v866
    %v3146 = vunpack.c.l.b16 %v867
    %v3147 = vunpack.c.l.b16 %v868
    %v3148 = vunpack.c.l.b16 %v869
    %v3149 = vunpack.c.l.b16 %v870
    %v3150 = vunpack.c.l.b16 %v871
    %v3151 = vunpack.c.l.b16 %v872
    %v3152 = vunpack.c.l.b16 %v873
    %v3153 = vunpack.c.l.b16 %v874
    %v3154 = vunpack.c.l.b16 %v875
    %v3155 = vunpack.c.l.b16 %v876
    %v3156 = vunpack.c.l.b16 %v877
    %v3157 = vunpack.c.l.b16 %v878
    %v3158 = vunpack.c.l.b16 %v879
    %v3159 = vunpack.c.l.b16 %v880
    %v3160 = vunpack.c.l.b16 %v881
    %v3161 = vunpack.c.l.b16 %v882
    %v3162 = vunpack.c.l.b16 %v883
    %v3163 = vunpack.c.l.b16 %v884
    %v3164 = vunpack.c.l.b16 %v885
    %v3165 = vunpack.c.l.b16 %v886
    %v3166 = vunpack.c.l.b16 %v887
    %v3167 = vunpack.c.l.b16 %v888
    %v3168 = vunpack.c.l.b16 %v889
    %v3169 = vunpack.c.l.b16 %v890
    %v3170 = vunpack.c.l.b16 %v891
    %v3171 = vunpack.c.l.b16 %v892
    %v3172 = vunpack.c.l.b16 %v893
    %v3173 = vunpack.c.l.b16 %v894
    %v3174 = vunpack.c.l.b16 %v895
    %v3175 = vunpack.c.l.b16 %v896
    %v3176 = vunpack.c.l.b16 %v897
    %v3177 = vunpack.c.l.b16 %v898
    %v3178 = vunpack.c.l.b16 %v899
    %v3179 = vunpack.c.l.b16 %v900
    %v3180 = vunpack.c.l.b16 %v901
    %v3181 = vunpack.c.l.b16 %v902
    %v3182 = vunpack.c.l.b16 %v903
    %v3183 = vunpack.c.l.b16 %v904
    %v3184 = vunpack.c.l.b16 %v905
    %v3185 = vunpack.c.l.b16 %v906
    %v3186 = vunpack.c.l.b16 %v907
    %v3187 = vunpack.c.l.b16 %v908
    %v3188 = vunpack.c.l.b16 %v909
    %v3189 = vunpack.c.l.b16 %v910
    %v3190 = vunpack.c.l.b16 %v911
    %v3191 = vunpack.c.l.b16 %v912
    %v3192 = vunpack.c.l.b16 %v913
    %v3193 = vunpack.c.l.b16 %v914
    %v3194 = vunpack.c.l.b16 %v915
    %v3195 = vunpack.c.l.b16 %v916
    %v3196 = vunpack.c.l.b16 %v917
    %v3197 = vunpack.c.l.b16 %v918
    %v3198 = vunpack.c.l.b16 %v919
    %v3199 = vunpack.c.l.b16 %v920
    %v3200 = vunpack.c.l.b16 %v921
    %v3201 = vunpack.c.l.b16 %v922
    %v3202 = vunpack.c.l.b16 %v923
    %v3203 = vunpack.c.l.b16 %v924
    %v3204 = vunpack.c.l.b16 %v925
    %v3205 = vunpack.c.l.b16 %v926
    %v3206 = vunpack.c.l.b16 %v927
    %v3207 = vunpack.c.l.b16 %v928
    %v3208 = vunpack.c.l.b16 %v929
    %v3209 = vunpack.c.l.b16 %v930
    %v3210 = vunpack.c.l.b16 %v931
    %v3211 = vunpack.c.l.b16 %v932
    %v3212 = vunpack.c.l.b16 %v933
    %v3213 = vunpack.c.l.b16 %v934
    %v3214 = vunpack.c.l.b16 %v935
    %v3215 = vunpack.c.l.b16 %v936
    %v3216 = vunpack.c.l.b16 %v937
    %v3217 = vunpack.c.l.b16 %v938
    %v3218 = vunpack.c.l.b16 %v939
    %v3219 = vunpack.c.l.b16 %v940
    %v3220 = vunpack.c.l.b16 %v941
    %v3221 = vunpack.c.l.b16 %v942
    %v3222 = vunpack.c.l.b16 %v943
    %v3223 = vunpack.c.l.b16 %v944
    %v3224 = vunpack.c.l.b16 %v945
    %v3225 = vunpack.c.l.b16 %v946
    %v3226 = vunpack.c.l.b16 %v947
    %v3227 = vunpack.c.l.b16 %v948
    %v3228 = vunpack.c.l.b16 %v949
    %v3229 = vunpack.c.l.b16 %v950
    %v3230 = vunpack.c.l.b16 %v951
    %v3231 = vunpack.c.l.b16 %v952
    %v3232 = vunpack.c.l.b16 %v953
    %v3233 = vunpack.c.l.b16 %v954
    %v3234 = vunpack.c.l.b16 %v955
    %v3235 = vunpack.c.l.b16 %v956
    %v3236 = vunpack.c.l.b16 %v957
    %v3237 = vunpack.c.l.b16 %v958
    %v3238 = vunpack.c.l.b16 %v959
    %v3239 = vunpack.c.l.b16 %v960
    %v3240 = vunpack.c.l.b16 %v961
    %v3241 = vunpack.c.l.b16 %v962
    %v3242 = vunpack.c.l.b16 %v963
    %v3243 = vunpack.c.l.b16 %v964
    %v3244 = vunpack.c.l.b16 %v965
    %v3245 = vunpack.c.l.b16 %v966
    %v3246 = vunpack.c.l.b16 %v967
    %v3247 = vunpack.c.l.b16 %v968
    %v3248 = vunpack.c.l.b16 %v969
    %v3249 = vunpack.c.l.b16 %v970
    %v3250 = vunpack.c.l.b16 %v971
    %v3251 = vunpack.c.l.b16 %v972
    %v3252 = vunpack.c.l.b16 %v973
    %v3253 = vunpack.c.l.b16 %v974
    %v3254 = vunpack.c.l.b16 %v975
    %v3255 = vunpack.c.l.b16 %v976
    %v3256 = vunpack.c.l.b16 %v977
    %v3257 = vunpack.c.l.b16 %v978
    %v3258 = vunpack.c.l.b16 %v979
    %v3259 = vunpack.c.l.b16 %v980
    %v3260 = vunpack.c.l.b16 %v981
    %v3261 = vunpack.c.l.b16 %v982
    %v3262 = vunpack.c.l.b16 %v983
    %v3263 = vunpack.c.l.b16 %v984
    %v3264 = vunpack.c.l.b16 %v985
    %v3265 = vunpack.c.l.b16 %v986
    %v3266 = vunpack.c.l.b16 %v987
    %v3267 = vunpack.c.l.b16 %v988
    %v3268 = vunpack.c.l.b16 %v989
    %v3269 = vunpack.c.l.b16 %v990
    %v3270 = vunpack.c.l.b16 %v991
    %v3271 = vunpack.c.l.b16 %v992
    %v3272 = vunpack.c.l.b16 %v993
    %v3273 = vunpack.c.l.b16 %v994
    %v3274 = vunpack.c.l.b16 %v995
    %v3275 = vunpack.c.l.b16 %v996
    %v3276 = vunpack.c.l.b16 %v997
    %v3277 = vunpack.c.l.b16 %v998
    %v3278 = vunpack.c.l.b16 %v999
    %v3279 = vunpack.c.l.b16 %v1000
    %v3280 = vunpack.c.l.b16 %v1001
    %v3281 = vunpack.c.l.b16 %v1002
    %v3282 = vunpack.c.l.b16 %v1003
    %v3283 = vunpack.c.l.b16 %v1004
    %v3284 = vunpack.c.l.b16 %v1005
    %v3285 = vunpack.c.l.b16 %v1006
    %v3286 = vunpack.c.l.b16 %v1007
    %v3287 = vunpack.c.l.b16 %v1008
    %v3288 = vunpack.c.l.b16 %v1009
    %v3289 = vunpack.c.l.b16 %v1010
    %v3290 = vunpack.c.l.b16 %v1011
    %v3291 = vunpack.c.l.b16 %v1012
    %v3292 = vunpack.c.l.b16 %v1013
    %v3293 = vunpack.c.l.b16 %v1014
    %v3294 = vunpack.c.l.b16 %v1015
    %v3295 = vunpack.c.l.b16 %v1016
    %v3296 = vunpack.c.l.b16 %v1017
    %v3297 = vunpack.c.l.b16 %v1018
    %v3298 = vunpack.c.l.b16 %v1019
    %v3299 = vunpack.c.l.b16 %v1020
    %v3300 = vunpack.c.l.b16 %v1021
    %v3301 = vunpack.c.l.b16 %v1022
    %v3302 = vunpack.c.l.b16 %v1023
    %v3303 = vunpack.c.l.b16 %v1024
    %v3304 = vunpack.c.l.b16 %v1025
    %v3305 = vunpack.c.l.b16 %v1026
    %v3306 = vunpack.c.l.b16 %v1027
    %v3307 = vunpack.c.l.b16 %v1028
    %v3308 = vunpack.c.l.b16 %v1029
    %v3309 = vunpack.c.l.b16 %v1030
    %v3310 = vunpack.c.l.b16 %v1031
    %v3311 = vunpack.c.l.b16 %v1032
    %v3312 = vunpack.c.l.b16 %v1033
    %v3313 = vunpack.c.l.b16 %v1034
    %v3314 = vunpack.c.l.b16 %v1035
    %v3315 = vunpack.c.l.b16 %v1036
    %v3316 = vunpack.c.l.b16 %v1037
    %v3317 = vunpack.c.l.b16 %v1038
    %v3318 = vunpack.c.l.b16 %v1039
    %v3319 = vunpack.c.l.b16 %v1040
    %v3320 = vunpack.c.l.b16 %v1041
    %v3321 = vunpack.c.l.b16 %v1042
    %v3322 = vunpack.c.l.b16 %v1043
    %v3323 = vunpack.c.l.b16 %v1044
    %v3324 = vunpack.c.l.b16 %v1045
    %v3325 = vunpack.c.l.b16 %v1046
    %v3326 = vunpack.c.l.b16 %v1047
    %v3327 = vunpack.c.l.b16 %v1048
    %v3328 = vunpack.c.l.b16 %v1049
    %v3329 = vunpack.c.l.b16 %v1050
    %v3330 = vunpack.c.l.b16 %v1051
    %v3331 = vunpack.c.l.b16 %v1052
    %v3332 = vunpack.c.l.b16 %v1053
    %v3333 = vunpack.c.l.b16 %v1054
    %v3334 = vunpack.c.l.b16 %v1055
    %v3335 = vunpack.c.l.b16 %v1056
    %v3336 = vunpack.c.l.b16 %v1057
    %v3337 = vunpack.c.l.b16 %v1058
    %v3338 = vunpack.c.l.b16 %v1059
    %v3339 = vunpack.c.l.b16 %v1060
    %v3340 = vunpack.c.l.b16 %v1061
    %v3341 = vunpack.c.l.b16 %v1062
    %v3342 = vunpack.c.l.b16 %v1063
    %v3343 = vunpack.c.l.b16 %v1064
    %v3344 = vunpack.c.l.b16 %v1065
    %v3345 = vunpack.c.l.b16 %v1066
    %v3346 = vunpack.c.l.b16 %v1067
    %v3347 = vunpack.c.l.b16 %v1068
    %v3348 = vunpack.c.l.b16 %v1069
    %v3349 = vunpack.c.l.b16 %v1070
    %v3350 = vunpack.c.l.b16 %v1071
    %v3351 = vunpack.c.l.b16 %v1072
    %v3352 = vunpack.c.l.b16 %v1073
    %v3353 = vunpack.c.l.b16 %v1074
    %v3354 = vunpack.c.l.b16 %v1075
    %v3355 = vunpack.c.l.b16 %v1076
    %v3356 = vunpack.c.l.b16 %v1077
    %v3357 = vunpack.c.l.b16 %v1078
    %v3358 = vunpack.c.l.b16 %v1079
    %v3359 = vunpack.c.l.b16 %v1080
    %v3360 = vunpack.c.l.b16 %v1081
    %v3361 = vunpack.c.l.b16 %v1082
    %v3362 = vunpack.c.l.b16 %v1083
    %v3363 = vunpack.c.l.b16 %v1084
    %v3364 = vunpack.c.l.b16 %v1085
    %v3365 = vunpack.c.l.b16 %v1086
    %v3366 = vunpack.c.l.b16 %v1087
    %v3367 = vunpack.c.l.b16 %v1088
    %v3368 = vunpack.c.l.b16 %v1089
    %v3369 = vunpack.c.l.b16 %v1090
    %v3370 = vunpack.c.l.b16 %v1091
    %v3371 = vunpack.c.l.b16 %v1092
    %v3372 = vunpack.c.l.b16 %v1093
    %v3373 = vunpack.c.l.b16 %v1094
    %v3374 = vunpack.c.l.b16 %v1095
    %v3375 = vunpack.c.l.b16 %v1096
    %v3376 = vunpack.c.l.b16 %v1097
    %v3377 = vunpack.c.l.b16 %v1098
    %v3378 = vunpack.c.l.b16 %v1099
    %v3379 = vunpack.c.l.b16 %v1100
    %v3380 = vunpack.c.l.b16 %v1101
    %v3381 = vunpack.c.l.b16 %v1102
    %v3382 = vunpack.c.l.b16 %v1103
    %v3383 = vunpack.c.l.b16 %v1104
    %v3384 = vunpack.c.l.b16 %v1105
    %v3385 = vunpack.c.l.b16 %v1106
    %v3386 = vunpack.c.l.b16 %v1107
    %v3387 = vunpack.c.l.b16 %v1108
    %v3388 = vunpack.c.l.b16 %v1109
    %v3389 = vunpack.c.l.b16 %v1110
    %v3390 = vunpack.c.l.b16 %v1111
    %v3391 = vunpack.c.l.b16 %v1112
    %v3392 = vunpack.c.l.b16 %v1113
    %v3393 = vunpack.c.l.b16 %v1114
    %v3394 = vunpack.c.l.b16 %v1115
    %v3395 = vunpack.c.l.b16 %v1116
    %v3396 = vunpack.c.l.b16 %v1117
    %v3397 = vunpack.c.l.b16 %v1118
    %v3398 = vunpack.c.l.b16 %v1119
    %v3399 = vunpack.c.l.b16 %v1120
    %v3400 = vunpack.c.l.b16 %v1121
    %v3401 = vunpack.c.l.b16 %v1122
    %v3402 = vunpack.c.l.b16 %v1123
    %v3403 = vunpack.c.l.b16 %v1124
    %v3404 = vunpack.c.l.b16 %v1125
    %v3405 = vunpack.c.l.b16 %v1126
    %v3406 = vunpack.c.l.b16 %v1127
    %v3407 = vunpack.c.l.b16 %v1128
    %v3408 = vunpack.c.l.b16 %v1129
    %v3409 = vunpack.c.l.b16 %v1130
    %v3410 = vunpack.c.l.b16 %v1131
    %v3411 = vunpack.c.l.b16 %v1132
    %v3412 = vunpack.c.l.b16 %v1133
    %v3413 = vunpack.c.l.b16 %v1134
    %v3414 = vunpack.c.l.b16 %v1135
    %v3415 = vunpack.c.l.b16 %v1136
    %v3416 = vunpack.c.l.b16 %v1137
    %v3417 = vunpack.c.l.b16 %v1138
    %v3418 = vunpack.c.l.b16 %v1139
    %v3419 = vunpack.c.l.b16 %v1140
    %v3420 = vunpack.c.l.b16 %v1141
    %v3421 = vunpack.c.l.b16 %v1142
    %v3422 = vunpack.c.l.b16 %v1143
    %v3423 = vunpack.c.l.b16 %v1144
    %v3424 = vunpack.c.l.b16 %v1145
    %v3425 = vunpack.c.l.b16 %v1146
    %v3426 = vunpack.c.l.b16 %v1147
    %v3427 = vunpack.c.l.b16 %v1148
    %v3428 = vunpack.c.l.b16 %v1149
    %v3429 = vunpack.c.l.b16 %v1150
    %v3430 = vunpack.c.l.b16 %v1151
    %v3431 = vunpack.c.l.b16 %v1152
    %v3432 = vunpack.c.l.b16 %v1153
    %v3433 = vunpack.c.l.b16 %v1154
    %v3434 = vunpack.c.l.b16 %v1155
    %v3435 = vunpack.c.l.b16 %v1156
    %v3436 = vunpack.c.l.b16 %v1157
    %v3437 = vunpack.c.l.b16 %v1158
    %v3438 = vunpack.c.l.b16 %v1159
    %v3439 = vunpack.c.l.b16 %v1160
    %v3440 = vunpack.c.l.b16 %v1161
    %v3441 = vunpack.c.l.b16 %v1162
    %v3442 = vunpack.c.l.b16 %v1163
    %v3443 = vunpack.c.l.b16 %v1164
    %v3444 = vunpack.c.l.b16 %v1165
    %v3445 = vunpack.c.l.b16 %v1166
    %v3446 = vunpack.c.l.b16 %v1167
    %v3447 = vunpack.c.l.b16 %v1168
    %v3448 = vunpack.c.l.b16 %v1169
    %v3449 = vunpack.c.l.b16 %v1170
    %v3450 = vunpack.c.l.b16 %v1171
    %v3451 = vunpack.c.l.b16 %v1172
    %v3452 = vunpack.c.l.b16 %v1173
    %v3453 = vunpack.c.l.b16 %v1174
    %v3454 = vunpack.c.l.b16 %v1175
    %v3455 = vunpack.c.l.b16 %v1176
    %v3456 = vunpack.c.l.b16 %v1177
    %v3457 = vunpack.c.l.b16 %v1178
    %v3458 = vunpack.c.l.b16 %v1179
    %v3459 = vunpack.c.l.b16 %v1180
    %v3460 = vunpack.c.l.b16 %v1181
    %v3461 = vunpack.c.l.b16 %v1182
    %v3462 = vunpack.c.l.b16 %v1183
    %v3463 = vunpack.c.l.b16 %v1184
    %v3464 = vunpack.c.l.b16 %v1185
    %v3465 = vunpack.c.l.b16 %v1186
    %v3466 = vunpack.c.l.b16 %v1187
    %v3467 = vunpack.c.l.b16 %v1188
    %v3468 = vunpack.c.l.b16 %v1189
    %v3469 = vunpack.c.l.b16 %v1190
    %v3470 = vunpack.c.l.b16 %v1191
    %v3471 = vunpack.c.l.b16 %v1192
    %v3472 = vunpack.c.l.b16 %v1193
    %v3473 = vunpack.c.l.b16 %v1194
    %v3474 = vunpack.c.l.b16 %v1195
    %v3475 = vunpack.c.l.b16 %v1196
    %v3476 = vunpack.c.l.b16 %v1197
    %v3477 = vunpack.c.l.b16 %v1198
    %v3478 = vunpack.c.l.b16 %v1199
    %v3479 = vunpack.c.l.b16 %v1200
    %v3480 = vunpack.c.l.b16 %v1201
    %v3481 = vunpack.c.l.b16 %v1202
    %v3482 = vunpack.c.l.b16 %v1203
    %v3483 = vunpack.c.l.b16 %v1204
    %v3484 = vunpack.c.l.b16 %v1205
    %v3485 = vunpack.c.l.b16 %v1206
    %v3486 = vunpack.c.l.b16 %v1207
    %v3487 = vunpack.c.l.b16 %v1208
    %v3488 = vunpack.c.l.b16 %v1209
    %v3489 = vunpack.c.l.b16 %v1210
    %v3490 = vunpack.c.l.b16 %v1211
    %v3491 = vunpack.c.l.b16 %v1212
    %v3492 = vunpack.c.l.b16 %v1213
    %v3493 = vunpack.c.l.b16 %v1214
    %v3494 = vunpack.c.l.b16 %v1215
    %v3495 = vunpack.c.l.b16 %v1216
    %v3496 = vunpack.c.l.b16 %v1217
    %v3497 = vunpack.c.l.b16 %v1218
    %v3498 = vunpack.c.l.b16 %v1219
    %v3499 = vunpack.c.l.b16 %v1220
    %v3500 = vunpack.c.l.b16 %v1221
    %v3501 = vunpack.c.l.b16 %v1222
    %v3502 = vunpack.c.l.b16 %v1223
    %v3503 = vunpack.c.l.b16 %v1224
    %v3504 = vunpack.c.l.b16 %v1225
    %v3505 = vunpack.c.l.b16 %v1226
    %v3506 = vunpack.c.l.b16 %v1227
    %v3507 = vunpack.c.l.b16 %v1228
    %v3508 = vunpack.c.l.b16 %v1229
    %v3509 = vunpack.c.l.b16 %v1230
    %v3510 = vunpack.c.l.b16 %v1231
    %v3511 = vunpack.c.l.b16 %v1232
    %v3512 = vunpack.c.l.b16 %v1233
    %v3513 = vunpack.c.l.b16 %v1234
    %v3514 = vunpack.c.l.b16 %v1235
    %v3515 = vunpack.c.l.b16 %v1236
    %v3516 = vunpack.c.l.b16 %v1237
    %v3517 = vunpack.c.l.b16 %v1238
    %v3518 = vunpack.c.l.b16 %v1239
    %v3519 = vunpack.c.l.b16 %v1240
    %v3520 = vunpack.c.l.b16 %v1241
    %v3521 = vunpack.c.l.b16 %v1242
    %v3522 = vunpack.c.l.b16 %v1243
    %v3523 = vunpack.c.l.b16 %v1244
    %v3524 = vunpack.c.l.b16 %v1245
    %v3525 = vunpack.c.l.b16 %v1246
    %v3526 = vunpack.c.l.b16 %v1247
    %v3527 = vunpack.c.l.b16 %v1248
    %v3528 = vunpack.c.l.b16 %v1249
    %v3529 = vunpack.c.l.b16 %v1250
    %v3530 = vunpack.c.l.b16 %v1251
    %v3531 = vunpack.c.l.b16 %v1252
    %v3532 = vunpack.c.l.b16 %v1253
    %v3533 = vunpack.c.l.b16 %v1254
    %v3534 = vunpack.c.l.b16 %v1255
    %v3535 = vunpack.c.l.b16 %v1256
    %v3536 = vunpack.c.l.b16 %v1257
    %v3537 = vunpack.c.l.b16 %v1258
    %v3538 = vunpack.c.l.b16 %v1259
    %v3539 = vunpack.c.l.b16 %v1260
    %v3540 = vunpack.c.l.b16 %v1261
    %v3541 = vunpack.c.l.b16 %v1262
    %v3542 = vunpack.c.l.b16 %v1263
    %v3543 = vunpack.c.l.b16 %v1264
    %v3544 = vunpack.c.l.b16 %v1265
    %v3545 = vunpack.c.l.b16 %v1266
    %v3546 = vunpack.c.l.b16 %v1267
    %v3547 = vunpack.c.l.b16 %v1268
    %v3548 = vunpack.c.l.b16 %v1269
    %v3549 = vunpack.c.l.b16 %v1270
    %v3550 = vunpack.c.l.b16 %v1271
    %v3551 = vunpack.c.l.b16 %v1272
    %v3552 = vunpack.c.l.b16 %v1273
    %v3553 = vunpack.c.l.b16 %v1274
    %v3554 = vunpack.c.l.b16 %v1275
    %v3555 = vunpack.c.l.b16 %v1276
    %v3556 = vunpack.c.l.b16 %v1277
    %v3557 = vunpack.c.l.b16 %v1278
    %v3558 = vunpack.c.l.b16 %v1279
    %v3559 = vunpack.c.l.b16 %v1280
    %v3560 = vunpack.c.l.b16 %v1281
    %v3561 = vunpack.c.l.b16 %v1282
    %v3562 = vunpack.c.l.b16 %v1283
    %v3563 = vunpack.c.l.b16 %v1284
    %v3564 = vunpack.c.l.b16 %v1285
    %v3565 = vpack.c.b16 %v2542, %v2541
    %v3566 = vpack.c.b16 %v2544, %v2543
    %v3567 = vpack.c.b16 %v2546, %v2545
    %v3568 = vpack.c.b16 %v2548, %v2547
    %v3569 = vpack.c.b16 %v2550, %v2549
    %v3570 = vpack.c.b16 %v2552, %v2551
    %v3571 = vpack.c.b16 %v2554, %v2553
    %v3572 = vpack.c.b16 %v2556, %v2555
    %v3573 = vpack.c.b16 %v2558, %v2557
    %v3574 = vpack.c.b16 %v2560, %v2559
    %v3575 = vpack.c.b16 %v2562, %v2561
    %v3576 = vpack.c.b16 %v2564, %v2563
    %v3577 = vpack.c.b16 %v2566, %v2565
    %v3578 = vpack.c.b16 %v2568, %v2567
    %v3579 = vpack.c.b16 %v2570, %v2569
    %v3580 = vpack.c.b16 %v2572, %v2571
    %v3581 = vpack.c.b16 %v2574, %v2573
    %v3582 = vpack.c.b16 %v2576, %v2575
    %v3583 = vpack.c.b16 %v2578, %v2577
    %v3584 = vpack.c.b16 %v2580, %v2579
    %v3585 = vpack.c.b16 %v2582, %v2581
    %v3586 = vpack.c.b16 %v2584, %v2583
    %v3587 = vpack.c.b16 %v2586, %v2585
    %v3588 = vpack.c.b16 %v2588, %v2587
    %v3589 = vpack.c.b16 %v2590, %v2589
    %v3590 = vpack.c.b16 %v2592, %v2591
    %v3591 = vpack.c.b16 %v2594, %v2593
    %v3592 = vpack.c.b16 %v2596, %v2595
    %v3593 = vpack.c.b16 %v2598, %v2597
    %v3594 = vpack.c.b16 %v2600, %v2599
    %v3595 = vpack.c.b16 %v2602, %v2601
    %v3596 = vpack.c.b16 %v2604, %v2603
    %v3597 = vpack.c.b16 %v2606, %v2605
    %v3598 = vpack.c.b16 %v2608, %v2607
    %v3599 = vpack.c.b16 %v2610, %v2609
    %v3600 = vpack.c.b16 %v2612, %v2611
    %v3601 = vpack.c.b16 %v2614, %v2613
    %v3602 = vpack.c.b16 %v2616, %v2615
    %v3603 = vpack.c.b16 %v2618, %v2617
    %v3604 = vpack.c.b16 %v2620, %v2619
    %v3605 = vpack.c.b16 %v2622, %v2621
    %v3606 = vpack.c.b16 %v2624, %v2623
    %v3607 = vpack.c.b16 %v2626, %v2625
    %v3608 = vpack.c.b16 %v2628, %v2627
    %v3609 = vpack.c.b16 %v2630, %v2629
    %v3610 = vpack.c.b16 %v2632, %v2631
    %v3611 = vpack.c.b16 %v2634, %v2633
    %v3612 = vpack.c.b16 %v2636, %v2635
    %v3613 = vpack.c.b16 %v2638, %v2637
    %v3614 = vpack.c.b16 %v2640, %v2639
    %v3615 = vpack.c.b16 %v2642, %v2641
    %v3616 = vpack.c.b16 %v2644, %v2643
    %v3617 = vpack.c.b16 %v2646, %v2645
    %v3618 = vpack.c.b16 %v2648, %v2647
    %v3619 = vpack.c.b16 %v2650, %v2649
    %v3620 = vpack.c.b16 %v2652, %v2651
    %v3621 = vpack.c.b16 %v2654, %v2653
    %v3622 = vpack.c.b16 %v2656, %v2655
    %v3623 = vpack.c.b16 %v2658, %v2657
    %v3624 = vpack.c.b16 %v2660, %v2659
    %v3625 = vpack.c.b16 %v2662, %v2661
    %v3626 = vpack.c.b16 %v2664, %v2663
    %v3627 = vpack.c.b16 %v2666, %v2665
    %v3628 = vpack.c.b16 %v2668, %v2667
    %v3629 = vpack.c.b16 %v2670, %v2669
    %v3630 = vpack.c.b16 %v2672, %v2671
    %v3631 = vpack.c.b16 %v2674, %v2673
    %v3632 = vpack.c.b16 %v2676, %v2675
    %v3633 = vpack.c.b16 %v2678, %v2677
    %v3634 = vpack.c.b16 %v2680, %v2679
    %v3635 = vpack.c.b16 %v2682, %v2681
    %v3636 = vpack.c.b16 %v2684, %v2683
    %v3637 = vpack.c.b16 %v2686, %v2685
    %v3638 = vpack.c.b16 %v2688, %v2687
    %v3639 = vpack.c.b16 %v2690, %v2689
    %v3640 = vpack.c.b16 %v2692, %v2691
    %v3641 = vpack.c.b16 %v2694, %v2693
    %v3642 = vpack.c.b16 %v2696, %v2695
    %v3643 = vpack.c.b16 %v2698, %v2697
    %v3644 = vpack.c.b16 %v2700, %v2699
    %v3645 = vpack.c.b16 %v2702, %v2701
    %v3646 = vpack.c.b16 %v2704, %v2703
    %v3647 = vpack.c.b16 %v2706, %v2705
    %v3648 = vpack.c.b16 %v2708, %v2707
    %v3649 = vpack.c.b16 %v2710, %v2709
    %v3650 = vpack.c.b16 %v2712, %v2711
    %v3651 = vpack.c.b16 %v2714, %v2713
    %v3652 = vpack.c.b16 %v2716, %v2715
    %v3653 = vpack.c.b16 %v2718, %v2717
    %v3654 = vpack.c.b16 %v2720, %v2719
    %v3655 = vpack.c.b16 %v2722, %v2721
    %v3656 = vpack.c.b16 %v2724, %v2723
    %v3657 = vpack.c.b16 %v2726, %v2725
    %v3658 = vpack.c.b16 %v2728, %v2727
    %v3659 = vpack.c.b16 %v2730, %v2729
    %v3660 = vpack.c.b16 %v2732, %v2731
    %v3661 = vpack.c.b16 %v2734, %v2733
    %v3662 = vpack.c.b16 %v2736, %v2735
    %v3663 = vpack.c.b16 %v2738, %v2737
    %v3664 = vpack.c.b16 %v2740, %v2739
    %v3665 = vpack.c.b16 %v2742, %v2741
    %v3666 = vpack.c.b16 %v2744, %v2743
    %v3667 = vpack.c.b16 %v2746, %v2745
    %v3668 = vpack.c.b16 %v2748, %v2747
    %v3669 = vpack.c.b16 %v2750, %v2749
    %v3670 = vpack.c.b16 %v2752, %v2751
    %v3671 = vpack.c.b16 %v2754, %v2753
    %v3672 = vpack.c.b16 %v2756, %v2755
    %v3673 = vpack.c.b16 %v2758, %v2757
    %v3674 = vpack.c.b16 %v2760, %v2759
    %v3675 = vpack.c.b16 %v2762, %v2761
    %v3676 = vpack.c.b16 %v2764, %v2763
    %v3677 = vpack.c.b16 %v2766, %v2765
    %v3678 = vpack.c.b16 %v2768, %v2767
    %v3679 = vpack.c.b16 %v2770, %v2769
    %v3680 = vpack.c.b16 %v2772, %v2771
    %v3681 = vpack.c.b16 %v2774, %v2773
    %v3682 = vpack.c.b16 %v2776, %v2775
    %v3683 = vpack.c.b16 %v2778, %v2777
    %v3684 = vpack.c.b16 %v2780, %v2779
    %v3685 = vpack.c.b16 %v2782, %v2781
    %v3686 = vpack.c.b16 %v2784, %v2783
    %v3687 = vpack.c.b16 %v2786, %v2785
    %v3688 = vpack.c.b16 %v2788, %v2787
    %v3689 = vpack.c.b16 %v2790, %v2789
    %v3690 = vpack.c.b16 %v2792, %v2791
    %v3691 = vpack.c.b16 %v2794, %v2793
    %v3692 = vpack.c.b16 %v2796, %v2795
    %v3693 = vpack.c.b16 %v2798, %v2797
    %v3694 = vpack.c.b16 %v2800, %v2799
    %v3695 = vpack.c.b16 %v2802, %v2801
    %v3696 = vpack.c.b16 %v2804, %v2803
    %v3697 = vpack.c.b16 %v2806, %v2805
    %v3698 = vpack.c.b16 %v2808, %v2807
    %v3699 = vpack.c.b16 %v2810, %v2809
    %v3700 = vpack.c.b16 %v2812, %v2811
    %v3701 = vpack.c.b16 %v2814, %v2813
    %v3702 = vpack.c.b16 %v2816, %v2815
    %v3703 = vpack.c.b16 %v2818, %v2817
    %v3704 = vpack.c.b16 %v2820, %v2819
    %v3705 = vpack.c.b16 %v2822, %v2821
    %v3706 = vpack.c.b16 %v2824, %v2823
    %v3707 = vpack.c.b16 %v2826, %v2825
    %v3708 = vpack.c.b16 %v2828, %v2827
    %v3709 = vpack.c.b16 %v2830, %v2829
    %v3710 = vpack.c.b16 %v2832, %v2831
    %v3711 = vpack.c.b16 %v2834, %v2833
    %v3712 = vpack.c.b16 %v2836, %v2835
    %v3713 = vpack.c.b16 %v2838, %v2837
    %v3714 = vpack.c.b16 %v2840, %v2839
    %v3715 = vpack.c.b16 %v2842, %v2841
    %v3716 = vpack.c.b16 %v2844, %v2843
    %v3717 = vpack.c.b16 %v2846, %v2845
    %v3718 = vpack.c.b16 %v2848, %v2847
    %v3719 = vpack.c.b16 %v2850, %v2849
    %v3720 = vpack.c.b16 %v2852, %v2851
    %v3721 = vpack.c.b16 %v2854, %v2853
    %v3722 = vpack.c.b16 %v2856, %v2855
    %v3723 = vpack.c.b16 %v2858, %v2857
    %v3724 = vpack.c.b16 %v2860, %v2859
    %v3725 = vpack.c.b16 %v2862, %v2861
    %v3726 = vpack.c.b16 %v2864, %v2863
    %v3727 = vpack.c.b16 %v2866, %v2865
    %v3728 = vpack.c.b16 %v2868, %v2867
    %v3729 = vpack.c.b16 %v2870, %v2869
    %v3730 = vpack.c.b16 %v2872, %v2871
    %v3731 = vpack.c.b16 %v2874, %v2873
    %v3732 = vpack.c.b16 %v2876, %v2875
    %v3733 = vpack.c.b16 %v2878, %v2877
    %v3734 = vpack.c.b16 %v2880, %v2879
    %v3735 = vpack.c.b16 %v2882, %v2881
    %v3736 = vpack.c.b16 %v2884, %v2883
    %v3737 = vpack.c.b16 %v2886, %v2885
    %v3738 = vpack.c.b16 %v2888, %v2887
    %v3739 = vpack.c.b16 %v2890, %v2889
    %v3740 = vpack.c.b16 %v2892, %v2891
    %v3741 = vpack.c.b16 %v2894, %v2893
    %v3742 = vpack.c.b16 %v2896, %v2895
    %v3743 = vpack.c.b16 %v2898, %v2897
    %v3744 = vpack.c.b16 %v2900, %v2899
    %v3745 = vpack.c.b16 %v2902, %v2901
    %v3746 = vpack.c.b16 %v2904, %v2903
    %v3747 = vpack.c.b16 %v2906, %v2905
    %v3748 = vpack.c.b16 %v2908, %v2907
    %v3749 = vpack.c.b16 %v2910, %v2909
    %v3750 = vpack.c.b16 %v2912, %v2911
    %v3751 = vpack.c.b16 %v2914, %v2913
    %v3752 = vpack.c.b16 %v2916, %v2915
    %v3753 = vpack.c.b16 %v2918, %v2917
    %v3754 = vpack.c.b16 %v2920, %v2919
    %v3755 = vpack.c.b16 %v2922, %v2921
    %v3756 = vpack.c.b16 %v2924, %v2923
    %v3757 = vpack.c.b16 %v2926, %v2925
    %v3758 = vpack.c.b16 %v2928, %v2927
    %v3759 = vpack.c.b16 %v2930, %v2929
    %v3760 = vpack.c.b16 %v2932, %v2931
    %v3761 = vpack.c.b16 %v2934, %v2933
    %v3762 = vpack.c.b16 %v2936, %v2935
    %v3763 = vpack.c.b16 %v2938, %v2937
    %v3764 = vpack.c.b16 %v2940, %v2939
    %v3765 = vpack.c.b16 %v2942, %v2941
    %v3766 = vpack.c.b16 %v2944, %v2943
    %v3767 = vpack.c.b16 %v2946, %v2945
    %v3768 = vpack.c.b16 %v2948, %v2947
    %v3769 = vpack.c.b16 %v2950, %v2949
    %v3770 = vpack.c.b16 %v2952, %v2951
    %v3771 = vpack.c.b16 %v2954, %v2953
    %v3772 = vpack.c.b16 %v2956, %v2955
    %v3773 = vpack.c.b16 %v2958, %v2957
    %v3774 = vpack.c.b16 %v2960, %v2959
    %v3775 = vpack.c.b16 %v2962, %v2961
    %v3776 = vpack.c.b16 %v2964, %v2963
    %v3777 = vpack.c.b16 %v2966, %v2965
    %v3778 = vpack.c.b16 %v2968, %v2967
    %v3779 = vpack.c.b16 %v2970, %v2969
    %v3780 = vpack.c.b16 %v2972, %v2971
    %v3781 = vpack.c.b16 %v2974, %v2973
    %v3782 = vpack.c.b16 %v2976, %v2975
    %v3783 = vpack.c.b16 %v2978, %v2977
    %v3784 = vpack.c.b16 %v2980, %v2979
    %v3785 = vpack.c.b16 %v2982, %v2981
    %v3786 = vpack.c.b16 %v2984, %v2983
    %v3787 = vpack.c.b16 %v2986, %v2985
    %v3788 = vpack.c.b16 %v2988, %v2987
    %v3789 = vpack.c.b16 %v2990, %v2989
    %v3790 = vpack.c.b16 %v2992, %v2991
    %v3791 = vpack.c.b16 %v2994, %v2993
    %v3792 = vpack.c.b16 %v2996, %v2995
    %v3793 = vpack.c.b16 %v2998, %v2997
    %v3794 = vpack.c.b16 %v3000, %v2999
    %v3795 = vpack.c.b16 %v3002, %v3001
    %v3796 = vpack.c.b16 %v3004, %v3003
    %v3797 = vpack.c.b16 %v3006, %v3005
    %v3798 = vpack.c.b16 %v3008, %v3007
    %v3799 = vpack.c.b16 %v3010, %v3009
    %v3800 = vpack.c.b16 %v3012, %v3011
    %v3801 = vpack.c.b16 %v3014, %v3013
    %v3802 = vpack.c.b16 %v3016, %v3015
    %v3803 = vpack.c.b16 %v3018, %v3017
    %v3804 = vpack.c.b16 %v3020, %v3019
    %v3805 = vpack.c.b16 %v3022, %v3021
    %v3806 = vpack.c.b16 %v3024, %v3023
    %v3807 = vpack.c.b16 %v3026, %v3025
    %v3808 = vpack.c.b16 %v3028, %v3027
    %v3809 = vpack.c.b16 %v3030, %v3029
    %v3810 = vpack.c.b16 %v3032, %v3031
    %v3811 = vpack.c.b16 %v3034, %v3033
    %v3812 = vpack.c.b16 %v3036, %v3035
    %v3813 = vpack.c.b16 %v3038, %v3037
    %v3814 = vpack.c.b16 %v3040, %v3039
    %v3815 = vpack.c.b16 %v3042, %v3041
    %v3816 = vpack.c.b16 %v3044, %v3043
    %v3817 = vpack.c.b16 %v3046, %v3045
    %v3818 = vpack.c.b16 %v3048, %v3047
    %v3819 = vpack.c.b16 %v3050, %v3049
    %v3820 = vpack.c.b16 %v3052, %v3051
    %v3821 = vpack.c.b16 %v3054, %v3053
    %v3822 = vpack.c.b16 %v3056, %v3055
    %v3823 = vpack.c.b16 %v3058, %v3057
    %v3824 = vpack.c.b16 %v3060, %v3059
    %v3825 = vpack.c.b16 %v3062, %v3061
    %v3826 = vpack.c.b16 %v3064, %v3063
    %v3827 = vpack.c.b16 %v3066, %v3065
    %v3828 = vpack.c.b16 %v3068, %v3067
    %v3829 = vpack.c.b16 %v3070, %v3069
    %v3830 = vpack.c.b16 %v3072, %v3071
    %v3831 = vpack.c.b16 %v3074, %v3073
    %v3832 = vpack.c.b16 %v3076, %v3075
    %v3833 = vpack.c.b16 %v3078, %v3077
    %v3834 = vpack.c.b16 %v3080, %v3079
    %v3835 = vpack.c.b16 %v3082, %v3081
    %v3836 = vpack.c.b16 %v3084, %v3083
    %v3837 = vpack.c.b16 %v3086, %v3085
    %v3838 = vpack.c.b16 %v3088, %v3087
    %v3839 = vpack.c.b16 %v3090, %v3089
    %v3840 = vpack.c.b16 %v3092, %v3091
    %v3841 = vpack.c.b16 %v3094, %v3093
    %v3842 = vpack.c.b16 %v3096, %v3095
    %v3843 = vpack.c.b16 %v3098, %v3097
    %v3844 = vpack.c.b16 %v3100, %v3099
    %v3845 = vpack.c.b16 %v3102, %v3101
    %v3846 = vpack.c.b16 %v3104, %v3103
    %v3847 = vpack.c.b16 %v3106, %v3105
    %v3848 = vpack.c.b16 %v3108, %v3107
    %v3849 = vpack.c.b16 %v3110, %v3109
    %v3850 = vpack.c.b16 %v3112, %v3111
    %v3851 = vpack.c.b16 %v3114, %v3113
    %v3852 = vpack.c.b16 %v3116, %v3115
    %v3853 = vpack.c.b16 %v3118, %v3117
    %v3854 = vpack.c.b16 %v3120, %v3119
    %v3855 = vpack.c.b16 %v3122, %v3121
    %v3856 = vpack.c.b16 %v3124, %v3123
    %v3857 = vpack.c.b16 %v3126, %v3125
    %v3858 = vpack.c.b16 %v3128, %v3127
    %v3859 = vpack.c.b16 %v3130, %v3129
    %v3860 = vpack.c.b16 %v3132, %v3131
    %v3861 = vpack.c.b16 %v3134, %v3133
    %v3862 = vpack.c.b16 %v3136, %v3135
    %v3863 = vpack.c.b16 %v3138, %v3137
    %v3864 = vpack.c.b16 %v3140, %v3139
    %v3865 = vpack.c.b16 %v3142, %v3141
    %v3866 = vpack.c.b16 %v3144, %v3143
    %v3867 = vpack.c.b16 %v3146, %v3145
    %v3868 = vpack.c.b16 %v3148, %v3147
    %v3869 = vpack.c.b16 %v3150, %v3149
    %v3870 = vpack.c.b16 %v3152, %v3151
    %v3871 = vpack.c.b16 %v3154, %v3153
    %v3872 = vpack.c.b16 %v3156, %v3155
    %v3873 = vpack.c.b16 %v3158, %v3157
    %v3874 = vpack.c.b16 %v3160, %v3159
    %v3875 = vpack.c.b16 %v3162, %v3161
    %v3876 = vpack.c.b16 %v3164, %v3163
    %v3877 = vpack.c.b16 %v3166, %v3165
    %v3878 = vpack.c.b16 %v3168, %v3167
    %v3879 = vpack.c.b16 %v3170, %v3169
    %v3880 = vpack.c.b16 %v3172, %v3171
    %v3881 = vpack.c.b16 %v3174, %v3173
    %v3882 = vpack.c.b16 %v3176, %v3175
    %v3883 = vpack.c.b16 %v3178, %v3177
    %v3884 = vpack.c.b16 %v3180, %v3179
    %v3885 = vpack.c.b16 %v3182, %v3181
    %v3886 = vpack.c.b16 %v3184, %v3183
    %v3887 = vpack.c.b16 %v3186, %v3185
    %v3888 = vpack.c.b16 %v3188, %v3187
    %v3889 = vpack.c.b16 %v3190, %v3189
    %v3890 = vpack.c.b16 %v3192, %v3191
    %v3891 = vpack.c.b16 %v3194, %v3193
    %v3892 = vpack.c.b16 %v3196, %v3195
    %v3893 = vpack.c.b16 %v3198, %v3197
    %v3894 = vpack.c.b16 %v3200, %v3199
    %v3895 = vpack.c.b16 %v3202, %v3201
    %v3896 = vpack.c.b16 %v3204, %v3203
    %v3897 = vpack.c.b16 %v3206, %v3205
    %v3898 = vpack.c.b16 %v3208, %v3207
    %v3899 = vpack.c.b16 %v3210, %v3209
    %v3900 = vpack.c.b16 %v3212, %v3211
    %v3901 = vpack.c.b16 %v3214, %v3213
    %v3902 = vpack.c.b16 %v3216, %v3215
    %v3903 = vpack.c.b16 %v3218, %v3217
    %v3904 = vpack.c.b16 %v3220, %v3219
    %v3905 = vpack.c.b16 %v3222, %v3221
    %v3906 = vpack.c.b16 %v3224, %v3223
    %v3907 = vpack.c.b16 %v3226, %v3225
    %v3908 = vpack.c.b16 %v3228, %v3227
    %v3909 = vpack.c.b16 %v3230, %v3229
    %v3910 = vpack.c.b16 %v3232, %v3231
    %v3911 = vpack.c.b16 %v3234, %v3233
    %v3912 = vpack.c.b16 %v3236, %v3235
    %v3913 = vpack.c.b16 %v3238, %v3237
    %v3914 = vpack.c.b16 %v3240, %v3239
    %v3915 = vpack.c.b16 %v3242, %v3241
    %v3916 = vpack.c.b16 %v3244, %v3243
    %v3917 = vpack.c.b16 %v3246, %v3245
    %v3918 = vpack.c.b16 %v3248, %v3247
    %v3919 = vpack.c.b16 %v3250, %v3249
    %v3920 = vpack.c.b16 %v3252, %v3251
    %v3921 = vpack.c.b16 %v3254, %v3253
    %v3922 = vpack.c.b16 %v3256, %v3255
    %v3923 = vpack.c.b16 %v3258, %v3257
    %v3924 = vpack.c.b16 %v3260, %v3259
    %v3925 = vpack.c.b16 %v3262, %v3261
    %v3926 = vpack.c.b16 %v3264, %v3263
    %v3927 = vpack.c.b16 %v3266, %v3265
    %v3928 = vpack.c.b16 %v3268, %v3267
    %v3929 = vpack.c.b16 %v3270, %v3269
    %v3930 = vpack.c.b16 %v3272, %v3271
    %v3931 = vpack.c.b16 %v3274, %v3273
    %v3932 = vpack.c.b16 %v3276, %v3275
    %v3933 = vpack.c.b16 %v3278, %v3277
    %v3934 = vpack.c.b16 %v3280, %v3279
    %v3935 = vpack.c.b16 %v3282, %v3281
    %v3936 = vpack.c.b16 %v3284, %v3283
    %v3937 = vpack.c.b16 %v3286, %v3285
    %v3938 = vpack.c.b16 %v3288, %v3287
    %v3939 = vpack.c.b16 %v3290, %v3289
    %v3940 = vpack.c.b16 %v3292, %v3291
    %v3941 = vpack.c.b16 %v3294, %v3293
    %v3942 = vpack.c.b16 %v3296, %v3295
    %v3943 = vpack.c.b16 %v3298, %v3297
    %v3944 = vpack.c.b16 %v3300, %v3299
    %v3945 = vpack.c.b16 %v3302, %v3301
    %v3946 = vpack.c.b16 %v3304, %v3303
    %v3947 = vpack.c.b16 %v3306, %v3305
    %v3948 = vpack.c.b16 %v3308, %v3307
    %v3949 = vpack.c.b16 %v3310, %v3309
    %v3950 = vpack.c.b16 %v3312, %v3311
    %v3951 = vpack.c.b16 %v3314, %v3313
    %v3952 = vpack.c.b16 %v3316, %v3315
    %v3953 = vpack.c.b16 %v3318, %v3317
    %v3954 = vpack.c.b16 %v3320, %v3319
    %v3955 = vpack.c.b16 %v3322, %v3321
    %v3956 = vpack.c.b16 %v3324, %v3323
    %v3957 = vpack.c.b16 %v3326, %v3325
    %v3958 = vpack.c.b16 %v3328, %v3327
    %v3959 = vpack.c.b16 %v3330, %v3329
    %v3960 = vpack.c.b16 %v3332, %v3331
    %v3961 = vpack.c.b16 %v3334, %v3333
    %v3962 = vpack.c.b16 %v3336, %v3335
    %v3963 = vpack.c.b16 %v3338, %v3337
    %v3964 = vpack.c.b16 %v3340, %v3339
    %v3965 = vpack.c.b16 %v3342, %v3341
    %v3966 = vpack.c.b16 %v3344, %v3343
    %v3967 = vpack.c.b16 %v3346, %v3345
    %v3968 = vpack.c.b16 %v3348, %v3347
    %v3969 = vpack.c.b16 %v3350, %v3349
    %v3970 = vpack.c.b16 %v3352, %v3351
    %v3971 = vpack.c.b16 %v3354, %v3353
    %v3972 = vpack.c.b16 %v3356, %v3355
    %v3973 = vpack.c.b16 %v3358, %v3357
    %v3974 = vpack.c.b16 %v3360, %v3359
    %v3975 = vpack.c.b16 %v3362, %v3361
    %v3976 = vpack.c.b16 %v3364, %v3363
    %v3977 = vpack.c.b16 %v3366, %v3365
    %v3978 = vpack.c.b16 %v3368, %v3367
    %v3979 = vpack.c.b16 %v3370, %v3369
    %v3980 = vpack.c.b16 %v3372, %v3371
    %v3981 = vpack.c.b16 %v3374, %v3373
    %v3982 = vpack.c.b16 %v3376, %v3375
    %v3983 = vpack.c.b16 %v3378, %v3377
    %v3984 = vpack.c.b16 %v3380, %v3379
    %v3985 = vpack.c.b16 %v3382, %v3381
    %v3986 = vpack.c.b16 %v3384, %v3383
    %v3987 = vpack.c.b16 %v3386, %v3385
    %v3988 = vpack.c.b16 %v3388, %v3387
    %v3989 = vpack.c.b16 %v3390, %v3389
    %v3990 = vpack.c.b16 %v3392, %v3391
    %v3991 = vpack.c.b16 %v3394, %v3393
    %v3992 = vpack.c.b16 %v3396, %v3395
    %v3993 = vpack.c.b16 %v3398, %v3397
    %v3994 = vpack.c.b16 %v3400, %v3399
    %v3995 = vpack.c.b16 %v3402, %v3401
    %v3996 = vpack.c.b16 %v3404, %v3403
    %v3997 = vpack.c.b16 %v3406, %v3405
    %v3998 = vpack.c.b16 %v3408, %v3407
    %v3999 = vpack.c.b16 %v3410, %v3409
    %v4000 = vpack.c.b16 %v3412, %v3411
    %v4001 = vpack.c.b16 %v3414, %v3413
    %v4002 = vpack.c.b16 %v3416, %v3415
    %v4003 = vpack.c.b16 %v3418, %v3417
    %v4004 = vpack.c.b16 %v3420, %v3419
    %v4005 = vpack.c.b16 %v3422, %v3421
    %v4006 = vpack.c.b16 %v3424, %v3423
    %v4007 = vpack.c.b16 %v3426, %v3425
    %v4008 = vpack.c.b16 %v3428, %v3427
    %v4009 = vpack.c.b16 %v3430, %v3429
    %v4010 = vpack.c.b16 %v3432, %v3431
    %v4011 = vpack.c.b16 %v3434, %v3433
    %v4012 = vpack.c.b16 %v3436, %v3435
    %v4013 = vpack.c.b16 %v3438, %v3437
    %v4014 = vpack.c.b16 %v3440, %v3439
    %v4015 = vpack.c.b16 %v3442, %v3441
    %v4016 = vpack.c.b16 %v3444, %v3443
    %v4017 = vpack.c.b16 %v3446, %v3445
    %v4018 = vpack.c.b16 %v3448, %v3447
    %v4019 = vpack.c.b16 %v3450, %v3449
    %v4020 = vpack.c.b16 %v3452, %v3451
    %v4021 = vpack.c.b16 %v3454, %v3453
    %v4022 = vpack.c.b16 %v3456, %v3455
    %v4023 = vpack.c.b16 %v3458, %v3457
    %v4024 = vpack.c.b16 %v3460, %v3459
    %v4025 = vpack.c.b16 %v3462, %v3461
    %v4026 = vpack.c.b16 %v3464, %v3463
    %v4027 = vpack.c.b16 %v3466, %v3465
    %v4028 = vpack.c.b16 %v3468, %v3467
    %v4029 = vpack.c.b16 %v3470, %v3469
    %v4030 = vpack.c.b16 %v3472, %v3471
    %v4031 = vpack.c.b16 %v3474, %v3473
    %v4032 = vpack.c.b16 %v3476, %v3475
    %v4033 = vpack.c.b16 %v3478, %v3477
    %v4034 = vpack.c.b16 %v3480, %v3479
    %v4035 = vpack.c.b16 %v3482, %v3481
    %v4036 = vpack.c.b16 %v3484, %v3483
    %v4037 = vpack.c.b16 %v3486, %v3485
    %v4038 = vpack.c.b16 %v3488, %v3487
    %v4039 = vpack.c.b16 %v3490, %v3489
    %v4040 = vpack.c.b16 %v3492, %v3491
    %v4041 = vpack.c.b16 %v3494, %v3493
    %v4042 = vpack.c.b16 %v3496, %v3495
    %v4043 = vpack.c.b16 %v3498, %v3497
    %v4044 = vpack.c.b16 %v3500, %v3499
    %v4045 = vpack.c.b16 %v3502, %v3501
    %v4046 = vpack.c.b16 %v3504, %v3503
    %v4047 = vpack.c.b16 %v3506, %v3505
    %v4048 = vpack.c.b16 %v3508, %v3507
    %v4049 = vpack.c.b16 %v3510, %v3509
    %v4050 = vpack.c.b16 %v3512, %v3511
    %v4051 = vpack.c.b16 %v3514, %v3513
    %v4052 = vpack.c.b16 %v3516, %v3515
    %v4053 = vpack.c.b16 %v3518, %v3517
    %v4054 = vpack.c.b16 %v3520, %v3519
    %v4055 = vpack.c.b16 %v3522, %v3521
    %v4056 = vpack.c.b16 %v3524, %v3523
    %v4057 = vpack.c.b16 %v3526, %v3525
    %v4058 = vpack.c.b16 %v3528, %v3527
    %v4059 = vpack.c.b16 %v3530, %v3529
    %v4060 = vpack.c.b16 %v3532, %v3531
    %v4061 = vpack.c.b16 %v3534, %v3533
    %v4062 = vpack.c.b16 %v3536, %v3535
    %v4063 = vpack.c.b16 %v3538, %v3537
    %v4064 = vpack.c.b16 %v3540, %v3539
    %v4065 = vpack.c.b16 %v3542, %v3541
    %v4066 = vpack.c.b16 %v3544, %v3543
    %v4067 = vpack.c.b16 %v3546, %v3545
    %v4068 = vpack.c.b16 %v3548, %v3547
    %v4069 = vpack.c.b16 %v3550, %v3549
    %v4070 = vpack.c.b16 %v3552, %v3551
    %v4071 = vpack.c.b16 %v3554, %v3553
    %v4072 = vpack.c.b16 %v3556, %v3555
    %v4073 = vpack.c.b16 %v3558, %v3557
    %v4074 = vpack.c.b16 %v3560, %v3559
    %v4075 = vpack.c.b16 %v3562, %v3561
    %v4076 = vpack.c.b16 %v3564, %v3563
    %4589 = vmatprep.subr.bf16.mxu0 0
    %4590 = vmatpush1.bf16.msra.mxu0 %v3572
    %4591 = vmatprep.subr.bf16.mxu0 0
    %4592 = vmatpush1.bf16.msra.mxu0 %v3571
    %4593 = vmatprep.subr.bf16.mxu0 0
    %4594 = vmatpush1.bf16.msra.mxu0 %v3570
    %4595 = vmatprep.subr.bf16.mxu0 0
    %4596 = vmatpush1.bf16.msra.mxu0 %v3569
    %4597 = vmatprep.subr.bf16.mxu0 0
    %4598 = vmatpush1.bf16.msra.mxu0 %v3568
    %4599 = vmatprep.subr.bf16.mxu0 0
    %4600 = vmatpush1.bf16.msra.mxu0 %v3567
    %4601 = vmatprep.subr.bf16.mxu0 0
    %4602 = vmatpush1.bf16.msra.mxu0 %v3566
    %4603 = vmatprep.subr.bf16.mxu0 0
    %4604 = vmatpush1.bf16.msra.mxu0 %v3565
    %4605 = vmatprep.subr.bf16.mxu0 0
    %4606 = vmatpush2.bf16.msra.mxu0 %v3580
    %4607 = vmatprep.subr.bf16.mxu0 0
    %4608 = vmatpush2.bf16.msra.mxu0 %v3579
    %4609 = vmatprep.subr.bf16.mxu0 0
    %4610 = vmatpush2.bf16.msra.mxu0 %v3578
    %4611 = vmatprep.subr.bf16.mxu0 0
    %4612 = vmatpush2.bf16.msra.mxu0 %v3577
    %4613 = vmatprep.subr.bf16.mxu0 0
    %4614 = vmatpush2.bf16.msra.mxu0 %v3576
    %4615 = vmatprep.subr.bf16.mxu0 0
    %4616 = vmatpush2.bf16.msra.mxu0 %v3575
    %4617 = vmatprep.subr.bf16.mxu0 0
    %4618 = vmatpush2.bf16.msra.mxu0 %v3574
    %4619 = vmatprep.subr.bf16.mxu0 0
    %4620 = vmatpush2.bf16.msra.mxu0 %v3573
    %4621 = vmatprep.mubr.bf16.mxu0 %v1390
    %4622 = vmatmul.mubr.bf16.gmra.mxu0 %v1389
    %v4623 = vpop.f32.mrf.mxu0
    %v4624 = vadd.f32 %v1291, %v4623
    %v4625 = vpop.f32.mrf.mxu0
    %v4626 = vpop.f32.mrf.mxu0
    %v4627 = vpop.f32.mrf.mxu0
    %4628 = vdwg.mxu0
    %4629 = vmatprep.subr.bf16.mxu0 0
    %4630 = vmatpush1.bf16.msra.mxu0 %v3588
    %4631 = vmatprep.subr.bf16.mxu0 0
    %4632 = vmatpush1.bf16.msra.mxu0 %v3587
    %4633 = vmatprep.subr.bf16.mxu0 0
    %4634 = vmatpush1.bf16.msra.mxu0 %v3586
    %4635 = vmatprep.subr.bf16.mxu0 0
    %4636 = vmatpush1.bf16.msra.mxu0 %v3585
    %4637 = vmatprep.subr.bf16.mxu0 0
    %4638 = vmatpush1.bf16.msra.mxu0 %v3584
    %4639 = vmatprep.subr.bf16.mxu0 0
    %4640 = vmatpush1.bf16.msra.mxu0 %v3583
    %4641 = vmatprep.subr.bf16.mxu0 0
    %4642 = vmatpush1.bf16.msra.mxu0 %v3582
    %4643 = vmatprep.subr.bf16.mxu0 0
    %4644 = vmatpush1.bf16.msra.mxu0 %v3581
    %4645 = vmatprep.subr.bf16.mxu0 0
    %4646 = vmatpush2.bf16.msra.mxu0 %v3596
    %4647 = vmatprep.subr.bf16.mxu0 0
    %4648 = vmatpush2.bf16.msra.mxu0 %v3595
    %4649 = vmatprep.subr.bf16.mxu0 0
    %4650 = vmatpush2.bf16.msra.mxu0 %v3594
    %4651 = vmatprep.subr.bf16.mxu0 0
    %4652 = vmatpush2.bf16.msra.mxu0 %v3593
    %4653 = vmatprep.subr.bf16.mxu0 0
    %4654 = vmatpush2.bf16.msra.mxu0 %v3592
    %4655 = vmatprep.subr.bf16.mxu0 0
    %4656 = vmatpush2.bf16.msra.mxu0 %v3591
    %4657 = vmatprep.subr.bf16.mxu0 0
    %4658 = vmatpush2.bf16.msra.mxu0 %v3590
    %4659 = vmatprep.subr.bf16.mxu0 0
    %4660 = vmatpush2.bf16.msra.mxu0 %v3589
    %4661 = vmatprep.mubr.bf16.mxu0 %v1392
    %4662 = vmatmul.mubr.bf16.gmra.mxu0 %v1391
    %v4663 = vpop.f32.mrf.mxu0
    %v4664 = vadd.f32 %v4624, %v4663
    %v4665 = vpop.f32.mrf.mxu0
    %v4666 = vpop.f32.mrf.mxu0
    %v4667 = vpop.f32.mrf.mxu0
    %4668 = vdwg.mxu0
    %4669 = vmatprep.subr.bf16.mxu0 0
    %4670 = vmatpush1.bf16.msra.mxu0 %v3604
    %4671 = vmatprep.subr.bf16.mxu0 0
    %4672 = vmatpush1.bf16.msra.mxu0 %v3603
    %4673 = vmatprep.subr.bf16.mxu0 0
    %4674 = vmatpush1.bf16.msra.mxu0 %v3602
    %4675 = vmatprep.subr.bf16.mxu0 0
    %4676 = vmatpush1.bf16.msra.mxu0 %v3601
    %4677 = vmatprep.subr.bf16.mxu0 0
    %4678 = vmatpush1.bf16.msra.mxu0 %v3600
    %4679 = vmatprep.subr.bf16.mxu0 0
    %4680 = vmatpush1.bf16.msra.mxu0 %v3599
    %4681 = vmatprep.subr.bf16.mxu0 0
    %4682 = vmatpush1.bf16.msra.mxu0 %v3598
    %4683 = vmatprep.subr.bf16.mxu0 0
    %4684 = vmatpush1.bf16.msra.mxu0 %v3597
    %4685 = vmatprep.subr.bf16.mxu0 0
    %4686 = vmatpush2.bf16.msra.mxu0 %v3612
    %4687 = vmatprep.subr.bf16.mxu0 0
    %4688 = vmatpush2.bf16.msra.mxu0 %v3611
    %4689 = vmatprep.subr.bf16.mxu0 0
    %4690 = vmatpush2.bf16.msra.mxu0 %v3610
    %4691 = vmatprep.subr.bf16.mxu0 0
    %4692 = vmatpush2.bf16.msra.mxu0 %v3609
    %4693 = vmatprep.subr.bf16.mxu0 0
    %4694 = vmatpush2.bf16.msra.mxu0 %v3608
    %4695 = vmatprep.subr.bf16.mxu0 0
    %4696 = vmatpush2.bf16.msra.mxu0 %v3607
    %4697 = vmatprep.subr.bf16.mxu0 0
    %4698 = vmatpush2.bf16.msra.mxu0 %v3606
    %4699 = vmatprep.subr.bf16.mxu0 0
    %4700 = vmatpush2.bf16.msra.mxu0 %v3605
    %4701 = vmatprep.mubr.bf16.mxu0 %v1394
    %4702 = vmatmul.mubr.bf16.gmra.mxu0 %v1393
    %v4703 = vpop.f32.mrf.mxu0
    %v4704 = vadd.f32 %v4664, %v4703
    %v4705 = vpop.f32.mrf.mxu0
    %v4706 = vpop.f32.mrf.mxu0
    %v4707 = vpop.f32.mrf.mxu0
    %4708 = vdwg.mxu0
    %4709 = vmatprep.subr.bf16.mxu0 0
    %4710 = vmatpush1.bf16.msra.mxu0 %v3620
    %4711 = vmatprep.subr.bf16.mxu0 0
    %4712 = vmatpush1.bf16.msra.mxu0 %v3619
    %4713 = vmatprep.subr.bf16.mxu0 0
    %4714 = vmatpush1.bf16.msra.mxu0 %v3618
    %4715 = vmatprep.subr.bf16.mxu0 0
    %4716 = vmatpush1.bf16.msra.mxu0 %v3617
    %4717 = vmatprep.subr.bf16.mxu0 0
    %4718 = vmatpush1.bf16.msra.mxu0 %v3616
    %4719 = vmatprep.subr.bf16.mxu0 0
    %4720 = vmatpush1.bf16.msra.mxu0 %v3615
    %4721 = vmatprep.subr.bf16.mxu0 0
    %4722 = vmatpush1.bf16.msra.mxu0 %v3614
    %4723 = vmatprep.subr.bf16.mxu0 0
    %4724 = vmatpush1.bf16.msra.mxu0 %v3613
    %4725 = vmatprep.subr.bf16.mxu0 0
    %4726 = vmatpush2.bf16.msra.mxu0 %v3628
    %4727 = vmatprep.subr.bf16.mxu0 0
    %4728 = vmatpush2.bf16.msra.mxu0 %v3627
    %4729 = vmatprep.subr.bf16.mxu0 0
    %4730 = vmatpush2.bf16.msra.mxu0 %v3626
    %4731 = vmatprep.subr.bf16.mxu0 0
    %4732 = vmatpush2.bf16.msra.mxu0 %v3625
    %4733 = vmatprep.subr.bf16.mxu0 0
    %4734 = vmatpush2.bf16.msra.mxu0 %v3624
    %4735 = vmatprep.subr.bf16.mxu0 0
    %4736 = vmatpush2.bf16.msra.mxu0 %v3623
    %4737 = vmatprep.subr.bf16.mxu0 0
    %4738 = vmatpush2.bf16.msra.mxu0 %v3622
    %4739 = vmatprep.subr.bf16.mxu0 0
    %4740 = vmatpush2.bf16.msra.mxu0 %v3621
    %4741 = vmatprep.mubr.bf16.mxu0 %v1396
    %4742 = vmatmul.mubr.bf16.gmra.mxu0 %v1395
    %v4743 = vpop.f32.mrf.mxu0
    %v4744 = vadd.f32 %v4704, %v4743
    %v4745 = vpop.f32.mrf.mxu0
    %v4746 = vpop.f32.mrf.mxu0
    %v4747 = vpop.f32.mrf.mxu0
    %4748 = vdwg.mxu0
    %4749 = vmatprep.subr.bf16.mxu0 0
    %4750 = vmatpush1.bf16.msra.mxu0 %v3636
    %4751 = vmatprep.subr.bf16.mxu0 0
    %4752 = vmatpush1.bf16.msra.mxu0 %v3635
    %4753 = vmatprep.subr.bf16.mxu0 0
    %4754 = vmatpush1.bf16.msra.mxu0 %v3634
    %4755 = vmatprep.subr.bf16.mxu0 0
    %4756 = vmatpush1.bf16.msra.mxu0 %v3633
    %4757 = vmatprep.subr.bf16.mxu0 0
    %4758 = vmatpush1.bf16.msra.mxu0 %v3632
    %4759 = vmatprep.subr.bf16.mxu0 0
    %4760 = vmatpush1.bf16.msra.mxu0 %v3631
    %4761 = vmatprep.subr.bf16.mxu0 0
    %4762 = vmatpush1.bf16.msra.mxu0 %v3630
    %4763 = vmatprep.subr.bf16.mxu0 0
    %4764 = vmatpush1.bf16.msra.mxu0 %v3629
    %4765 = vmatprep.subr.bf16.mxu0 0
    %4766 = vmatpush2.bf16.msra.mxu0 %v3644
    %4767 = vmatprep.subr.bf16.mxu0 0
    %4768 = vmatpush2.bf16.msra.mxu0 %v3643
    %4769 = vmatprep.subr.bf16.mxu0 0
    %4770 = vmatpush2.bf16.msra.mxu0 %v3642
    %4771 = vmatprep.subr.bf16.mxu0 0
    %4772 = vmatpush2.bf16.msra.mxu0 %v3641
    %4773 = vmatprep.subr.bf16.mxu0 0
    %4774 = vmatpush2.bf16.msra.mxu0 %v3640
    %4775 = vmatprep.subr.bf16.mxu0 0
    %4776 = vmatpush2.bf16.msra.mxu0 %v3639
    %4777 = vmatprep.subr.bf16.mxu0 0
    %4778 = vmatpush2.bf16.msra.mxu0 %v3638
    %4779 = vmatprep.subr.bf16.mxu0 0
    %4780 = vmatpush2.bf16.msra.mxu0 %v3637
    %4781 = vmatprep.mubr.bf16.mxu0 %v1398
    %4782 = vmatmul.mubr.bf16.gmra.mxu0 %v1397
    %v4783 = vpop.f32.mrf.mxu0
    %v4784 = vadd.f32 %v4744, %v4783
    %v4785 = vpop.f32.mrf.mxu0
    %v4786 = vpop.f32.mrf.mxu0
    %v4787 = vpop.f32.mrf.mxu0
    %4788 = vdwg.mxu0
    %4789 = vmatprep.subr.bf16.mxu0 0
    %4790 = vmatpush1.bf16.msra.mxu0 %v3652
    %4791 = vmatprep.subr.bf16.mxu0 0
    %4792 = vmatpush1.bf16.msra.mxu0 %v3651
    %4793 = vmatprep.subr.bf16.mxu0 0
    %4794 = vmatpush1.bf16.msra.mxu0 %v3650
    %4795 = vmatprep.subr.bf16.mxu0 0
    %4796 = vmatpush1.bf16.msra.mxu0 %v3649
    %4797 = vmatprep.subr.bf16.mxu0 0
    %4798 = vmatpush1.bf16.msra.mxu0 %v3648
    %4799 = vmatprep.subr.bf16.mxu0 0
    %4800 = vmatpush1.bf16.msra.mxu0 %v3647
    %4801 = vmatprep.subr.bf16.mxu0 0
    %4802 = vmatpush1.bf16.msra.mxu0 %v3646
    %4803 = vmatprep.subr.bf16.mxu0 0
    %4804 = vmatpush1.bf16.msra.mxu0 %v3645
    %4805 = vmatprep.subr.bf16.mxu0 0
    %4806 = vmatpush2.bf16.msra.mxu0 %v3660
    %4807 = vmatprep.subr.bf16.mxu0 0
    %4808 = vmatpush2.bf16.msra.mxu0 %v3659
    %4809 = vmatprep.subr.bf16.mxu0 0
    %4810 = vmatpush2.bf16.msra.mxu0 %v3658
    %4811 = vmatprep.subr.bf16.mxu0 0
    %4812 = vmatpush2.bf16.msra.mxu0 %v3657
    %4813 = vmatprep.subr.bf16.mxu0 0
    %4814 = vmatpush2.bf16.msra.mxu0 %v3656
    %4815 = vmatprep.subr.bf16.mxu0 0
    %4816 = vmatpush2.bf16.msra.mxu0 %v3655
    %4817 = vmatprep.subr.bf16.mxu0 0
    %4818 = vmatpush2.bf16.msra.mxu0 %v3654
    %4819 = vmatprep.subr.bf16.mxu0 0
    %4820 = vmatpush2.bf16.msra.mxu0 %v3653
    %4821 = vmatprep.mubr.bf16.mxu0 %v1400
    %4822 = vmatmul.mubr.bf16.gmra.mxu0 %v1399
    %v4823 = vpop.f32.mrf.mxu0
    %v4824 = vadd.f32 %v4784, %v4823
    %v4825 = vpop.f32.mrf.mxu0
    %v4826 = vpop.f32.mrf.mxu0
    %v4827 = vpop.f32.mrf.mxu0
    %4828 = vdwg.mxu0
    %4829 = vmatprep.subr.bf16.mxu0 0
    %4830 = vmatpush1.bf16.msra.mxu0 %v3668
    %4831 = vmatprep.subr.bf16.mxu0 0
    %4832 = vmatpush1.bf16.msra.mxu0 %v3667
    %4833 = vmatprep.subr.bf16.mxu0 0
    %4834 = vmatpush1.bf16.msra.mxu0 %v3666
    %4835 = vmatprep.subr.bf16.mxu0 0
    %4836 = vmatpush1.bf16.msra.mxu0 %v3665
    %4837 = vmatprep.subr.bf16.mxu0 0
    %4838 = vmatpush1.bf16.msra.mxu0 %v3664
    %4839 = vmatprep.subr.bf16.mxu0 0
    %4840 = vmatpush1.bf16.msra.mxu0 %v3663
    %4841 = vmatprep.subr.bf16.mxu0 0
    %4842 = vmatpush1.bf16.msra.mxu0 %v3662
    %4843 = vmatprep.subr.bf16.mxu0 0
    %4844 = vmatpush1.bf16.msra.mxu0 %v3661
    %4845 = vmatprep.subr.bf16.mxu0 0
    %4846 = vmatpush2.bf16.msra.mxu0 %v3676
    %4847 = vmatprep.subr.bf16.mxu0 0
    %4848 = vmatpush2.bf16.msra.mxu0 %v3675
    %4849 = vmatprep.subr.bf16.mxu0 0
    %4850 = vmatpush2.bf16.msra.mxu0 %v3674
    %4851 = vmatprep.subr.bf16.mxu0 0
    %4852 = vmatpush2.bf16.msra.mxu0 %v3673
    %4853 = vmatprep.subr.bf16.mxu0 0
    %4854 = vmatpush2.bf16.msra.mxu0 %v3672
    %4855 = vmatprep.subr.bf16.mxu0 0
    %4856 = vmatpush2.bf16.msra.mxu0 %v3671
    %4857 = vmatprep.subr.bf16.mxu0 0
    %4858 = vmatpush2.bf16.msra.mxu0 %v3670
    %4859 = vmatprep.subr.bf16.mxu0 0
    %4860 = vmatpush2.bf16.msra.mxu0 %v3669
    %4861 = vmatprep.mubr.bf16.mxu0 %v1402
    %4862 = vmatmul.mubr.bf16.gmra.mxu0 %v1401
    %v4863 = vpop.f32.mrf.mxu0
    %v4864 = vadd.f32 %v4824, %v4863
    %v4865 = vpop.f32.mrf.mxu0
    %v4866 = vpop.f32.mrf.mxu0
    %v4867 = vpop.f32.mrf.mxu0
    %4868 = vdwg.mxu0
    %4869 = vmatprep.subr.bf16.mxu0 0
    %4870 = vmatpush1.bf16.msra.mxu0 %v3684
    %4871 = vmatprep.subr.bf16.mxu0 0
    %4872 = vmatpush1.bf16.msra.mxu0 %v3683
    %4873 = vmatprep.subr.bf16.mxu0 0
    %4874 = vmatpush1.bf16.msra.mxu0 %v3682
    %4875 = vmatprep.subr.bf16.mxu0 0
    %4876 = vmatpush1.bf16.msra.mxu0 %v3681
    %4877 = vmatprep.subr.bf16.mxu0 0
    %4878 = vmatpush1.bf16.msra.mxu0 %v3680
    %4879 = vmatprep.subr.bf16.mxu0 0
    %4880 = vmatpush1.bf16.msra.mxu0 %v3679
    %4881 = vmatprep.subr.bf16.mxu0 0
    %4882 = vmatpush1.bf16.msra.mxu0 %v3678
    %4883 = vmatprep.subr.bf16.mxu0 0
    %4884 = vmatpush1.bf16.msra.mxu0 %v3677
    %4885 = vmatprep.subr.bf16.mxu0 0
    %4886 = vmatpush2.bf16.msra.mxu0 %v3692
    %4887 = vmatprep.subr.bf16.mxu0 0
    %4888 = vmatpush2.bf16.msra.mxu0 %v3691
    %4889 = vmatprep.subr.bf16.mxu0 0
    %4890 = vmatpush2.bf16.msra.mxu0 %v3690
    %4891 = vmatprep.subr.bf16.mxu0 0
    %4892 = vmatpush2.bf16.msra.mxu0 %v3689
    %4893 = vmatprep.subr.bf16.mxu0 0
    %4894 = vmatpush2.bf16.msra.mxu0 %v3688
    %4895 = vmatprep.subr.bf16.mxu0 0
    %4896 = vmatpush2.bf16.msra.mxu0 %v3687
    %4897 = vmatprep.subr.bf16.mxu0 0
    %4898 = vmatpush2.bf16.msra.mxu0 %v3686
    %4899 = vmatprep.subr.bf16.mxu0 0
    %4900 = vmatpush2.bf16.msra.mxu0 %v3685
    %4901 = vmatprep.mubr.bf16.mxu0 %v1404
    %4902 = vmatmul.mubr.bf16.gmra.mxu0 %v1403
    %v4903 = vpop.f32.mrf.mxu0
    %v4904 = vadd.f32 %v4864, %v4903
    %v4905 = vpop.f32.mrf.mxu0
    %v4906 = vpop.f32.mrf.mxu0
    %v4907 = vpop.f32.mrf.mxu0
    %4908 = vdwg.mxu0
    %4909 = vmatprep.subr.bf16.mxu0 0
    %4910 = vmatpush1.bf16.msra.mxu0 %v3700
    %4911 = vmatprep.subr.bf16.mxu0 0
    %4912 = vmatpush1.bf16.msra.mxu0 %v3699
    %4913 = vmatprep.subr.bf16.mxu0 0
    %4914 = vmatpush1.bf16.msra.mxu0 %v3698
    %4915 = vmatprep.subr.bf16.mxu0 0
    %4916 = vmatpush1.bf16.msra.mxu0 %v3697
    %4917 = vmatprep.subr.bf16.mxu0 0
    %4918 = vmatpush1.bf16.msra.mxu0 %v3696
    %4919 = vmatprep.subr.bf16.mxu0 0
    %4920 = vmatpush1.bf16.msra.mxu0 %v3695
    %4921 = vmatprep.subr.bf16.mxu0 0
    %4922 = vmatpush1.bf16.msra.mxu0 %v3694
    %4923 = vmatprep.subr.bf16.mxu0 0
    %4924 = vmatpush1.bf16.msra.mxu0 %v3693
    %4925 = vmatprep.subr.bf16.mxu0 0
    %4926 = vmatpush2.bf16.msra.mxu0 %v3708
    %4927 = vmatprep.subr.bf16.mxu0 0
    %4928 = vmatpush2.bf16.msra.mxu0 %v3707
    %4929 = vmatprep.subr.bf16.mxu0 0
    %4930 = vmatpush2.bf16.msra.mxu0 %v3706
    %4931 = vmatprep.subr.bf16.mxu0 0
    %4932 = vmatpush2.bf16.msra.mxu0 %v3705
    %4933 = vmatprep.subr.bf16.mxu0 0
    %4934 = vmatpush2.bf16.msra.mxu0 %v3704
    %4935 = vmatprep.subr.bf16.mxu0 0
    %4936 = vmatpush2.bf16.msra.mxu0 %v3703
    %4937 = vmatprep.subr.bf16.mxu0 0
    %4938 = vmatpush2.bf16.msra.mxu0 %v3702
    %4939 = vmatprep.subr.bf16.mxu0 0
    %4940 = vmatpush2.bf16.msra.mxu0 %v3701
    %4941 = vmatprep.mubr.bf16.mxu0 %v1406
    %4942 = vmatmul.mubr.bf16.gmra.mxu0 %v1405
    %v4943 = vpop.f32.mrf.mxu0
    %v4944 = vadd.f32 %v4904, %v4943
    %v4945 = vpop.f32.mrf.mxu0
    %v4946 = vpop.f32.mrf.mxu0
    %v4947 = vpop.f32.mrf.mxu0
    %4948 = vdwg.mxu0
    %4949 = vmatprep.subr.bf16.mxu0 0
    %4950 = vmatpush1.bf16.msra.mxu0 %v3716
    %4951 = vmatprep.subr.bf16.mxu0 0
    %4952 = vmatpush1.bf16.msra.mxu0 %v3715
    %4953 = vmatprep.subr.bf16.mxu0 0
    %4954 = vmatpush1.bf16.msra.mxu0 %v3714
    %4955 = vmatprep.subr.bf16.mxu0 0
    %4956 = vmatpush1.bf16.msra.mxu0 %v3713
    %4957 = vmatprep.subr.bf16.mxu0 0
    %4958 = vmatpush1.bf16.msra.mxu0 %v3712
    %4959 = vmatprep.subr.bf16.mxu0 0
    %4960 = vmatpush1.bf16.msra.mxu0 %v3711
    %4961 = vmatprep.subr.bf16.mxu0 0
    %4962 = vmatpush1.bf16.msra.mxu0 %v3710
    %4963 = vmatprep.subr.bf16.mxu0 0
    %4964 = vmatpush1.bf16.msra.mxu0 %v3709
    %4965 = vmatprep.subr.bf16.mxu0 0
    %4966 = vmatpush2.bf16.msra.mxu0 %v3724
    %4967 = vmatprep.subr.bf16.mxu0 0
    %4968 = vmatpush2.bf16.msra.mxu0 %v3723
    %4969 = vmatprep.subr.bf16.mxu0 0
    %4970 = vmatpush2.bf16.msra.mxu0 %v3722
    %4971 = vmatprep.subr.bf16.mxu0 0
    %4972 = vmatpush2.bf16.msra.mxu0 %v3721
    %4973 = vmatprep.subr.bf16.mxu0 0
    %4974 = vmatpush2.bf16.msra.mxu0 %v3720
    %4975 = vmatprep.subr.bf16.mxu0 0
    %4976 = vmatpush2.bf16.msra.mxu0 %v3719
    %4977 = vmatprep.subr.bf16.mxu0 0
    %4978 = vmatpush2.bf16.msra.mxu0 %v3718
    %4979 = vmatprep.subr.bf16.mxu0 0
    %4980 = vmatpush2.bf16.msra.mxu0 %v3717
    %4981 = vmatprep.mubr.bf16.mxu0 %v1408
    %4982 = vmatmul.mubr.bf16.gmra.mxu0 %v1407
    %v4983 = vpop.f32.mrf.mxu0
    %v4984 = vadd.f32 %v4944, %v4983
    %v4985 = vpop.f32.mrf.mxu0
    %v4986 = vpop.f32.mrf.mxu0
    %v4987 = vpop.f32.mrf.mxu0
    %4988 = vdwg.mxu0
    %4989 = vmatprep.subr.bf16.mxu0 0
    %4990 = vmatpush1.bf16.msra.mxu0 %v3732
    %4991 = vmatprep.subr.bf16.mxu0 0
    %4992 = vmatpush1.bf16.msra.mxu0 %v3731
    %4993 = vmatprep.subr.bf16.mxu0 0
    %4994 = vmatpush1.bf16.msra.mxu0 %v3730
    %4995 = vmatprep.subr.bf16.mxu0 0
    %4996 = vmatpush1.bf16.msra.mxu0 %v3729
    %4997 = vmatprep.subr.bf16.mxu0 0
    %4998 = vmatpush1.bf16.msra.mxu0 %v3728
    %4999 = vmatprep.subr.bf16.mxu0 0
    %5000 = vmatpush1.bf16.msra.mxu0 %v3727
    %5001 = vmatprep.subr.bf16.mxu0 0
    %5002 = vmatpush1.bf16.msra.mxu0 %v3726
    %5003 = vmatprep.subr.bf16.mxu0 0
    %5004 = vmatpush1.bf16.msra.mxu0 %v3725
    %5005 = vmatprep.subr.bf16.mxu0 0
    %5006 = vmatpush2.bf16.msra.mxu0 %v3740
    %5007 = vmatprep.subr.bf16.mxu0 0
    %5008 = vmatpush2.bf16.msra.mxu0 %v3739
    %5009 = vmatprep.subr.bf16.mxu0 0
    %5010 = vmatpush2.bf16.msra.mxu0 %v3738
    %5011 = vmatprep.subr.bf16.mxu0 0
    %5012 = vmatpush2.bf16.msra.mxu0 %v3737
    %5013 = vmatprep.subr.bf16.mxu0 0
    %5014 = vmatpush2.bf16.msra.mxu0 %v3736
    %5015 = vmatprep.subr.bf16.mxu0 0
    %5016 = vmatpush2.bf16.msra.mxu0 %v3735
    %5017 = vmatprep.subr.bf16.mxu0 0
    %5018 = vmatpush2.bf16.msra.mxu0 %v3734
    %5019 = vmatprep.subr.bf16.mxu0 0
    %5020 = vmatpush2.bf16.msra.mxu0 %v3733
    %5021 = vmatprep.mubr.bf16.mxu0 %v1410
    %5022 = vmatmul.mubr.bf16.gmra.mxu0 %v1409
    %v5023 = vpop.f32.mrf.mxu0
    %v5024 = vadd.f32 %v4984, %v5023
    %v5025 = vpop.f32.mrf.mxu0
    %v5026 = vpop.f32.mrf.mxu0
    %v5027 = vpop.f32.mrf.mxu0
    %5028 = vdwg.mxu0
    %5029 = vmatprep.subr.bf16.mxu0 0
    %5030 = vmatpush1.bf16.msra.mxu0 %v3748
    %5031 = vmatprep.subr.bf16.mxu0 0
    %5032 = vmatpush1.bf16.msra.mxu0 %v3747
    %5033 = vmatprep.subr.bf16.mxu0 0
    %5034 = vmatpush1.bf16.msra.mxu0 %v3746
    %5035 = vmatprep.subr.bf16.mxu0 0
    %5036 = vmatpush1.bf16.msra.mxu0 %v3745
    %5037 = vmatprep.subr.bf16.mxu0 0
    %5038 = vmatpush1.bf16.msra.mxu0 %v3744
    %5039 = vmatprep.subr.bf16.mxu0 0
    %5040 = vmatpush1.bf16.msra.mxu0 %v3743
    %5041 = vmatprep.subr.bf16.mxu0 0
    %5042 = vmatpush1.bf16.msra.mxu0 %v3742
    %5043 = vmatprep.subr.bf16.mxu0 0
    %5044 = vmatpush1.bf16.msra.mxu0 %v3741
    %5045 = vmatprep.subr.bf16.mxu0 0
    %5046 = vmatpush2.bf16.msra.mxu0 %v3756
    %5047 = vmatprep.subr.bf16.mxu0 0
    %5048 = vmatpush2.bf16.msra.mxu0 %v3755
    %5049 = vmatprep.subr.bf16.mxu0 0
    %5050 = vmatpush2.bf16.msra.mxu0 %v3754
    %5051 = vmatprep.subr.bf16.mxu0 0
    %5052 = vmatpush2.bf16.msra.mxu0 %v3753
    %5053 = vmatprep.subr.bf16.mxu0 0
    %5054 = vmatpush2.bf16.msra.mxu0 %v3752
    %5055 = vmatprep.subr.bf16.mxu0 0
    %5056 = vmatpush2.bf16.msra.mxu0 %v3751
    %5057 = vmatprep.subr.bf16.mxu0 0
    %5058 = vmatpush2.bf16.msra.mxu0 %v3750
    %5059 = vmatprep.subr.bf16.mxu0 0
    %5060 = vmatpush2.bf16.msra.mxu0 %v3749
    %5061 = vmatprep.mubr.bf16.mxu0 %v1412
    %5062 = vmatmul.mubr.bf16.gmra.mxu0 %v1411
    %v5063 = vpop.f32.mrf.mxu0
    %v5064 = vadd.f32 %v5024, %v5063
    %v5065 = vpop.f32.mrf.mxu0
    %v5066 = vpop.f32.mrf.mxu0
    %v5067 = vpop.f32.mrf.mxu0
    %5068 = vdwg.mxu0
    %5069 = vmatprep.subr.bf16.mxu0 0
    %5070 = vmatpush1.bf16.msra.mxu0 %v3764
    %5071 = vmatprep.subr.bf16.mxu0 0
    %5072 = vmatpush1.bf16.msra.mxu0 %v3763
    %5073 = vmatprep.subr.bf16.mxu0 0
    %5074 = vmatpush1.bf16.msra.mxu0 %v3762
    %5075 = vmatprep.subr.bf16.mxu0 0
    %5076 = vmatpush1.bf16.msra.mxu0 %v3761
    %5077 = vmatprep.subr.bf16.mxu0 0
    %5078 = vmatpush1.bf16.msra.mxu0 %v3760
    %5079 = vmatprep.subr.bf16.mxu0 0
    %5080 = vmatpush1.bf16.msra.mxu0 %v3759
    %5081 = vmatprep.subr.bf16.mxu0 0
    %5082 = vmatpush1.bf16.msra.mxu0 %v3758
    %5083 = vmatprep.subr.bf16.mxu0 0
    %5084 = vmatpush1.bf16.msra.mxu0 %v3757
    %5085 = vmatprep.subr.bf16.mxu0 0
    %5086 = vmatpush2.bf16.msra.mxu0 %v3772
    %5087 = vmatprep.subr.bf16.mxu0 0
    %5088 = vmatpush2.bf16.msra.mxu0 %v3771
    %5089 = vmatprep.subr.bf16.mxu0 0
    %5090 = vmatpush2.bf16.msra.mxu0 %v3770
    %5091 = vmatprep.subr.bf16.mxu0 0
    %5092 = vmatpush2.bf16.msra.mxu0 %v3769
    %5093 = vmatprep.subr.bf16.mxu0 0
    %5094 = vmatpush2.bf16.msra.mxu0 %v3768
    %5095 = vmatprep.subr.bf16.mxu0 0
    %5096 = vmatpush2.bf16.msra.mxu0 %v3767
    %5097 = vmatprep.subr.bf16.mxu0 0
    %5098 = vmatpush2.bf16.msra.mxu0 %v3766
    %5099 = vmatprep.subr.bf16.mxu0 0
    %5100 = vmatpush2.bf16.msra.mxu0 %v3765
    %5101 = vmatprep.mubr.bf16.mxu0 %v1414
    %5102 = vmatmul.mubr.bf16.gmra.mxu0 %v1413
    %v5103 = vpop.f32.mrf.mxu0
    %v5104 = vadd.f32 %v5064, %v5103
    %v5105 = vpop.f32.mrf.mxu0
    %v5106 = vpop.f32.mrf.mxu0
    %v5107 = vpop.f32.mrf.mxu0
    %5108 = vdwg.mxu0
    %5109 = vmatprep.subr.bf16.mxu0 0
    %5110 = vmatpush1.bf16.msra.mxu0 %v3780
    %5111 = vmatprep.subr.bf16.mxu0 0
    %5112 = vmatpush1.bf16.msra.mxu0 %v3779
    %5113 = vmatprep.subr.bf16.mxu0 0
    %5114 = vmatpush1.bf16.msra.mxu0 %v3778
    %5115 = vmatprep.subr.bf16.mxu0 0
    %5116 = vmatpush1.bf16.msra.mxu0 %v3777
    %5117 = vmatprep.subr.bf16.mxu0 0
    %5118 = vmatpush1.bf16.msra.mxu0 %v3776
    %5119 = vmatprep.subr.bf16.mxu0 0
    %5120 = vmatpush1.bf16.msra.mxu0 %v3775
    %5121 = vmatprep.subr.bf16.mxu0 0
    %5122 = vmatpush1.bf16.msra.mxu0 %v3774
    %5123 = vmatprep.subr.bf16.mxu0 0
    %5124 = vmatpush1.bf16.msra.mxu0 %v3773
    %5125 = vmatprep.subr.bf16.mxu0 0
    %5126 = vmatpush2.bf16.msra.mxu0 %v3788
    %5127 = vmatprep.subr.bf16.mxu0 0
    %5128 = vmatpush2.bf16.msra.mxu0 %v3787
    %5129 = vmatprep.subr.bf16.mxu0 0
    %5130 = vmatpush2.bf16.msra.mxu0 %v3786
    %5131 = vmatprep.subr.bf16.mxu0 0
    %5132 = vmatpush2.bf16.msra.mxu0 %v3785
    %5133 = vmatprep.subr.bf16.mxu0 0
    %5134 = vmatpush2.bf16.msra.mxu0 %v3784
    %5135 = vmatprep.subr.bf16.mxu0 0
    %5136 = vmatpush2.bf16.msra.mxu0 %v3783
    %5137 = vmatprep.subr.bf16.mxu0 0
    %5138 = vmatpush2.bf16.msra.mxu0 %v3782
    %5139 = vmatprep.subr.bf16.mxu0 0
    %5140 = vmatpush2.bf16.msra.mxu0 %v3781
    %5141 = vmatprep.mubr.bf16.mxu0 %v1416
    %5142 = vmatmul.mubr.bf16.gmra.mxu0 %v1415
    %v5143 = vpop.f32.mrf.mxu0
    %v5144 = vadd.f32 %v5104, %v5143
    %v5145 = vpop.f32.mrf.mxu0
    %v5146 = vpop.f32.mrf.mxu0
    %v5147 = vpop.f32.mrf.mxu0
    %5148 = vdwg.mxu0
    %5149 = vmatprep.subr.bf16.mxu0 0
    %5150 = vmatpush1.bf16.msra.mxu0 %v3796
    %5151 = vmatprep.subr.bf16.mxu0 0
    %5152 = vmatpush1.bf16.msra.mxu0 %v3795
    %5153 = vmatprep.subr.bf16.mxu0 0
    %5154 = vmatpush1.bf16.msra.mxu0 %v3794
    %5155 = vmatprep.subr.bf16.mxu0 0
    %5156 = vmatpush1.bf16.msra.mxu0 %v3793
    %5157 = vmatprep.subr.bf16.mxu0 0
    %5158 = vmatpush1.bf16.msra.mxu0 %v3792
    %5159 = vmatprep.subr.bf16.mxu0 0
    %5160 = vmatpush1.bf16.msra.mxu0 %v3791
    %5161 = vmatprep.subr.bf16.mxu0 0
    %5162 = vmatpush1.bf16.msra.mxu0 %v3790
    %5163 = vmatprep.subr.bf16.mxu0 0
    %5164 = vmatpush1.bf16.msra.mxu0 %v3789
    %5165 = vmatprep.subr.bf16.mxu0 0
    %5166 = vmatpush2.bf16.msra.mxu0 %v3804
    %5167 = vmatprep.subr.bf16.mxu0 0
    %5168 = vmatpush2.bf16.msra.mxu0 %v3803
    %5169 = vmatprep.subr.bf16.mxu0 0
    %5170 = vmatpush2.bf16.msra.mxu0 %v3802
    %5171 = vmatprep.subr.bf16.mxu0 0
    %5172 = vmatpush2.bf16.msra.mxu0 %v3801
    %5173 = vmatprep.subr.bf16.mxu0 0
    %5174 = vmatpush2.bf16.msra.mxu0 %v3800
    %5175 = vmatprep.subr.bf16.mxu0 0
    %5176 = vmatpush2.bf16.msra.mxu0 %v3799
    %5177 = vmatprep.subr.bf16.mxu0 0
    %5178 = vmatpush2.bf16.msra.mxu0 %v3798
    %5179 = vmatprep.subr.bf16.mxu0 0
    %5180 = vmatpush2.bf16.msra.mxu0 %v3797
    %5181 = vmatprep.mubr.bf16.mxu0 %v1418
    %5182 = vmatmul.mubr.bf16.gmra.mxu0 %v1417
    %v5183 = vpop.f32.mrf.mxu0
    %v5184 = vadd.f32 %v5144, %v5183
    %v5185 = vpop.f32.mrf.mxu0
    %v5186 = vpop.f32.mrf.mxu0
    %v5187 = vpop.f32.mrf.mxu0
    %5188 = vdwg.mxu0
    %5189 = vmatprep.subr.bf16.mxu0 0
    %5190 = vmatpush1.bf16.msra.mxu0 %v3812
    %5191 = vmatprep.subr.bf16.mxu0 0
    %5192 = vmatpush1.bf16.msra.mxu0 %v3811
    %5193 = vmatprep.subr.bf16.mxu0 0
    %5194 = vmatpush1.bf16.msra.mxu0 %v3810
    %5195 = vmatprep.subr.bf16.mxu0 0
    %5196 = vmatpush1.bf16.msra.mxu0 %v3809
    %5197 = vmatprep.subr.bf16.mxu0 0
    %5198 = vmatpush1.bf16.msra.mxu0 %v3808
    %5199 = vmatprep.subr.bf16.mxu0 0
    %5200 = vmatpush1.bf16.msra.mxu0 %v3807
    %5201 = vmatprep.subr.bf16.mxu0 0
    %5202 = vmatpush1.bf16.msra.mxu0 %v3806
    %5203 = vmatprep.subr.bf16.mxu0 0
    %5204 = vmatpush1.bf16.msra.mxu0 %v3805
    %5205 = vmatprep.subr.bf16.mxu0 0
    %5206 = vmatpush2.bf16.msra.mxu0 %v3820
    %5207 = vmatprep.subr.bf16.mxu0 0
    %5208 = vmatpush2.bf16.msra.mxu0 %v3819
    %5209 = vmatprep.subr.bf16.mxu0 0
    %5210 = vmatpush2.bf16.msra.mxu0 %v3818
    %5211 = vmatprep.subr.bf16.mxu0 0
    %5212 = vmatpush2.bf16.msra.mxu0 %v3817
    %5213 = vmatprep.subr.bf16.mxu0 0
    %5214 = vmatpush2.bf16.msra.mxu0 %v3816
    %5215 = vmatprep.subr.bf16.mxu0 0
    %5216 = vmatpush2.bf16.msra.mxu0 %v3815
    %5217 = vmatprep.subr.bf16.mxu0 0
    %5218 = vmatpush2.bf16.msra.mxu0 %v3814
    %5219 = vmatprep.subr.bf16.mxu0 0
    %5220 = vmatpush2.bf16.msra.mxu0 %v3813
    %5221 = vmatprep.mubr.bf16.mxu0 %v1420
    %5222 = vmatmul.mubr.bf16.gmra.mxu0 %v1419
    %v5223 = vpop.f32.mrf.mxu0
    %v5224 = vadd.f32 %v5184, %v5223
    %v5225 = vpop.f32.mrf.mxu0
    %v5226 = vpop.f32.mrf.mxu0
    %v5227 = vpop.f32.mrf.mxu0
    %5228 = vdwg.mxu0
    %5229 = vmatprep.subr.bf16.mxu0 0
    %5230 = vmatpush1.bf16.msra.mxu0 %v3828
    %5231 = vmatprep.subr.bf16.mxu0 0
    %5232 = vmatpush1.bf16.msra.mxu0 %v3827
    %5233 = vmatprep.subr.bf16.mxu0 0
    %5234 = vmatpush1.bf16.msra.mxu0 %v3826
    %5235 = vmatprep.subr.bf16.mxu0 0
    %5236 = vmatpush1.bf16.msra.mxu0 %v3825
    %5237 = vmatprep.subr.bf16.mxu0 0
    %5238 = vmatpush1.bf16.msra.mxu0 %v3824
    %5239 = vmatprep.subr.bf16.mxu0 0
    %5240 = vmatpush1.bf16.msra.mxu0 %v3823
    %5241 = vmatprep.subr.bf16.mxu0 0
    %5242 = vmatpush1.bf16.msra.mxu0 %v3822
    %5243 = vmatprep.subr.bf16.mxu0 0
    %5244 = vmatpush1.bf16.msra.mxu0 %v3821
    %5245 = vmatprep.subr.bf16.mxu0 0
    %5246 = vmatpush2.bf16.msra.mxu0 %v3836
    %5247 = vmatprep.subr.bf16.mxu0 0
    %5248 = vmatpush2.bf16.msra.mxu0 %v3835
    %5249 = vmatprep.subr.bf16.mxu0 0
    %5250 = vmatpush2.bf16.msra.mxu0 %v3834
    %5251 = vmatprep.subr.bf16.mxu0 0
    %5252 = vmatpush2.bf16.msra.mxu0 %v3833
    %5253 = vmatprep.subr.bf16.mxu0 0
    %5254 = vmatpush2.bf16.msra.mxu0 %v3832
    %5255 = vmatprep.subr.bf16.mxu0 0
    %5256 = vmatpush2.bf16.msra.mxu0 %v3831
    %5257 = vmatprep.subr.bf16.mxu0 0
    %5258 = vmatpush2.bf16.msra.mxu0 %v3830
    %5259 = vmatprep.subr.bf16.mxu0 0
    %5260 = vmatpush2.bf16.msra.mxu0 %v3829
    %5261 = vmatprep.mubr.bf16.mxu0 %v1422
    %5262 = vmatmul.mubr.bf16.gmra.mxu0 %v1421
    %v5263 = vpop.f32.mrf.mxu0
    %v5264 = vadd.f32 %v5224, %v5263
    %v5265 = vpop.f32.mrf.mxu0
    %v5266 = vpop.f32.mrf.mxu0
    %v5267 = vpop.f32.mrf.mxu0
    %5268 = vdwg.mxu0
    %5269 = vmatprep.subr.bf16.mxu0 0
    %5270 = vmatpush1.bf16.msra.mxu0 %v3844
    %5271 = vmatprep.subr.bf16.mxu0 0
    %5272 = vmatpush1.bf16.msra.mxu0 %v3843
    %5273 = vmatprep.subr.bf16.mxu0 0
    %5274 = vmatpush1.bf16.msra.mxu0 %v3842
    %5275 = vmatprep.subr.bf16.mxu0 0
    %5276 = vmatpush1.bf16.msra.mxu0 %v3841
    %5277 = vmatprep.subr.bf16.mxu0 0
    %5278 = vmatpush1.bf16.msra.mxu0 %v3840
    %5279 = vmatprep.subr.bf16.mxu0 0
    %5280 = vmatpush1.bf16.msra.mxu0 %v3839
    %5281 = vmatprep.subr.bf16.mxu0 0
    %5282 = vmatpush1.bf16.msra.mxu0 %v3838
    %5283 = vmatprep.subr.bf16.mxu0 0
    %5284 = vmatpush1.bf16.msra.mxu0 %v3837
    %5285 = vmatprep.subr.bf16.mxu0 0
    %5286 = vmatpush2.bf16.msra.mxu0 %v3852
    %5287 = vmatprep.subr.bf16.mxu0 0
    %5288 = vmatpush2.bf16.msra.mxu0 %v3851
    %5289 = vmatprep.subr.bf16.mxu0 0
    %5290 = vmatpush2.bf16.msra.mxu0 %v3850
    %5291 = vmatprep.subr.bf16.mxu0 0
    %5292 = vmatpush2.bf16.msra.mxu0 %v3849
    %5293 = vmatprep.subr.bf16.mxu0 0
    %5294 = vmatpush2.bf16.msra.mxu0 %v3848
    %5295 = vmatprep.subr.bf16.mxu0 0
    %5296 = vmatpush2.bf16.msra.mxu0 %v3847
    %5297 = vmatprep.subr.bf16.mxu0 0
    %5298 = vmatpush2.bf16.msra.mxu0 %v3846
    %5299 = vmatprep.subr.bf16.mxu0 0
    %5300 = vmatpush2.bf16.msra.mxu0 %v3845
    %5301 = vmatprep.mubr.bf16.mxu0 %v1424
    %5302 = vmatmul.mubr.bf16.gmra.mxu0 %v1423
    %v5303 = vpop.f32.mrf.mxu0
    %v5304 = vadd.f32 %v5264, %v5303
    %v5305 = vpop.f32.mrf.mxu0
    %v5306 = vpop.f32.mrf.mxu0
    %v5307 = vpop.f32.mrf.mxu0
    %5308 = vdwg.mxu0
    %5309 = vmatprep.subr.bf16.mxu0 0
    %5310 = vmatpush1.bf16.msra.mxu0 %v3860
    %5311 = vmatprep.subr.bf16.mxu0 0
    %5312 = vmatpush1.bf16.msra.mxu0 %v3859
    %5313 = vmatprep.subr.bf16.mxu0 0
    %5314 = vmatpush1.bf16.msra.mxu0 %v3858
    %5315 = vmatprep.subr.bf16.mxu0 0
    %5316 = vmatpush1.bf16.msra.mxu0 %v3857
    %5317 = vmatprep.subr.bf16.mxu0 0
    %5318 = vmatpush1.bf16.msra.mxu0 %v3856
    %5319 = vmatprep.subr.bf16.mxu0 0
    %5320 = vmatpush1.bf16.msra.mxu0 %v3855
    %5321 = vmatprep.subr.bf16.mxu0 0
    %5322 = vmatpush1.bf16.msra.mxu0 %v3854
    %5323 = vmatprep.subr.bf16.mxu0 0
    %5324 = vmatpush1.bf16.msra.mxu0 %v3853
    %5325 = vmatprep.subr.bf16.mxu0 0
    %5326 = vmatpush2.bf16.msra.mxu0 %v3868
    %5327 = vmatprep.subr.bf16.mxu0 0
    %5328 = vmatpush2.bf16.msra.mxu0 %v3867
    %5329 = vmatprep.subr.bf16.mxu0 0
    %5330 = vmatpush2.bf16.msra.mxu0 %v3866
    %5331 = vmatprep.subr.bf16.mxu0 0
    %5332 = vmatpush2.bf16.msra.mxu0 %v3865
    %5333 = vmatprep.subr.bf16.mxu0 0
    %5334 = vmatpush2.bf16.msra.mxu0 %v3864
    %5335 = vmatprep.subr.bf16.mxu0 0
    %5336 = vmatpush2.bf16.msra.mxu0 %v3863
    %5337 = vmatprep.subr.bf16.mxu0 0
    %5338 = vmatpush2.bf16.msra.mxu0 %v3862
    %5339 = vmatprep.subr.bf16.mxu0 0
    %5340 = vmatpush2.bf16.msra.mxu0 %v3861
    %5341 = vmatprep.mubr.bf16.mxu0 %v1426
    %5342 = vmatmul.mubr.bf16.gmra.mxu0 %v1425
    %v5343 = vpop.f32.mrf.mxu0
    %v5344 = vadd.f32 %v5304, %v5343
    %v5345 = vpop.f32.mrf.mxu0
    %v5346 = vpop.f32.mrf.mxu0
    %v5347 = vpop.f32.mrf.mxu0
    %5348 = vdwg.mxu0
    %5349 = vmatprep.subr.bf16.mxu0 0
    %5350 = vmatpush1.bf16.msra.mxu0 %v3876
    %5351 = vmatprep.subr.bf16.mxu0 0
    %5352 = vmatpush1.bf16.msra.mxu0 %v3875
    %5353 = vmatprep.subr.bf16.mxu0 0
    %5354 = vmatpush1.bf16.msra.mxu0 %v3874
    %5355 = vmatprep.subr.bf16.mxu0 0
    %5356 = vmatpush1.bf16.msra.mxu0 %v3873
    %5357 = vmatprep.subr.bf16.mxu0 0
    %5358 = vmatpush1.bf16.msra.mxu0 %v3872
    %5359 = vmatprep.subr.bf16.mxu0 0
    %5360 = vmatpush1.bf16.msra.mxu0 %v3871
    %5361 = vmatprep.subr.bf16.mxu0 0
    %5362 = vmatpush1.bf16.msra.mxu0 %v3870
    %5363 = vmatprep.subr.bf16.mxu0 0
    %5364 = vmatpush1.bf16.msra.mxu0 %v3869
    %5365 = vmatprep.subr.bf16.mxu0 0
    %5366 = vmatpush2.bf16.msra.mxu0 %v3884
    %5367 = vmatprep.subr.bf16.mxu0 0
    %5368 = vmatpush2.bf16.msra.mxu0 %v3883
    %5369 = vmatprep.subr.bf16.mxu0 0
    %5370 = vmatpush2.bf16.msra.mxu0 %v3882
    %5371 = vmatprep.subr.bf16.mxu0 0
    %5372 = vmatpush2.bf16.msra.mxu0 %v3881
    %5373 = vmatprep.subr.bf16.mxu0 0
    %5374 = vmatpush2.bf16.msra.mxu0 %v3880
    %5375 = vmatprep.subr.bf16.mxu0 0
    %5376 = vmatpush2.bf16.msra.mxu0 %v3879
    %5377 = vmatprep.subr.bf16.mxu0 0
    %5378 = vmatpush2.bf16.msra.mxu0 %v3878
    %5379 = vmatprep.subr.bf16.mxu0 0
    %5380 = vmatpush2.bf16.msra.mxu0 %v3877
    %5381 = vmatprep.mubr.bf16.mxu0 %v1428
    %5382 = vmatmul.mubr.bf16.gmra.mxu0 %v1427
    %v5383 = vpop.f32.mrf.mxu0
    %v5384 = vadd.f32 %v5344, %v5383
    %v5385 = vpop.f32.mrf.mxu0
    %v5386 = vpop.f32.mrf.mxu0
    %v5387 = vpop.f32.mrf.mxu0
    %5388 = vdwg.mxu0
    %5389 = vmatprep.subr.bf16.mxu0 0
    %5390 = vmatpush1.bf16.msra.mxu0 %v3892
    %5391 = vmatprep.subr.bf16.mxu0 0
    %5392 = vmatpush1.bf16.msra.mxu0 %v3891
    %5393 = vmatprep.subr.bf16.mxu0 0
    %5394 = vmatpush1.bf16.msra.mxu0 %v3890
    %5395 = vmatprep.subr.bf16.mxu0 0
    %5396 = vmatpush1.bf16.msra.mxu0 %v3889
    %5397 = vmatprep.subr.bf16.mxu0 0
    %5398 = vmatpush1.bf16.msra.mxu0 %v3888
    %5399 = vmatprep.subr.bf16.mxu0 0
    %5400 = vmatpush1.bf16.msra.mxu0 %v3887
    %5401 = vmatprep.subr.bf16.mxu0 0
    %5402 = vmatpush1.bf16.msra.mxu0 %v3886
    %5403 = vmatprep.subr.bf16.mxu0 0
    %5404 = vmatpush1.bf16.msra.mxu0 %v3885
    %5405 = vmatprep.subr.bf16.mxu0 0
    %5406 = vmatpush2.bf16.msra.mxu0 %v3900
    %5407 = vmatprep.subr.bf16.mxu0 0
    %5408 = vmatpush2.bf16.msra.mxu0 %v3899
    %5409 = vmatprep.subr.bf16.mxu0 0
    %5410 = vmatpush2.bf16.msra.mxu0 %v3898
    %5411 = vmatprep.subr.bf16.mxu0 0
    %5412 = vmatpush2.bf16.msra.mxu0 %v3897
    %5413 = vmatprep.subr.bf16.mxu0 0
    %5414 = vmatpush2.bf16.msra.mxu0 %v3896
    %5415 = vmatprep.subr.bf16.mxu0 0
    %5416 = vmatpush2.bf16.msra.mxu0 %v3895
    %5417 = vmatprep.subr.bf16.mxu0 0
    %5418 = vmatpush2.bf16.msra.mxu0 %v3894
    %5419 = vmatprep.subr.bf16.mxu0 0
    %5420 = vmatpush2.bf16.msra.mxu0 %v3893
    %5421 = vmatprep.mubr.bf16.mxu0 %v1430
    %5422 = vmatmul.mubr.bf16.gmra.mxu0 %v1429
    %v5423 = vpop.f32.mrf.mxu0
    %v5424 = vadd.f32 %v5384, %v5423
    %v5425 = vpop.f32.mrf.mxu0
    %v5426 = vpop.f32.mrf.mxu0
    %v5427 = vpop.f32.mrf.mxu0
    %5428 = vdwg.mxu0
    %5429 = vmatprep.subr.bf16.mxu0 0
    %5430 = vmatpush1.bf16.msra.mxu0 %v3908
    %5431 = vmatprep.subr.bf16.mxu0 0
    %5432 = vmatpush1.bf16.msra.mxu0 %v3907
    %5433 = vmatprep.subr.bf16.mxu0 0
    %5434 = vmatpush1.bf16.msra.mxu0 %v3906
    %5435 = vmatprep.subr.bf16.mxu0 0
    %5436 = vmatpush1.bf16.msra.mxu0 %v3905
    %5437 = vmatprep.subr.bf16.mxu0 0
    %5438 = vmatpush1.bf16.msra.mxu0 %v3904
    %5439 = vmatprep.subr.bf16.mxu0 0
    %5440 = vmatpush1.bf16.msra.mxu0 %v3903
    %5441 = vmatprep.subr.bf16.mxu0 0
    %5442 = vmatpush1.bf16.msra.mxu0 %v3902
    %5443 = vmatprep.subr.bf16.mxu0 0
    %5444 = vmatpush1.bf16.msra.mxu0 %v3901
    %5445 = vmatprep.subr.bf16.mxu0 0
    %5446 = vmatpush2.bf16.msra.mxu0 %v3916
    %5447 = vmatprep.subr.bf16.mxu0 0
    %5448 = vmatpush2.bf16.msra.mxu0 %v3915
    %5449 = vmatprep.subr.bf16.mxu0 0
    %5450 = vmatpush2.bf16.msra.mxu0 %v3914
    %5451 = vmatprep.subr.bf16.mxu0 0
    %5452 = vmatpush2.bf16.msra.mxu0 %v3913
    %5453 = vmatprep.subr.bf16.mxu0 0
    %5454 = vmatpush2.bf16.msra.mxu0 %v3912
    %5455 = vmatprep.subr.bf16.mxu0 0
    %5456 = vmatpush2.bf16.msra.mxu0 %v3911
    %5457 = vmatprep.subr.bf16.mxu0 0
    %5458 = vmatpush2.bf16.msra.mxu0 %v3910
    %5459 = vmatprep.subr.bf16.mxu0 0
    %5460 = vmatpush2.bf16.msra.mxu0 %v3909
    %5461 = vmatprep.mubr.bf16.mxu0 %v1432
    %5462 = vmatmul.mubr.bf16.gmra.mxu0 %v1431
    %v5463 = vpop.f32.mrf.mxu0
    %v5464 = vadd.f32 %v5424, %v5463
    %v5465 = vpop.f32.mrf.mxu0
    %v5466 = vpop.f32.mrf.mxu0
    %v5467 = vpop.f32.mrf.mxu0
    %5468 = vdwg.mxu0
    %5469 = vmatprep.subr.bf16.mxu0 0
    %5470 = vmatpush1.bf16.msra.mxu0 %v3924
    %5471 = vmatprep.subr.bf16.mxu0 0
    %5472 = vmatpush1.bf16.msra.mxu0 %v3923
    %5473 = vmatprep.subr.bf16.mxu0 0
    %5474 = vmatpush1.bf16.msra.mxu0 %v3922
    %5475 = vmatprep.subr.bf16.mxu0 0
    %5476 = vmatpush1.bf16.msra.mxu0 %v3921
    %5477 = vmatprep.subr.bf16.mxu0 0
    %5478 = vmatpush1.bf16.msra.mxu0 %v3920
    %5479 = vmatprep.subr.bf16.mxu0 0
    %5480 = vmatpush1.bf16.msra.mxu0 %v3919
    %5481 = vmatprep.subr.bf16.mxu0 0
    %5482 = vmatpush1.bf16.msra.mxu0 %v3918
    %5483 = vmatprep.subr.bf16.mxu0 0
    %5484 = vmatpush1.bf16.msra.mxu0 %v3917
    %5485 = vmatprep.subr.bf16.mxu0 0
    %5486 = vmatpush2.bf16.msra.mxu0 %v3932
    %5487 = vmatprep.subr.bf16.mxu0 0
    %5488 = vmatpush2.bf16.msra.mxu0 %v3931
    %5489 = vmatprep.subr.bf16.mxu0 0
    %5490 = vmatpush2.bf16.msra.mxu0 %v3930
    %5491 = vmatprep.subr.bf16.mxu0 0
    %5492 = vmatpush2.bf16.msra.mxu0 %v3929
    %5493 = vmatprep.subr.bf16.mxu0 0
    %5494 = vmatpush2.bf16.msra.mxu0 %v3928
    %5495 = vmatprep.subr.bf16.mxu0 0
    %5496 = vmatpush2.bf16.msra.mxu0 %v3927
    %5497 = vmatprep.subr.bf16.mxu0 0
    %5498 = vmatpush2.bf16.msra.mxu0 %v3926
    %5499 = vmatprep.subr.bf16.mxu0 0
    %5500 = vmatpush2.bf16.msra.mxu0 %v3925
    %5501 = vmatprep.mubr.bf16.mxu0 %v1434
    %5502 = vmatmul.mubr.bf16.gmra.mxu0 %v1433
    %v5503 = vpop.f32.mrf.mxu0
    %v5504 = vadd.f32 %v5464, %v5503
    %v5505 = vpop.f32.mrf.mxu0
    %v5506 = vpop.f32.mrf.mxu0
    %v5507 = vpop.f32.mrf.mxu0
    %5508 = vdwg.mxu0
    %5509 = vmatprep.subr.bf16.mxu0 0
    %5510 = vmatpush1.bf16.msra.mxu0 %v3940
    %5511 = vmatprep.subr.bf16.mxu0 0
    %5512 = vmatpush1.bf16.msra.mxu0 %v3939
    %5513 = vmatprep.subr.bf16.mxu0 0
    %5514 = vmatpush1.bf16.msra.mxu0 %v3938
    %5515 = vmatprep.subr.bf16.mxu0 0
    %5516 = vmatpush1.bf16.msra.mxu0 %v3937
    %5517 = vmatprep.subr.bf16.mxu0 0
    %5518 = vmatpush1.bf16.msra.mxu0 %v3936
    %5519 = vmatprep.subr.bf16.mxu0 0
    %5520 = vmatpush1.bf16.msra.mxu0 %v3935
    %5521 = vmatprep.subr.bf16.mxu0 0
    %5522 = vmatpush1.bf16.msra.mxu0 %v3934
    %5523 = vmatprep.subr.bf16.mxu0 0
    %5524 = vmatpush1.bf16.msra.mxu0 %v3933
    %5525 = vmatprep.subr.bf16.mxu0 0
    %5526 = vmatpush2.bf16.msra.mxu0 %v3948
    %5527 = vmatprep.subr.bf16.mxu0 0
    %5528 = vmatpush2.bf16.msra.mxu0 %v3947
    %5529 = vmatprep.subr.bf16.mxu0 0
    %5530 = vmatpush2.bf16.msra.mxu0 %v3946
    %5531 = vmatprep.subr.bf16.mxu0 0
    %5532 = vmatpush2.bf16.msra.mxu0 %v3945
    %5533 = vmatprep.subr.bf16.mxu0 0
    %5534 = vmatpush2.bf16.msra.mxu0 %v3944
    %5535 = vmatprep.subr.bf16.mxu0 0
    %5536 = vmatpush2.bf16.msra.mxu0 %v3943
    %5537 = vmatprep.subr.bf16.mxu0 0
    %5538 = vmatpush2.bf16.msra.mxu0 %v3942
    %5539 = vmatprep.subr.bf16.mxu0 0
    %5540 = vmatpush2.bf16.msra.mxu0 %v3941
    %5541 = vmatprep.mubr.bf16.mxu0 %v1436
    %5542 = vmatmul.mubr.bf16.gmra.mxu0 %v1435
    %v5543 = vpop.f32.mrf.mxu0
    %v5544 = vadd.f32 %v5504, %v5543
    %v5545 = vpop.f32.mrf.mxu0
    %v5546 = vpop.f32.mrf.mxu0
    %v5547 = vpop.f32.mrf.mxu0
    %5548 = vdwg.mxu0
    %5549 = vmatprep.subr.bf16.mxu0 0
    %5550 = vmatpush1.bf16.msra.mxu0 %v3956
    %5551 = vmatprep.subr.bf16.mxu0 0
    %5552 = vmatpush1.bf16.msra.mxu0 %v3955
    %5553 = vmatprep.subr.bf16.mxu0 0
    %5554 = vmatpush1.bf16.msra.mxu0 %v3954
    %5555 = vmatprep.subr.bf16.mxu0 0
    %5556 = vmatpush1.bf16.msra.mxu0 %v3953
    %5557 = vmatprep.subr.bf16.mxu0 0
    %5558 = vmatpush1.bf16.msra.mxu0 %v3952
    %5559 = vmatprep.subr.bf16.mxu0 0
    %5560 = vmatpush1.bf16.msra.mxu0 %v3951
    %5561 = vmatprep.subr.bf16.mxu0 0
    %5562 = vmatpush1.bf16.msra.mxu0 %v3950
    %5563 = vmatprep.subr.bf16.mxu0 0
    %5564 = vmatpush1.bf16.msra.mxu0 %v3949
    %5565 = vmatprep.subr.bf16.mxu0 0
    %5566 = vmatpush2.bf16.msra.mxu0 %v3964
    %5567 = vmatprep.subr.bf16.mxu0 0
    %5568 = vmatpush2.bf16.msra.mxu0 %v3963
    %5569 = vmatprep.subr.bf16.mxu0 0
    %5570 = vmatpush2.bf16.msra.mxu0 %v3962
    %5571 = vmatprep.subr.bf16.mxu0 0
    %5572 = vmatpush2.bf16.msra.mxu0 %v3961
    %5573 = vmatprep.subr.bf16.mxu0 0
    %5574 = vmatpush2.bf16.msra.mxu0 %v3960
    %5575 = vmatprep.subr.bf16.mxu0 0
    %5576 = vmatpush2.bf16.msra.mxu0 %v3959
    %5577 = vmatprep.subr.bf16.mxu0 0
    %5578 = vmatpush2.bf16.msra.mxu0 %v3958
    %5579 = vmatprep.subr.bf16.mxu0 0
    %5580 = vmatpush2.bf16.msra.mxu0 %v3957
    %5581 = vmatprep.mubr.bf16.mxu0 %v1438
    %5582 = vmatmul.mubr.bf16.gmra.mxu0 %v1437
    %v5583 = vpop.f32.mrf.mxu0
    %v5584 = vadd.f32 %v5544, %v5583
    %v5585 = vpop.f32.mrf.mxu0
    %v5586 = vpop.f32.mrf.mxu0
    %v5587 = vpop.f32.mrf.mxu0
    %5588 = vdwg.mxu0
    %5589 = vmatprep.subr.bf16.mxu0 0
    %5590 = vmatpush1.bf16.msra.mxu0 %v3972
    %5591 = vmatprep.subr.bf16.mxu0 0
    %5592 = vmatpush1.bf16.msra.mxu0 %v3971
    %5593 = vmatprep.subr.bf16.mxu0 0
    %5594 = vmatpush1.bf16.msra.mxu0 %v3970
    %5595 = vmatprep.subr.bf16.mxu0 0
    %5596 = vmatpush1.bf16.msra.mxu0 %v3969
    %5597 = vmatprep.subr.bf16.mxu0 0
    %5598 = vmatpush1.bf16.msra.mxu0 %v3968
    %5599 = vmatprep.subr.bf16.mxu0 0
    %5600 = vmatpush1.bf16.msra.mxu0 %v3967
    %5601 = vmatprep.subr.bf16.mxu0 0
    %5602 = vmatpush1.bf16.msra.mxu0 %v3966
    %5603 = vmatprep.subr.bf16.mxu0 0
    %5604 = vmatpush1.bf16.msra.mxu0 %v3965
    %5605 = vmatprep.subr.bf16.mxu0 0
    %5606 = vmatpush2.bf16.msra.mxu0 %v3980
    %5607 = vmatprep.subr.bf16.mxu0 0
    %5608 = vmatpush2.bf16.msra.mxu0 %v3979
    %5609 = vmatprep.subr.bf16.mxu0 0
    %5610 = vmatpush2.bf16.msra.mxu0 %v3978
    %5611 = vmatprep.subr.bf16.mxu0 0
    %5612 = vmatpush2.bf16.msra.mxu0 %v3977
    %5613 = vmatprep.subr.bf16.mxu0 0
    %5614 = vmatpush2.bf16.msra.mxu0 %v3976
    %5615 = vmatprep.subr.bf16.mxu0 0
    %5616 = vmatpush2.bf16.msra.mxu0 %v3975
    %5617 = vmatprep.subr.bf16.mxu0 0
    %5618 = vmatpush2.bf16.msra.mxu0 %v3974
    %5619 = vmatprep.subr.bf16.mxu0 0
    %5620 = vmatpush2.bf16.msra.mxu0 %v3973
    %5621 = vmatprep.mubr.bf16.mxu0 %v1440
    %5622 = vmatmul.mubr.bf16.gmra.mxu0 %v1439
    %v5623 = vpop.f32.mrf.mxu0
    %v5624 = vadd.f32 %v5584, %v5623
    %v5625 = vpop.f32.mrf.mxu0
    %v5626 = vpop.f32.mrf.mxu0
    %v5627 = vpop.f32.mrf.mxu0
    %5628 = vdwg.mxu0
    %5629 = vmatprep.subr.bf16.mxu0 0
    %5630 = vmatpush1.bf16.msra.mxu0 %v3988
    %5631 = vmatprep.subr.bf16.mxu0 0
    %5632 = vmatpush1.bf16.msra.mxu0 %v3987
    %5633 = vmatprep.subr.bf16.mxu0 0
    %5634 = vmatpush1.bf16.msra.mxu0 %v3986
    %5635 = vmatprep.subr.bf16.mxu0 0
    %5636 = vmatpush1.bf16.msra.mxu0 %v3985
    %5637 = vmatprep.subr.bf16.mxu0 0
    %5638 = vmatpush1.bf16.msra.mxu0 %v3984
    %5639 = vmatprep.subr.bf16.mxu0 0
    %5640 = vmatpush1.bf16.msra.mxu0 %v3983
    %5641 = vmatprep.subr.bf16.mxu0 0
    %5642 = vmatpush1.bf16.msra.mxu0 %v3982
    %5643 = vmatprep.subr.bf16.mxu0 0
    %5644 = vmatpush1.bf16.msra.mxu0 %v3981
    %5645 = vmatprep.subr.bf16.mxu0 0
    %5646 = vmatpush2.bf16.msra.mxu0 %v3996
    %5647 = vmatprep.subr.bf16.mxu0 0
    %5648 = vmatpush2.bf16.msra.mxu0 %v3995
    %5649 = vmatprep.subr.bf16.mxu0 0
    %5650 = vmatpush2.bf16.msra.mxu0 %v3994
    %5651 = vmatprep.subr.bf16.mxu0 0
    %5652 = vmatpush2.bf16.msra.mxu0 %v3993
    %5653 = vmatprep.subr.bf16.mxu0 0
    %5654 = vmatpush2.bf16.msra.mxu0 %v3992
    %5655 = vmatprep.subr.bf16.mxu0 0
    %5656 = vmatpush2.bf16.msra.mxu0 %v3991
    %5657 = vmatprep.subr.bf16.mxu0 0
    %5658 = vmatpush2.bf16.msra.mxu0 %v3990
    %5659 = vmatprep.subr.bf16.mxu0 0
    %5660 = vmatpush2.bf16.msra.mxu0 %v3989
    %5661 = vmatprep.mubr.bf16.mxu0 %v1442
    %5662 = vmatmul.mubr.bf16.gmra.mxu0 %v1441
    %v5663 = vpop.f32.mrf.mxu0
    %v5664 = vadd.f32 %v5624, %v5663
    %v5665 = vpop.f32.mrf.mxu0
    %v5666 = vpop.f32.mrf.mxu0
    %v5667 = vpop.f32.mrf.mxu0
    %5668 = vdwg.mxu0
    %5669 = vmatprep.subr.bf16.mxu0 0
    %5670 = vmatpush1.bf16.msra.mxu0 %v4004
    %5671 = vmatprep.subr.bf16.mxu0 0
    %5672 = vmatpush1.bf16.msra.mxu0 %v4003
    %5673 = vmatprep.subr.bf16.mxu0 0
    %5674 = vmatpush1.bf16.msra.mxu0 %v4002
    %5675 = vmatprep.subr.bf16.mxu0 0
    %5676 = vmatpush1.bf16.msra.mxu0 %v4001
    %5677 = vmatprep.subr.bf16.mxu0 0
    %5678 = vmatpush1.bf16.msra.mxu0 %v4000
    %5679 = vmatprep.subr.bf16.mxu0 0
    %5680 = vmatpush1.bf16.msra.mxu0 %v3999
    %5681 = vmatprep.subr.bf16.mxu0 0
    %5682 = vmatpush1.bf16.msra.mxu0 %v3998
    %5683 = vmatprep.subr.bf16.mxu0 0
    %5684 = vmatpush1.bf16.msra.mxu0 %v3997
    %5685 = vmatprep.subr.bf16.mxu0 0
    %5686 = vmatpush2.bf16.msra.mxu0 %v4012
    %5687 = vmatprep.subr.bf16.mxu0 0
    %5688 = vmatpush2.bf16.msra.mxu0 %v4011
    %5689 = vmatprep.subr.bf16.mxu0 0
    %5690 = vmatpush2.bf16.msra.mxu0 %v4010
    %5691 = vmatprep.subr.bf16.mxu0 0
    %5692 = vmatpush2.bf16.msra.mxu0 %v4009
    %5693 = vmatprep.subr.bf16.mxu0 0
    %5694 = vmatpush2.bf16.msra.mxu0 %v4008
    %5695 = vmatprep.subr.bf16.mxu0 0
    %5696 = vmatpush2.bf16.msra.mxu0 %v4007
    %5697 = vmatprep.subr.bf16.mxu0 0
    %5698 = vmatpush2.bf16.msra.mxu0 %v4006
    %5699 = vmatprep.subr.bf16.mxu0 0
    %5700 = vmatpush2.bf16.msra.mxu0 %v4005
    %5701 = vmatprep.mubr.bf16.mxu0 %v1444
    %5702 = vmatmul.mubr.bf16.gmra.mxu0 %v1443
    %v5703 = vpop.f32.mrf.mxu0
    %v5704 = vadd.f32 %v5664, %v5703
    %v5705 = vpop.f32.mrf.mxu0
    %v5706 = vpop.f32.mrf.mxu0
    %v5707 = vpop.f32.mrf.mxu0
    %5708 = vdwg.mxu0
    %5709 = vmatprep.subr.bf16.mxu0 0
    %5710 = vmatpush1.bf16.msra.mxu0 %v4020
    %5711 = vmatprep.subr.bf16.mxu0 0
    %5712 = vmatpush1.bf16.msra.mxu0 %v4019
    %5713 = vmatprep.subr.bf16.mxu0 0
    %5714 = vmatpush1.bf16.msra.mxu0 %v4018
    %5715 = vmatprep.subr.bf16.mxu0 0
    %5716 = vmatpush1.bf16.msra.mxu0 %v4017
    %5717 = vmatprep.subr.bf16.mxu0 0
    %5718 = vmatpush1.bf16.msra.mxu0 %v4016
    %5719 = vmatprep.subr.bf16.mxu0 0
    %5720 = vmatpush1.bf16.msra.mxu0 %v4015
    %5721 = vmatprep.subr.bf16.mxu0 0
    %5722 = vmatpush1.bf16.msra.mxu0 %v4014
    %5723 = vmatprep.subr.bf16.mxu0 0
    %5724 = vmatpush1.bf16.msra.mxu0 %v4013
    %5725 = vmatprep.subr.bf16.mxu0 0
    %5726 = vmatpush2.bf16.msra.mxu0 %v4028
    %5727 = vmatprep.subr.bf16.mxu0 0
    %5728 = vmatpush2.bf16.msra.mxu0 %v4027
    %5729 = vmatprep.subr.bf16.mxu0 0
    %5730 = vmatpush2.bf16.msra.mxu0 %v4026
    %5731 = vmatprep.subr.bf16.mxu0 0
    %5732 = vmatpush2.bf16.msra.mxu0 %v4025
    %5733 = vmatprep.subr.bf16.mxu0 0
    %5734 = vmatpush2.bf16.msra.mxu0 %v4024
    %5735 = vmatprep.subr.bf16.mxu0 0
    %5736 = vmatpush2.bf16.msra.mxu0 %v4023
    %5737 = vmatprep.subr.bf16.mxu0 0
    %5738 = vmatpush2.bf16.msra.mxu0 %v4022
    %5739 = vmatprep.subr.bf16.mxu0 0
    %5740 = vmatpush2.bf16.msra.mxu0 %v4021
    %5741 = vmatprep.mubr.bf16.mxu0 %v1446
    %5742 = vmatmul.mubr.bf16.gmra.mxu0 %v1445
    %v5743 = vpop.f32.mrf.mxu0
    %v5744 = vadd.f32 %v5704, %v5743
    %v5745 = vpop.f32.mrf.mxu0
    %v5746 = vpop.f32.mrf.mxu0
    %v5747 = vpop.f32.mrf.mxu0
    %5748 = vdwg.mxu0
    %5749 = vmatprep.subr.bf16.mxu0 0
    %5750 = vmatpush1.bf16.msra.mxu0 %v4036
    %5751 = vmatprep.subr.bf16.mxu0 0
    %5752 = vmatpush1.bf16.msra.mxu0 %v4035
    %5753 = vmatprep.subr.bf16.mxu0 0
    %5754 = vmatpush1.bf16.msra.mxu0 %v4034
    %5755 = vmatprep.subr.bf16.mxu0 0
    %5756 = vmatpush1.bf16.msra.mxu0 %v4033
    %5757 = vmatprep.subr.bf16.mxu0 0
    %5758 = vmatpush1.bf16.msra.mxu0 %v4032
    %5759 = vmatprep.subr.bf16.mxu0 0
    %5760 = vmatpush1.bf16.msra.mxu0 %v4031
    %5761 = vmatprep.subr.bf16.mxu0 0
    %5762 = vmatpush1.bf16.msra.mxu0 %v4030
    %5763 = vmatprep.subr.bf16.mxu0 0
    %5764 = vmatpush1.bf16.msra.mxu0 %v4029
    %5765 = vmatprep.subr.bf16.mxu0 0
    %5766 = vmatpush2.bf16.msra.mxu0 %v4044
    %5767 = vmatprep.subr.bf16.mxu0 0
    %5768 = vmatpush2.bf16.msra.mxu0 %v4043
    %5769 = vmatprep.subr.bf16.mxu0 0
    %5770 = vmatpush2.bf16.msra.mxu0 %v4042
    %5771 = vmatprep.subr.bf16.mxu0 0
    %5772 = vmatpush2.bf16.msra.mxu0 %v4041
    %5773 = vmatprep.subr.bf16.mxu0 0
    %5774 = vmatpush2.bf16.msra.mxu0 %v4040
    %5775 = vmatprep.subr.bf16.mxu0 0
    %5776 = vmatpush2.bf16.msra.mxu0 %v4039
    %5777 = vmatprep.subr.bf16.mxu0 0
    %5778 = vmatpush2.bf16.msra.mxu0 %v4038
    %5779 = vmatprep.subr.bf16.mxu0 0
    %5780 = vmatpush2.bf16.msra.mxu0 %v4037
    %5781 = vmatprep.mubr.bf16.mxu0 %v1448
    %5782 = vmatmul.mubr.bf16.gmra.mxu0 %v1447
    %v5783 = vpop.f32.mrf.mxu0
    %v5784 = vadd.f32 %v5744, %v5783
    %v5785 = vpop.f32.mrf.mxu0
    %v5786 = vpop.f32.mrf.mxu0
    %v5787 = vpop.f32.mrf.mxu0
    %5788 = vdwg.mxu0
    %5789 = vmatprep.subr.bf16.mxu0 0
    %5790 = vmatpush1.bf16.msra.mxu0 %v4052
    %5791 = vmatprep.subr.bf16.mxu0 0
    %5792 = vmatpush1.bf16.msra.mxu0 %v4051
    %5793 = vmatprep.subr.bf16.mxu0 0
    %5794 = vmatpush1.bf16.msra.mxu0 %v4050
    %5795 = vmatprep.subr.bf16.mxu0 0
    %5796 = vmatpush1.bf16.msra.mxu0 %v4049
    %5797 = vmatprep.subr.bf16.mxu0 0
    %5798 = vmatpush1.bf16.msra.mxu0 %v4048
    %5799 = vmatprep.subr.bf16.mxu0 0
    %5800 = vmatpush1.bf16.msra.mxu0 %v4047
    %5801 = vmatprep.subr.bf16.mxu0 0
    %5802 = vmatpush1.bf16.msra.mxu0 %v4046
    %5803 = vmatprep.subr.bf16.mxu0 0
    %5804 = vmatpush1.bf16.msra.mxu0 %v4045
    %5805 = vmatprep.subr.bf16.mxu0 0
    %5806 = vmatpush2.bf16.msra.mxu0 %v4060
    %5807 = vmatprep.subr.bf16.mxu0 0
    %5808 = vmatpush2.bf16.msra.mxu0 %v4059
    %5809 = vmatprep.subr.bf16.mxu0 0
    %5810 = vmatpush2.bf16.msra.mxu0 %v4058
    %5811 = vmatprep.subr.bf16.mxu0 0
    %5812 = vmatpush2.bf16.msra.mxu0 %v4057
    %5813 = vmatprep.subr.bf16.mxu0 0
    %5814 = vmatpush2.bf16.msra.mxu0 %v4056
    %5815 = vmatprep.subr.bf16.mxu0 0
    %5816 = vmatpush2.bf16.msra.mxu0 %v4055
    %5817 = vmatprep.subr.bf16.mxu0 0
    %5818 = vmatpush2.bf16.msra.mxu0 %v4054
    %5819 = vmatprep.subr.bf16.mxu0 0
    %5820 = vmatpush2.bf16.msra.mxu0 %v4053
    %5821 = vmatprep.mubr.bf16.mxu0 %v1450
    %5822 = vmatmul.mubr.bf16.gmra.mxu0 %v1449
    %v5823 = vpop.f32.mrf.mxu0
    %v5824 = vadd.f32 %v5784, %v5823
    %v5825 = vpop.f32.mrf.mxu0
    %v5826 = vpop.f32.mrf.mxu0
    %v5827 = vpop.f32.mrf.mxu0
    %5828 = vdwg.mxu0
    %5829 = vmatprep.subr.bf16.mxu0 0
    %5830 = vmatpush1.bf16.msra.mxu0 %v4068
    %5831 = vmatprep.subr.bf16.mxu0 0
    %5832 = vmatpush1.bf16.msra.mxu0 %v4067
    %5833 = vmatprep.subr.bf16.mxu0 0
    %5834 = vmatpush1.bf16.msra.mxu0 %v4066
    %5835 = vmatprep.subr.bf16.mxu0 0
    %5836 = vmatpush1.bf16.msra.mxu0 %v4065
    %5837 = vmatprep.subr.bf16.mxu0 0
    %5838 = vmatpush1.bf16.msra.mxu0 %v4064
    %5839 = vmatprep.subr.bf16.mxu0 0
    %5840 = vmatpush1.bf16.msra.mxu0 %v4063
    %5841 = vmatprep.subr.bf16.mxu0 0
    %5842 = vmatpush1.bf16.msra.mxu0 %v4062
    %5843 = vmatprep.subr.bf16.mxu0 0
    %5844 = vmatpush1.bf16.msra.mxu0 %v4061
    %5845 = vmatprep.subr.bf16.mxu0 0
    %5846 = vmatpush2.bf16.msra.mxu0 %v4076
    %5847 = vmatprep.subr.bf16.mxu0 0
    %5848 = vmatpush2.bf16.msra.mxu0 %v4075
    %5849 = vmatprep.subr.bf16.mxu0 0
    %5850 = vmatpush2.bf16.msra.mxu0 %v4074
    %5851 = vmatprep.subr.bf16.mxu0 0
    %5852 = vmatpush2.bf16.msra.mxu0 %v4073
    %5853 = vmatprep.subr.bf16.mxu0 0
    %5854 = vmatpush2.bf16.msra.mxu0 %v4072
    %5855 = vmatprep.subr.bf16.mxu0 0
    %5856 = vmatpush2.bf16.msra.mxu0 %v4071
    %5857 = vmatprep.subr.bf16.mxu0 0
    %5858 = vmatpush2.bf16.msra.mxu0 %v4070
    %5859 = vmatprep.subr.bf16.mxu0 0
    %5860 = vmatpush2.bf16.msra.mxu0 %v4069
    %5861 = vmatprep.mubr.bf16.mxu0 %v1452
    %5862 = vmatmul.mubr.bf16.gmra.mxu0 %v1451
    %v5863 = vpop.f32.mrf.mxu0
    %v5864 = vadd.f32 %v5824, %v5863
    %v5865 = vpop.f32.mrf.mxu0
    %v5866 = vpop.f32.mrf.mxu0
    %v5867 = vpop.f32.mrf.mxu0
    %5868 = vdwg.mxu0
    %v5869 = vmax.f32 %v5864, 0.0
    %v5870 = vld [vmem:[%s3] sm:$0xff]
    %v5871 = vld [vmem:[%s3 + $0x8] sm:$0xff]
    %v5872 = vld [vmem:[%s3 + $0x10] sm:$0xff]
    %v5873 = vld [vmem:[%s3 + $0x18] sm:$0xff]
    %v5874 = vld [vmem:[%s3 + $0x20] sm:$0xff]
    %v5875 = vld [vmem:[%s3 + $0x28] sm:$0xff]
    %v5876 = vld [vmem:[%s3 + $0x30] sm:$0xff]
    %v5877 = vld [vmem:[%s3 + $0x38] sm:$0xff]
    %v5878 = vld [vmem:[%s3 + $0x40] sm:$0xff]
    %v5879 = vld [vmem:[%s3 + $0x48] sm:$0xff]
    %v5880 = vld [vmem:[%s3 + $0x50] sm:$0xff]
    %v5881 = vld [vmem:[%s3 + $0x58] sm:$0xff]
    %v5882 = vld [vmem:[%s3 + $0x60] sm:$0xff]
    %v5883 = vld [vmem:[%s3 + $0x68] sm:$0xff]
    %v5884 = vld [vmem:[%s3 + $0x70] sm:$0xff]
    %v5885 = vld [vmem:[%s3 + $0x78] sm:$0xff]
    %v5886 = vld [vmem:[#allocation8] sm:$0x1]
    %v5888 = vlaneseq
    %v5889 = vshrl.u32 %v5888, 7
    %v5890 = vsub.s32 0, %v5889
    %v5891 = vrot.slane %v5886, %v5890
    %5893 = vmatprep.subr.mxu0 0.0
    %5894 = vmatpush1.msra.mxu0 %v5885
    %5895 = vmatprep.subr.mxu0 0.0
    %5896 = vmatpush1.msra.mxu0 %v5884
    %5897 = vmatprep.subr.mxu0 0.0
    %5898 = vmatpush1.msra.mxu0 %v5883
    %5899 = vmatprep.subr.mxu0 0.0
    %5900 = vmatpush1.msra.mxu0 %v5882
    %5901 = vmatprep.subr.mxu0 0.0
    %5902 = vmatpush1.msra.mxu0 %v5881
    %5903 = vmatprep.subr.mxu0 0.0
    %5904 = vmatpush1.msra.mxu0 %v5880
    %5905 = vmatprep.subr.mxu0 0.0
    %5906 = vmatpush1.msra.mxu0 %v5879
    %5907 = vmatprep.subr.mxu0 0.0
    %5908 = vmatpush1.msra.mxu0 %v5878
    %5909 = vmatprep.subr.mxu0 0.0
    %5910 = vmatpush1.msra.mxu0 %v5877
    %5911 = vmatprep.subr.mxu0 0.0
    %5912 = vmatpush1.msra.mxu0 %v5876
    %5913 = vmatprep.subr.mxu0 0.0
    %5914 = vmatpush1.msra.mxu0 %v5875
    %5915 = vmatprep.subr.mxu0 0.0
    %5916 = vmatpush1.msra.mxu0 %v5874
    %5917 = vmatprep.subr.mxu0 0.0
    %5918 = vmatpush1.msra.mxu0 %v5873
    %5919 = vmatprep.subr.mxu0 0.0
    %5920 = vmatpush1.msra.mxu0 %v5872
    %5921 = vmatprep.subr.mxu0 0.0
    %5922 = vmatpush1.msra.mxu0 %v5871
    %5923 = vmatprep.subr.mxu0 0.0
    %5924 = vmatpush1.msra.mxu0 %v5870
    %5925 = vmatprep.subr.mxu0 0.0
    %5926 = vmatpush2.msra.mxu0 0.0
    %5927 = vmatprep.subr.mxu0 0.0
    %5928 = vmatpush2.msra.mxu0 0.0
    %5929 = vmatprep.subr.mxu0 0.0
    %5930 = vmatpush2.msra.mxu0 0.0
    %5931 = vmatprep.subr.mxu0 0.0
    %5932 = vmatpush2.msra.mxu0 0.0
    %5933 = vmatprep.subr.mxu0 0.0
    %5934 = vmatpush2.msra.mxu0 0.0
    %5935 = vmatprep.subr.mxu0 0.0
    %5936 = vmatpush2.msra.mxu0 0.0
    %5937 = vmatprep.subr.mxu0 0.0
    %5938 = vmatpush2.msra.mxu0 0.0
    %5939 = vmatprep.subr.mxu0 0.0
    %5940 = vmatpush2.msra.mxu0 0.0
    %5941 = vmatprep.subr.mxu0 0.0
    %5942 = vmatpush2.msra.mxu0 0.0
    %5943 = vmatprep.subr.mxu0 0.0
    %5944 = vmatpush2.msra.mxu0 0.0
    %5945 = vmatprep.subr.mxu0 0.0
    %5946 = vmatpush2.msra.mxu0 0.0
    %5947 = vmatprep.subr.mxu0 0.0
    %5948 = vmatpush2.msra.mxu0 0.0
    %5949 = vmatprep.subr.mxu0 0.0
    %5950 = vmatpush2.msra.mxu0 0.0
    %5951 = vmatprep.subr.mxu0 0.0
    %5952 = vmatpush2.msra.mxu0 0.0
    %5953 = vmatprep.subr.mxu0 0.0
    %5954 = vmatpush2.msra.mxu0 0.0
    %5955 = vmatprep.subr.mxu0 0.0
    %5956 = vmatpush2.msra.mxu0 0.0
    %5957 = vmatprep.mubr.f32.mxu0 0.0
    %5958 = vmatmul.mubr.f32.gmra.mxu0 %v5869
    %v5959 = vpop.f32.mrf.mxu0
    %v5960 = vadd.f32 %v5891, %v5959
    %v5961 = vpop.f32.mrf.mxu0
    %5962 = vdwg.mxu0
    %v5963 = vmax.f32 %v5960, 0.0
    %v5964 = vld [vmem:[%s5] sm:$0xff]
    %v5965 = vld [vmem:[%s5 + $0x8] sm:$0xff]
    %v5966 = vld [vmem:[%s5 + $0x10] sm:$0xff]
    %v5967 = vld [vmem:[%s5 + $0x18] sm:$0xff]
    %v5968 = vld [vmem:[%s5 + $0x20] sm:$0xff]
    %v5969 = vld [vmem:[%s5 + $0x28] sm:$0xff]
    %v5970 = vld [vmem:[%s5 + $0x30] sm:$0xff]
    %v5971 = vld [vmem:[%s5 + $0x38] sm:$0xff]
    %v5972 = vld [vmem:[#allocation10] sm:$0x1]
    %v5974 = vlaneseq
    %v5975 = vshrl.u32 %v5974, 7
    %v5976 = vsub.s32 0, %v5975
    %v5977 = vrot.slane %v5972, %v5976
    %vm5979 = vcmask 523264
    %v5981 = vsel %vm5979, %v5963, 0
    %5983 = vmatprep.subr.mxu0 0.0
    %5984 = vmatpush1.msra.mxu0 0.0
    %5985 = vmatprep.subr.mxu0 0.0
    %5986 = vmatpush1.msra.mxu0 0.0
    %5987 = vmatprep.subr.mxu0 0.0
    %5988 = vmatpush1.msra.mxu0 0.0
    %5989 = vmatprep.subr.mxu0 0.0
    %5990 = vmatpush1.msra.mxu0 0.0
    %5991 = vmatprep.subr.mxu0 0.0
    %5992 = vmatpush1.msra.mxu0 0.0
    %5993 = vmatprep.subr.mxu0 0.0
    %5994 = vmatpush1.msra.mxu0 0.0
    %5995 = vmatprep.subr.mxu0 0.0
    %5996 = vmatpush1.msra.mxu0 0.0
    %5997 = vmatprep.subr.mxu0 0.0
    %5998 = vmatpush1.msra.mxu0 0.0
    %5999 = vmatprep.subr.mxu0 0.0
    %6000 = vmatpush1.msra.mxu0 %v5971
    %6001 = vmatprep.subr.mxu0 0.0
    %6002 = vmatpush1.msra.mxu0 %v5970
    %6003 = vmatprep.subr.mxu0 0.0
    %6004 = vmatpush1.msra.mxu0 %v5969
    %6005 = vmatprep.subr.mxu0 0.0
    %6006 = vmatpush1.msra.mxu0 %v5968
    %6007 = vmatprep.subr.mxu0 0.0
    %6008 = vmatpush1.msra.mxu0 %v5967
    %6009 = vmatprep.subr.mxu0 0.0
    %6010 = vmatpush1.msra.mxu0 %v5966
    %6011 = vmatprep.subr.mxu0 0.0
    %6012 = vmatpush1.msra.mxu0 %v5965
    %6013 = vmatprep.subr.mxu0 0.0
    %6014 = vmatpush1.msra.mxu0 %v5964
    %6015 = vmatprep.subr.mxu0 0.0
    %6016 = vmatpush2.msra.mxu0 0.0
    %6017 = vmatprep.subr.mxu0 0.0
    %6018 = vmatpush2.msra.mxu0 0.0
    %6019 = vmatprep.subr.mxu0 0.0
    %6020 = vmatpush2.msra.mxu0 0.0
    %6021 = vmatprep.subr.mxu0 0.0
    %6022 = vmatpush2.msra.mxu0 0.0
    %6023 = vmatprep.subr.mxu0 0.0
    %6024 = vmatpush2.msra.mxu0 0.0
    %6025 = vmatprep.subr.mxu0 0.0
    %6026 = vmatpush2.msra.mxu0 0.0
    %6027 = vmatprep.subr.mxu0 0.0
    %6028 = vmatpush2.msra.mxu0 0.0
    %6029 = vmatprep.subr.mxu0 0.0
    %6030 = vmatpush2.msra.mxu0 0.0
    %6031 = vmatprep.subr.mxu0 0.0
    %6032 = vmatpush2.msra.mxu0 0.0
    %6033 = vmatprep.subr.mxu0 0.0
    %6034 = vmatpush2.msra.mxu0 0.0
    %6035 = vmatprep.subr.mxu0 0.0
    %6036 = vmatpush2.msra.mxu0 0.0
    %6037 = vmatprep.subr.mxu0 0.0
    %6038 = vmatpush2.msra.mxu0 0.0
    %6039 = vmatprep.subr.mxu0 0.0
    %6040 = vmatpush2.msra.mxu0 0.0
    %6041 = vmatprep.subr.mxu0 0.0
    %6042 = vmatpush2.msra.mxu0 0.0
    %6043 = vmatprep.subr.mxu0 0.0
    %6044 = vmatpush2.msra.mxu0 0.0
    %6045 = vmatprep.subr.mxu0 0.0
    %6046 = vmatpush2.msra.mxu0 0.0
    %6047 = vmatprep.mubr.f32.mxu0 0.0
    %6048 = vmatmul.mubr.f32.gmra.mxu0 %v5981
    %v6049 = vpop.f32.mrf.mxu0
    %v6050 = vadd.f32 %v5977, %v6049
    %v6051 = vpop.f32.mrf.mxu0
    %6052 = vdwg.mxu0
    %v6053 = vmax.f32 %v6050, 0.0
    %v6054 = vld [vmem:[%s7] sm:$0xff]
    %v6055 = vld [vmem:[%s7 + $0x8] sm:$0xf]
    %v6056 = vld [vmem:[#allocation11] sm:$0x1]
    %v6058 = vlaneseq
    %v6059 = vshrl.u32 %v6058, 7
    %v6060 = vsub.s32 0, %v6059
    %v6061 = vrot.slane %v6056, %v6060
    %vm6063 = vcmask 97280
    %v6065 = vsel %vm6063, %v6053, 0
    %vm6067 = vcmask 1043456
    %v6069 = vsel %vm6067, %v6055, 0
    %6071 = vmatprep.subr.mxu0 0.0
    %6072 = vmatpush1.msra.mxu0 0.0
    %6073 = vmatprep.subr.mxu0 0.0
    %6074 = vmatpush1.msra.mxu0 0.0
    %6075 = vmatprep.subr.mxu0 0.0
    %6076 = vmatpush1.msra.mxu0 0.0
    %6077 = vmatprep.subr.mxu0 0.0
    %6078 = vmatpush1.msra.mxu0 0.0
    %6079 = vmatprep.subr.mxu0 0.0
    %6080 = vmatpush1.msra.mxu0 0.0
    %6081 = vmatprep.subr.mxu0 0.0
    %6082 = vmatpush1.msra.mxu0 0.0
    %6083 = vmatprep.subr.mxu0 0.0
    %6084 = vmatpush1.msra.mxu0 0.0
    %6085 = vmatprep.subr.mxu0 0.0
    %6086 = vmatpush1.msra.mxu0 0.0
    %6087 = vmatprep.subr.mxu0 0.0
    %6088 = vmatpush1.msra.mxu0 0.0
    %6089 = vmatprep.subr.mxu0 0.0
    %6090 = vmatpush1.msra.mxu0 0.0
    %6091 = vmatprep.subr.mxu0 0.0
    %6092 = vmatpush1.msra.mxu0 0.0
    %6093 = vmatprep.subr.mxu0 0.0
    %6094 = vmatpush1.msra.mxu0 0.0
    %6095 = vmatprep.subr.mxu0 0.0
    %6096 = vmatpush1.msra.mxu0 0.0
    %6097 = vmatprep.subr.mxu0 0.0
    %6098 = vmatpush1.msra.mxu0 0.0
    %6099 = vmatprep.subr.mxu0 0.0
    %6100 = vmatpush1.msra.mxu0 %v6069
    %6101 = vmatprep.subr.mxu0 0.0
    %6102 = vmatpush1.msra.mxu0 %v6054
    %6103 = vmatprep.subr.mxu0 0.0
    %6104 = vmatpush2.msra.mxu0 0.0
    %6105 = vmatprep.subr.mxu0 0.0
    %6106 = vmatpush2.msra.mxu0 0.0
    %6107 = vmatprep.subr.mxu0 0.0
    %6108 = vmatpush2.msra.mxu0 0.0
    %6109 = vmatprep.subr.mxu0 0.0
    %6110 = vmatpush2.msra.mxu0 0.0
    %6111 = vmatprep.subr.mxu0 0.0
    %6112 = vmatpush2.msra.mxu0 0.0
    %6113 = vmatprep.subr.mxu0 0.0
    %6114 = vmatpush2.msra.mxu0 0.0
    %6115 = vmatprep.subr.mxu0 0.0
    %6116 = vmatpush2.msra.mxu0 0.0
    %6117 = vmatprep.subr.mxu0 0.0
    %6118 = vmatpush2.msra.mxu0 0.0
    %6119 = vmatprep.subr.mxu0 0.0
    %6120 = vmatpush2.msra.mxu0 0.0
    %6121 = vmatprep.subr.mxu0 0.0
    %6122 = vmatpush2.msra.mxu0 0.0
    %6123 = vmatprep.subr.mxu0 0.0
    %6124 = vmatpush2.msra.mxu0 0.0
    %6125 = vmatprep.subr.mxu0 0.0
    %6126 = vmatpush2.msra.mxu0 0.0
    %6127 = vmatprep.subr.mxu0 0.0
    %6128 = vmatpush2.msra.mxu0 0.0
    %6129 = vmatprep.subr.mxu0 0.0
    %6130 = vmatpush2.msra.mxu0 0.0
    %6131 = vmatprep.subr.mxu0 0.0
    %6132 = vmatpush2.msra.mxu0 0.0
    %6133 = vmatprep.subr.mxu0 0.0
    %6134 = vmatpush2.msra.mxu0 0.0
    %6135 = vmatprep.mubr.f32.mxu0 0.0
    %6136 = vmatmul.mubr.f32.gmra.mxu0 %v6065
    %v6137 = vpop.f32.mrf.mxu0
    %v6138 = vadd.f32 %v6061, %v6137
    %v6139 = vpop.f32.mrf.mxu0
    %6140 = vdwg.mxu0
    %vm6141 = vcmask 23552
    %6142 = vst.msk [vmem:[%s17] sm:$0xff] %vm6141, %v6138
    %v6143 = vld [vmem:[#allocation13] sm:$0x7]
    %v6144 = vld [vmem:[#allocation14] sm:$0x1]
    %v6146 = vlaneseq
    %v6147 = vshrl.u32 %v6146, 7
    %v6148 = vsub.s32 0, %v6147
    %v6149 = vrot.slane %v6144, %v6148
    %v6152 = vsel %vm6141, %v6138, 0
    %vm6154 = vcmask 1042432
    %v6156 = vsel %vm6154, %v6143, 0
    %6158 = vmatprep.subr.mxu0 0.0
    %6159 = vmatpush1.msra.mxu0 0.0
    %6160 = vmatprep.subr.mxu0 0.0
    %6161 = vmatpush1.msra.mxu0 0.0
    %6162 = vmatprep.subr.mxu0 0.0
    %6163 = vmatpush1.msra.mxu0 0.0
    %6164 = vmatprep.subr.mxu0 0.0
    %6165 = vmatpush1.msra.mxu0 0.0
    %6166 = vmatprep.subr.mxu0 0.0
    %6167 = vmatpush1.msra.mxu0 0.0
    %6168 = vmatprep.subr.mxu0 0.0
    %6169 = vmatpush1.msra.mxu0 0.0
    %6170 = vmatprep.subr.mxu0 0.0
    %6171 = vmatpush1.msra.mxu0 0.0
    %6172 = vmatprep.subr.mxu0 0.0
    %6173 = vmatpush1.msra.mxu0 0.0
    %6174 = vmatprep.subr.mxu0 0.0
    %6175 = vmatpush1.msra.mxu0 0.0
    %6176 = vmatprep.subr.mxu0 0.0
    %6177 = vmatpush1.msra.mxu0 0.0
    %6178 = vmatprep.subr.mxu0 0.0
    %6179 = vmatpush1.msra.mxu0 0.0
    %6180 = vmatprep.subr.mxu0 0.0
    %6181 = vmatpush1.msra.mxu0 0.0
    %6182 = vmatprep.subr.mxu0 0.0
    %6183 = vmatpush1.msra.mxu0 0.0
    %6184 = vmatprep.subr.mxu0 0.0
    %6185 = vmatpush1.msra.mxu0 0.0
    %6186 = vmatprep.subr.mxu0 0.0
    %6187 = vmatpush1.msra.mxu0 0.0
    %6188 = vmatprep.subr.mxu0 0.0
    %6189 = vmatpush1.msra.mxu0 %v6156
    %6190 = vmatprep.subr.mxu0 0.0
    %6191 = vmatpush2.msra.mxu0 0.0
    %6192 = vmatprep.subr.mxu0 0.0
    %6193 = vmatpush2.msra.mxu0 0.0
    %6194 = vmatprep.subr.mxu0 0.0
    %6195 = vmatpush2.msra.mxu0 0.0
    %6196 = vmatprep.subr.mxu0 0.0
    %6197 = vmatpush2.msra.mxu0 0.0
    %6198 = vmatprep.subr.mxu0 0.0
    %6199 = vmatpush2.msra.mxu0 0.0
    %6200 = vmatprep.subr.mxu0 0.0
    %6201 = vmatpush2.msra.mxu0 0.0
    %6202 = vmatprep.subr.mxu0 0.0
    %6203 = vmatpush2.msra.mxu0 0.0
    %6204 = vmatprep.subr.mxu0 0.0
    %6205 = vmatpush2.msra.mxu0 0.0
    %6206 = vmatprep.subr.mxu0 0.0
    %6207 = vmatpush2.msra.mxu0 0.0
    %6208 = vmatprep.subr.mxu0 0.0
    %6209 = vmatpush2.msra.mxu0 0.0
    %6210 = vmatprep.subr.mxu0 0.0
    %6211 = vmatpush2.msra.mxu0 0.0
    %6212 = vmatprep.subr.mxu0 0.0
    %6213 = vmatpush2.msra.mxu0 0.0
    %6214 = vmatprep.subr.mxu0 0.0
    %6215 = vmatpush2.msra.mxu0 0.0
    %6216 = vmatprep.subr.mxu0 0.0
    %6217 = vmatpush2.msra.mxu0 0.0
    %6218 = vmatprep.subr.mxu0 0.0
    %6219 = vmatpush2.msra.mxu0 0.0
    %6220 = vmatprep.subr.mxu0 0.0
    %6221 = vmatpush2.msra.mxu0 0.0
    %6222 = vmatprep.mubr.f32.mxu0 0.0
    %6223 = vmatmul.mubr.f32.gmra.mxu0 %v6152
    %v6224 = vpop.f32.mrf.mxu0
    %v6225 = vadd.f32 %v6149, %v6224
    %v6226 = vpop.f32.mrf.mxu0
    %6227 = vdwg.mxu0
    %v6228 = vmax.f32 %v6225, 0.0
    %v6229 = vld [vmem:[#allocation16] sm:$0xff]
    %v6230 = vld [vmem:[#allocation16 + $0x8] sm:$0xf]
    %v6231 = vld [vmem:[#allocation17] sm:$0x1]
    %v6233 = vlaneseq
    %v6234 = vshrl.u32 %v6233, 7
    %v6235 = vsub.s32 0, %v6234
    %v6236 = vrot.slane %v6231, %v6235
    %v6239 = vsel %vm6063, %v6228, 0
    %v6242 = vsel %vm6067, %v6230, 0
    %6244 = vmatprep.subr.mxu0 0.0
    %6245 = vmatpush1.msra.mxu0 0.0
    %6246 = vmatprep.subr.mxu0 0.0
    %6247 = vmatpush1.msra.mxu0 0.0
    %6248 = vmatprep.subr.mxu0 0.0
    %6249 = vmatpush1.msra.mxu0 0.0
    %6250 = vmatprep.subr.mxu0 0.0
    %6251 = vmatpush1.msra.mxu0 0.0
    %6252 = vmatprep.subr.mxu0 0.0
    %6253 = vmatpush1.msra.mxu0 0.0
    %6254 = vmatprep.subr.mxu0 0.0
    %6255 = vmatpush1.msra.mxu0 0.0
    %6256 = vmatprep.subr.mxu0 0.0
    %6257 = vmatpush1.msra.mxu0 0.0
    %6258 = vmatprep.subr.mxu0 0.0
    %6259 = vmatpush1.msra.mxu0 0.0
    %6260 = vmatprep.subr.mxu0 0.0
    %6261 = vmatpush1.msra.mxu0 0.0
    %6262 = vmatprep.subr.mxu0 0.0
    %6263 = vmatpush1.msra.mxu0 0.0
    %6264 = vmatprep.subr.mxu0 0.0
    %6265 = vmatpush1.msra.mxu0 0.0
    %6266 = vmatprep.subr.mxu0 0.0
    %6267 = vmatpush1.msra.mxu0 0.0
    %6268 = vmatprep.subr.mxu0 0.0
    %6269 = vmatpush1.msra.mxu0 0.0
    %6270 = vmatprep.subr.mxu0 0.0
    %6271 = vmatpush1.msra.mxu0 0.0
    %6272 = vmatprep.subr.mxu0 0.0
    %6273 = vmatpush1.msra.mxu0 %v6242
    %6274 = vmatprep.subr.mxu0 0.0
    %6275 = vmatpush1.msra.mxu0 %v6229
    %6276 = vmatprep.subr.mxu0 0.0
    %6277 = vmatpush2.msra.mxu0 0.0
    %6278 = vmatprep.subr.mxu0 0.0
    %6279 = vmatpush2.msra.mxu0 0.0
    %6280 = vmatprep.subr.mxu0 0.0
    %6281 = vmatpush2.msra.mxu0 0.0
    %6282 = vmatprep.subr.mxu0 0.0
    %6283 = vmatpush2.msra.mxu0 0.0
    %6284 = vmatprep.subr.mxu0 0.0
    %6285 = vmatpush2.msra.mxu0 0.0
    %6286 = vmatprep.subr.mxu0 0.0
    %6287 = vmatpush2.msra.mxu0 0.0
    %6288 = vmatprep.subr.mxu0 0.0
    %6289 = vmatpush2.msra.mxu0 0.0
    %6290 = vmatprep.subr.mxu0 0.0
    %6291 = vmatpush2.msra.mxu0 0.0
    %6292 = vmatprep.subr.mxu0 0.0
    %6293 = vmatpush2.msra.mxu0 0.0
    %6294 = vmatprep.subr.mxu0 0.0
    %6295 = vmatpush2.msra.mxu0 0.0
    %6296 = vmatprep.subr.mxu0 0.0
    %6297 = vmatpush2.msra.mxu0 0.0
    %6298 = vmatprep.subr.mxu0 0.0
    %6299 = vmatpush2.msra.mxu0 0.0
    %6300 = vmatprep.subr.mxu0 0.0
    %6301 = vmatpush2.msra.mxu0 0.0
    %6302 = vmatprep.subr.mxu0 0.0
    %6303 = vmatpush2.msra.mxu0 0.0
    %6304 = vmatprep.subr.mxu0 0.0
    %6305 = vmatpush2.msra.mxu0 0.0
    %6306 = vmatprep.subr.mxu0 0.0
    %6307 = vmatpush2.msra.mxu0 0.0
    %6308 = vmatprep.mubr.f32.mxu0 0.0
    %6309 = vmatmul.mubr.f32.gmra.mxu0 %v6239
    %v6310 = vpop.f32.mrf.mxu0
    %v6311 = vadd.f32 %v6236, %v6310
    %v6312 = vpop.f32.mrf.mxu0
    %6313 = vdwg.mxu0
    %v6314 = vmax.f32 %v6311, 0.0
    %v6315 = vld [vmem:[#allocation19] sm:$0xff]
    %v6316 = vld [vmem:[#allocation19 + $0x8] sm:$0xff]
    %v6317 = vld [vmem:[#allocation19 + $0x10] sm:$0xff]
    %v6318 = vld [vmem:[#allocation19 + $0x18] sm:$0xff]
    %v6319 = vld [vmem:[#allocation19 + $0x20] sm:$0xff]
    %v6320 = vld [vmem:[#allocation19 + $0x28] sm:$0xff]
    %v6321 = vld [vmem:[#allocation19 + $0x30] sm:$0xff]
    %v6322 = vld [vmem:[#allocation19 + $0x38] sm:$0xff]
    %v6323 = vld [vmem:[#allocation20] sm:$0x1]
    %v6325 = vlaneseq
    %v6326 = vshrl.u32 %v6325, 7
    %v6327 = vsub.s32 0, %v6326
    %v6328 = vrot.slane %v6323, %v6327
    %v6331 = vsel %vm5979, %v6314, 0
    %6333 = vmatprep.subr.mxu0 0.0
    %6334 = vmatpush1.msra.mxu0 0.0
    %6335 = vmatprep.subr.mxu0 0.0
    %6336 = vmatpush1.msra.mxu0 0.0
    %6337 = vmatprep.subr.mxu0 0.0
    %6338 = vmatpush1.msra.mxu0 0.0
    %6339 = vmatprep.subr.mxu0 0.0
    %6340 = vmatpush1.msra.mxu0 0.0
    %6341 = vmatprep.subr.mxu0 0.0
    %6342 = vmatpush1.msra.mxu0 0.0
    %6343 = vmatprep.subr.mxu0 0.0
    %6344 = vmatpush1.msra.mxu0 0.0
    %6345 = vmatprep.subr.mxu0 0.0
    %6346 = vmatpush1.msra.mxu0 0.0
    %6347 = vmatprep.subr.mxu0 0.0
    %6348 = vmatpush1.msra.mxu0 0.0
    %6349 = vmatprep.subr.mxu0 0.0
    %6350 = vmatpush1.msra.mxu0 %v6322
    %6351 = vmatprep.subr.mxu0 0.0
    %6352 = vmatpush1.msra.mxu0 %v6321
    %6353 = vmatprep.subr.mxu0 0.0
    %6354 = vmatpush1.msra.mxu0 %v6320
    %6355 = vmatprep.subr.mxu0 0.0
    %6356 = vmatpush1.msra.mxu0 %v6319
    %6357 = vmatprep.subr.mxu0 0.0
    %6358 = vmatpush1.msra.mxu0 %v6318
    %6359 = vmatprep.subr.mxu0 0.0
    %6360 = vmatpush1.msra.mxu0 %v6317
    %6361 = vmatprep.subr.mxu0 0.0
    %6362 = vmatpush1.msra.mxu0 %v6316
    %6363 = vmatprep.subr.mxu0 0.0
    %6364 = vmatpush1.msra.mxu0 %v6315
    %6365 = vmatprep.subr.mxu0 0.0
    %6366 = vmatpush2.msra.mxu0 0.0
    %6367 = vmatprep.subr.mxu0 0.0
    %6368 = vmatpush2.msra.mxu0 0.0
    %6369 = vmatprep.subr.mxu0 0.0
    %6370 = vmatpush2.msra.mxu0 0.0
    %6371 = vmatprep.subr.mxu0 0.0
    %6372 = vmatpush2.msra.mxu0 0.0
    %6373 = vmatprep.subr.mxu0 0.0
    %6374 = vmatpush2.msra.mxu0 0.0
    %6375 = vmatprep.subr.mxu0 0.0
    %6376 = vmatpush2.msra.mxu0 0.0
    %6377 = vmatprep.subr.mxu0 0.0
    %6378 = vmatpush2.msra.mxu0 0.0
    %6379 = vmatprep.subr.mxu0 0.0
    %6380 = vmatpush2.msra.mxu0 0.0
    %6381 = vmatprep.subr.mxu0 0.0
    %6382 = vmatpush2.msra.mxu0 0.0
    %6383 = vmatprep.subr.mxu0 0.0
    %6384 = vmatpush2.msra.mxu0 0.0
    %6385 = vmatprep.subr.mxu0 0.0
    %6386 = vmatpush2.msra.mxu0 0.0
    %6387 = vmatprep.subr.mxu0 0.0
    %6388 = vmatpush2.msra.mxu0 0.0
    %6389 = vmatprep.subr.mxu0 0.0
    %6390 = vmatpush2.msra.mxu0 0.0
    %6391 = vmatprep.subr.mxu0 0.0
    %6392 = vmatpush2.msra.mxu0 0.0
    %6393 = vmatprep.subr.mxu0 0.0
    %6394 = vmatpush2.msra.mxu0 0.0
    %6395 = vmatprep.subr.mxu0 0.0
    %6396 = vmatpush2.msra.mxu0 0.0
    %6397 = vmatprep.mubr.f32.mxu0 0.0
    %6398 = vmatmul.mubr.f32.gmra.mxu0 %v6331
    %v6399 = vpop.f32.mrf.mxu0
    %v6400 = vadd.f32 %v6328, %v6399
    %v6401 = vpop.f32.mrf.mxu0
    %6402 = vdwg.mxu0
    %v6403 = vmax.f32 %v6400, 0.0
    %v6404 = vpack.c.bf16 %v6403, %v6403
    %v6405 = vld [vmem:[#allocation22] sm:$0xff]
    %v6406 = vld [vmem:[#allocation22 + $0x8] sm:$0xff]
    %v6407 = vld [vmem:[#allocation22 + $0x10] sm:$0xff]
    %v6408 = vld [vmem:[#allocation22 + $0x18] sm:$0xff]
    %v6409 = vld [vmem:[#allocation22 + $0x20] sm:$0xff]
    %v6410 = vld [vmem:[#allocation22 + $0x28] sm:$0xff]
    %v6411 = vld [vmem:[#allocation22 + $0x30] sm:$0xff]
    %v6412 = vld [vmem:[#allocation22 + $0x38] sm:$0xff]
    %v6413 = vld [vmem:[#allocation22 + $0x100] sm:$0xff]
    %v6414 = vld [vmem:[#allocation22 + $0x108] sm:$0xff]
    %v6415 = vld [vmem:[#allocation22 + $0x110] sm:$0xff]
    %v6416 = vld [vmem:[#allocation22 + $0x118] sm:$0xff]
    %v6417 = vld [vmem:[#allocation22 + $0x120] sm:$0xff]
    %v6418 = vld [vmem:[#allocation22 + $0x128] sm:$0xff]
    %v6419 = vld [vmem:[#allocation22 + $0x130] sm:$0xff]
    %v6420 = vld [vmem:[#allocation22 + $0x138] sm:$0xff]
    %v6421 = vld [vmem:[#allocation22 + $0x200] sm:$0xff]
    %v6422 = vld [vmem:[#allocation22 + $0x208] sm:$0xff]
    %v6423 = vld [vmem:[#allocation22 + $0x210] sm:$0xff]
    %v6424 = vld [vmem:[#allocation22 + $0x218] sm:$0xff]
    %v6425 = vld [vmem:[#allocation22 + $0x220] sm:$0xff]
    %v6426 = vld [vmem:[#allocation22 + $0x228] sm:$0xff]
    %v6427 = vld [vmem:[#allocation22 + $0x230] sm:$0xff]
    %v6428 = vld [vmem:[#allocation22 + $0x238] sm:$0xff]
    %v6429 = vld [vmem:[#allocation22 + $0x300] sm:$0xff]
    %v6430 = vld [vmem:[#allocation22 + $0x308] sm:$0xff]
    %v6431 = vld [vmem:[#allocation22 + $0x310] sm:$0xff]
    %v6432 = vld [vmem:[#allocation22 + $0x318] sm:$0xff]
    %v6433 = vld [vmem:[#allocation22 + $0x320] sm:$0xff]
    %v6434 = vld [vmem:[#allocation22 + $0x328] sm:$0xff]
    %v6435 = vld [vmem:[#allocation22 + $0x330] sm:$0xff]
    %v6436 = vld [vmem:[#allocation22 + $0x338] sm:$0xff]
    %v6437 = vld [vmem:[#allocation22 + $0x400] sm:$0xff]
    %v6438 = vld [vmem:[#allocation22 + $0x408] sm:$0xff]
    %v6439 = vld [vmem:[#allocation22 + $0x410] sm:$0xff]
    %v6440 = vld [vmem:[#allocation22 + $0x418] sm:$0xff]
    %v6441 = vld [vmem:[#allocation22 + $0x420] sm:$0xff]
    %v6442 = vld [vmem:[#allocation22 + $0x428] sm:$0xff]
    %v6443 = vld [vmem:[#allocation22 + $0x430] sm:$0xff]
    %v6444 = vld [vmem:[#allocation22 + $0x438] sm:$0xff]
    %v6445 = vld [vmem:[#allocation22 + $0x500] sm:$0xff]
    %v6446 = vld [vmem:[#allocation22 + $0x508] sm:$0xff]
    %v6447 = vld [vmem:[#allocation22 + $0x510] sm:$0xff]
    %v6448 = vld [vmem:[#allocation22 + $0x518] sm:$0xff]
    %v6449 = vld [vmem:[#allocation22 + $0x520] sm:$0xff]
    %v6450 = vld [vmem:[#allocation22 + $0x528] sm:$0xff]
    %v6451 = vld [vmem:[#allocation22 + $0x530] sm:$0xff]
    %v6452 = vld [vmem:[#allocation22 + $0x538] sm:$0xff]
    %v6453 = vld [vmem:[#allocation22 + $0x600] sm:$0xff]
    %v6454 = vld [vmem:[#allocation22 + $0x608] sm:$0xff]
    %v6455 = vld [vmem:[#allocation22 + $0x610] sm:$0xff]
    %v6456 = vld [vmem:[#allocation22 + $0x618] sm:$0xff]
    %v6457 = vld [vmem:[#allocation22 + $0x620] sm:$0xff]
    %v6458 = vld [vmem:[#allocation22 + $0x628] sm:$0xff]
    %v6459 = vld [vmem:[#allocation22 + $0x630] sm:$0xff]
    %v6460 = vld [vmem:[#allocation22 + $0x638] sm:$0xff]
    %v6461 = vld [vmem:[#allocation22 + $0x700] sm:$0xff]
    %v6462 = vld [vmem:[#allocation22 + $0x708] sm:$0xff]
    %v6463 = vld [vmem:[#allocation22 + $0x710] sm:$0xff]
    %v6464 = vld [vmem:[#allocation22 + $0x718] sm:$0xff]
    %v6465 = vld [vmem:[#allocation22 + $0x720] sm:$0xff]
    %v6466 = vld [vmem:[#allocation22 + $0x728] sm:$0xff]
    %v6467 = vld [vmem:[#allocation22 + $0x730] sm:$0xff]
    %v6468 = vld [vmem:[#allocation22 + $0x738] sm:$0xff]
    %v6469 = vld [vmem:[#allocation22 + $0x800] sm:$0xff]
    %v6470 = vld [vmem:[#allocation22 + $0x808] sm:$0xff]
    %v6471 = vld [vmem:[#allocation22 + $0x810] sm:$0xff]
    %v6472 = vld [vmem:[#allocation22 + $0x818] sm:$0xff]
    %v6473 = vld [vmem:[#allocation22 + $0x820] sm:$0xff]
    %v6474 = vld [vmem:[#allocation22 + $0x828] sm:$0xff]
    %v6475 = vld [vmem:[#allocation22 + $0x830] sm:$0xff]
    %v6476 = vld [vmem:[#allocation22 + $0x838] sm:$0xff]
    %v6477 = vld [vmem:[#allocation22 + $0x900] sm:$0xff]
    %v6478 = vld [vmem:[#allocation22 + $0x908] sm:$0xff]
    %v6479 = vld [vmem:[#allocation22 + $0x910] sm:$0xff]
    %v6480 = vld [vmem:[#allocation22 + $0x918] sm:$0xff]
    %v6481 = vld [vmem:[#allocation22 + $0x920] sm:$0xff]
    %v6482 = vld [vmem:[#allocation22 + $0x928] sm:$0xff]
    %v6483 = vld [vmem:[#allocation22 + $0x930] sm:$0xff]
    %v6484 = vld [vmem:[#allocation22 + $0x938] sm:$0xff]
    %v6485 = vld [vmem:[#allocation22 + $0xa00] sm:$0xff]
    %v6486 = vld [vmem:[#allocation22 + $0xa08] sm:$0xff]
    %v6487 = vld [vmem:[#allocation22 + $0xa10] sm:$0xff]
    %v6488 = vld [vmem:[#allocation22 + $0xa18] sm:$0xff]
    %v6489 = vld [vmem:[#allocation22 + $0xa20] sm:$0xff]
    %v6490 = vld [vmem:[#allocation22 + $0xa28] sm:$0xff]
    %v6491 = vld [vmem:[#allocation22 + $0xa30] sm:$0xff]
    %v6492 = vld [vmem:[#allocation22 + $0xa38] sm:$0xff]
    %v6493 = vld [vmem:[#allocation22 + $0xb00] sm:$0xff]
    %v6494 = vld [vmem:[#allocation22 + $0xb08] sm:$0xff]
    %v6495 = vld [vmem:[#allocation22 + $0xb10] sm:$0xff]
    %v6496 = vld [vmem:[#allocation22 + $0xb18] sm:$0xff]
    %v6497 = vld [vmem:[#allocation22 + $0xb20] sm:$0xff]
    %v6498 = vld [vmem:[#allocation22 + $0xb28] sm:$0xff]
    %v6499 = vld [vmem:[#allocation22 + $0xb30] sm:$0xff]
    %v6500 = vld [vmem:[#allocation22 + $0xb38] sm:$0xff]
    %v6501 = vld [vmem:[#allocation22 + $0xc00] sm:$0xff]
    %v6502 = vld [vmem:[#allocation22 + $0xc08] sm:$0xff]
    %v6503 = vld [vmem:[#allocation22 + $0xc10] sm:$0xff]
    %v6504 = vld [vmem:[#allocation22 + $0xc18] sm:$0xff]
    %v6505 = vld [vmem:[#allocation22 + $0xc20] sm:$0xff]
    %v6506 = vld [vmem:[#allocation22 + $0xc28] sm:$0xff]
    %v6507 = vld [vmem:[#allocation22 + $0xc30] sm:$0xff]
    %v6508 = vld [vmem:[#allocation22 + $0xc38] sm:$0xff]
    %v6509 = vld [vmem:[#allocation22 + $0xd00] sm:$0xff]
    %v6510 = vld [vmem:[#allocation22 + $0xd08] sm:$0xff]
    %v6511 = vld [vmem:[#allocation22 + $0xd10] sm:$0xff]
    %v6512 = vld [vmem:[#allocation22 + $0xd18] sm:$0xff]
    %v6513 = vld [vmem:[#allocation22 + $0xd20] sm:$0xff]
    %v6514 = vld [vmem:[#allocation22 + $0xd28] sm:$0xff]
    %v6515 = vld [vmem:[#allocation22 + $0xd30] sm:$0xff]
    %v6516 = vld [vmem:[#allocation22 + $0xd38] sm:$0xff]
    %v6517 = vld [vmem:[#allocation22 + $0xe00] sm:$0xff]
    %v6518 = vld [vmem:[#allocation22 + $0xe08] sm:$0xff]
    %v6519 = vld [vmem:[#allocation22 + $0xe10] sm:$0xff]
    %v6520 = vld [vmem:[#allocation22 + $0xe18] sm:$0xff]
    %v6521 = vld [vmem:[#allocation22 + $0xe20] sm:$0xff]
    %v6522 = vld [vmem:[#allocation22 + $0xe28] sm:$0xff]
    %v6523 = vld [vmem:[#allocation22 + $0xe30] sm:$0xff]
    %v6524 = vld [vmem:[#allocation22 + $0xe38] sm:$0xff]
    %v6525 = vld [vmem:[#allocation22 + $0xf00] sm:$0xff]
    %v6526 = vld [vmem:[#allocation22 + $0xf08] sm:$0xff]
    %v6527 = vld [vmem:[#allocation22 + $0xf10] sm:$0xff]
    %v6528 = vld [vmem:[#allocation22 + $0xf18] sm:$0xff]
    %v6529 = vld [vmem:[#allocation22 + $0xf20] sm:$0xff]
    %v6530 = vld [vmem:[#allocation22 + $0xf28] sm:$0xff]
    %v6531 = vld [vmem:[#allocation22 + $0xf30] sm:$0xff]
    %v6532 = vld [vmem:[#allocation22 + $0xf38] sm:$0xff]
    %v6533 = vld [vmem:[#allocation23] sm:$0xff]
    %v6534 = vld [vmem:[#allocation23 + $0x8] sm:$0xff]
    %v6537 = vlaneseq
    %v6538 = vshrl.u32 %v6537, 7
    %v6539 = vsub.s32 0, %v6538
    %v6540 = vrot.slane %v6533, %v6539
    %v6541 = vlaneseq
    %v6542 = vshrl.u32 %v6541, 7
    %v6543 = vsub.s32 1, %v6542
    %v6544 = vrot.slane %v6533, %v6543
    %v6545 = vlaneseq
    %v6546 = vshrl.u32 %v6545, 7
    %v6547 = vsub.s32 2, %v6546
    %v6548 = vrot.slane %v6533, %v6547
    %v6549 = vlaneseq
    %v6550 = vshrl.u32 %v6549, 7
    %v6551 = vsub.s32 3, %v6550
    %v6552 = vrot.slane %v6533, %v6551
    %v6553 = vlaneseq
    %v6554 = vshrl.u32 %v6553, 7
    %v6555 = vsub.s32 4, %v6554
    %v6556 = vrot.slane %v6533, %v6555
    %v6557 = vlaneseq
    %v6558 = vshrl.u32 %v6557, 7
    %v6559 = vsub.s32 5, %v6558
    %v6560 = vrot.slane %v6533, %v6559
    %v6561 = vlaneseq
    %v6562 = vshrl.u32 %v6561, 7
    %v6563 = vsub.s32 6, %v6562
    %v6564 = vrot.slane %v6533, %v6563
    %v6565 = vlaneseq
    %v6566 = vshrl.u32 %v6565, 7
    %v6567 = vsub.s32 7, %v6566
    %v6568 = vrot.slane %v6533, %v6567
    %v6569 = vlaneseq
    %v6570 = vshrl.u32 %v6569, 7
    %v6571 = vsub.s32 0, %v6570
    %v6572 = vrot.slane %v6534, %v6571
    %v6573 = vlaneseq
    %v6574 = vshrl.u32 %v6573, 7
    %v6575 = vsub.s32 1, %v6574
    %v6576 = vrot.slane %v6534, %v6575
    %v6577 = vlaneseq
    %v6578 = vshrl.u32 %v6577, 7
    %v6579 = vsub.s32 2, %v6578
    %v6580 = vrot.slane %v6534, %v6579
    %v6581 = vlaneseq
    %v6582 = vshrl.u32 %v6581, 7
    %v6583 = vsub.s32 3, %v6582
    %v6584 = vrot.slane %v6534, %v6583
    %v6585 = vlaneseq
    %v6586 = vshrl.u32 %v6585, 7
    %v6587 = vsub.s32 4, %v6586
    %v6588 = vrot.slane %v6534, %v6587
    %v6589 = vlaneseq
    %v6590 = vshrl.u32 %v6589, 7
    %v6591 = vsub.s32 5, %v6590
    %v6592 = vrot.slane %v6534, %v6591
    %v6593 = vlaneseq
    %v6594 = vshrl.u32 %v6593, 7
    %v6595 = vsub.s32 6, %v6594
    %v6596 = vrot.slane %v6534, %v6595
    %v6597 = vlaneseq
    %v6598 = vshrl.u32 %v6597, 7
    %v6599 = vsub.s32 7, %v6598
    %v6600 = vrot.slane %v6534, %v6599
    %v6745 = vunpack.c.l.b16 %v6405
    %v6746 = vunpack.c.h.b16 %v6405
    %v6747 = vunpack.c.l.b16 %v6406
    %v6748 = vunpack.c.h.b16 %v6406
    %v6749 = vunpack.c.l.b16 %v6407
    %v6750 = vunpack.c.h.b16 %v6407
    %v6751 = vunpack.c.l.b16 %v6408
    %v6752 = vunpack.c.h.b16 %v6408
    %v6753 = vunpack.c.l.b16 %v6409
    %v6754 = vunpack.c.h.b16 %v6409
    %v6755 = vunpack.c.l.b16 %v6410
    %v6756 = vunpack.c.h.b16 %v6410
    %v6757 = vunpack.c.l.b16 %v6411
    %v6758 = vunpack.c.h.b16 %v6411
    %v6759 = vunpack.c.l.b16 %v6412
    %v6760 = vunpack.c.h.b16 %v6412
    %v6761 = vunpack.c.l.b16 %v6413
    %v6762 = vunpack.c.h.b16 %v6413
    %v6763 = vunpack.c.l.b16 %v6414
    %v6764 = vunpack.c.h.b16 %v6414
    %v6765 = vunpack.c.l.b16 %v6415
    %v6766 = vunpack.c.h.b16 %v6415
    %v6767 = vunpack.c.l.b16 %v6416
    %v6768 = vunpack.c.h.b16 %v6416
    %v6769 = vunpack.c.l.b16 %v6417
    %v6770 = vunpack.c.h.b16 %v6417
    %v6771 = vunpack.c.l.b16 %v6418
    %v6772 = vunpack.c.h.b16 %v6418
    %v6773 = vunpack.c.l.b16 %v6419
    %v6774 = vunpack.c.h.b16 %v6419
    %v6775 = vunpack.c.l.b16 %v6420
    %v6776 = vunpack.c.h.b16 %v6420
    %v6777 = vunpack.c.l.b16 %v6421
    %v6778 = vunpack.c.h.b16 %v6421
    %v6779 = vunpack.c.l.b16 %v6422
    %v6780 = vunpack.c.h.b16 %v6422
    %v6781 = vunpack.c.l.b16 %v6423
    %v6782 = vunpack.c.h.b16 %v6423
    %v6783 = vunpack.c.l.b16 %v6424
    %v6784 = vunpack.c.h.b16 %v6424
    %v6785 = vunpack.c.l.b16 %v6425
    %v6786 = vunpack.c.h.b16 %v6425
    %v6787 = vunpack.c.l.b16 %v6426
    %v6788 = vunpack.c.h.b16 %v6426
    %v6789 = vunpack.c.l.b16 %v6427
    %v6790 = vunpack.c.h.b16 %v6427
    %v6791 = vunpack.c.l.b16 %v6428
    %v6792 = vunpack.c.h.b16 %v6428
    %v6793 = vunpack.c.l.b16 %v6429
    %v6794 = vunpack.c.h.b16 %v6429
    %v6795 = vunpack.c.l.b16 %v6430
    %v6796 = vunpack.c.h.b16 %v6430
    %v6797 = vunpack.c.l.b16 %v6431
    %v6798 = vunpack.c.h.b16 %v6431
    %v6799 = vunpack.c.l.b16 %v6432
    %v6800 = vunpack.c.h.b16 %v6432
    %v6801 = vunpack.c.l.b16 %v6433
    %v6802 = vunpack.c.h.b16 %v6433
    %v6803 = vunpack.c.l.b16 %v6434
    %v6804 = vunpack.c.h.b16 %v6434
    %v6805 = vunpack.c.l.b16 %v6435
    %v6806 = vunpack.c.h.b16 %v6435
    %v6807 = vunpack.c.l.b16 %v6436
    %v6808 = vunpack.c.h.b16 %v6436
    %v6809 = vunpack.c.l.b16 %v6437
    %v6810 = vunpack.c.h.b16 %v6437
    %v6811 = vunpack.c.l.b16 %v6438
    %v6812 = vunpack.c.h.b16 %v6438
    %v6813 = vunpack.c.l.b16 %v6439
    %v6814 = vunpack.c.h.b16 %v6439
    %v6815 = vunpack.c.l.b16 %v6440
    %v6816 = vunpack.c.h.b16 %v6440
    %v6817 = vunpack.c.l.b16 %v6441
    %v6818 = vunpack.c.h.b16 %v6441
    %v6819 = vunpack.c.l.b16 %v6442
    %v6820 = vunpack.c.h.b16 %v6442
    %v6821 = vunpack.c.l.b16 %v6443
    %v6822 = vunpack.c.h.b16 %v6443
    %v6823 = vunpack.c.l.b16 %v6444
    %v6824 = vunpack.c.h.b16 %v6444
    %v6825 = vunpack.c.l.b16 %v6445
    %v6826 = vunpack.c.h.b16 %v6445
    %v6827 = vunpack.c.l.b16 %v6446
    %v6828 = vunpack.c.h.b16 %v6446
    %v6829 = vunpack.c.l.b16 %v6447
    %v6830 = vunpack.c.h.b16 %v6447
    %v6831 = vunpack.c.l.b16 %v6448
    %v6832 = vunpack.c.h.b16 %v6448
    %v6833 = vunpack.c.l.b16 %v6449
    %v6834 = vunpack.c.h.b16 %v6449
    %v6835 = vunpack.c.l.b16 %v6450
    %v6836 = vunpack.c.h.b16 %v6450
    %v6837 = vunpack.c.l.b16 %v6451
    %v6838 = vunpack.c.h.b16 %v6451
    %v6839 = vunpack.c.l.b16 %v6452
    %v6840 = vunpack.c.h.b16 %v6452
    %v6841 = vunpack.c.l.b16 %v6453
    %v6842 = vunpack.c.h.b16 %v6453
    %v6843 = vunpack.c.l.b16 %v6454
    %v6844 = vunpack.c.h.b16 %v6454
    %v6845 = vunpack.c.l.b16 %v6455
    %v6846 = vunpack.c.h.b16 %v6455
    %v6847 = vunpack.c.l.b16 %v6456
    %v6848 = vunpack.c.h.b16 %v6456
    %v6849 = vunpack.c.l.b16 %v6457
    %v6850 = vunpack.c.h.b16 %v6457
    %v6851 = vunpack.c.l.b16 %v6458
    %v6852 = vunpack.c.h.b16 %v6458
    %v6853 = vunpack.c.l.b16 %v6459
    %v6854 = vunpack.c.h.b16 %v6459
    %v6855 = vunpack.c.l.b16 %v6460
    %v6856 = vunpack.c.h.b16 %v6460
    %v6857 = vunpack.c.l.b16 %v6461
    %v6858 = vunpack.c.h.b16 %v6461
    %v6859 = vunpack.c.l.b16 %v6462
    %v6860 = vunpack.c.h.b16 %v6462
    %v6861 = vunpack.c.l.b16 %v6463
    %v6862 = vunpack.c.h.b16 %v6463
    %v6863 = vunpack.c.l.b16 %v6464
    %v6864 = vunpack.c.h.b16 %v6464
    %v6865 = vunpack.c.l.b16 %v6465
    %v6866 = vunpack.c.h.b16 %v6465
    %v6867 = vunpack.c.l.b16 %v6466
    %v6868 = vunpack.c.h.b16 %v6466
    %v6869 = vunpack.c.l.b16 %v6467
    %v6870 = vunpack.c.h.b16 %v6467
    %v6871 = vunpack.c.l.b16 %v6468
    %v6872 = vunpack.c.h.b16 %v6468
    %v6873 = vunpack.c.l.b16 %v6469
    %v6874 = vunpack.c.h.b16 %v6469
    %v6875 = vunpack.c.l.b16 %v6470
    %v6876 = vunpack.c.h.b16 %v6470
    %v6877 = vunpack.c.l.b16 %v6471
    %v6878 = vunpack.c.h.b16 %v6471
    %v6879 = vunpack.c.l.b16 %v6472
    %v6880 = vunpack.c.h.b16 %v6472
    %v6881 = vunpack.c.l.b16 %v6473
    %v6882 = vunpack.c.h.b16 %v6473
    %v6883 = vunpack.c.l.b16 %v6474
    %v6884 = vunpack.c.h.b16 %v6474
    %v6885 = vunpack.c.l.b16 %v6475
    %v6886 = vunpack.c.h.b16 %v6475
    %v6887 = vunpack.c.l.b16 %v6476
    %v6888 = vunpack.c.h.b16 %v6476
    %v6889 = vunpack.c.l.b16 %v6477
    %v6890 = vunpack.c.h.b16 %v6477
    %v6891 = vunpack.c.l.b16 %v6478
    %v6892 = vunpack.c.h.b16 %v6478
    %v6893 = vunpack.c.l.b16 %v6479
    %v6894 = vunpack.c.h.b16 %v6479
    %v6895 = vunpack.c.l.b16 %v6480
    %v6896 = vunpack.c.h.b16 %v6480
    %v6897 = vunpack.c.l.b16 %v6481
    %v6898 = vunpack.c.h.b16 %v6481
    %v6899 = vunpack.c.l.b16 %v6482
    %v6900 = vunpack.c.h.b16 %v6482
    %v6901 = vunpack.c.l.b16 %v6483
    %v6902 = vunpack.c.h.b16 %v6483
    %v6903 = vunpack.c.l.b16 %v6484
    %v6904 = vunpack.c.h.b16 %v6484
    %v6905 = vunpack.c.l.b16 %v6485
    %v6906 = vunpack.c.h.b16 %v6485
    %v6907 = vunpack.c.l.b16 %v6486
    %v6908 = vunpack.c.h.b16 %v6486
    %v6909 = vunpack.c.l.b16 %v6487
    %v6910 = vunpack.c.h.b16 %v6487
    %v6911 = vunpack.c.l.b16 %v6488
    %v6912 = vunpack.c.h.b16 %v6488
    %v6913 = vunpack.c.l.b16 %v6489
    %v6914 = vunpack.c.h.b16 %v6489
    %v6915 = vunpack.c.l.b16 %v6490
    %v6916 = vunpack.c.h.b16 %v6490
    %v6917 = vunpack.c.l.b16 %v6491
    %v6918 = vunpack.c.h.b16 %v6491
    %v6919 = vunpack.c.l.b16 %v6492
    %v6920 = vunpack.c.h.b16 %v6492
    %v6921 = vunpack.c.l.b16 %v6493
    %v6922 = vunpack.c.h.b16 %v6493
    %v6923 = vunpack.c.l.b16 %v6494
    %v6924 = vunpack.c.h.b16 %v6494
    %v6925 = vunpack.c.l.b16 %v6495
    %v6926 = vunpack.c.h.b16 %v6495
    %v6927 = vunpack.c.l.b16 %v6496
    %v6928 = vunpack.c.h.b16 %v6496
    %v6929 = vunpack.c.l.b16 %v6497
    %v6930 = vunpack.c.h.b16 %v6497
    %v6931 = vunpack.c.l.b16 %v6498
    %v6932 = vunpack.c.h.b16 %v6498
    %v6933 = vunpack.c.l.b16 %v6499
    %v6934 = vunpack.c.h.b16 %v6499
    %v6935 = vunpack.c.l.b16 %v6500
    %v6936 = vunpack.c.h.b16 %v6500
    %v6937 = vunpack.c.l.b16 %v6501
    %v6938 = vunpack.c.h.b16 %v6501
    %v6939 = vunpack.c.l.b16 %v6502
    %v6940 = vunpack.c.h.b16 %v6502
    %v6941 = vunpack.c.l.b16 %v6503
    %v6942 = vunpack.c.h.b16 %v6503
    %v6943 = vunpack.c.l.b16 %v6504
    %v6944 = vunpack.c.h.b16 %v6504
    %v6945 = vunpack.c.l.b16 %v6505
    %v6946 = vunpack.c.h.b16 %v6505
    %v6947 = vunpack.c.l.b16 %v6506
    %v6948 = vunpack.c.h.b16 %v6506
    %v6949 = vunpack.c.l.b16 %v6507
    %v6950 = vunpack.c.h.b16 %v6507
    %v6951 = vunpack.c.l.b16 %v6508
    %v6952 = vunpack.c.h.b16 %v6508
    %v6953 = vunpack.c.l.b16 %v6509
    %v6954 = vunpack.c.h.b16 %v6509
    %v6955 = vunpack.c.l.b16 %v6510
    %v6956 = vunpack.c.h.b16 %v6510
    %v6957 = vunpack.c.l.b16 %v6511
    %v6958 = vunpack.c.h.b16 %v6511
    %v6959 = vunpack.c.l.b16 %v6512
    %v6960 = vunpack.c.h.b16 %v6512
    %v6961 = vunpack.c.l.b16 %v6513
    %v6962 = vunpack.c.h.b16 %v6513
    %v6963 = vunpack.c.l.b16 %v6514
    %v6964 = vunpack.c.h.b16 %v6514
    %v6965 = vunpack.c.l.b16 %v6515
    %v6966 = vunpack.c.h.b16 %v6515
    %v6967 = vunpack.c.l.b16 %v6516
    %v6968 = vunpack.c.h.b16 %v6516
    %v6969 = vunpack.c.l.b16 %v6517
    %v6970 = vunpack.c.h.b16 %v6517
    %v6971 = vunpack.c.l.b16 %v6518
    %v6972 = vunpack.c.h.b16 %v6518
    %v6973 = vunpack.c.l.b16 %v6519
    %v6974 = vunpack.c.h.b16 %v6519
    %v6975 = vunpack.c.l.b16 %v6520
    %v6976 = vunpack.c.h.b16 %v6520
    %v6977 = vunpack.c.l.b16 %v6521
    %v6978 = vunpack.c.h.b16 %v6521
    %v6979 = vunpack.c.l.b16 %v6522
    %v6980 = vunpack.c.h.b16 %v6522
    %v6981 = vunpack.c.l.b16 %v6523
    %v6982 = vunpack.c.h.b16 %v6523
    %v6983 = vunpack.c.l.b16 %v6524
    %v6984 = vunpack.c.h.b16 %v6524
    %v6985 = vunpack.c.l.b16 %v6525
    %v6986 = vunpack.c.h.b16 %v6525
    %v6987 = vunpack.c.l.b16 %v6526
    %v6988 = vunpack.c.h.b16 %v6526
    %v6989 = vunpack.c.l.b16 %v6527
    %v6990 = vunpack.c.h.b16 %v6527
    %v6991 = vunpack.c.l.b16 %v6528
    %v6992 = vunpack.c.h.b16 %v6528
    %v6993 = vunpack.c.l.b16 %v6529
    %v6994 = vunpack.c.h.b16 %v6529
    %v6995 = vunpack.c.l.b16 %v6530
    %v6996 = vunpack.c.h.b16 %v6530
    %v6997 = vunpack.c.l.b16 %v6531
    %v6998 = vunpack.c.h.b16 %v6531
    %v6999 = vunpack.c.l.b16 %v6532
    %v7000 = vunpack.c.h.b16 %v6532
    %v7001 = vpack.c.b16 %v6761, %v6745
    %v7002 = vpack.c.b16 %v6762, %v6746
    %v7003 = vpack.c.b16 %v6763, %v6747
    %v7004 = vpack.c.b16 %v6764, %v6748
    %v7005 = vpack.c.b16 %v6765, %v6749
    %v7006 = vpack.c.b16 %v6766, %v6750
    %v7007 = vpack.c.b16 %v6767, %v6751
    %v7008 = vpack.c.b16 %v6768, %v6752
    %v7009 = vpack.c.b16 %v6769, %v6753
    %v7010 = vpack.c.b16 %v6770, %v6754
    %v7011 = vpack.c.b16 %v6771, %v6755
    %v7012 = vpack.c.b16 %v6772, %v6756
    %v7013 = vpack.c.b16 %v6773, %v6757
    %v7014 = vpack.c.b16 %v6774, %v6758
    %v7015 = vpack.c.b16 %v6775, %v6759
    %v7016 = vpack.c.b16 %v6776, %v6760
    %v7017 = vpack.c.b16 %v6793, %v6777
    %v7018 = vpack.c.b16 %v6794, %v6778
    %v7019 = vpack.c.b16 %v6795, %v6779
    %v7020 = vpack.c.b16 %v6796, %v6780
    %v7021 = vpack.c.b16 %v6797, %v6781
    %v7022 = vpack.c.b16 %v6798, %v6782
    %v7023 = vpack.c.b16 %v6799, %v6783
    %v7024 = vpack.c.b16 %v6800, %v6784
    %v7025 = vpack.c.b16 %v6801, %v6785
    %v7026 = vpack.c.b16 %v6802, %v6786
    %v7027 = vpack.c.b16 %v6803, %v6787
    %v7028 = vpack.c.b16 %v6804, %v6788
    %v7029 = vpack.c.b16 %v6805, %v6789
    %v7030 = vpack.c.b16 %v6806, %v6790
    %v7031 = vpack.c.b16 %v6807, %v6791
    %v7032 = vpack.c.b16 %v6808, %v6792
    %v7033 = vpack.c.b16 %v6825, %v6809
    %v7034 = vpack.c.b16 %v6826, %v6810
    %v7035 = vpack.c.b16 %v6827, %v6811
    %v7036 = vpack.c.b16 %v6828, %v6812
    %v7037 = vpack.c.b16 %v6829, %v6813
    %v7038 = vpack.c.b16 %v6830, %v6814
    %v7039 = vpack.c.b16 %v6831, %v6815
    %v7040 = vpack.c.b16 %v6832, %v6816
    %v7041 = vpack.c.b16 %v6833, %v6817
    %v7042 = vpack.c.b16 %v6834, %v6818
    %v7043 = vpack.c.b16 %v6835, %v6819
    %v7044 = vpack.c.b16 %v6836, %v6820
    %v7045 = vpack.c.b16 %v6837, %v6821
    %v7046 = vpack.c.b16 %v6838, %v6822
    %v7047 = vpack.c.b16 %v6839, %v6823
    %v7048 = vpack.c.b16 %v6840, %v6824
    %v7049 = vpack.c.b16 %v6857, %v6841
    %v7050 = vpack.c.b16 %v6858, %v6842
    %v7051 = vpack.c.b16 %v6859, %v6843
    %v7052 = vpack.c.b16 %v6860, %v6844
    %v7053 = vpack.c.b16 %v6861, %v6845
    %v7054 = vpack.c.b16 %v6862, %v6846
    %v7055 = vpack.c.b16 %v6863, %v6847
    %v7056 = vpack.c.b16 %v6864, %v6848
    %v7057 = vpack.c.b16 %v6865, %v6849
    %v7058 = vpack.c.b16 %v6866, %v6850
    %v7059 = vpack.c.b16 %v6867, %v6851
    %v7060 = vpack.c.b16 %v6868, %v6852
    %v7061 = vpack.c.b16 %v6869, %v6853
    %v7062 = vpack.c.b16 %v6870, %v6854
    %v7063 = vpack.c.b16 %v6871, %v6855
    %v7064 = vpack.c.b16 %v6872, %v6856
    %v7065 = vpack.c.b16 %v6889, %v6873
    %v7066 = vpack.c.b16 %v6890, %v6874
    %v7067 = vpack.c.b16 %v6891, %v6875
    %v7068 = vpack.c.b16 %v6892, %v6876
    %v7069 = vpack.c.b16 %v6893, %v6877
    %v7070 = vpack.c.b16 %v6894, %v6878
    %v7071 = vpack.c.b16 %v6895, %v6879
    %v7072 = vpack.c.b16 %v6896, %v6880
    %v7073 = vpack.c.b16 %v6897, %v6881
    %v7074 = vpack.c.b16 %v6898, %v6882
    %v7075 = vpack.c.b16 %v6899, %v6883
    %v7076 = vpack.c.b16 %v6900, %v6884
    %v7077 = vpack.c.b16 %v6901, %v6885
    %v7078 = vpack.c.b16 %v6902, %v6886
    %v7079 = vpack.c.b16 %v6903, %v6887
    %v7080 = vpack.c.b16 %v6904, %v6888
    %v7081 = vpack.c.b16 %v6921, %v6905
    %v7082 = vpack.c.b16 %v6922, %v6906
    %v7083 = vpack.c.b16 %v6923, %v6907
    %v7084 = vpack.c.b16 %v6924, %v6908
    %v7085 = vpack.c.b16 %v6925, %v6909
    %v7086 = vpack.c.b16 %v6926, %v6910
    %v7087 = vpack.c.b16 %v6927, %v6911
    %v7088 = vpack.c.b16 %v6928, %v6912
    %v7089 = vpack.c.b16 %v6929, %v6913
    %v7090 = vpack.c.b16 %v6930, %v6914
    %v7091 = vpack.c.b16 %v6931, %v6915
    %v7092 = vpack.c.b16 %v6932, %v6916
    %v7093 = vpack.c.b16 %v6933, %v6917
    %v7094 = vpack.c.b16 %v6934, %v6918
    %v7095 = vpack.c.b16 %v6935, %v6919
    %v7096 = vpack.c.b16 %v6936, %v6920
    %v7097 = vpack.c.b16 %v6953, %v6937
    %v7098 = vpack.c.b16 %v6954, %v6938
    %v7099 = vpack.c.b16 %v6955, %v6939
    %v7100 = vpack.c.b16 %v6956, %v6940
    %v7101 = vpack.c.b16 %v6957, %v6941
    %v7102 = vpack.c.b16 %v6958, %v6942
    %v7103 = vpack.c.b16 %v6959, %v6943
    %v7104 = vpack.c.b16 %v6960, %v6944
    %v7105 = vpack.c.b16 %v6961, %v6945
    %v7106 = vpack.c.b16 %v6962, %v6946
    %v7107 = vpack.c.b16 %v6963, %v6947
    %v7108 = vpack.c.b16 %v6964, %v6948
    %v7109 = vpack.c.b16 %v6965, %v6949
    %v7110 = vpack.c.b16 %v6966, %v6950
    %v7111 = vpack.c.b16 %v6967, %v6951
    %v7112 = vpack.c.b16 %v6968, %v6952
    %v7113 = vpack.c.b16 %v6985, %v6969
    %v7114 = vpack.c.b16 %v6986, %v6970
    %v7115 = vpack.c.b16 %v6987, %v6971
    %v7116 = vpack.c.b16 %v6988, %v6972
    %v7117 = vpack.c.b16 %v6989, %v6973
    %v7118 = vpack.c.b16 %v6990, %v6974
    %v7119 = vpack.c.b16 %v6991, %v6975
    %v7120 = vpack.c.b16 %v6992, %v6976
    %v7121 = vpack.c.b16 %v6993, %v6977
    %v7122 = vpack.c.b16 %v6994, %v6978
    %v7123 = vpack.c.b16 %v6995, %v6979
    %v7124 = vpack.c.b16 %v6996, %v6980
    %v7125 = vpack.c.b16 %v6997, %v6981
    %v7126 = vpack.c.b16 %v6998, %v6982
    %v7127 = vpack.c.b16 %v6999, %v6983
    %v7128 = vpack.c.b16 %v7000, %v6984
    %7257 = vmatprep.subr.bf16.mxu0 %v7114
    %7258 = vmatpush1.bf16.msra.mxu0 %v7113
    %7259 = vmatprep.subr.bf16.mxu0 %v7098
    %7260 = vmatpush1.bf16.msra.mxu0 %v7097
    %7261 = vmatprep.subr.bf16.mxu0 %v7082
    %7262 = vmatpush1.bf16.msra.mxu0 %v7081
    %7263 = vmatprep.subr.bf16.mxu0 %v7066
    %7264 = vmatpush1.bf16.msra.mxu0 %v7065
    %7265 = vmatprep.subr.bf16.mxu0 %v7050
    %7266 = vmatpush1.bf16.msra.mxu0 %v7049
    %7267 = vmatprep.subr.bf16.mxu0 %v7034
    %7268 = vmatpush1.bf16.msra.mxu0 %v7033
    %7269 = vmatprep.subr.bf16.mxu0 %v7018
    %7270 = vmatpush1.bf16.msra.mxu0 %v7017
    %7271 = vmatprep.subr.bf16.mxu0 %v7002
    %7272 = vmatpush1.bf16.msra.mxu0 %v7001
    %7273 = vmatprep.subr.bf16.mxu0 0
    %7274 = vmatpush2.bf16.msra.mxu0 0
    %7275 = vmatprep.subr.bf16.mxu0 0
    %7276 = vmatpush2.bf16.msra.mxu0 0
    %7277 = vmatprep.subr.bf16.mxu0 0
    %7278 = vmatpush2.bf16.msra.mxu0 0
    %7279 = vmatprep.subr.bf16.mxu0 0
    %7280 = vmatpush2.bf16.msra.mxu0 0
    %7281 = vmatprep.subr.bf16.mxu0 0
    %7282 = vmatpush2.bf16.msra.mxu0 0
    %7283 = vmatprep.subr.bf16.mxu0 0
    %7284 = vmatpush2.bf16.msra.mxu0 0
    %7285 = vmatprep.subr.bf16.mxu0 0
    %7286 = vmatpush2.bf16.msra.mxu0 0
    %7287 = vmatprep.subr.bf16.mxu0 0
    %7288 = vmatpush2.bf16.msra.mxu0 0
    %7289 = vmatprep.mubr.bf16.mxu0 0
    %7290 = vmatmul.mubr.bf16.gmra.mxu0 %v6404
    %v7291 = vpop.f32.mrf.mxu0
    %v7292 = vadd.f32 %v6540, %v7291
    %v7293 = vpop.f32.mrf.mxu0
    %v7294 = vadd.f32 %v6544, %v7293
    %v7295 = vpop.f32.mrf.mxu0
    %v7296 = vpop.f32.mrf.mxu0
    %7297 = vdwg.mxu0
    %7298 = vmatprep.subr.bf16.mxu0 %v7116
    %7299 = vmatpush1.bf16.msra.mxu0 %v7115
    %7300 = vmatprep.subr.bf16.mxu0 %v7100
    %7301 = vmatpush1.bf16.msra.mxu0 %v7099
    %7302 = vmatprep.subr.bf16.mxu0 %v7084
    %7303 = vmatpush1.bf16.msra.mxu0 %v7083
    %7304 = vmatprep.subr.bf16.mxu0 %v7068
    %7305 = vmatpush1.bf16.msra.mxu0 %v7067
    %7306 = vmatprep.subr.bf16.mxu0 %v7052
    %7307 = vmatpush1.bf16.msra.mxu0 %v7051
    %7308 = vmatprep.subr.bf16.mxu0 %v7036
    %7309 = vmatpush1.bf16.msra.mxu0 %v7035
    %7310 = vmatprep.subr.bf16.mxu0 %v7020
    %7311 = vmatpush1.bf16.msra.mxu0 %v7019
    %7312 = vmatprep.subr.bf16.mxu0 %v7004
    %7313 = vmatpush1.bf16.msra.mxu0 %v7003
    %7314 = vmatprep.subr.bf16.mxu0 0
    %7315 = vmatpush2.bf16.msra.mxu0 0
    %7316 = vmatprep.subr.bf16.mxu0 0
    %7317 = vmatpush2.bf16.msra.mxu0 0
    %7318 = vmatprep.subr.bf16.mxu0 0
    %7319 = vmatpush2.bf16.msra.mxu0 0
    %7320 = vmatprep.subr.bf16.mxu0 0
    %7321 = vmatpush2.bf16.msra.mxu0 0
    %7322 = vmatprep.subr.bf16.mxu0 0
    %7323 = vmatpush2.bf16.msra.mxu0 0
    %7324 = vmatprep.subr.bf16.mxu0 0
    %7325 = vmatpush2.bf16.msra.mxu0 0
    %7326 = vmatprep.subr.bf16.mxu0 0
    %7327 = vmatpush2.bf16.msra.mxu0 0
    %7328 = vmatprep.subr.bf16.mxu0 0
    %7329 = vmatpush2.bf16.msra.mxu0 0
    %7330 = vmatprep.mubr.bf16.mxu0 0
    %7331 = vmatmul.mubr.bf16.gmra.mxu0 %v6404
    %v7332 = vpop.f32.mrf.mxu0
    %v7333 = vadd.f32 %v6548, %v7332
    %v7334 = vpop.f32.mrf.mxu0
    %v7335 = vadd.f32 %v6552, %v7334
    %v7336 = vpop.f32.mrf.mxu0
    %v7337 = vpop.f32.mrf.mxu0
    %7338 = vdwg.mxu0
    %7339 = vmatprep.subr.bf16.mxu0 %v7118
    %7340 = vmatpush1.bf16.msra.mxu0 %v7117
    %7341 = vmatprep.subr.bf16.mxu0 %v7102
    %7342 = vmatpush1.bf16.msra.mxu0 %v7101
    %7343 = vmatprep.subr.bf16.mxu0 %v7086
    %7344 = vmatpush1.bf16.msra.mxu0 %v7085
    %7345 = vmatprep.subr.bf16.mxu0 %v7070
    %7346 = vmatpush1.bf16.msra.mxu0 %v7069
    %7347 = vmatprep.subr.bf16.mxu0 %v7054
    %7348 = vmatpush1.bf16.msra.mxu0 %v7053
    %7349 = vmatprep.subr.bf16.mxu0 %v7038
    %7350 = vmatpush1.bf16.msra.mxu0 %v7037
    %7351 = vmatprep.subr.bf16.mxu0 %v7022
    %7352 = vmatpush1.bf16.msra.mxu0 %v7021
    %7353 = vmatprep.subr.bf16.mxu0 %v7006
    %7354 = vmatpush1.bf16.msra.mxu0 %v7005
    %7355 = vmatprep.subr.bf16.mxu0 0
    %7356 = vmatpush2.bf16.msra.mxu0 0
    %7357 = vmatprep.subr.bf16.mxu0 0
    %7358 = vmatpush2.bf16.msra.mxu0 0
    %7359 = vmatprep.subr.bf16.mxu0 0
    %7360 = vmatpush2.bf16.msra.mxu0 0
    %7361 = vmatprep.subr.bf16.mxu0 0
    %7362 = vmatpush2.bf16.msra.mxu0 0
    %7363 = vmatprep.subr.bf16.mxu0 0
    %7364 = vmatpush2.bf16.msra.mxu0 0
    %7365 = vmatprep.subr.bf16.mxu0 0
    %7366 = vmatpush2.bf16.msra.mxu0 0
    %7367 = vmatprep.subr.bf16.mxu0 0
    %7368 = vmatpush2.bf16.msra.mxu0 0
    %7369 = vmatprep.subr.bf16.mxu0 0
    %7370 = vmatpush2.bf16.msra.mxu0 0
    %7371 = vmatprep.mubr.bf16.mxu0 0
    %7372 = vmatmul.mubr.bf16.gmra.mxu0 %v6404
    %v7373 = vpop.f32.mrf.mxu0
    %v7374 = vadd.f32 %v6556, %v7373
    %v7375 = vpop.f32.mrf.mxu0
    %v7376 = vadd.f32 %v6560, %v7375
    %v7377 = vpop.f32.mrf.mxu0
    %v7378 = vpop.f32.mrf.mxu0
    %7379 = vdwg.mxu0
    %7380 = vmatprep.subr.bf16.mxu0 %v7120
    %7381 = vmatpush1.bf16.msra.mxu0 %v7119
    %7382 = vmatprep.subr.bf16.mxu0 %v7104
    %7383 = vmatpush1.bf16.msra.mxu0 %v7103
    %7384 = vmatprep.subr.bf16.mxu0 %v7088
    %7385 = vmatpush1.bf16.msra.mxu0 %v7087
    %7386 = vmatprep.subr.bf16.mxu0 %v7072
    %7387 = vmatpush1.bf16.msra.mxu0 %v7071
    %7388 = vmatprep.subr.bf16.mxu0 %v7056
    %7389 = vmatpush1.bf16.msra.mxu0 %v7055
    %7390 = vmatprep.subr.bf16.mxu0 %v7040
    %7391 = vmatpush1.bf16.msra.mxu0 %v7039
    %7392 = vmatprep.subr.bf16.mxu0 %v7024
    %7393 = vmatpush1.bf16.msra.mxu0 %v7023
    %7394 = vmatprep.subr.bf16.mxu0 %v7008
    %7395 = vmatpush1.bf16.msra.mxu0 %v7007
    %7396 = vmatprep.subr.bf16.mxu0 0
    %7397 = vmatpush2.bf16.msra.mxu0 0
    %7398 = vmatprep.subr.bf16.mxu0 0
    %7399 = vmatpush2.bf16.msra.mxu0 0
    %7400 = vmatprep.subr.bf16.mxu0 0
    %7401 = vmatpush2.bf16.msra.mxu0 0
    %7402 = vmatprep.subr.bf16.mxu0 0
    %7403 = vmatpush2.bf16.msra.mxu0 0
    %7404 = vmatprep.subr.bf16.mxu0 0
    %7405 = vmatpush2.bf16.msra.mxu0 0
    %7406 = vmatprep.subr.bf16.mxu0 0
    %7407 = vmatpush2.bf16.msra.mxu0 0
    %7408 = vmatprep.subr.bf16.mxu0 0
    %7409 = vmatpush2.bf16.msra.mxu0 0
    %7410 = vmatprep.subr.bf16.mxu0 0
    %7411 = vmatpush2.bf16.msra.mxu0 0
    %7412 = vmatprep.mubr.bf16.mxu0 0
    %7413 = vmatmul.mubr.bf16.gmra.mxu0 %v6404
    %v7414 = vpop.f32.mrf.mxu0
    %v7415 = vadd.f32 %v6564, %v7414
    %v7416 = vpop.f32.mrf.mxu0
    %v7417 = vadd.f32 %v6568, %v7416
    %v7418 = vpop.f32.mrf.mxu0
    %v7419 = vpop.f32.mrf.mxu0
    %7420 = vdwg.mxu0
    %7421 = vmatprep.subr.bf16.mxu0 %v7122
    %7422 = vmatpush1.bf16.msra.mxu0 %v7121
    %7423 = vmatprep.subr.bf16.mxu0 %v7106
    %7424 = vmatpush1.bf16.msra.mxu0 %v7105
    %7425 = vmatprep.subr.bf16.mxu0 %v7090
    %7426 = vmatpush1.bf16.msra.mxu0 %v7089
    %7427 = vmatprep.subr.bf16.mxu0 %v7074
    %7428 = vmatpush1.bf16.msra.mxu0 %v7073
    %7429 = vmatprep.subr.bf16.mxu0 %v7058
    %7430 = vmatpush1.bf16.msra.mxu0 %v7057
    %7431 = vmatprep.subr.bf16.mxu0 %v7042
    %7432 = vmatpush1.bf16.msra.mxu0 %v7041
    %7433 = vmatprep.subr.bf16.mxu0 %v7026
    %7434 = vmatpush1.bf16.msra.mxu0 %v7025
    %7435 = vmatprep.subr.bf16.mxu0 %v7010
    %7436 = vmatpush1.bf16.msra.mxu0 %v7009
    %7437 = vmatprep.subr.bf16.mxu0 0
    %7438 = vmatpush2.bf16.msra.mxu0 0
    %7439 = vmatprep.subr.bf16.mxu0 0
    %7440 = vmatpush2.bf16.msra.mxu0 0
    %7441 = vmatprep.subr.bf16.mxu0 0
    %7442 = vmatpush2.bf16.msra.mxu0 0
    %7443 = vmatprep.subr.bf16.mxu0 0
    %7444 = vmatpush2.bf16.msra.mxu0 0
    %7445 = vmatprep.subr.bf16.mxu0 0
    %7446 = vmatpush2.bf16.msra.mxu0 0
    %7447 = vmatprep.subr.bf16.mxu0 0
    %7448 = vmatpush2.bf16.msra.mxu0 0
    %7449 = vmatprep.subr.bf16.mxu0 0
    %7450 = vmatpush2.bf16.msra.mxu0 0
    %7451 = vmatprep.subr.bf16.mxu0 0
    %7452 = vmatpush2.bf16.msra.mxu0 0
    %7453 = vmatprep.mubr.bf16.mxu0 0
    %7454 = vmatmul.mubr.bf16.gmra.mxu0 %v6404
    %v7455 = vpop.f32.mrf.mxu0
    %v7456 = vadd.f32 %v6572, %v7455
    %v7457 = vpop.f32.mrf.mxu0
    %v7458 = vadd.f32 %v6576, %v7457
    %v7459 = vpop.f32.mrf.mxu0
    %v7460 = vpop.f32.mrf.mxu0
    %7461 = vdwg.mxu0
    %7462 = vmatprep.subr.bf16.mxu0 %v7124
    %7463 = vmatpush1.bf16.msra.mxu0 %v7123
    %7464 = vmatprep.subr.bf16.mxu0 %v7108
    %7465 = vmatpush1.bf16.msra.mxu0 %v7107
    %7466 = vmatprep.subr.bf16.mxu0 %v7092
    %7467 = vmatpush1.bf16.msra.mxu0 %v7091
    %7468 = vmatprep.subr.bf16.mxu0 %v7076
    %7469 = vmatpush1.bf16.msra.mxu0 %v7075
    %7470 = vmatprep.subr.bf16.mxu0 %v7060
    %7471 = vmatpush1.bf16.msra.mxu0 %v7059
    %7472 = vmatprep.subr.bf16.mxu0 %v7044
    %7473 = vmatpush1.bf16.msra.mxu0 %v7043
    %7474 = vmatprep.subr.bf16.mxu0 %v7028
    %7475 = vmatpush1.bf16.msra.mxu0 %v7027
    %7476 = vmatprep.subr.bf16.mxu0 %v7012
    %7477 = vmatpush1.bf16.msra.mxu0 %v7011
    %7478 = vmatprep.subr.bf16.mxu0 0
    %7479 = vmatpush2.bf16.msra.mxu0 0
    %7480 = vmatprep.subr.bf16.mxu0 0
    %7481 = vmatpush2.bf16.msra.mxu0 0
    %7482 = vmatprep.subr.bf16.mxu0 0
    %7483 = vmatpush2.bf16.msra.mxu0 0
    %7484 = vmatprep.subr.bf16.mxu0 0
    %7485 = vmatpush2.bf16.msra.mxu0 0
    %7486 = vmatprep.subr.bf16.mxu0 0
    %7487 = vmatpush2.bf16.msra.mxu0 0
    %7488 = vmatprep.subr.bf16.mxu0 0
    %7489 = vmatpush2.bf16.msra.mxu0 0
    %7490 = vmatprep.subr.bf16.mxu0 0
    %7491 = vmatpush2.bf16.msra.mxu0 0
    %7492 = vmatprep.subr.bf16.mxu0 0
    %7493 = vmatpush2.bf16.msra.mxu0 0
    %7494 = vmatprep.mubr.bf16.mxu0 0
    %7495 = vmatmul.mubr.bf16.gmra.mxu0 %v6404
    %v7496 = vpop.f32.mrf.mxu0
    %v7497 = vadd.f32 %v6580, %v7496
    %v7498 = vpop.f32.mrf.mxu0
    %v7499 = vadd.f32 %v6584, %v7498
    %v7500 = vpop.f32.mrf.mxu0
    %v7501 = vpop.f32.mrf.mxu0
    %7502 = vdwg.mxu0
    %7503 = vmatprep.subr.bf16.mxu0 %v7126
    %7504 = vmatpush1.bf16.msra.mxu0 %v7125
    %7505 = vmatprep.subr.bf16.mxu0 %v7110
    %7506 = vmatpush1.bf16.msra.mxu0 %v7109
    %7507 = vmatprep.subr.bf16.mxu0 %v7094
    %7508 = vmatpush1.bf16.msra.mxu0 %v7093
    %7509 = vmatprep.subr.bf16.mxu0 %v7078
    %7510 = vmatpush1.bf16.msra.mxu0 %v7077
    %7511 = vmatprep.subr.bf16.mxu0 %v7062
    %7512 = vmatpush1.bf16.msra.mxu0 %v7061
    %7513 = vmatprep.subr.bf16.mxu0 %v7046
    %7514 = vmatpush1.bf16.msra.mxu0 %v7045
    %7515 = vmatprep.subr.bf16.mxu0 %v7030
    %7516 = vmatpush1.bf16.msra.mxu0 %v7029
    %7517 = vmatprep.subr.bf16.mxu0 %v7014
    %7518 = vmatpush1.bf16.msra.mxu0 %v7013
    %7519 = vmatprep.subr.bf16.mxu0 0
    %7520 = vmatpush2.bf16.msra.mxu0 0
    %7521 = vmatprep.subr.bf16.mxu0 0
    %7522 = vmatpush2.bf16.msra.mxu0 0
    %7523 = vmatprep.subr.bf16.mxu0 0
    %7524 = vmatpush2.bf16.msra.mxu0 0
    %7525 = vmatprep.subr.bf16.mxu0 0
    %7526 = vmatpush2.bf16.msra.mxu0 0
    %7527 = vmatprep.subr.bf16.mxu0 0
    %7528 = vmatpush2.bf16.msra.mxu0 0
    %7529 = vmatprep.subr.bf16.mxu0 0
    %7530 = vmatpush2.bf16.msra.mxu0 0
    %7531 = vmatprep.subr.bf16.mxu0 0
    %7532 = vmatpush2.bf16.msra.mxu0 0
    %7533 = vmatprep.subr.bf16.mxu0 0
    %7534 = vmatpush2.bf16.msra.mxu0 0
    %7535 = vmatprep.mubr.bf16.mxu0 0
    %7536 = vmatmul.mubr.bf16.gmra.mxu0 %v6404
    %v7537 = vpop.f32.mrf.mxu0
    %v7538 = vadd.f32 %v6588, %v7537
    %v7539 = vpop.f32.mrf.mxu0
    %v7540 = vadd.f32 %v6592, %v7539
    %v7541 = vpop.f32.mrf.mxu0
    %v7542 = vpop.f32.mrf.mxu0
    %7543 = vdwg.mxu0
    %7544 = vmatprep.subr.bf16.mxu0 %v7128
    %7545 = vmatpush1.bf16.msra.mxu0 %v7127
    %7546 = vmatprep.subr.bf16.mxu0 %v7112
    %7547 = vmatpush1.bf16.msra.mxu0 %v7111
    %7548 = vmatprep.subr.bf16.mxu0 %v7096
    %7549 = vmatpush1.bf16.msra.mxu0 %v7095
    %7550 = vmatprep.subr.bf16.mxu0 %v7080
    %7551 = vmatpush1.bf16.msra.mxu0 %v7079
    %7552 = vmatprep.subr.bf16.mxu0 %v7064
    %7553 = vmatpush1.bf16.msra.mxu0 %v7063
    %7554 = vmatprep.subr.bf16.mxu0 %v7048
    %7555 = vmatpush1.bf16.msra.mxu0 %v7047
    %7556 = vmatprep.subr.bf16.mxu0 %v7032
    %7557 = vmatpush1.bf16.msra.mxu0 %v7031
    %7558 = vmatprep.subr.bf16.mxu0 %v7016
    %7559 = vmatpush1.bf16.msra.mxu0 %v7015
    %7560 = vmatprep.subr.bf16.mxu0 0
    %7561 = vmatpush2.bf16.msra.mxu0 0
    %7562 = vmatprep.subr.bf16.mxu0 0
    %7563 = vmatpush2.bf16.msra.mxu0 0
    %7564 = vmatprep.subr.bf16.mxu0 0
    %7565 = vmatpush2.bf16.msra.mxu0 0
    %7566 = vmatprep.subr.bf16.mxu0 0
    %7567 = vmatpush2.bf16.msra.mxu0 0
    %7568 = vmatprep.subr.bf16.mxu0 0
    %7569 = vmatpush2.bf16.msra.mxu0 0
    %7570 = vmatprep.subr.bf16.mxu0 0
    %7571 = vmatpush2.bf16.msra.mxu0 0
    %7572 = vmatprep.subr.bf16.mxu0 0
    %7573 = vmatpush2.bf16.msra.mxu0 0
    %7574 = vmatprep.subr.bf16.mxu0 0
    %7575 = vmatpush2.bf16.msra.mxu0 0
    %7576 = vmatprep.mubr.bf16.mxu0 0
    %7577 = vmatmul.mubr.bf16.gmra.mxu0 %v6404
    %v7578 = vpop.f32.mrf.mxu0
    %v7579 = vadd.f32 %v6596, %v7578
    %v7580 = vpop.f32.mrf.mxu0
    %v7581 = vadd.f32 %v6600, %v7580
    %v7582 = vpop.f32.mrf.mxu0
    %v7583 = vpop.f32.mrf.mxu0
    %7584 = vdwg.mxu0
    %v7585 = vsub.f32 0.0, %v7292
    %v7586 = vsub.f32 0.0, %v7294
    %v7587 = vsub.f32 0.0, %v7333
    %v7588 = vsub.f32 0.0, %v7335
    %v7589 = vsub.f32 0.0, %v7374
    %v7590 = vsub.f32 0.0, %v7376
    %v7591 = vsub.f32 0.0, %v7415
    %v7592 = vsub.f32 0.0, %v7417
    %v7593 = vsub.f32 0.0, %v7456
    %v7594 = vsub.f32 0.0, %v7458
    %v7595 = vsub.f32 0.0, %v7497
    %v7596 = vsub.f32 0.0, %v7499
    %v7597 = vsub.f32 0.0, %v7538
    %v7598 = vsub.f32 0.0, %v7540
    %v7599 = vsub.f32 0.0, %v7579
    %v7600 = vsub.f32 0.0, %v7581
    %v7601 = vmul.f32 %v7585, 1.442695
    %v7602 = vpow.pop %v7601
    %v7603 = vmul.f32 %v7586, 1.442695
    %v7604 = vpow.pop %v7603
    %v7605 = vmul.f32 %v7587, 1.442695
    %v7606 = vpow.pop %v7605
    %v7607 = vmul.f32 %v7588, 1.442695
    %v7608 = vpow.pop %v7607
    %v7609 = vmul.f32 %v7589, 1.442695
    %v7610 = vpow.pop %v7609
    %v7611 = vmul.f32 %v7590, 1.442695
    %v7612 = vpow.pop %v7611
    %v7613 = vmul.f32 %v7591, 1.442695
    %v7614 = vpow.pop %v7613
    %v7615 = vmul.f32 %v7592, 1.442695
    %v7616 = vpow.pop %v7615
    %v7617 = vmul.f32 %v7593, 1.442695
    %v7618 = vpow.pop %v7617
    %v7619 = vmul.f32 %v7594, 1.442695
    %v7620 = vpow.pop %v7619
    %v7621 = vmul.f32 %v7595, 1.442695
    %v7622 = vpow.pop %v7621
    %v7623 = vmul.f32 %v7596, 1.442695
    %v7624 = vpow.pop %v7623
    %v7625 = vmul.f32 %v7597, 1.442695
    %v7626 = vpow.pop %v7625
    %v7627 = vmul.f32 %v7598, 1.442695
    %v7628 = vpow.pop %v7627
    %v7629 = vmul.f32 %v7599, 1.442695
    %v7630 = vpow.pop %v7629
    %v7631 = vmul.f32 %v7600, 1.442695
    %v7632 = vpow.pop %v7631
    %v7633 = vadd.f32 %v7602, 1.0
    %v7634 = vadd.f32 %v7604, 1.0
    %v7635 = vadd.f32 %v7606, 1.0
    %v7636 = vadd.f32 %v7608, 1.0
    %v7637 = vadd.f32 %v7610, 1.0
    %v7638 = vadd.f32 %v7612, 1.0
    %v7639 = vadd.f32 %v7614, 1.0
    %v7640 = vadd.f32 %v7616, 1.0
    %v7641 = vadd.f32 %v7618, 1.0
    %v7642 = vadd.f32 %v7620, 1.0
    %v7643 = vadd.f32 %v7622, 1.0
    %v7644 = vadd.f32 %v7624, 1.0
    %v7645 = vadd.f32 %v7626, 1.0
    %v7646 = vadd.f32 %v7628, 1.0
    %v7647 = vadd.f32 %v7630, 1.0
    %v7648 = vadd.f32 %v7632, 1.0
    %v7649 = vrcp.pop %v7633
    %v7650 = vrcp.pop %v7634
    %v7651 = vrcp.pop %v7635
    %v7652 = vrcp.pop %v7636
    %v7653 = vrcp.pop %v7637
    %v7654 = vrcp.pop %v7638
    %v7655 = vrcp.pop %v7639
    %v7656 = vrcp.pop %v7640
    %v7657 = vrcp.pop %v7641
    %v7658 = vrcp.pop %v7642
    %v7659 = vrcp.pop %v7643
    %v7660 = vrcp.pop %v7644
    %v7661 = vrcp.pop %v7645
    %v7662 = vrcp.pop %v7646
    %v7663 = vrcp.pop %v7647
    %v7664 = vrcp.pop %v7648
    %v7665 = vpack.c.bf16 %v7649, %v7649
    %v7666 = vpack.c.bf16 %v7650, %v7650
    %v7667 = vpack.c.bf16 %v7651, %v7651
    %v7668 = vpack.c.bf16 %v7652, %v7652
    %v7669 = vpack.c.bf16 %v7653, %v7653
    %v7670 = vpack.c.bf16 %v7654, %v7654
    %v7671 = vpack.c.bf16 %v7655, %v7655
    %v7672 = vpack.c.bf16 %v7656, %v7656
    %v7673 = vpack.c.bf16 %v7657, %v7657
    %v7674 = vpack.c.bf16 %v7658, %v7658
    %v7675 = vpack.c.bf16 %v7659, %v7659
    %v7676 = vpack.c.bf16 %v7660, %v7660
    %v7677 = vpack.c.bf16 %v7661, %v7661
    %v7678 = vpack.c.bf16 %v7662, %v7662
    %v7679 = vpack.c.bf16 %v7663, %v7663
    %v7680 = vpack.c.bf16 %v7664, %v7664
    %v7697 = vunpack.c.l.b16 %v7665
    %v7698 = vunpack.c.l.b16 %v7666
    %v7699 = vunpack.c.l.b16 %v7667
    %v7700 = vunpack.c.l.b16 %v7668
    %v7701 = vunpack.c.l.b16 %v7669
    %v7702 = vunpack.c.l.b16 %v7670
    %v7703 = vunpack.c.l.b16 %v7671
    %v7704 = vunpack.c.l.b16 %v7672
    %v7705 = vunpack.c.l.b16 %v7673
    %v7706 = vunpack.c.l.b16 %v7674
    %v7707 = vunpack.c.l.b16 %v7675
    %v7708 = vunpack.c.l.b16 %v7676
    %v7709 = vunpack.c.l.b16 %v7677
    %v7710 = vunpack.c.l.b16 %v7678
    %v7711 = vunpack.c.l.b16 %v7679
    %v7712 = vunpack.c.l.b16 %v7680
    %v7713 = vpack.c.b16 %v7698, %v7697
    %v7714 = vpack.c.b16 %v7700, %v7699
    %v7715 = vpack.c.b16 %v7702, %v7701
    %v7716 = vpack.c.b16 %v7704, %v7703
    %v7717 = vpack.c.b16 %v7706, %v7705
    %v7718 = vpack.c.b16 %v7708, %v7707
    %v7719 = vpack.c.b16 %v7710, %v7709
    %v7720 = vpack.c.b16 %v7712, %v7711
    %7729 = vst [vmem:[#allocation25] sm:$0xff] %v7713
    %7730 = vst [vmem:[#allocation25 + $0x8] sm:$0xff] %v7714
    %7731 = vst [vmem:[#allocation25 + $0x10] sm:$0xff] %v7715
    %7732 = vst [vmem:[#allocation25 + $0x18] sm:$0xff] %v7716
    %7733 = vst [vmem:[#allocation25 + $0x20] sm:$0xff] %v7717
    %7734 = vst [vmem:[#allocation25 + $0x28] sm:$0xff] %v7718
    %7735 = vst [vmem:[#allocation25 + $0x30] sm:$0xff] %v7719
    %7736 = vst [vmem:[#allocation25 + $0x38] sm:$0xff] %v7720
    %v7737 = vld [vmem:[#allocation22 + $0x40] sm:$0xff]
    %v7738 = vld [vmem:[#allocation22 + $0x48] sm:$0xff]
    %v7739 = vld [vmem:[#allocation22 + $0x50] sm:$0xff]
    %v7740 = vld [vmem:[#allocation22 + $0x58] sm:$0xff]
    %v7741 = vld [vmem:[#allocation22 + $0x60] sm:$0xff]
    %v7742 = vld [vmem:[#allocation22 + $0x68] sm:$0xff]
    %v7743 = vld [vmem:[#allocation22 + $0x70] sm:$0xff]
    %v7744 = vld [vmem:[#allocation22 + $0x78] sm:$0xff]
    %v7745 = vld [vmem:[#allocation22 + $0x140] sm:$0xff]
    %v7746 = vld [vmem:[#allocation22 + $0x148] sm:$0xff]
    %v7747 = vld [vmem:[#allocation22 + $0x150] sm:$0xff]
    %v7748 = vld [vmem:[#allocation22 + $0x158] sm:$0xff]
    %v7749 = vld [vmem:[#allocation22 + $0x160] sm:$0xff]
    %v7750 = vld [vmem:[#allocation22 + $0x168] sm:$0xff]
    %v7751 = vld [vmem:[#allocation22 + $0x170] sm:$0xff]
    %v7752 = vld [vmem:[#allocation22 + $0x178] sm:$0xff]
    %v7753 = vld [vmem:[#allocation22 + $0x240] sm:$0xff]
    %v7754 = vld [vmem:[#allocation22 + $0x248] sm:$0xff]
    %v7755 = vld [vmem:[#allocation22 + $0x250] sm:$0xff]
    %v7756 = vld [vmem:[#allocation22 + $0x258] sm:$0xff]
    %v7757 = vld [vmem:[#allocation22 + $0x260] sm:$0xff]
    %v7758 = vld [vmem:[#allocation22 + $0x268] sm:$0xff]
    %v7759 = vld [vmem:[#allocation22 + $0x270] sm:$0xff]
    %v7760 = vld [vmem:[#allocation22 + $0x278] sm:$0xff]
    %v7761 = vld [vmem:[#allocation22 + $0x340] sm:$0xff]
    %v7762 = vld [vmem:[#allocation22 + $0x348] sm:$0xff]
    %v7763 = vld [vmem:[#allocation22 + $0x350] sm:$0xff]
    %v7764 = vld [vmem:[#allocation22 + $0x358] sm:$0xff]
    %v7765 = vld [vmem:[#allocation22 + $0x360] sm:$0xff]
    %v7766 = vld [vmem:[#allocation22 + $0x368] sm:$0xff]
    %v7767 = vld [vmem:[#allocation22 + $0x370] sm:$0xff]
    %v7768 = vld [vmem:[#allocation22 + $0x378] sm:$0xff]
    %v7769 = vld [vmem:[#allocation22 + $0x440] sm:$0xff]
    %v7770 = vld [vmem:[#allocation22 + $0x448] sm:$0xff]
    %v7771 = vld [vmem:[#allocation22 + $0x450] sm:$0xff]
    %v7772 = vld [vmem:[#allocation22 + $0x458] sm:$0xff]
    %v7773 = vld [vmem:[#allocation22 + $0x460] sm:$0xff]
    %v7774 = vld [vmem:[#allocation22 + $0x468] sm:$0xff]
    %v7775 = vld [vmem:[#allocation22 + $0x470] sm:$0xff]
    %v7776 = vld [vmem:[#allocation22 + $0x478] sm:$0xff]
    %v7777 = vld [vmem:[#allocation22 + $0x540] sm:$0xff]
    %v7778 = vld [vmem:[#allocation22 + $0x548] sm:$0xff]
    %v7779 = vld [vmem:[#allocation22 + $0x550] sm:$0xff]
    %v7780 = vld [vmem:[#allocation22 + $0x558] sm:$0xff]
    %v7781 = vld [vmem:[#allocation22 + $0x560] sm:$0xff]
    %v7782 = vld [vmem:[#allocation22 + $0x568] sm:$0xff]
    %v7783 = vld [vmem:[#allocation22 + $0x570] sm:$0xff]
    %v7784 = vld [vmem:[#allocation22 + $0x578] sm:$0xff]
    %v7785 = vld [vmem:[#allocation22 + $0x640] sm:$0xff]
    %v7786 = vld [vmem:[#allocation22 + $0x648] sm:$0xff]
    %v7787 = vld [vmem:[#allocation22 + $0x650] sm:$0xff]
    %v7788 = vld [vmem:[#allocation22 + $0x658] sm:$0xff]
    %v7789 = vld [vmem:[#allocation22 + $0x660] sm:$0xff]
    %v7790 = vld [vmem:[#allocation22 + $0x668] sm:$0xff]
    %v7791 = vld [vmem:[#allocation22 + $0x670] sm:$0xff]
    %v7792 = vld [vmem:[#allocation22 + $0x678] sm:$0xff]
    %v7793 = vld [vmem:[#allocation22 + $0x740] sm:$0xff]
    %v7794 = vld [vmem:[#allocation22 + $0x748] sm:$0xff]
    %v7795 = vld [vmem:[#allocation22 + $0x750] sm:$0xff]
    %v7796 = vld [vmem:[#allocation22 + $0x758] sm:$0xff]
    %v7797 = vld [vmem:[#allocation22 + $0x760] sm:$0xff]
    %v7798 = vld [vmem:[#allocation22 + $0x768] sm:$0xff]
    %v7799 = vld [vmem:[#allocation22 + $0x770] sm:$0xff]
    %v7800 = vld [vmem:[#allocation22 + $0x778] sm:$0xff]
    %v7801 = vld [vmem:[#allocation22 + $0x840] sm:$0xff]
    %v7802 = vld [vmem:[#allocation22 + $0x848] sm:$0xff]
    %v7803 = vld [vmem:[#allocation22 + $0x850] sm:$0xff]
    %v7804 = vld [vmem:[#allocation22 + $0x858] sm:$0xff]
    %v7805 = vld [vmem:[#allocation22 + $0x860] sm:$0xff]
    %v7806 = vld [vmem:[#allocation22 + $0x868] sm:$0xff]
    %v7807 = vld [vmem:[#allocation22 + $0x870] sm:$0xff]
    %v7808 = vld [vmem:[#allocation22 + $0x878] sm:$0xff]
    %v7809 = vld [vmem:[#allocation22 + $0x940] sm:$0xff]
    %v7810 = vld [vmem:[#allocation22 + $0x948] sm:$0xff]
    %v7811 = vld [vmem:[#allocation22 + $0x950] sm:$0xff]
    %v7812 = vld [vmem:[#allocation22 + $0x958] sm:$0xff]
    %v7813 = vld [vmem:[#allocation22 + $0x960] sm:$0xff]
    %v7814 = vld [vmem:[#allocation22 + $0x968] sm:$0xff]
    %v7815 = vld [vmem:[#allocation22 + $0x970] sm:$0xff]
    %v7816 = vld [vmem:[#allocation22 + $0x978] sm:$0xff]
    %v7817 = vld [vmem:[#allocation22 + $0xa40] sm:$0xff]
    %v7818 = vld [vmem:[#allocation22 + $0xa48] sm:$0xff]
    %v7819 = vld [vmem:[#allocation22 + $0xa50] sm:$0xff]
    %v7820 = vld [vmem:[#allocation22 + $0xa58] sm:$0xff]
    %v7821 = vld [vmem:[#allocation22 + $0xa60] sm:$0xff]
    %v7822 = vld [vmem:[#allocation22 + $0xa68] sm:$0xff]
    %v7823 = vld [vmem:[#allocation22 + $0xa70] sm:$0xff]
    %v7824 = vld [vmem:[#allocation22 + $0xa78] sm:$0xff]
    %v7825 = vld [vmem:[#allocation22 + $0xb40] sm:$0xff]
    %v7826 = vld [vmem:[#allocation22 + $0xb48] sm:$0xff]
    %v7827 = vld [vmem:[#allocation22 + $0xb50] sm:$0xff]
    %v7828 = vld [vmem:[#allocation22 + $0xb58] sm:$0xff]
    %v7829 = vld [vmem:[#allocation22 + $0xb60] sm:$0xff]
    %v7830 = vld [vmem:[#allocation22 + $0xb68] sm:$0xff]
    %v7831 = vld [vmem:[#allocation22 + $0xb70] sm:$0xff]
    %v7832 = vld [vmem:[#allocation22 + $0xb78] sm:$0xff]
    %v7833 = vld [vmem:[#allocation22 + $0xc40] sm:$0xff]
    %v7834 = vld [vmem:[#allocation22 + $0xc48] sm:$0xff]
    %v7835 = vld [vmem:[#allocation22 + $0xc50] sm:$0xff]
    %v7836 = vld [vmem:[#allocation22 + $0xc58] sm:$0xff]
    %v7837 = vld [vmem:[#allocation22 + $0xc60] sm:$0xff]
    %v7838 = vld [vmem:[#allocation22 + $0xc68] sm:$0xff]
    %v7839 = vld [vmem:[#allocation22 + $0xc70] sm:$0xff]
    %v7840 = vld [vmem:[#allocation22 + $0xc78] sm:$0xff]
    %v7841 = vld [vmem:[#allocation22 + $0xd40] sm:$0xff]
    %v7842 = vld [vmem:[#allocation22 + $0xd48] sm:$0xff]
    %v7843 = vld [vmem:[#allocation22 + $0xd50] sm:$0xff]
    %v7844 = vld [vmem:[#allocation22 + $0xd58] sm:$0xff]
    %v7845 = vld [vmem:[#allocation22 + $0xd60] sm:$0xff]
    %v7846 = vld [vmem:[#allocation22 + $0xd68] sm:$0xff]
    %v7847 = vld [vmem:[#allocation22 + $0xd70] sm:$0xff]
    %v7848 = vld [vmem:[#allocation22 + $0xd78] sm:$0xff]
    %v7849 = vld [vmem:[#allocation22 + $0xe40] sm:$0xff]
    %v7850 = vld [vmem:[#allocation22 + $0xe48] sm:$0xff]
    %v7851 = vld [vmem:[#allocation22 + $0xe50] sm:$0xff]
    %v7852 = vld [vmem:[#allocation22 + $0xe58] sm:$0xff]
    %v7853 = vld [vmem:[#allocation22 + $0xe60] sm:$0xff]
    %v7854 = vld [vmem:[#allocation22 + $0xe68] sm:$0xff]
    %v7855 = vld [vmem:[#allocation22 + $0xe70] sm:$0xff]
    %v7856 = vld [vmem:[#allocation22 + $0xe78] sm:$0xff]
    %v7857 = vld [vmem:[#allocation22 + $0xf40] sm:$0xff]
    %v7858 = vld [vmem:[#allocation22 + $0xf48] sm:$0xff]
    %v7859 = vld [vmem:[#allocation22 + $0xf50] sm:$0xff]
    %v7860 = vld [vmem:[#allocation22 + $0xf58] sm:$0xff]
    %v7861 = vld [vmem:[#allocation22 + $0xf60] sm:$0xff]
    %v7862 = vld [vmem:[#allocation22 + $0xf68] sm:$0xff]
    %v7863 = vld [vmem:[#allocation22 + $0xf70] sm:$0xff]
    %v7864 = vld [vmem:[#allocation22 + $0xf78] sm:$0xff]
    %v7865 = vld [vmem:[#allocation23 + $0x10] sm:$0xff]
    %v7866 = vld [vmem:[#allocation23 + $0x18] sm:$0xff]
    %v7869 = vlaneseq
    %v7870 = vshrl.u32 %v7869, 7
    %v7871 = vsub.s32 0, %v7870
    %v7872 = vrot.slane %v7865, %v7871
    %v7873 = vlaneseq
    %v7874 = vshrl.u32 %v7873, 7
    %v7875 = vsub.s32 1, %v7874
    %v7876 = vrot.slane %v7865, %v7875
    %v7877 = vlaneseq
    %v7878 = vshrl.u32 %v7877, 7
    %v7879 = vsub.s32 2, %v7878
    %v7880 = vrot.slane %v7865, %v7879
    %v7881 = vlaneseq
    %v7882 = vshrl.u32 %v7881, 7
    %v7883 = vsub.s32 3, %v7882
    %v7884 = vrot.slane %v7865, %v7883
    %v7885 = vlaneseq
    %v7886 = vshrl.u32 %v7885, 7
    %v7887 = vsub.s32 4, %v7886
    %v7888 = vrot.slane %v7865, %v7887
    %v7889 = vlaneseq
    %v7890 = vshrl.u32 %v7889, 7
    %v7891 = vsub.s32 5, %v7890
    %v7892 = vrot.slane %v7865, %v7891
    %v7893 = vlaneseq
    %v7894 = vshrl.u32 %v7893, 7
    %v7895 = vsub.s32 6, %v7894
    %v7896 = vrot.slane %v7865, %v7895
    %v7897 = vlaneseq
    %v7898 = vshrl.u32 %v7897, 7
    %v7899 = vsub.s32 7, %v7898
    %v7900 = vrot.slane %v7865, %v7899
    %v7901 = vlaneseq
    %v7902 = vshrl.u32 %v7901, 7
    %v7903 = vsub.s32 0, %v7902
    %v7904 = vrot.slane %v7866, %v7903
    %v7905 = vlaneseq
    %v7906 = vshrl.u32 %v7905, 7
    %v7907 = vsub.s32 1, %v7906
    %v7908 = vrot.slane %v7866, %v7907
    %v7909 = vlaneseq
    %v7910 = vshrl.u32 %v7909, 7
    %v7911 = vsub.s32 2, %v7910
    %v7912 = vrot.slane %v7866, %v7911
    %v7913 = vlaneseq
    %v7914 = vshrl.u32 %v7913, 7
    %v7915 = vsub.s32 3, %v7914
    %v7916 = vrot.slane %v7866, %v7915
    %v7917 = vlaneseq
    %v7918 = vshrl.u32 %v7917, 7
    %v7919 = vsub.s32 4, %v7918
    %v7920 = vrot.slane %v7866, %v7919
    %v7921 = vlaneseq
    %v7922 = vshrl.u32 %v7921, 7
    %v7923 = vsub.s32 5, %v7922
    %v7924 = vrot.slane %v7866, %v7923
    %v7925 = vlaneseq
    %v7926 = vshrl.u32 %v7925, 7
    %v7927 = vsub.s32 6, %v7926
    %v7928 = vrot.slane %v7866, %v7927
    %v7929 = vlaneseq
    %v7930 = vshrl.u32 %v7929, 7
    %v7931 = vsub.s32 7, %v7930
    %v7932 = vrot.slane %v7866, %v7931
    %v8077 = vunpack.c.l.b16 %v7737
    %v8078 = vunpack.c.h.b16 %v7737
    %v8079 = vunpack.c.l.b16 %v7738
    %v8080 = vunpack.c.h.b16 %v7738
    %v8081 = vunpack.c.l.b16 %v7739
    %v8082 = vunpack.c.h.b16 %v7739
    %v8083 = vunpack.c.l.b16 %v7740
    %v8084 = vunpack.c.h.b16 %v7740
    %v8085 = vunpack.c.l.b16 %v7741
    %v8086 = vunpack.c.h.b16 %v7741
    %v8087 = vunpack.c.l.b16 %v7742
    %v8088 = vunpack.c.h.b16 %v7742
    %v8089 = vunpack.c.l.b16 %v7743
    %v8090 = vunpack.c.h.b16 %v7743
    %v8091 = vunpack.c.l.b16 %v7744
    %v8092 = vunpack.c.h.b16 %v7744
    %v8093 = vunpack.c.l.b16 %v7745
    %v8094 = vunpack.c.h.b16 %v7745
    %v8095 = vunpack.c.l.b16 %v7746
    %v8096 = vunpack.c.h.b16 %v7746
    %v8097 = vunpack.c.l.b16 %v7747
    %v8098 = vunpack.c.h.b16 %v7747
    %v8099 = vunpack.c.l.b16 %v7748
    %v8100 = vunpack.c.h.b16 %v7748
    %v8101 = vunpack.c.l.b16 %v7749
    %v8102 = vunpack.c.h.b16 %v7749
    %v8103 = vunpack.c.l.b16 %v7750
    %v8104 = vunpack.c.h.b16 %v7750
    %v8105 = vunpack.c.l.b16 %v7751
    %v8106 = vunpack.c.h.b16 %v7751
    %v8107 = vunpack.c.l.b16 %v7752
    %v8108 = vunpack.c.h.b16 %v7752
    %v8109 = vunpack.c.l.b16 %v7753
    %v8110 = vunpack.c.h.b16 %v7753
    %v8111 = vunpack.c.l.b16 %v7754
    %v8112 = vunpack.c.h.b16 %v7754
    %v8113 = vunpack.c.l.b16 %v7755
    %v8114 = vunpack.c.h.b16 %v7755
    %v8115 = vunpack.c.l.b16 %v7756
    %v8116 = vunpack.c.h.b16 %v7756
    %v8117 = vunpack.c.l.b16 %v7757
    %v8118 = vunpack.c.h.b16 %v7757
    %v8119 = vunpack.c.l.b16 %v7758
    %v8120 = vunpack.c.h.b16 %v7758
    %v8121 = vunpack.c.l.b16 %v7759
    %v8122 = vunpack.c.h.b16 %v7759
    %v8123 = vunpack.c.l.b16 %v7760
    %v8124 = vunpack.c.h.b16 %v7760
    %v8125 = vunpack.c.l.b16 %v7761
    %v8126 = vunpack.c.h.b16 %v7761
    %v8127 = vunpack.c.l.b16 %v7762
    %v8128 = vunpack.c.h.b16 %v7762
    %v8129 = vunpack.c.l.b16 %v7763
    %v8130 = vunpack.c.h.b16 %v7763
    %v8131 = vunpack.c.l.b16 %v7764
    %v8132 = vunpack.c.h.b16 %v7764
    %v8133 = vunpack.c.l.b16 %v7765
    %v8134 = vunpack.c.h.b16 %v7765
    %v8135 = vunpack.c.l.b16 %v7766
    %v8136 = vunpack.c.h.b16 %v7766
    %v8137 = vunpack.c.l.b16 %v7767
    %v8138 = vunpack.c.h.b16 %v7767
    %v8139 = vunpack.c.l.b16 %v7768
    %v8140 = vunpack.c.h.b16 %v7768
    %v8141 = vunpack.c.l.b16 %v7769
    %v8142 = vunpack.c.h.b16 %v7769
    %v8143 = vunpack.c.l.b16 %v7770
    %v8144 = vunpack.c.h.b16 %v7770
    %v8145 = vunpack.c.l.b16 %v7771
    %v8146 = vunpack.c.h.b16 %v7771
    %v8147 = vunpack.c.l.b16 %v7772
    %v8148 = vunpack.c.h.b16 %v7772
    %v8149 = vunpack.c.l.b16 %v7773
    %v8150 = vunpack.c.h.b16 %v7773
    %v8151 = vunpack.c.l.b16 %v7774
    %v8152 = vunpack.c.h.b16 %v7774
    %v8153 = vunpack.c.l.b16 %v7775
    %v8154 = vunpack.c.h.b16 %v7775
    %v8155 = vunpack.c.l.b16 %v7776
    %v8156 = vunpack.c.h.b16 %v7776
    %v8157 = vunpack.c.l.b16 %v7777
    %v8158 = vunpack.c.h.b16 %v7777
    %v8159 = vunpack.c.l.b16 %v7778
    %v8160 = vunpack.c.h.b16 %v7778
    %v8161 = vunpack.c.l.b16 %v7779
    %v8162 = vunpack.c.h.b16 %v7779
    %v8163 = vunpack.c.l.b16 %v7780
    %v8164 = vunpack.c.h.b16 %v7780
    %v8165 = vunpack.c.l.b16 %v7781
    %v8166 = vunpack.c.h.b16 %v7781
    %v8167 = vunpack.c.l.b16 %v7782
    %v8168 = vunpack.c.h.b16 %v7782
    %v8169 = vunpack.c.l.b16 %v7783
    %v8170 = vunpack.c.h.b16 %v7783
    %v8171 = vunpack.c.l.b16 %v7784
    %v8172 = vunpack.c.h.b16 %v7784
    %v8173 = vunpack.c.l.b16 %v7785
    %v8174 = vunpack.c.h.b16 %v7785
    %v8175 = vunpack.c.l.b16 %v7786
    %v8176 = vunpack.c.h.b16 %v7786
    %v8177 = vunpack.c.l.b16 %v7787
    %v8178 = vunpack.c.h.b16 %v7787
    %v8179 = vunpack.c.l.b16 %v7788
    %v8180 = vunpack.c.h.b16 %v7788
    %v8181 = vunpack.c.l.b16 %v7789
    %v8182 = vunpack.c.h.b16 %v7789
    %v8183 = vunpack.c.l.b16 %v7790
    %v8184 = vunpack.c.h.b16 %v7790
    %v8185 = vunpack.c.l.b16 %v7791
    %v8186 = vunpack.c.h.b16 %v7791
    %v8187 = vunpack.c.l.b16 %v7792
    %v8188 = vunpack.c.h.b16 %v7792
    %v8189 = vunpack.c.l.b16 %v7793
    %v8190 = vunpack.c.h.b16 %v7793
    %v8191 = vunpack.c.l.b16 %v7794
    %v8192 = vunpack.c.h.b16 %v7794
    %v8193 = vunpack.c.l.b16 %v7795
    %v8194 = vunpack.c.h.b16 %v7795
    %v8195 = vunpack.c.l.b16 %v7796
    %v8196 = vunpack.c.h.b16 %v7796
    %v8197 = vunpack.c.l.b16 %v7797
    %v8198 = vunpack.c.h.b16 %v7797
    %v8199 = vunpack.c.l.b16 %v7798
    %v8200 = vunpack.c.h.b16 %v7798
    %v8201 = vunpack.c.l.b16 %v7799
    %v8202 = vunpack.c.h.b16 %v7799
    %v8203 = vunpack.c.l.b16 %v7800
    %v8204 = vunpack.c.h.b16 %v7800
    %v8205 = vunpack.c.l.b16 %v7801
    %v8206 = vunpack.c.h.b16 %v7801
    %v8207 = vunpack.c.l.b16 %v7802
    %v8208 = vunpack.c.h.b16 %v7802
    %v8209 = vunpack.c.l.b16 %v7803
    %v8210 = vunpack.c.h.b16 %v7803
    %v8211 = vunpack.c.l.b16 %v7804
    %v8212 = vunpack.c.h.b16 %v7804
    %v8213 = vunpack.c.l.b16 %v7805
    %v8214 = vunpack.c.h.b16 %v7805
    %v8215 = vunpack.c.l.b16 %v7806
    %v8216 = vunpack.c.h.b16 %v7806
    %v8217 = vunpack.c.l.b16 %v7807
    %v8218 = vunpack.c.h.b16 %v7807
    %v8219 = vunpack.c.l.b16 %v7808
    %v8220 = vunpack.c.h.b16 %v7808
    %v8221 = vunpack.c.l.b16 %v7809
    %v8222 = vunpack.c.h.b16 %v7809
    %v8223 = vunpack.c.l.b16 %v7810
    %v8224 = vunpack.c.h.b16 %v7810
    %v8225 = vunpack.c.l.b16 %v7811
    %v8226 = vunpack.c.h.b16 %v7811
    %v8227 = vunpack.c.l.b16 %v7812
    %v8228 = vunpack.c.h.b16 %v7812
    %v8229 = vunpack.c.l.b16 %v7813
    %v8230 = vunpack.c.h.b16 %v7813
    %v8231 = vunpack.c.l.b16 %v7814
    %v8232 = vunpack.c.h.b16 %v7814
    %v8233 = vunpack.c.l.b16 %v7815
    %v8234 = vunpack.c.h.b16 %v7815
    %v8235 = vunpack.c.l.b16 %v7816
    %v8236 = vunpack.c.h.b16 %v7816
    %v8237 = vunpack.c.l.b16 %v7817
    %v8238 = vunpack.c.h.b16 %v7817
    %v8239 = vunpack.c.l.b16 %v7818
    %v8240 = vunpack.c.h.b16 %v7818
    %v8241 = vunpack.c.l.b16 %v7819
    %v8242 = vunpack.c.h.b16 %v7819
    %v8243 = vunpack.c.l.b16 %v7820
    %v8244 = vunpack.c.h.b16 %v7820
    %v8245 = vunpack.c.l.b16 %v7821
    %v8246 = vunpack.c.h.b16 %v7821
    %v8247 = vunpack.c.l.b16 %v7822
    %v8248 = vunpack.c.h.b16 %v7822
    %v8249 = vunpack.c.l.b16 %v7823
    %v8250 = vunpack.c.h.b16 %v7823
    %v8251 = vunpack.c.l.b16 %v7824
    %v8252 = vunpack.c.h.b16 %v7824
    %v8253 = vunpack.c.l.b16 %v7825
    %v8254 = vunpack.c.h.b16 %v7825
    %v8255 = vunpack.c.l.b16 %v7826
    %v8256 = vunpack.c.h.b16 %v7826
    %v8257 = vunpack.c.l.b16 %v7827
    %v8258 = vunpack.c.h.b16 %v7827
    %v8259 = vunpack.c.l.b16 %v7828
    %v8260 = vunpack.c.h.b16 %v7828
    %v8261 = vunpack.c.l.b16 %v7829
    %v8262 = vunpack.c.h.b16 %v7829
    %v8263 = vunpack.c.l.b16 %v7830
    %v8264 = vunpack.c.h.b16 %v7830
    %v8265 = vunpack.c.l.b16 %v7831
    %v8266 = vunpack.c.h.b16 %v7831
    %v8267 = vunpack.c.l.b16 %v7832
    %v8268 = vunpack.c.h.b16 %v7832
    %v8269 = vunpack.c.l.b16 %v7833
    %v8270 = vunpack.c.h.b16 %v7833
    %v8271 = vunpack.c.l.b16 %v7834
    %v8272 = vunpack.c.h.b16 %v7834
    %v8273 = vunpack.c.l.b16 %v7835
    %v8274 = vunpack.c.h.b16 %v7835
    %v8275 = vunpack.c.l.b16 %v7836
    %v8276 = vunpack.c.h.b16 %v7836
    %v8277 = vunpack.c.l.b16 %v7837
    %v8278 = vunpack.c.h.b16 %v7837
    %v8279 = vunpack.c.l.b16 %v7838
    %v8280 = vunpack.c.h.b16 %v7838
    %v8281 = vunpack.c.l.b16 %v7839
    %v8282 = vunpack.c.h.b16 %v7839
    %v8283 = vunpack.c.l.b16 %v7840
    %v8284 = vunpack.c.h.b16 %v7840
    %v8285 = vunpack.c.l.b16 %v7841
    %v8286 = vunpack.c.h.b16 %v7841
    %v8287 = vunpack.c.l.b16 %v7842
    %v8288 = vunpack.c.h.b16 %v7842
    %v8289 = vunpack.c.l.b16 %v7843
    %v8290 = vunpack.c.h.b16 %v7843
    %v8291 = vunpack.c.l.b16 %v7844
    %v8292 = vunpack.c.h.b16 %v7844
    %v8293 = vunpack.c.l.b16 %v7845
    %v8294 = vunpack.c.h.b16 %v7845
    %v8295 = vunpack.c.l.b16 %v7846
    %v8296 = vunpack.c.h.b16 %v7846
    %v8297 = vunpack.c.l.b16 %v7847
    %v8298 = vunpack.c.h.b16 %v7847
    %v8299 = vunpack.c.l.b16 %v7848
    %v8300 = vunpack.c.h.b16 %v7848
    %v8301 = vunpack.c.l.b16 %v7849
    %v8302 = vunpack.c.h.b16 %v7849
    %v8303 = vunpack.c.l.b16 %v7850
    %v8304 = vunpack.c.h.b16 %v7850
    %v8305 = vunpack.c.l.b16 %v7851
    %v8306 = vunpack.c.h.b16 %v7851
    %v8307 = vunpack.c.l.b16 %v7852
    %v8308 = vunpack.c.h.b16 %v7852
    %v8309 = vunpack.c.l.b16 %v7853
    %v8310 = vunpack.c.h.b16 %v7853
    %v8311 = vunpack.c.l.b16 %v7854
    %v8312 = vunpack.c.h.b16 %v7854
    %v8313 = vunpack.c.l.b16 %v7855
    %v8314 = vunpack.c.h.b16 %v7855
    %v8315 = vunpack.c.l.b16 %v7856
    %v8316 = vunpack.c.h.b16 %v7856
    %v8317 = vunpack.c.l.b16 %v7857
    %v8318 = vunpack.c.h.b16 %v7857
    %v8319 = vunpack.c.l.b16 %v7858
    %v8320 = vunpack.c.h.b16 %v7858
    %v8321 = vunpack.c.l.b16 %v7859
    %v8322 = vunpack.c.h.b16 %v7859
    %v8323 = vunpack.c.l.b16 %v7860
    %v8324 = vunpack.c.h.b16 %v7860
    %v8325 = vunpack.c.l.b16 %v7861
    %v8326 = vunpack.c.h.b16 %v7861
    %v8327 = vunpack.c.l.b16 %v7862
    %v8328 = vunpack.c.h.b16 %v7862
    %v8329 = vunpack.c.l.b16 %v7863
    %v8330 = vunpack.c.h.b16 %v7863
    %v8331 = vunpack.c.l.b16 %v7864
    %v8332 = vunpack.c.h.b16 %v7864
    %v8333 = vpack.c.b16 %v8093, %v8077
    %v8334 = vpack.c.b16 %v8094, %v8078
    %v8335 = vpack.c.b16 %v8095, %v8079
    %v8336 = vpack.c.b16 %v8096, %v8080
    %v8337 = vpack.c.b16 %v8097, %v8081
    %v8338 = vpack.c.b16 %v8098, %v8082
    %v8339 = vpack.c.b16 %v8099, %v8083
    %v8340 = vpack.c.b16 %v8100, %v8084
    %v8341 = vpack.c.b16 %v8101, %v8085
    %v8342 = vpack.c.b16 %v8102, %v8086
    %v8343 = vpack.c.b16 %v8103, %v8087
    %v8344 = vpack.c.b16 %v8104, %v8088
    %v8345 = vpack.c.b16 %v8105, %v8089
    %v8346 = vpack.c.b16 %v8106, %v8090
    %v8347 = vpack.c.b16 %v8107, %v8091
    %v8348 = vpack.c.b16 %v8108, %v8092
    %v8349 = vpack.c.b16 %v8125, %v8109
    %v8350 = vpack.c.b16 %v8126, %v8110
    %v8351 = vpack.c.b16 %v8127, %v8111
    %v8352 = vpack.c.b16 %v8128, %v8112
    %v8353 = vpack.c.b16 %v8129, %v8113
    %v8354 = vpack.c.b16 %v8130, %v8114
    %v8355 = vpack.c.b16 %v8131, %v8115
    %v8356 = vpack.c.b16 %v8132, %v8116
    %v8357 = vpack.c.b16 %v8133, %v8117
    %v8358 = vpack.c.b16 %v8134, %v8118
    %v8359 = vpack.c.b16 %v8135, %v8119
    %v8360 = vpack.c.b16 %v8136, %v8120
    %v8361 = vpack.c.b16 %v8137, %v8121
    %v8362 = vpack.c.b16 %v8138, %v8122
    %v8363 = vpack.c.b16 %v8139, %v8123
    %v8364 = vpack.c.b16 %v8140, %v8124
    %v8365 = vpack.c.b16 %v8157, %v8141
    %v8366 = vpack.c.b16 %v8158, %v8142
    %v8367 = vpack.c.b16 %v8159, %v8143
    %v8368 = vpack.c.b16 %v8160, %v8144
    %v8369 = vpack.c.b16 %v8161, %v8145
    %v8370 = vpack.c.b16 %v8162, %v8146
    %v8371 = vpack.c.b16 %v8163, %v8147
    %v8372 = vpack.c.b16 %v8164, %v8148
    %v8373 = vpack.c.b16 %v8165, %v8149
    %v8374 = vpack.c.b16 %v8166, %v8150
    %v8375 = vpack.c.b16 %v8167, %v8151
    %v8376 = vpack.c.b16 %v8168, %v8152
    %v8377 = vpack.c.b16 %v8169, %v8153
    %v8378 = vpack.c.b16 %v8170, %v8154
    %v8379 = vpack.c.b16 %v8171, %v8155
    %v8380 = vpack.c.b16 %v8172, %v8156
    %v8381 = vpack.c.b16 %v8189, %v8173
    %v8382 = vpack.c.b16 %v8190, %v8174
    %v8383 = vpack.c.b16 %v8191, %v8175
    %v8384 = vpack.c.b16 %v8192, %v8176
    %v8385 = vpack.c.b16 %v8193, %v8177
    %v8386 = vpack.c.b16 %v8194, %v8178
    %v8387 = vpack.c.b16 %v8195, %v8179
    %v8388 = vpack.c.b16 %v8196, %v8180
    %v8389 = vpack.c.b16 %v8197, %v8181
    %v8390 = vpack.c.b16 %v8198, %v8182
    %v8391 = vpack.c.b16 %v8199, %v8183
    %v8392 = vpack.c.b16 %v8200, %v8184
    %v8393 = vpack.c.b16 %v8201, %v8185
    %v8394 = vpack.c.b16 %v8202, %v8186
    %v8395 = vpack.c.b16 %v8203, %v8187
    %v8396 = vpack.c.b16 %v8204, %v8188
    %v8397 = vpack.c.b16 %v8221, %v8205
    %v8398 = vpack.c.b16 %v8222, %v8206
    %v8399 = vpack.c.b16 %v8223, %v8207
    %v8400 = vpack.c.b16 %v8224, %v8208
    %v8401 = vpack.c.b16 %v8225, %v8209
    %v8402 = vpack.c.b16 %v8226, %v8210
    %v8403 = vpack.c.b16 %v8227, %v8211
    %v8404 = vpack.c.b16 %v8228, %v8212
    %v8405 = vpack.c.b16 %v8229, %v8213
    %v8406 = vpack.c.b16 %v8230, %v8214
    %v8407 = vpack.c.b16 %v8231, %v8215
    %v8408 = vpack.c.b16 %v8232, %v8216
    %v8409 = vpack.c.b16 %v8233, %v8217
    %v8410 = vpack.c.b16 %v8234, %v8218
    %v8411 = vpack.c.b16 %v8235, %v8219
    %v8412 = vpack.c.b16 %v8236, %v8220
    %v8413 = vpack.c.b16 %v8253, %v8237
    %v8414 = vpack.c.b16 %v8254, %v8238
    %v8415 = vpack.c.b16 %v8255, %v8239
    %v8416 = vpack.c.b16 %v8256, %v8240
    %v8417 = vpack.c.b16 %v8257, %v8241
    %v8418 = vpack.c.b16 %v8258, %v8242
    %v8419 = vpack.c.b16 %v8259, %v8243
    %v8420 = vpack.c.b16 %v8260, %v8244
    %v8421 = vpack.c.b16 %v8261, %v8245
    %v8422 = vpack.c.b16 %v8262, %v8246
    %v8423 = vpack.c.b16 %v8263, %v8247
    %v8424 = vpack.c.b16 %v8264, %v8248
    %v8425 = vpack.c.b16 %v8265, %v8249
    %v8426 = vpack.c.b16 %v8266, %v8250
    %v8427 = vpack.c.b16 %v8267, %v8251
    %v8428 = vpack.c.b16 %v8268, %v8252
    %v8429 = vpack.c.b16 %v8285, %v8269
    %v8430 = vpack.c.b16 %v8286, %v8270
    %v8431 = vpack.c.b16 %v8287, %v8271
    %v8432 = vpack.c.b16 %v8288, %v8272
    %v8433 = vpack.c.b16 %v8289, %v8273
    %v8434 = vpack.c.b16 %v8290, %v8274
    %v8435 = vpack.c.b16 %v8291, %v8275
    %v8436 = vpack.c.b16 %v8292, %v8276
    %v8437 = vpack.c.b16 %v8293, %v8277
    %v8438 = vpack.c.b16 %v8294, %v8278
    %v8439 = vpack.c.b16 %v8295, %v8279
    %v8440 = vpack.c.b16 %v8296, %v8280
    %v8441 = vpack.c.b16 %v8297, %v8281
    %v8442 = vpack.c.b16 %v8298, %v8282
    %v8443 = vpack.c.b16 %v8299, %v8283
    %v8444 = vpack.c.b16 %v8300, %v8284
    %v8445 = vpack.c.b16 %v8317, %v8301
    %v8446 = vpack.c.b16 %v8318, %v8302
    %v8447 = vpack.c.b16 %v8319, %v8303
    %v8448 = vpack.c.b16 %v8320, %v8304
    %v8449 = vpack.c.b16 %v8321, %v8305
    %v8450 = vpack.c.b16 %v8322, %v8306
    %v8451 = vpack.c.b16 %v8323, %v8307
    %v8452 = vpack.c.b16 %v8324, %v8308
    %v8453 = vpack.c.b16 %v8325, %v8309
    %v8454 = vpack.c.b16 %v8326, %v8310
    %v8455 = vpack.c.b16 %v8327, %v8311
    %v8456 = vpack.c.b16 %v8328, %v8312
    %v8457 = vpack.c.b16 %v8329, %v8313
    %v8458 = vpack.c.b16 %v8330, %v8314
    %v8459 = vpack.c.b16 %v8331, %v8315
    %v8460 = vpack.c.b16 %v8332, %v8316
    %8589 = vmatprep.subr.bf16.mxu0 %v8446
    %8590 = vmatpush1.bf16.msra.mxu0 %v8445
    %8591 = vmatprep.subr.bf16.mxu0 %v8430
    %8592 = vmatpush1.bf16.msra.mxu0 %v8429
    %8593 = vmatprep.subr.bf16.mxu0 %v8414
    %8594 = vmatpush1.bf16.msra.mxu0 %v8413
    %8595 = vmatprep.subr.bf16.mxu0 %v8398
    %8596 = vmatpush1.bf16.msra.mxu0 %v8397
    %8597 = vmatprep.subr.bf16.mxu0 %v8382
    %8598 = vmatpush1.bf16.msra.mxu0 %v8381
    %8599 = vmatprep.subr.bf16.mxu0 %v8366
    %8600 = vmatpush1.bf16.msra.mxu0 %v8365
    %8601 = vmatprep.subr.bf16.mxu0 %v8350
    %8602 = vmatpush1.bf16.msra.mxu0 %v8349
    %8603 = vmatprep.subr.bf16.mxu0 %v8334
    %8604 = vmatpush1.bf16.msra.mxu0 %v8333
    %8605 = vmatprep.subr.bf16.mxu0 0
    %8606 = vmatpush2.bf16.msra.mxu0 0
    %8607 = vmatprep.subr.bf16.mxu0 0
    %8608 = vmatpush2.bf16.msra.mxu0 0
    %8609 = vmatprep.subr.bf16.mxu0 0
    %8610 = vmatpush2.bf16.msra.mxu0 0
    %8611 = vmatprep.subr.bf16.mxu0 0
    %8612 = vmatpush2.bf16.msra.mxu0 0
    %8613 = vmatprep.subr.bf16.mxu0 0
    %8614 = vmatpush2.bf16.msra.mxu0 0
    %8615 = vmatprep.subr.bf16.mxu0 0
    %8616 = vmatpush2.bf16.msra.mxu0 0
    %8617 = vmatprep.subr.bf16.mxu0 0
    %8618 = vmatpush2.bf16.msra.mxu0 0
    %8619 = vmatprep.subr.bf16.mxu0 0
    %8620 = vmatpush2.bf16.msra.mxu0 0
    %8621 = vmatprep.mubr.bf16.mxu0 0
    %8622 = vmatmul.mubr.bf16.gmra.mxu0 %v6404
    %v8623 = vpop.f32.mrf.mxu0
    %v8624 = vadd.f32 %v7872, %v8623
    %v8625 = vpop.f32.mrf.mxu0
    %v8626 = vadd.f32 %v7876, %v8625
    %v8627 = vpop.f32.mrf.mxu0
    %v8628 = vpop.f32.mrf.mxu0
    %8629 = vdwg.mxu0
    %8630 = vmatprep.subr.bf16.mxu0 %v8448
    %8631 = vmatpush1.bf16.msra.mxu0 %v8447
    %8632 = vmatprep.subr.bf16.mxu0 %v8432
    %8633 = vmatpush1.bf16.msra.mxu0 %v8431
    %8634 = vmatprep.subr.bf16.mxu0 %v8416
    %8635 = vmatpush1.bf16.msra.mxu0 %v8415
    %8636 = vmatprep.subr.bf16.mxu0 %v8400
    %8637 = vmatpush1.bf16.msra.mxu0 %v8399
    %8638 = vmatprep.subr.bf16.mxu0 %v8384
    %8639 = vmatpush1.bf16.msra.mxu0 %v8383
    %8640 = vmatprep.subr.bf16.mxu0 %v8368
    %8641 = vmatpush1.bf16.msra.mxu0 %v8367
    %8642 = vmatprep.subr.bf16.mxu0 %v8352
    %8643 = vmatpush1.bf16.msra.mxu0 %v8351
    %8644 = vmatprep.subr.bf16.mxu0 %v8336
    %8645 = vmatpush1.bf16.msra.mxu0 %v8335
    %8646 = vmatprep.subr.bf16.mxu0 0
    %8647 = vmatpush2.bf16.msra.mxu0 0
    %8648 = vmatprep.subr.bf16.mxu0 0
    %8649 = vmatpush2.bf16.msra.mxu0 0
    %8650 = vmatprep.subr.bf16.mxu0 0
    %8651 = vmatpush2.bf16.msra.mxu0 0
    %8652 = vmatprep.subr.bf16.mxu0 0
    %8653 = vmatpush2.bf16.msra.mxu0 0
    %8654 = vmatprep.subr.bf16.mxu0 0
    %8655 = vmatpush2.bf16.msra.mxu0 0
    %8656 = vmatprep.subr.bf16.mxu0 0
    %8657 = vmatpush2.bf16.msra.mxu0 0
    %8658 = vmatprep.subr.bf16.mxu0 0
    %8659 = vmatpush2.bf16.msra.mxu0 0
    %8660 = vmatprep.subr.bf16.mxu0 0
    %8661 = vmatpush2.bf16.msra.mxu0 0
    %8662 = vmatprep.mubr.bf16.mxu0 0
    %8663 = vmatmul.mubr.bf16.gmra.mxu0 %v6404
    %v8664 = vpop.f32.mrf.mxu0
    %v8665 = vadd.f32 %v7880, %v8664
    %v8666 = vpop.f32.mrf.mxu0
    %v8667 = vadd.f32 %v7884, %v8666
    %v8668 = vpop.f32.mrf.mxu0
    %v8669 = vpop.f32.mrf.mxu0
    %8670 = vdwg.mxu0
    %8671 = vmatprep.subr.bf16.mxu0 %v8450
    %8672 = vmatpush1.bf16.msra.mxu0 %v8449
    %8673 = vmatprep.subr.bf16.mxu0 %v8434
    %8674 = vmatpush1.bf16.msra.mxu0 %v8433
    %8675 = vmatprep.subr.bf16.mxu0 %v8418
    %8676 = vmatpush1.bf16.msra.mxu0 %v8417
    %8677 = vmatprep.subr.bf16.mxu0 %v8402
    %8678 = vmatpush1.bf16.msra.mxu0 %v8401
    %8679 = vmatprep.subr.bf16.mxu0 %v8386
    %8680 = vmatpush1.bf16.msra.mxu0 %v8385
    %8681 = vmatprep.subr.bf16.mxu0 %v8370
    %8682 = vmatpush1.bf16.msra.mxu0 %v8369
    %8683 = vmatprep.subr.bf16.mxu0 %v8354
    %8684 = vmatpush1.bf16.msra.mxu0 %v8353
    %8685 = vmatprep.subr.bf16.mxu0 %v8338
    %8686 = vmatpush1.bf16.msra.mxu0 %v8337
    %8687 = vmatprep.subr.bf16.mxu0 0
    %8688 = vmatpush2.bf16.msra.mxu0 0
    %8689 = vmatprep.subr.bf16.mxu0 0
    %8690 = vmatpush2.bf16.msra.mxu0 0
    %8691 = vmatprep.subr.bf16.mxu0 0
    %8692 = vmatpush2.bf16.msra.mxu0 0
    %8693 = vmatprep.subr.bf16.mxu0 0
    %8694 = vmatpush2.bf16.msra.mxu0 0
    %8695 = vmatprep.subr.bf16.mxu0 0
    %8696 = vmatpush2.bf16.msra.mxu0 0
    %8697 = vmatprep.subr.bf16.mxu0 0
    %8698 = vmatpush2.bf16.msra.mxu0 0
    %8699 = vmatprep.subr.bf16.mxu0 0
    %8700 = vmatpush2.bf16.msra.mxu0 0
    %8701 = vmatprep.subr.bf16.mxu0 0
    %8702 = vmatpush2.bf16.msra.mxu0 0
    %8703 = vmatprep.mubr.bf16.mxu0 0
    %8704 = vmatmul.mubr.bf16.gmra.mxu0 %v6404
    %v8705 = vpop.f32.mrf.mxu0
    %v8706 = vadd.f32 %v7888, %v8705
    %v8707 = vpop.f32.mrf.mxu0
    %v8708 = vadd.f32 %v7892, %v8707
    %v8709 = vpop.f32.mrf.mxu0
    %v8710 = vpop.f32.mrf.mxu0
    %8711 = vdwg.mxu0
    %8712 = vmatprep.subr.bf16.mxu0 %v8452
    %8713 = vmatpush1.bf16.msra.mxu0 %v8451
    %8714 = vmatprep.subr.bf16.mxu0 %v8436
    %8715 = vmatpush1.bf16.msra.mxu0 %v8435
    %8716 = vmatprep.subr.bf16.mxu0 %v8420
    %8717 = vmatpush1.bf16.msra.mxu0 %v8419
    %8718 = vmatprep.subr.bf16.mxu0 %v8404
    %8719 = vmatpush1.bf16.msra.mxu0 %v8403
    %8720 = vmatprep.subr.bf16.mxu0 %v8388
    %8721 = vmatpush1.bf16.msra.mxu0 %v8387
    %8722 = vmatprep.subr.bf16.mxu0 %v8372
    %8723 = vmatpush1.bf16.msra.mxu0 %v8371
    %8724 = vmatprep.subr.bf16.mxu0 %v8356
    %8725 = vmatpush1.bf16.msra.mxu0 %v8355
    %8726 = vmatprep.subr.bf16.mxu0 %v8340
    %8727 = vmatpush1.bf16.msra.mxu0 %v8339
    %8728 = vmatprep.subr.bf16.mxu0 0
    %8729 = vmatpush2.bf16.msra.mxu0 0
    %8730 = vmatprep.subr.bf16.mxu0 0
    %8731 = vmatpush2.bf16.msra.mxu0 0
    %8732 = vmatprep.subr.bf16.mxu0 0
    %8733 = vmatpush2.bf16.msra.mxu0 0
    %8734 = vmatprep.subr.bf16.mxu0 0
    %8735 = vmatpush2.bf16.msra.mxu0 0
    %8736 = vmatprep.subr.bf16.mxu0 0
    %8737 = vmatpush2.bf16.msra.mxu0 0
    %8738 = vmatprep.subr.bf16.mxu0 0
    %8739 = vmatpush2.bf16.msra.mxu0 0
    %8740 = vmatprep.subr.bf16.mxu0 0
    %8741 = vmatpush2.bf16.msra.mxu0 0
    %8742 = vmatprep.subr.bf16.mxu0 0
    %8743 = vmatpush2.bf16.msra.mxu0 0
    %8744 = vmatprep.mubr.bf16.mxu0 0
    %8745 = vmatmul.mubr.bf16.gmra.mxu0 %v6404
    %v8746 = vpop.f32.mrf.mxu0
    %v8747 = vadd.f32 %v7896, %v8746
    %v8748 = vpop.f32.mrf.mxu0
    %v8749 = vadd.f32 %v7900, %v8748
    %v8750 = vpop.f32.mrf.mxu0
    %v8751 = vpop.f32.mrf.mxu0
    %8752 = vdwg.mxu0
    %8753 = vmatprep.subr.bf16.mxu0 %v8454
    %8754 = vmatpush1.bf16.msra.mxu0 %v8453
    %8755 = vmatprep.subr.bf16.mxu0 %v8438
    %8756 = vmatpush1.bf16.msra.mxu0 %v8437
    %8757 = vmatprep.subr.bf16.mxu0 %v8422
    %8758 = vmatpush1.bf16.msra.mxu0 %v8421
    %8759 = vmatprep.subr.bf16.mxu0 %v8406
    %8760 = vmatpush1.bf16.msra.mxu0 %v8405
    %8761 = vmatprep.subr.bf16.mxu0 %v8390
    %8762 = vmatpush1.bf16.msra.mxu0 %v8389
    %8763 = vmatprep.subr.bf16.mxu0 %v8374
    %8764 = vmatpush1.bf16.msra.mxu0 %v8373
    %8765 = vmatprep.subr.bf16.mxu0 %v8358
    %8766 = vmatpush1.bf16.msra.mxu0 %v8357
    %8767 = vmatprep.subr.bf16.mxu0 %v8342
    %8768 = vmatpush1.bf16.msra.mxu0 %v8341
    %8769 = vmatprep.subr.bf16.mxu0 0
    %8770 = vmatpush2.bf16.msra.mxu0 0
    %8771 = vmatprep.subr.bf16.mxu0 0
    %8772 = vmatpush2.bf16.msra.mxu0 0
    %8773 = vmatprep.subr.bf16.mxu0 0
    %8774 = vmatpush2.bf16.msra.mxu0 0
    %8775 = vmatprep.subr.bf16.mxu0 0
    %8776 = vmatpush2.bf16.msra.mxu0 0
    %8777 = vmatprep.subr.bf16.mxu0 0
    %8778 = vmatpush2.bf16.msra.mxu0 0
    %8779 = vmatprep.subr.bf16.mxu0 0
    %8780 = vmatpush2.bf16.msra.mxu0 0
    %8781 = vmatprep.subr.bf16.mxu0 0
    %8782 = vmatpush2.bf16.msra.mxu0 0
    %8783 = vmatprep.subr.bf16.mxu0 0
    %8784 = vmatpush2.bf16.msra.mxu0 0
    %8785 = vmatprep.mubr.bf16.mxu0 0
    %8786 = vmatmul.mubr.bf16.gmra.mxu0 %v6404
    %v8787 = vpop.f32.mrf.mxu0
    %v8788 = vadd.f32 %v7904, %v8787
    %v8789 = vpop.f32.mrf.mxu0
    %v8790 = vadd.f32 %v7908, %v8789
    %v8791 = vpop.f32.mrf.mxu0
    %v8792 = vpop.f32.mrf.mxu0
    %8793 = vdwg.mxu0
    %8794 = vmatprep.subr.bf16.mxu0 %v8456
    %8795 = vmatpush1.bf16.msra.mxu0 %v8455
    %8796 = vmatprep.subr.bf16.mxu0 %v8440
    %8797 = vmatpush1.bf16.msra.mxu0 %v8439
    %8798 = vmatprep.subr.bf16.mxu0 %v8424
    %8799 = vmatpush1.bf16.msra.mxu0 %v8423
    %8800 = vmatprep.subr.bf16.mxu0 %v8408
    %8801 = vmatpush1.bf16.msra.mxu0 %v8407
    %8802 = vmatprep.subr.bf16.mxu0 %v8392
    %8803 = vmatpush1.bf16.msra.mxu0 %v8391
    %8804 = vmatprep.subr.bf16.mxu0 %v8376
    %8805 = vmatpush1.bf16.msra.mxu0 %v8375
    %8806 = vmatprep.subr.bf16.mxu0 %v8360
    %8807 = vmatpush1.bf16.msra.mxu0 %v8359
    %8808 = vmatprep.subr.bf16.mxu0 %v8344
    %8809 = vmatpush1.bf16.msra.mxu0 %v8343
    %8810 = vmatprep.subr.bf16.mxu0 0
    %8811 = vmatpush2.bf16.msra.mxu0 0
    %8812 = vmatprep.subr.bf16.mxu0 0
    %8813 = vmatpush2.bf16.msra.mxu0 0
    %8814 = vmatprep.subr.bf16.mxu0 0
    %8815 = vmatpush2.bf16.msra.mxu0 0
    %8816 = vmatprep.subr.bf16.mxu0 0
    %8817 = vmatpush2.bf16.msra.mxu0 0
    %8818 = vmatprep.subr.bf16.mxu0 0
    %8819 = vmatpush2.bf16.msra.mxu0 0
    %8820 = vmatprep.subr.bf16.mxu0 0
    %8821 = vmatpush2.bf16.msra.mxu0 0
    %8822 = vmatprep.subr.bf16.mxu0 0
    %8823 = vmatpush2.bf16.msra.mxu0 0
    %8824 = vmatprep.subr.bf16.mxu0 0
    %8825 = vmatpush2.bf16.msra.mxu0 0
    %8826 = vmatprep.mubr.bf16.mxu0 0
    %8827 = vmatmul.mubr.bf16.gmra.mxu0 %v6404
    %v8828 = vpop.f32.mrf.mxu0
    %v8829 = vadd.f32 %v7912, %v8828
    %v8830 = vpop.f32.mrf.mxu0
    %v8831 = vadd.f32 %v7916, %v8830
    %v8832 = vpop.f32.mrf.mxu0
    %v8833 = vpop.f32.mrf.mxu0
    %8834 = vdwg.mxu0
    %8835 = vmatprep.subr.bf16.mxu0 %v8458
    %8836 = vmatpush1.bf16.msra.mxu0 %v8457
    %8837 = vmatprep.subr.bf16.mxu0 %v8442
    %8838 = vmatpush1.bf16.msra.mxu0 %v8441
    %8839 = vmatprep.subr.bf16.mxu0 %v8426
    %8840 = vmatpush1.bf16.msra.mxu0 %v8425
    %8841 = vmatprep.subr.bf16.mxu0 %v8410
    %8842 = vmatpush1.bf16.msra.mxu0 %v8409
    %8843 = vmatprep.subr.bf16.mxu0 %v8394
    %8844 = vmatpush1.bf16.msra.mxu0 %v8393
    %8845 = vmatprep.subr.bf16.mxu0 %v8378
    %8846 = vmatpush1.bf16.msra.mxu0 %v8377
    %8847 = vmatprep.subr.bf16.mxu0 %v8362
    %8848 = vmatpush1.bf16.msra.mxu0 %v8361
    %8849 = vmatprep.subr.bf16.mxu0 %v8346
    %8850 = vmatpush1.bf16.msra.mxu0 %v8345
    %8851 = vmatprep.subr.bf16.mxu0 0
    %8852 = vmatpush2.bf16.msra.mxu0 0
    %8853 = vmatprep.subr.bf16.mxu0 0
    %8854 = vmatpush2.bf16.msra.mxu0 0
    %8855 = vmatprep.subr.bf16.mxu0 0
    %8856 = vmatpush2.bf16.msra.mxu0 0
    %8857 = vmatprep.subr.bf16.mxu0 0
    %8858 = vmatpush2.bf16.msra.mxu0 0
    %8859 = vmatprep.subr.bf16.mxu0 0
    %8860 = vmatpush2.bf16.msra.mxu0 0
    %8861 = vmatprep.subr.bf16.mxu0 0
    %8862 = vmatpush2.bf16.msra.mxu0 0
    %8863 = vmatprep.subr.bf16.mxu0 0
    %8864 = vmatpush2.bf16.msra.mxu0 0
    %8865 = vmatprep.subr.bf16.mxu0 0
    %8866 = vmatpush2.bf16.msra.mxu0 0
    %8867 = vmatprep.mubr.bf16.mxu0 0
    %8868 = vmatmul.mubr.bf16.gmra.mxu0 %v6404
    %v8869 = vpop.f32.mrf.mxu0
    %v8870 = vadd.f32 %v7920, %v8869
    %v8871 = vpop.f32.mrf.mxu0
    %v8872 = vadd.f32 %v7924, %v8871
    %v8873 = vpop.f32.mrf.mxu0
    %v8874 = vpop.f32.mrf.mxu0
    %8875 = vdwg.mxu0
    %8876 = vmatprep.subr.bf16.mxu0 %v8460
    %8877 = vmatpush1.bf16.msra.mxu0 %v8459
    %8878 = vmatprep.subr.bf16.mxu0 %v8444
    %8879 = vmatpush1.bf16.msra.mxu0 %v8443
    %8880 = vmatprep.subr.bf16.mxu0 %v8428
    %8881 = vmatpush1.bf16.msra.mxu0 %v8427
    %8882 = vmatprep.subr.bf16.mxu0 %v8412
    %8883 = vmatpush1.bf16.msra.mxu0 %v8411
    %8884 = vmatprep.subr.bf16.mxu0 %v8396
    %8885 = vmatpush1.bf16.msra.mxu0 %v8395
    %8886 = vmatprep.subr.bf16.mxu0 %v8380
    %8887 = vmatpush1.bf16.msra.mxu0 %v8379
    %8888 = vmatprep.subr.bf16.mxu0 %v8364
    %8889 = vmatpush1.bf16.msra.mxu0 %v8363
    %8890 = vmatprep.subr.bf16.mxu0 %v8348
    %8891 = vmatpush1.bf16.msra.mxu0 %v8347
    %8892 = vmatprep.subr.bf16.mxu0 0
    %8893 = vmatpush2.bf16.msra.mxu0 0
    %8894 = vmatprep.subr.bf16.mxu0 0
    %8895 = vmatpush2.bf16.msra.mxu0 0
    %8896 = vmatprep.subr.bf16.mxu0 0
    %8897 = vmatpush2.bf16.msra.mxu0 0
    %8898 = vmatprep.subr.bf16.mxu0 0
    %8899 = vmatpush2.bf16.msra.mxu0 0
    %8900 = vmatprep.subr.bf16.mxu0 0
    %8901 = vmatpush2.bf16.msra.mxu0 0
    %8902 = vmatprep.subr.bf16.mxu0 0
    %8903 = vmatpush2.bf16.msra.mxu0 0
    %8904 = vmatprep.subr.bf16.mxu0 0
    %8905 = vmatpush2.bf16.msra.mxu0 0
    %8906 = vmatprep.subr.bf16.mxu0 0
    %8907 = vmatpush2.bf16.msra.mxu0 0
    %8908 = vmatprep.mubr.bf16.mxu0 0
    %8909 = vmatmul.mubr.bf16.gmra.mxu0 %v6404
    %v8910 = vpop.f32.mrf.mxu0
    %v8911 = vadd.f32 %v7928, %v8910
    %v8912 = vpop.f32.mrf.mxu0
    %v8913 = vadd.f32 %v7932, %v8912
    %v8914 = vpop.f32.mrf.mxu0
    %v8915 = vpop.f32.mrf.mxu0
    %8916 = vdwg.mxu0
    %v8917 = vsub.f32 0.0, %v8624
    %v8918 = vsub.f32 0.0, %v8626
    %v8919 = vsub.f32 0.0, %v8665
    %v8920 = vsub.f32 0.0, %v8667
    %v8921 = vsub.f32 0.0, %v8706
    %v8922 = vsub.f32 0.0, %v8708
    %v8923 = vsub.f32 0.0, %v8747
    %v8924 = vsub.f32 0.0, %v8749
    %v8925 = vsub.f32 0.0, %v8788
    %v8926 = vsub.f32 0.0, %v8790
    %v8927 = vsub.f32 0.0, %v8829
    %v8928 = vsub.f32 0.0, %v8831
    %v8929 = vsub.f32 0.0, %v8870
    %v8930 = vsub.f32 0.0, %v8872
    %v8931 = vsub.f32 0.0, %v8911
    %v8932 = vsub.f32 0.0, %v8913
    %v8933 = vmul.f32 %v8917, 1.442695
    %v8934 = vpow.pop %v8933
    %v8935 = vmul.f32 %v8918, 1.442695
    %v8936 = vpow.pop %v8935
    %v8937 = vmul.f32 %v8919, 1.442695
    %v8938 = vpow.pop %v8937
    %v8939 = vmul.f32 %v8920, 1.442695
    %v8940 = vpow.pop %v8939
    %v8941 = vmul.f32 %v8921, 1.442695
    %v8942 = vpow.pop %v8941
    %v8943 = vmul.f32 %v8922, 1.442695
    %v8944 = vpow.pop %v8943
    %v8945 = vmul.f32 %v8923, 1.442695
    %v8946 = vpow.pop %v8945
    %v8947 = vmul.f32 %v8924, 1.442695
    %v8948 = vpow.pop %v8947
    %v8949 = vmul.f32 %v8925, 1.442695
    %v8950 = vpow.pop %v8949
    %v8951 = vmul.f32 %v8926, 1.442695
    %v8952 = vpow.pop %v8951
    %v8953 = vmul.f32 %v8927, 1.442695
    %v8954 = vpow.pop %v8953
    %v8955 = vmul.f32 %v8928, 1.442695
    %v8956 = vpow.pop %v8955
    %v8957 = vmul.f32 %v8929, 1.442695
    %v8958 = vpow.pop %v8957
    %v8959 = vmul.f32 %v8930, 1.442695
    %v8960 = vpow.pop %v8959
    %v8961 = vmul.f32 %v8931, 1.442695
    %v8962 = vpow.pop %v8961
    %v8963 = vmul.f32 %v8932, 1.442695
    %v8964 = vpow.pop %v8963
    %v8965 = vadd.f32 %v8934, 1.0
    %v8966 = vadd.f32 %v8936, 1.0
    %v8967 = vadd.f32 %v8938, 1.0
    %v8968 = vadd.f32 %v8940, 1.0
    %v8969 = vadd.f32 %v8942, 1.0
    %v8970 = vadd.f32 %v8944, 1.0
    %v8971 = vadd.f32 %v8946, 1.0
    %v8972 = vadd.f32 %v8948, 1.0
    %v8973 = vadd.f32 %v8950, 1.0
    %v8974 = vadd.f32 %v8952, 1.0
    %v8975 = vadd.f32 %v8954, 1.0
    %v8976 = vadd.f32 %v8956, 1.0
    %v8977 = vadd.f32 %v8958, 1.0
    %v8978 = vadd.f32 %v8960, 1.0
    %v8979 = vadd.f32 %v8962, 1.0
    %v8980 = vadd.f32 %v8964, 1.0
    %v8981 = vrcp.pop %v8965
    %v8982 = vrcp.pop %v8966
    %v8983 = vrcp.pop %v8967
    %v8984 = vrcp.pop %v8968
    %v8985 = vrcp.pop %v8969
    %v8986 = vrcp.pop %v8970
    %v8987 = vrcp.pop %v8971
    %v8988 = vrcp.pop %v8972
    %v8989 = vrcp.pop %v8973
    %v8990 = vrcp.pop %v8974
    %v8991 = vrcp.pop %v8975
    %v8992 = vrcp.pop %v8976
    %v8993 = vrcp.pop %v8977
    %v8994 = vrcp.pop %v8978
    %v8995 = vrcp.pop %v8979
    %v8996 = vrcp.pop %v8980
    %v8997 = vpack.c.bf16 %v8981, %v8981
    %v8998 = vpack.c.bf16 %v8982, %v8982
    %v8999 = vpack.c.bf16 %v8983, %v8983
    %v9000 = vpack.c.bf16 %v8984, %v8984
    %v9001 = vpack.c.bf16 %v8985, %v8985
    %v9002 = vpack.c.bf16 %v8986, %v8986
    %v9003 = vpack.c.bf16 %v8987, %v8987
    %v9004 = vpack.c.bf16 %v8988, %v8988
    %v9005 = vpack.c.bf16 %v8989, %v8989
    %v9006 = vpack.c.bf16 %v8990, %v8990
    %v9007 = vpack.c.bf16 %v8991, %v8991
    %v9008 = vpack.c.bf16 %v8992, %v8992
    %v9009 = vpack.c.bf16 %v8993, %v8993
    %v9010 = vpack.c.bf16 %v8994, %v8994
    %v9011 = vpack.c.bf16 %v8995, %v8995
    %v9012 = vpack.c.bf16 %v8996, %v8996
    %v9029 = vunpack.c.l.b16 %v8997
    %v9030 = vunpack.c.l.b16 %v8998
    %v9031 = vunpack.c.l.b16 %v8999
    %v9032 = vunpack.c.l.b16 %v9000
    %v9033 = vunpack.c.l.b16 %v9001
    %v9034 = vunpack.c.l.b16 %v9002
    %v9035 = vunpack.c.l.b16 %v9003
    %v9036 = vunpack.c.l.b16 %v9004
    %v9037 = vunpack.c.l.b16 %v9005
    %v9038 = vunpack.c.l.b16 %v9006
    %v9039 = vunpack.c.l.b16 %v9007
    %v9040 = vunpack.c.l.b16 %v9008
    %v9041 = vunpack.c.l.b16 %v9009
    %v9042 = vunpack.c.l.b16 %v9010
    %v9043 = vunpack.c.l.b16 %v9011
    %v9044 = vunpack.c.l.b16 %v9012
    %v9045 = vpack.c.b16 %v9030, %v9029
    %v9046 = vpack.c.b16 %v9032, %v9031
    %v9047 = vpack.c.b16 %v9034, %v9033
    %v9048 = vpack.c.b16 %v9036, %v9035
    %v9049 = vpack.c.b16 %v9038, %v9037
    %v9050 = vpack.c.b16 %v9040, %v9039
    %v9051 = vpack.c.b16 %v9042, %v9041
    %v9052 = vpack.c.b16 %v9044, %v9043
    %9061 = vst [vmem:[#allocation25 + $0x40] sm:$0xff] %v9045
    %9062 = vst [vmem:[#allocation25 + $0x48] sm:$0xff] %v9046
    %9063 = vst [vmem:[#allocation25 + $0x50] sm:$0xff] %v9047
    %9064 = vst [vmem:[#allocation25 + $0x58] sm:$0xff] %v9048
    %9065 = vst [vmem:[#allocation25 + $0x60] sm:$0xff] %v9049
    %9066 = vst [vmem:[#allocation25 + $0x68] sm:$0xff] %v9050
    %9067 = vst [vmem:[#allocation25 + $0x70] sm:$0xff] %v9051
    %9068 = vst [vmem:[#allocation25 + $0x78] sm:$0xff] %v9052
    %v9069 = vld [vmem:[#allocation22 + $0x80] sm:$0xff]
    %v9070 = vld [vmem:[#allocation22 + $0x88] sm:$0xff]
    %v9071 = vld [vmem:[#allocation22 + $0x90] sm:$0xff]
    %v9072 = vld [vmem:[#allocation22 + $0x98] sm:$0xff]
    %v9073 = vld [vmem:[#allocation22 + $0xa0] sm:$0xff]
    %v9074 = vld [vmem:[#allocation22 + $0xa8] sm:$0xff]
    %v9075 = vld [vmem:[#allocation22 + $0xb0] sm:$0xff]
    %v9076 = vld [vmem:[#allocation22 + $0xb8] sm:$0xff]
    %v9077 = vld [vmem:[#allocation22 + $0x180] sm:$0xff]
    %v9078 = vld [vmem:[#allocation22 + $0x188] sm:$0xff]
    %v9079 = vld [vmem:[#allocation22 + $0x190] sm:$0xff]
    %v9080 = vld [vmem:[#allocation22 + $0x198] sm:$0xff]
    %v9081 = vld [vmem:[#allocation22 + $0x1a0] sm:$0xff]
    %v9082 = vld [vmem:[#allocation22 + $0x1a8] sm:$0xff]
    %v9083 = vld [vmem:[#allocation22 + $0x1b0] sm:$0xff]
    %v9084 = vld [vmem:[#allocation22 + $0x1b8] sm:$0xff]
    %v9085 = vld [vmem:[#allocation22 + $0x280] sm:$0xff]
    %v9086 = vld [vmem:[#allocation22 + $0x288] sm:$0xff]
    %v9087 = vld [vmem:[#allocation22 + $0x290] sm:$0xff]
    %v9088 = vld [vmem:[#allocation22 + $0x298] sm:$0xff]
    %v9089 = vld [vmem:[#allocation22 + $0x2a0] sm:$0xff]
    %v9090 = vld [vmem:[#allocation22 + $0x2a8] sm:$0xff]
    %v9091 = vld [vmem:[#allocation22 + $0x2b0] sm:$0xff]
    %v9092 = vld [vmem:[#allocation22 + $0x2b8] sm:$0xff]
    %v9093 = vld [vmem:[#allocation22 + $0x380] sm:$0xff]
    %v9094 = vld [vmem:[#allocation22 + $0x388] sm:$0xff]
    %v9095 = vld [vmem:[#allocation22 + $0x390] sm:$0xff]
    %v9096 = vld [vmem:[#allocation22 + $0x398] sm:$0xff]
    %v9097 = vld [vmem:[#allocation22 + $0x3a0] sm:$0xff]
    %v9098 = vld [vmem:[#allocation22 + $0x3a8] sm:$0xff]
    %v9099 = vld [vmem:[#allocation22 + $0x3b0] sm:$0xff]
    %v9100 = vld [vmem:[#allocation22 + $0x3b8] sm:$0xff]
    %v9101 = vld [vmem:[#allocation22 + $0x480] sm:$0xff]
    %v9102 = vld [vmem:[#allocation22 + $0x488] sm:$0xff]
    %v9103 = vld [vmem:[#allocation22 + $0x490] sm:$0xff]
    %v9104 = vld [vmem:[#allocation22 + $0x498] sm:$0xff]
    %v9105 = vld [vmem:[#allocation22 + $0x4a0] sm:$0xff]
    %v9106 = vld [vmem:[#allocation22 + $0x4a8] sm:$0xff]
    %v9107 = vld [vmem:[#allocation22 + $0x4b0] sm:$0xff]
    %v9108 = vld [vmem:[#allocation22 + $0x4b8] sm:$0xff]
    %v9109 = vld [vmem:[#allocation22 + $0x580] sm:$0xff]
    %v9110 = vld [vmem:[#allocation22 + $0x588] sm:$0xff]
    %v9111 = vld [vmem:[#allocation22 + $0x590] sm:$0xff]
    %v9112 = vld [vmem:[#allocation22 + $0x598] sm:$0xff]
    %v9113 = vld [vmem:[#allocation22 + $0x5a0] sm:$0xff]
    %v9114 = vld [vmem:[#allocation22 + $0x5a8] sm:$0xff]
    %v9115 = vld [vmem:[#allocation22 + $0x5b0] sm:$0xff]
    %v9116 = vld [vmem:[#allocation22 + $0x5b8] sm:$0xff]
    %v9117 = vld [vmem:[#allocation22 + $0x680] sm:$0xff]
    %v9118 = vld [vmem:[#allocation22 + $0x688] sm:$0xff]
    %v9119 = vld [vmem:[#allocation22 + $0x690] sm:$0xff]
    %v9120 = vld [vmem:[#allocation22 + $0x698] sm:$0xff]
    %v9121 = vld [vmem:[#allocation22 + $0x6a0] sm:$0xff]
    %v9122 = vld [vmem:[#allocation22 + $0x6a8] sm:$0xff]
    %v9123 = vld [vmem:[#allocation22 + $0x6b0] sm:$0xff]
    %v9124 = vld [vmem:[#allocation22 + $0x6b8] sm:$0xff]
    %v9125 = vld [vmem:[#allocation22 + $0x780] sm:$0xff]
    %v9126 = vld [vmem:[#allocation22 + $0x788] sm:$0xff]
    %v9127 = vld [vmem:[#allocation22 + $0x790] sm:$0xff]
    %v9128 = vld [vmem:[#allocation22 + $0x798] sm:$0xff]
    %v9129 = vld [vmem:[#allocation22 + $0x7a0] sm:$0xff]
    %v9130 = vld [vmem:[#allocation22 + $0x7a8] sm:$0xff]
    %v9131 = vld [vmem:[#allocation22 + $0x7b0] sm:$0xff]
    %v9132 = vld [vmem:[#allocation22 + $0x7b8] sm:$0xff]
    %v9133 = vld [vmem:[#allocation22 + $0x880] sm:$0xff]
    %v9134 = vld [vmem:[#allocation22 + $0x888] sm:$0xff]
    %v9135 = vld [vmem:[#allocation22 + $0x890] sm:$0xff]
    %v9136 = vld [vmem:[#allocation22 + $0x898] sm:$0xff]
    %v9137 = vld [vmem:[#allocation22 + $0x8a0] sm:$0xff]
    %v9138 = vld [vmem:[#allocation22 + $0x8a8] sm:$0xff]
    %v9139 = vld [vmem:[#allocation22 + $0x8b0] sm:$0xff]
    %v9140 = vld [vmem:[#allocation22 + $0x8b8] sm:$0xff]
    %v9141 = vld [vmem:[#allocation22 + $0x980] sm:$0xff]
    %v9142 = vld [vmem:[#allocation22 + $0x988] sm:$0xff]
    %v9143 = vld [vmem:[#allocation22 + $0x990] sm:$0xff]
    %v9144 = vld [vmem:[#allocation22 + $0x998] sm:$0xff]
    %v9145 = vld [vmem:[#allocation22 + $0x9a0] sm:$0xff]
    %v9146 = vld [vmem:[#allocation22 + $0x9a8] sm:$0xff]
    %v9147 = vld [vmem:[#allocation22 + $0x9b0] sm:$0xff]
    %v9148 = vld [vmem:[#allocation22 + $0x9b8] sm:$0xff]
    %v9149 = vld [vmem:[#allocation22 + $0xa80] sm:$0xff]
    %v9150 = vld [vmem:[#allocation22 + $0xa88] sm:$0xff]
    %v9151 = vld [vmem:[#allocation22 + $0xa90] sm:$0xff]
    %v9152 = vld [vmem:[#allocation22 + $0xa98] sm:$0xff]
    %v9153 = vld [vmem:[#allocation22 + $0xaa0] sm:$0xff]
    %v9154 = vld [vmem:[#allocation22 + $0xaa8] sm:$0xff]
    %v9155 = vld [vmem:[#allocation22 + $0xab0] sm:$0xff]
    %v9156 = vld [vmem:[#allocation22 + $0xab8] sm:$0xff]
    %v9157 = vld [vmem:[#allocation22 + $0xb80] sm:$0xff]
    %v9158 = vld [vmem:[#allocation22 + $0xb88] sm:$0xff]
    %v9159 = vld [vmem:[#allocation22 + $0xb90] sm:$0xff]
    %v9160 = vld [vmem:[#allocation22 + $0xb98] sm:$0xff]
    %v9161 = vld [vmem:[#allocation22 + $0xba0] sm:$0xff]
    %v9162 = vld [vmem:[#allocation22 + $0xba8] sm:$0xff]
    %v9163 = vld [vmem:[#allocation22 + $0xbb0] sm:$0xff]
    %v9164 = vld [vmem:[#allocation22 + $0xbb8] sm:$0xff]
    %v9165 = vld [vmem:[#allocation22 + $0xc80] sm:$0xff]
    %v9166 = vld [vmem:[#allocation22 + $0xc88] sm:$0xff]
    %v9167 = vld [vmem:[#allocation22 + $0xc90] sm:$0xff]
    %v9168 = vld [vmem:[#allocation22 + $0xc98] sm:$0xff]
    %v9169 = vld [vmem:[#allocation22 + $0xca0] sm:$0xff]
    %v9170 = vld [vmem:[#allocation22 + $0xca8] sm:$0xff]
    %v9171 = vld [vmem:[#allocation22 + $0xcb0] sm:$0xff]
    %v9172 = vld [vmem:[#allocation22 + $0xcb8] sm:$0xff]
    %v9173 = vld [vmem:[#allocation22 + $0xd80] sm:$0xff]
    %v9174 = vld [vmem:[#allocation22 + $0xd88] sm:$0xff]
    %v9175 = vld [vmem:[#allocation22 + $0xd90] sm:$0xff]
    %v9176 = vld [vmem:[#allocation22 + $0xd98] sm:$0xff]
    %v9177 = vld [vmem:[#allocation22 + $0xda0] sm:$0xff]
    %v9178 = vld [vmem:[#allocation22 + $0xda8] sm:$0xff]
    %v9179 = vld [vmem:[#allocation22 + $0xdb0] sm:$0xff]
    %v9180 = vld [vmem:[#allocation22 + $0xdb8] sm:$0xff]
    %v9181 = vld [vmem:[#allocation22 + $0xe80] sm:$0xff]
    %v9182 = vld [vmem:[#allocation22 + $0xe88] sm:$0xff]
    %v9183 = vld [vmem:[#allocation22 + $0xe90] sm:$0xff]
    %v9184 = vld [vmem:[#allocation22 + $0xe98] sm:$0xff]
    %v9185 = vld [vmem:[#allocation22 + $0xea0] sm:$0xff]
    %v9186 = vld [vmem:[#allocation22 + $0xea8] sm:$0xff]
    %v9187 = vld [vmem:[#allocation22 + $0xeb0] sm:$0xff]
    %v9188 = vld [vmem:[#allocation22 + $0xeb8] sm:$0xff]
    %v9189 = vld [vmem:[#allocation22 + $0xf80] sm:$0xff]
    %v9190 = vld [vmem:[#allocation22 + $0xf88] sm:$0xff]
    %v9191 = vld [vmem:[#allocation22 + $0xf90] sm:$0xff]
    %v9192 = vld [vmem:[#allocation22 + $0xf98] sm:$0xff]
    %v9193 = vld [vmem:[#allocation22 + $0xfa0] sm:$0xff]
    %v9194 = vld [vmem:[#allocation22 + $0xfa8] sm:$0xff]
    %v9195 = vld [vmem:[#allocation22 + $0xfb0] sm:$0xff]
    %v9196 = vld [vmem:[#allocation22 + $0xfb8] sm:$0xff]
    %v9197 = vld [vmem:[#allocation23 + $0x20] sm:$0xff]
    %v9198 = vld [vmem:[#allocation23 + $0x28] sm:$0xff]
    %v9201 = vlaneseq
    %v9202 = vshrl.u32 %v9201, 7
    %v9203 = vsub.s32 0, %v9202
    %v9204 = vrot.slane %v9197, %v9203
    %v9205 = vlaneseq
    %v9206 = vshrl.u32 %v9205, 7
    %v9207 = vsub.s32 1, %v9206
    %v9208 = vrot.slane %v9197, %v9207
    %v9209 = vlaneseq
    %v9210 = vshrl.u32 %v9209, 7
    %v9211 = vsub.s32 2, %v9210
    %v9212 = vrot.slane %v9197, %v9211
    %v9213 = vlaneseq
    %v9214 = vshrl.u32 %v9213, 7
    %v9215 = vsub.s32 3, %v9214
    %v9216 = vrot.slane %v9197, %v9215
    %v9217 = vlaneseq
    %v9218 = vshrl.u32 %v9217, 7
    %v9219 = vsub.s32 4, %v9218
    %v9220 = vrot.slane %v9197, %v9219
    %v9221 = vlaneseq
    %v9222 = vshrl.u32 %v9221, 7
    %v9223 = vsub.s32 5, %v9222
    %v9224 = vrot.slane %v9197, %v9223
    %v9225 = vlaneseq
    %v9226 = vshrl.u32 %v9225, 7
    %v9227 = vsub.s32 6, %v9226
    %v9228 = vrot.slane %v9197, %v9227
    %v9229 = vlaneseq
    %v9230 = vshrl.u32 %v9229, 7
    %v9231 = vsub.s32 7, %v9230
    %v9232 = vrot.slane %v9197, %v9231
    %v9233 = vlaneseq
    %v9234 = vshrl.u32 %v9233, 7
    %v9235 = vsub.s32 0, %v9234
    %v9236 = vrot.slane %v9198, %v9235
    %v9237 = vlaneseq
    %v9238 = vshrl.u32 %v9237, 7
    %v9239 = vsub.s32 1, %v9238
    %v9240 = vrot.slane %v9198, %v9239
    %v9241 = vlaneseq
    %v9242 = vshrl.u32 %v9241, 7
    %v9243 = vsub.s32 2, %v9242
    %v9244 = vrot.slane %v9198, %v9243
    %v9245 = vlaneseq
    %v9246 = vshrl.u32 %v9245, 7
    %v9247 = vsub.s32 3, %v9246
    %v9248 = vrot.slane %v9198, %v9247
    %v9249 = vlaneseq
    %v9250 = vshrl.u32 %v9249, 7
    %v9251 = vsub.s32 4, %v9250
    %v9252 = vrot.slane %v9198, %v9251
    %v9253 = vlaneseq
    %v9254 = vshrl.u32 %v9253, 7
    %v9255 = vsub.s32 5, %v9254
    %v9256 = vrot.slane %v9198, %v9255
    %v9257 = vlaneseq
    %v9258 = vshrl.u32 %v9257, 7
    %v9259 = vsub.s32 6, %v9258
    %v9260 = vrot.slane %v9198, %v9259
    %v9261 = vlaneseq
    %v9262 = vshrl.u32 %v9261, 7
    %v9263 = vsub.s32 7, %v9262
    %v9264 = vrot.slane %v9198, %v9263
    %v9409 = vunpack.c.l.b16 %v9069
    %v9410 = vunpack.c.h.b16 %v9069
    %v9411 = vunpack.c.l.b16 %v9070
    %v9412 = vunpack.c.h.b16 %v9070
    %v9413 = vunpack.c.l.b16 %v9071
    %v9414 = vunpack.c.h.b16 %v9071
    %v9415 = vunpack.c.l.b16 %v9072
    %v9416 = vunpack.c.h.b16 %v9072
    %v9417 = vunpack.c.l.b16 %v9073
    %v9418 = vunpack.c.h.b16 %v9073
    %v9419 = vunpack.c.l.b16 %v9074
    %v9420 = vunpack.c.h.b16 %v9074
    %v9421 = vunpack.c.l.b16 %v9075
    %v9422 = vunpack.c.h.b16 %v9075
    %v9423 = vunpack.c.l.b16 %v9076
    %v9424 = vunpack.c.h.b16 %v9076
    %v9425 = vunpack.c.l.b16 %v9077
    %v9426 = vunpack.c.h.b16 %v9077
    %v9427 = vunpack.c.l.b16 %v9078
    %v9428 = vunpack.c.h.b16 %v9078
    %v9429 = vunpack.c.l.b16 %v9079
    %v9430 = vunpack.c.h.b16 %v9079
    %v9431 = vunpack.c.l.b16 %v9080
    %v9432 = vunpack.c.h.b16 %v9080
    %v9433 = vunpack.c.l.b16 %v9081
    %v9434 = vunpack.c.h.b16 %v9081
    %v9435 = vunpack.c.l.b16 %v9082
    %v9436 = vunpack.c.h.b16 %v9082
    %v9437 = vunpack.c.l.b16 %v9083
    %v9438 = vunpack.c.h.b16 %v9083
    %v9439 = vunpack.c.l.b16 %v9084
    %v9440 = vunpack.c.h.b16 %v9084
    %v9441 = vunpack.c.l.b16 %v9085
    %v9442 = vunpack.c.h.b16 %v9085
    %v9443 = vunpack.c.l.b16 %v9086
    %v9444 = vunpack.c.h.b16 %v9086
    %v9445 = vunpack.c.l.b16 %v9087
    %v9446 = vunpack.c.h.b16 %v9087
    %v9447 = vunpack.c.l.b16 %v9088
    %v9448 = vunpack.c.h.b16 %v9088
    %v9449 = vunpack.c.l.b16 %v9089
    %v9450 = vunpack.c.h.b16 %v9089
    %v9451 = vunpack.c.l.b16 %v9090
    %v9452 = vunpack.c.h.b16 %v9090
    %v9453 = vunpack.c.l.b16 %v9091
    %v9454 = vunpack.c.h.b16 %v9091
    %v9455 = vunpack.c.l.b16 %v9092
    %v9456 = vunpack.c.h.b16 %v9092
    %v9457 = vunpack.c.l.b16 %v9093
    %v9458 = vunpack.c.h.b16 %v9093
    %v9459 = vunpack.c.l.b16 %v9094
    %v9460 = vunpack.c.h.b16 %v9094
    %v9461 = vunpack.c.l.b16 %v9095
    %v9462 = vunpack.c.h.b16 %v9095
    %v9463 = vunpack.c.l.b16 %v9096
    %v9464 = vunpack.c.h.b16 %v9096
    %v9465 = vunpack.c.l.b16 %v9097
    %v9466 = vunpack.c.h.b16 %v9097
    %v9467 = vunpack.c.l.b16 %v9098
    %v9468 = vunpack.c.h.b16 %v9098
    %v9469 = vunpack.c.l.b16 %v9099
    %v9470 = vunpack.c.h.b16 %v9099
    %v9471 = vunpack.c.l.b16 %v9100
    %v9472 = vunpack.c.h.b16 %v9100
    %v9473 = vunpack.c.l.b16 %v9101
    %v9474 = vunpack.c.h.b16 %v9101
    %v9475 = vunpack.c.l.b16 %v9102
    %v9476 = vunpack.c.h.b16 %v9102
    %v9477 = vunpack.c.l.b16 %v9103
    %v9478 = vunpack.c.h.b16 %v9103
    %v9479 = vunpack.c.l.b16 %v9104
    %v9480 = vunpack.c.h.b16 %v9104
    %v9481 = vunpack.c.l.b16 %v9105
    %v9482 = vunpack.c.h.b16 %v9105
    %v9483 = vunpack.c.l.b16 %v9106
    %v9484 = vunpack.c.h.b16 %v9106
    %v9485 = vunpack.c.l.b16 %v9107
    %v9486 = vunpack.c.h.b16 %v9107
    %v9487 = vunpack.c.l.b16 %v9108
    %v9488 = vunpack.c.h.b16 %v9108
    %v9489 = vunpack.c.l.b16 %v9109
    %v9490 = vunpack.c.h.b16 %v9109
    %v9491 = vunpack.c.l.b16 %v9110
    %v9492 = vunpack.c.h.b16 %v9110
    %v9493 = vunpack.c.l.b16 %v9111
    %v9494 = vunpack.c.h.b16 %v9111
    %v9495 = vunpack.c.l.b16 %v9112
    %v9496 = vunpack.c.h.b16 %v9112
    %v9497 = vunpack.c.l.b16 %v9113
    %v9498 = vunpack.c.h.b16 %v9113
    %v9499 = vunpack.c.l.b16 %v9114
    %v9500 = vunpack.c.h.b16 %v9114
    %v9501 = vunpack.c.l.b16 %v9115
    %v9502 = vunpack.c.h.b16 %v9115
    %v9503 = vunpack.c.l.b16 %v9116
    %v9504 = vunpack.c.h.b16 %v9116
    %v9505 = vunpack.c.l.b16 %v9117
    %v9506 = vunpack.c.h.b16 %v9117
    %v9507 = vunpack.c.l.b16 %v9118
    %v9508 = vunpack.c.h.b16 %v9118
    %v9509 = vunpack.c.l.b16 %v9119
    %v9510 = vunpack.c.h.b16 %v9119
    %v9511 = vunpack.c.l.b16 %v9120
    %v9512 = vunpack.c.h.b16 %v9120
    %v9513 = vunpack.c.l.b16 %v9121
    %v9514 = vunpack.c.h.b16 %v9121
    %v9515 = vunpack.c.l.b16 %v9122
    %v9516 = vunpack.c.h.b16 %v9122
    %v9517 = vunpack.c.l.b16 %v9123
    %v9518 = vunpack.c.h.b16 %v9123
    %v9519 = vunpack.c.l.b16 %v9124
    %v9520 = vunpack.c.h.b16 %v9124
    %v9521 = vunpack.c.l.b16 %v9125
    %v9522 = vunpack.c.h.b16 %v9125
    %v9523 = vunpack.c.l.b16 %v9126
    %v9524 = vunpack.c.h.b16 %v9126
    %v9525 = vunpack.c.l.b16 %v9127
    %v9526 = vunpack.c.h.b16 %v9127
    %v9527 = vunpack.c.l.b16 %v9128
    %v9528 = vunpack.c.h.b16 %v9128
    %v9529 = vunpack.c.l.b16 %v9129
    %v9530 = vunpack.c.h.b16 %v9129
    %v9531 = vunpack.c.l.b16 %v9130
    %v9532 = vunpack.c.h.b16 %v9130
    %v9533 = vunpack.c.l.b16 %v9131
    %v9534 = vunpack.c.h.b16 %v9131
    %v9535 = vunpack.c.l.b16 %v9132
    %v9536 = vunpack.c.h.b16 %v9132
    %v9537 = vunpack.c.l.b16 %v9133
    %v9538 = vunpack.c.h.b16 %v9133
    %v9539 = vunpack.c.l.b16 %v9134
    %v9540 = vunpack.c.h.b16 %v9134
    %v9541 = vunpack.c.l.b16 %v9135
    %v9542 = vunpack.c.h.b16 %v9135
    %v9543 = vunpack.c.l.b16 %v9136
    %v9544 = vunpack.c.h.b16 %v9136
    %v9545 = vunpack.c.l.b16 %v9137
    %v9546 = vunpack.c.h.b16 %v9137
    %v9547 = vunpack.c.l.b16 %v9138
    %v9548 = vunpack.c.h.b16 %v9138
    %v9549 = vunpack.c.l.b16 %v9139
    %v9550 = vunpack.c.h.b16 %v9139
    %v9551 = vunpack.c.l.b16 %v9140
    %v9552 = vunpack.c.h.b16 %v9140
    %v9553 = vunpack.c.l.b16 %v9141
    %v9554 = vunpack.c.h.b16 %v9141
    %v9555 = vunpack.c.l.b16 %v9142
    %v9556 = vunpack.c.h.b16 %v9142
    %v9557 = vunpack.c.l.b16 %v9143
    %v9558 = vunpack.c.h.b16 %v9143
    %v9559 = vunpack.c.l.b16 %v9144
    %v9560 = vunpack.c.h.b16 %v9144
    %v9561 = vunpack.c.l.b16 %v9145
    %v9562 = vunpack.c.h.b16 %v9145
    %v9563 = vunpack.c.l.b16 %v9146
    %v9564 = vunpack.c.h.b16 %v9146
    %v9565 = vunpack.c.l.b16 %v9147
    %v9566 = vunpack.c.h.b16 %v9147
    %v9567 = vunpack.c.l.b16 %v9148
    %v9568 = vunpack.c.h.b16 %v9148
    %v9569 = vunpack.c.l.b16 %v9149
    %v9570 = vunpack.c.h.b16 %v9149
    %v9571 = vunpack.c.l.b16 %v9150
    %v9572 = vunpack.c.h.b16 %v9150
    %v9573 = vunpack.c.l.b16 %v9151
    %v9574 = vunpack.c.h.b16 %v9151
    %v9575 = vunpack.c.l.b16 %v9152
    %v9576 = vunpack.c.h.b16 %v9152
    %v9577 = vunpack.c.l.b16 %v9153
    %v9578 = vunpack.c.h.b16 %v9153
    %v9579 = vunpack.c.l.b16 %v9154
    %v9580 = vunpack.c.h.b16 %v9154
    %v9581 = vunpack.c.l.b16 %v9155
    %v9582 = vunpack.c.h.b16 %v9155
    %v9583 = vunpack.c.l.b16 %v9156
    %v9584 = vunpack.c.h.b16 %v9156
    %v9585 = vunpack.c.l.b16 %v9157
    %v9586 = vunpack.c.h.b16 %v9157
    %v9587 = vunpack.c.l.b16 %v9158
    %v9588 = vunpack.c.h.b16 %v9158
    %v9589 = vunpack.c.l.b16 %v9159
    %v9590 = vunpack.c.h.b16 %v9159
    %v9591 = vunpack.c.l.b16 %v9160
    %v9592 = vunpack.c.h.b16 %v9160
    %v9593 = vunpack.c.l.b16 %v9161
    %v9594 = vunpack.c.h.b16 %v9161
    %v9595 = vunpack.c.l.b16 %v9162
    %v9596 = vunpack.c.h.b16 %v9162
    %v9597 = vunpack.c.l.b16 %v9163
    %v9598 = vunpack.c.h.b16 %v9163
    %v9599 = vunpack.c.l.b16 %v9164
    %v9600 = vunpack.c.h.b16 %v9164
    %v9601 = vunpack.c.l.b16 %v9165
    %v9602 = vunpack.c.h.b16 %v9165
    %v9603 = vunpack.c.l.b16 %v9166
    %v9604 = vunpack.c.h.b16 %v9166
    %v9605 = vunpack.c.l.b16 %v9167
    %v9606 = vunpack.c.h.b16 %v9167
    %v9607 = vunpack.c.l.b16 %v9168
    %v9608 = vunpack.c.h.b16 %v9168
    %v9609 = vunpack.c.l.b16 %v9169
    %v9610 = vunpack.c.h.b16 %v9169
    %v9611 = vunpack.c.l.b16 %v9170
    %v9612 = vunpack.c.h.b16 %v9170
    %v9613 = vunpack.c.l.b16 %v9171
    %v9614 = vunpack.c.h.b16 %v9171
    %v9615 = vunpack.c.l.b16 %v9172
    %v9616 = vunpack.c.h.b16 %v9172
    %v9617 = vunpack.c.l.b16 %v9173
    %v9618 = vunpack.c.h.b16 %v9173
    %v9619 = vunpack.c.l.b16 %v9174
    %v9620 = vunpack.c.h.b16 %v9174
    %v9621 = vunpack.c.l.b16 %v9175
    %v9622 = vunpack.c.h.b16 %v9175
    %v9623 = vunpack.c.l.b16 %v9176
    %v9624 = vunpack.c.h.b16 %v9176
    %v9625 = vunpack.c.l.b16 %v9177
    %v9626 = vunpack.c.h.b16 %v9177
    %v9627 = vunpack.c.l.b16 %v9178
    %v9628 = vunpack.c.h.b16 %v9178
    %v9629 = vunpack.c.l.b16 %v9179
    %v9630 = vunpack.c.h.b16 %v9179
    %v9631 = vunpack.c.l.b16 %v9180
    %v9632 = vunpack.c.h.b16 %v9180
    %v9633 = vunpack.c.l.b16 %v9181
    %v9634 = vunpack.c.h.b16 %v9181
    %v9635 = vunpack.c.l.b16 %v9182
    %v9636 = vunpack.c.h.b16 %v9182
    %v9637 = vunpack.c.l.b16 %v9183
    %v9638 = vunpack.c.h.b16 %v9183
    %v9639 = vunpack.c.l.b16 %v9184
    %v9640 = vunpack.c.h.b16 %v9184
    %v9641 = vunpack.c.l.b16 %v9185
    %v9642 = vunpack.c.h.b16 %v9185
    %v9643 = vunpack.c.l.b16 %v9186
    %v9644 = vunpack.c.h.b16 %v9186
    %v9645 = vunpack.c.l.b16 %v9187
    %v9646 = vunpack.c.h.b16 %v9187
    %v9647 = vunpack.c.l.b16 %v9188
    %v9648 = vunpack.c.h.b16 %v9188
    %v9649 = vunpack.c.l.b16 %v9189
    %v9650 = vunpack.c.h.b16 %v9189
    %v9651 = vunpack.c.l.b16 %v9190
    %v9652 = vunpack.c.h.b16 %v9190
    %v9653 = vunpack.c.l.b16 %v9191
    %v9654 = vunpack.c.h.b16 %v9191
    %v9655 = vunpack.c.l.b16 %v9192
    %v9656 = vunpack.c.h.b16 %v9192
    %v9657 = vunpack.c.l.b16 %v9193
    %v9658 = vunpack.c.h.b16 %v9193
    %v9659 = vunpack.c.l.b16 %v9194
    %v9660 = vunpack.c.h.b16 %v9194
    %v9661 = vunpack.c.l.b16 %v9195
    %v9662 = vunpack.c.h.b16 %v9195
    %v9663 = vunpack.c.l.b16 %v9196
    %v9664 = vunpack.c.h.b16 %v9196
    %v9665 = vpack.c.b16 %v9425, %v9409
    %v9666 = vpack.c.b16 %v9426, %v9410
    %v9667 = vpack.c.b16 %v9427, %v9411
    %v9668 = vpack.c.b16 %v9428, %v9412
    %v9669 = vpack.c.b16 %v9429, %v9413
    %v9670 = vpack.c.b16 %v9430, %v9414
    %v9671 = vpack.c.b16 %v9431, %v9415
    %v9672 = vpack.c.b16 %v9432, %v9416
    %v9673 = vpack.c.b16 %v9433, %v9417
    %v9674 = vpack.c.b16 %v9434, %v9418
    %v9675 = vpack.c.b16 %v9435, %v9419
    %v9676 = vpack.c.b16 %v9436, %v9420
    %v9677 = vpack.c.b16 %v9437, %v9421
    %v9678 = vpack.c.b16 %v9438, %v9422
    %v9679 = vpack.c.b16 %v9439, %v9423
    %v9680 = vpack.c.b16 %v9440, %v9424
    %v9681 = vpack.c.b16 %v9457, %v9441
    %v9682 = vpack.c.b16 %v9458, %v9442
    %v9683 = vpack.c.b16 %v9459, %v9443
    %v9684 = vpack.c.b16 %v9460, %v9444
    %v9685 = vpack.c.b16 %v9461, %v9445
    %v9686 = vpack.c.b16 %v9462, %v9446
    %v9687 = vpack.c.b16 %v9463, %v9447
    %v9688 = vpack.c.b16 %v9464, %v9448
    %v9689 = vpack.c.b16 %v9465, %v9449
    %v9690 = vpack.c.b16 %v9466, %v9450
    %v9691 = vpack.c.b16 %v9467, %v9451
    %v9692 = vpack.c.b16 %v9468, %v9452
    %v9693 = vpack.c.b16 %v9469, %v9453
    %v9694 = vpack.c.b16 %v9470, %v9454
    %v9695 = vpack.c.b16 %v9471, %v9455
    %v9696 = vpack.c.b16 %v9472, %v9456
    %v9697 = vpack.c.b16 %v9489, %v9473
    %v9698 = vpack.c.b16 %v9490, %v9474
    %v9699 = vpack.c.b16 %v9491, %v9475
    %v9700 = vpack.c.b16 %v9492, %v9476
    %v9701 = vpack.c.b16 %v9493, %v9477
    %v9702 = vpack.c.b16 %v9494, %v9478
    %v9703 = vpack.c.b16 %v9495, %v9479
    %v9704 = vpack.c.b16 %v9496, %v9480
    %v9705 = vpack.c.b16 %v9497, %v9481
    %v9706 = vpack.c.b16 %v9498, %v9482
    %v9707 = vpack.c.b16 %v9499, %v9483
    %v9708 = vpack.c.b16 %v9500, %v9484
    %v9709 = vpack.c.b16 %v9501, %v9485
    %v9710 = vpack.c.b16 %v9502, %v9486
    %v9711 = vpack.c.b16 %v9503, %v9487
    %v9712 = vpack.c.b16 %v9504, %v9488
    %v9713 = vpack.c.b16 %v9521, %v9505
    %v9714 = vpack.c.b16 %v9522, %v9506
    %v9715 = vpack.c.b16 %v9523, %v9507
    %v9716 = vpack.c.b16 %v9524, %v9508
    %v9717 = vpack.c.b16 %v9525, %v9509
    %v9718 = vpack.c.b16 %v9526, %v9510
    %v9719 = vpack.c.b16 %v9527, %v9511
    %v9720 = vpack.c.b16 %v9528, %v9512
    %v9721 = vpack.c.b16 %v9529, %v9513
    %v9722 = vpack.c.b16 %v9530, %v9514
    %v9723 = vpack.c.b16 %v9531, %v9515
    %v9724 = vpack.c.b16 %v9532, %v9516
    %v9725 = vpack.c.b16 %v9533, %v9517
    %v9726 = vpack.c.b16 %v9534, %v9518
    %v9727 = vpack.c.b16 %v9535, %v9519
    %v9728 = vpack.c.b16 %v9536, %v9520
    %v9729 = vpack.c.b16 %v9553, %v9537
    %v9730 = vpack.c.b16 %v9554, %v9538
    %v9731 = vpack.c.b16 %v9555, %v9539
    %v9732 = vpack.c.b16 %v9556, %v9540
    %v9733 = vpack.c.b16 %v9557, %v9541
    %v9734 = vpack.c.b16 %v9558, %v9542
    %v9735 = vpack.c.b16 %v9559, %v9543
    %v9736 = vpack.c.b16 %v9560, %v9544
    %v9737 = vpack.c.b16 %v9561, %v9545
    %v9738 = vpack.c.b16 %v9562, %v9546
    %v9739 = vpack.c.b16 %v9563, %v9547
    %v9740 = vpack.c.b16 %v9564, %v9548
    %v9741 = vpack.c.b16 %v9565, %v9549
    %v9742 = vpack.c.b16 %v9566, %v9550
    %v9743 = vpack.c.b16 %v9567, %v9551
    %v9744 = vpack.c.b16 %v9568, %v9552
    %v9745 = vpack.c.b16 %v9585, %v9569
    %v9746 = vpack.c.b16 %v9586, %v9570
    %v9747 = vpack.c.b16 %v9587, %v9571
    %v9748 = vpack.c.b16 %v9588, %v9572
    %v9749 = vpack.c.b16 %v9589, %v9573
    %v9750 = vpack.c.b16 %v9590, %v9574
    %v9751 = vpack.c.b16 %v9591, %v9575
    %v9752 = vpack.c.b16 %v9592, %v9576
    %v9753 = vpack.c.b16 %v9593, %v9577
    %v9754 = vpack.c.b16 %v9594, %v9578
    %v9755 = vpack.c.b16 %v9595, %v9579
    %v9756 = vpack.c.b16 %v9596, %v9580
    %v9757 = vpack.c.b16 %v9597, %v9581
    %v9758 = vpack.c.b16 %v9598, %v9582
    %v9759 = vpack.c.b16 %v9599, %v9583
    %v9760 = vpack.c.b16 %v9600, %v9584
    %v9761 = vpack.c.b16 %v9617, %v9601
    %v9762 = vpack.c.b16 %v9618, %v9602
    %v9763 = vpack.c.b16 %v9619, %v9603
    %v9764 = vpack.c.b16 %v9620, %v9604
    %v9765 = vpack.c.b16 %v9621, %v9605
    %v9766 = vpack.c.b16 %v9622, %v9606
    %v9767 = vpack.c.b16 %v9623, %v9607
    %v9768 = vpack.c.b16 %v9624, %v9608
    %v9769 = vpack.c.b16 %v9625, %v9609
    %v9770 = vpack.c.b16 %v9626, %v9610
    %v9771 = vpack.c.b16 %v9627, %v9611
    %v9772 = vpack.c.b16 %v9628, %v9612
    %v9773 = vpack.c.b16 %v9629, %v9613
    %v9774 = vpack.c.b16 %v9630, %v9614
    %v9775 = vpack.c.b16 %v9631, %v9615
    %v9776 = vpack.c.b16 %v9632, %v9616
    %v9777 = vpack.c.b16 %v9649, %v9633
    %v9778 = vpack.c.b16 %v9650, %v9634
    %v9779 = vpack.c.b16 %v9651, %v9635
    %v9780 = vpack.c.b16 %v9652, %v9636
    %v9781 = vpack.c.b16 %v9653, %v9637
    %v9782 = vpack.c.b16 %v9654, %v9638
    %v9783 = vpack.c.b16 %v9655, %v9639
    %v9784 = vpack.c.b16 %v9656, %v9640
    %v9785 = vpack.c.b16 %v9657, %v9641
    %v9786 = vpack.c.b16 %v9658, %v9642
    %v9787 = vpack.c.b16 %v9659, %v9643
    %v9788 = vpack.c.b16 %v9660, %v9644
    %v9789 = vpack.c.b16 %v9661, %v9645
    %v9790 = vpack.c.b16 %v9662, %v9646
    %v9791 = vpack.c.b16 %v9663, %v9647
    %v9792 = vpack.c.b16 %v9664, %v9648
    %9921 = vmatprep.subr.bf16.mxu0 %v9778
    %9922 = vmatpush1.bf16.msra.mxu0 %v9777
    %9923 = vmatprep.subr.bf16.mxu0 %v9762
    %9924 = vmatpush1.bf16.msra.mxu0 %v9761
    %9925 = vmatprep.subr.bf16.mxu0 %v9746
    %9926 = vmatpush1.bf16.msra.mxu0 %v9745
    %9927 = vmatprep.subr.bf16.mxu0 %v9730
    %9928 = vmatpush1.bf16.msra.mxu0 %v9729
    %9929 = vmatprep.subr.bf16.mxu0 %v9714
    %9930 = vmatpush1.bf16.msra.mxu0 %v9713
    %9931 = vmatprep.subr.bf16.mxu0 %v9698
    %9932 = vmatpush1.bf16.msra.mxu0 %v9697
    %9933 = vmatprep.subr.bf16.mxu0 %v9682
    %9934 = vmatpush1.bf16.msra.mxu0 %v9681
    %9935 = vmatprep.subr.bf16.mxu0 %v9666
    %9936 = vmatpush1.bf16.msra.mxu0 %v9665
    %9937 = vmatprep.subr.bf16.mxu0 0
    %9938 = vmatpush2.bf16.msra.mxu0 0
    %9939 = vmatprep.subr.bf16.mxu0 0
    %9940 = vmatpush2.bf16.msra.mxu0 0
    %9941 = vmatprep.subr.bf16.mxu0 0
    %9942 = vmatpush2.bf16.msra.mxu0 0
    %9943 = vmatprep.subr.bf16.mxu0 0
    %9944 = vmatpush2.bf16.msra.mxu0 0
    %9945 = vmatprep.subr.bf16.mxu0 0
    %9946 = vmatpush2.bf16.msra.mxu0 0
    %9947 = vmatprep.subr.bf16.mxu0 0
    %9948 = vmatpush2.bf16.msra.mxu0 0
    %9949 = vmatprep.subr.bf16.mxu0 0
    %9950 = vmatpush2.bf16.msra.mxu0 0
    %9951 = vmatprep.subr.bf16.mxu0 0
    %9952 = vmatpush2.bf16.msra.mxu0 0
    %9953 = vmatprep.mubr.bf16.mxu0 0
    %9954 = vmatmul.mubr.bf16.gmra.mxu0 %v6404
    %v9955 = vpop.f32.mrf.mxu0
    %v9956 = vadd.f32 %v9204, %v9955
    %v9957 = vpop.f32.mrf.mxu0
    %v9958 = vadd.f32 %v9208, %v9957
    %v9959 = vpop.f32.mrf.mxu0
    %v9960 = vpop.f32.mrf.mxu0
    %9961 = vdwg.mxu0
    %9962 = vmatprep.subr.bf16.mxu0 %v9780
    %9963 = vmatpush1.bf16.msra.mxu0 %v9779
    %9964 = vmatprep.subr.bf16.mxu0 %v9764
    %9965 = vmatpush1.bf16.msra.mxu0 %v9763
    %9966 = vmatprep.subr.bf16.mxu0 %v9748
    %9967 = vmatpush1.bf16.msra.mxu0 %v9747
    %9968 = vmatprep.subr.bf16.mxu0 %v9732
    %9969 = vmatpush1.bf16.msra.mxu0 %v9731
    %9970 = vmatprep.subr.bf16.mxu0 %v9716
    %9971 = vmatpush1.bf16.msra.mxu0 %v9715
    %9972 = vmatprep.subr.bf16.mxu0 %v9700
    %9973 = vmatpush1.bf16.msra.mxu0 %v9699
    %9974 = vmatprep.subr.bf16.mxu0 %v9684
    %9975 = vmatpush1.bf16.msra.mxu0 %v9683
    %9976 = vmatprep.subr.bf16.mxu0 %v9668
    %9977 = vmatpush1.bf16.msra.mxu0 %v9667
    %9978 = vmatprep.subr.bf16.mxu0 0
    %9979 = vmatpush2.bf16.msra.mxu0 0
    %9980 = vmatprep.subr.bf16.mxu0 0
    %9981 = vmatpush2.bf16.msra.mxu0 0
    %9982 = vmatprep.subr.bf16.mxu0 0
    %9983 = vmatpush2.bf16.msra.mxu0 0
    %9984 = vmatprep.subr.bf16.mxu0 0
    %9985 = vmatpush2.bf16.msra.mxu0 0
    %9986 = vmatprep.subr.bf16.mxu0 0
    %9987 = vmatpush2.bf16.msra.mxu0 0
    %9988 = vmatprep.subr.bf16.mxu0 0
    %9989 = vmatpush2.bf16.msra.mxu0 0
    %9990 = vmatprep.subr.bf16.mxu0 0
    %9991 = vmatpush2.bf16.msra.mxu0 0
    %9992 = vmatprep.subr.bf16.mxu0 0
    %9993 = vmatpush2.bf16.msra.mxu0 0
    %9994 = vmatprep.mubr.bf16.mxu0 0
    %9995 = vmatmul.mubr.bf16.gmra.mxu0 %v6404
    %v9996 = vpop.f32.mrf.mxu0
    %v9997 = vadd.f32 %v9212, %v9996
    %v9998 = vpop.f32.mrf.mxu0
    %v9999 = vadd.f32 %v9216, %v9998
    %v10000 = vpop.f32.mrf.mxu0
    %v10001 = vpop.f32.mrf.mxu0
    %10002 = vdwg.mxu0
    %10003 = vmatprep.subr.bf16.mxu0 %v9782
    %10004 = vmatpush1.bf16.msra.mxu0 %v9781
    %10005 = vmatprep.subr.bf16.mxu0 %v9766
    %10006 = vmatpush1.bf16.msra.mxu0 %v9765
    %10007 = vmatprep.subr.bf16.mxu0 %v9750
    %10008 = vmatpush1.bf16.msra.mxu0 %v9749
    %10009 = vmatprep.subr.bf16.mxu0 %v9734
    %10010 = vmatpush1.bf16.msra.mxu0 %v9733
    %10011 = vmatprep.subr.bf16.mxu0 %v9718
    %10012 = vmatpush1.bf16.msra.mxu0 %v9717
    %10013 = vmatprep.subr.bf16.mxu0 %v9702
    %10014 = vmatpush1.bf16.msra.mxu0 %v9701
    %10015 = vmatprep.subr.bf16.mxu0 %v9686
    %10016 = vmatpush1.bf16.msra.mxu0 %v9685
    %10017 = vmatprep.subr.bf16.mxu0 %v9670
    %10018 = vmatpush1.bf16.msra.mxu0 %v9669
    %10019 = vmatprep.subr.bf16.mxu0 0
    %10020 = vmatpush2.bf16.msra.mxu0 0
    %10021 = vmatprep.subr.bf16.mxu0 0
    %10022 = vmatpush2.bf16.msra.mxu0 0
    %10023 = vmatprep.subr.bf16.mxu0 0
    %10024 = vmatpush2.bf16.msra.mxu0 0
    %10025 = vmatprep.subr.bf16.mxu0 0
    %10026 = vmatpush2.bf16.msra.mxu0 0
    %10027 = vmatprep.subr.bf16.mxu0 0
    %10028 = vmatpush2.bf16.msra.mxu0 0
    %10029 = vmatprep.subr.bf16.mxu0 0
    %10030 = vmatpush2.bf16.msra.mxu0 0
    %10031 = vmatprep.subr.bf16.mxu0 0
    %10032 = vmatpush2.bf16.msra.mxu0 0
    %10033 = vmatprep.subr.bf16.mxu0 0
    %10034 = vmatpush2.bf16.msra.mxu0 0
    %10035 = vmatprep.mubr.bf16.mxu0 0
    %10036 = vmatmul.mubr.bf16.gmra.mxu0 %v6404
    %v10037 = vpop.f32.mrf.mxu0
    %v10038 = vadd.f32 %v9220, %v10037
    %v10039 = vpop.f32.mrf.mxu0
    %v10040 = vadd.f32 %v9224, %v10039
    %v10041 = vpop.f32.mrf.mxu0
    %v10042 = vpop.f32.mrf.mxu0
    %10043 = vdwg.mxu0
    %10044 = vmatprep.subr.bf16.mxu0 %v9784
    %10045 = vmatpush1.bf16.msra.mxu0 %v9783
    %10046 = vmatprep.subr.bf16.mxu0 %v9768
    %10047 = vmatpush1.bf16.msra.mxu0 %v9767
    %10048 = vmatprep.subr.bf16.mxu0 %v9752
    %10049 = vmatpush1.bf16.msra.mxu0 %v9751
    %10050 = vmatprep.subr.bf16.mxu0 %v9736
    %10051 = vmatpush1.bf16.msra.mxu0 %v9735
    %10052 = vmatprep.subr.bf16.mxu0 %v9720
    %10053 = vmatpush1.bf16.msra.mxu0 %v9719
    %10054 = vmatprep.subr.bf16.mxu0 %v9704
    %10055 = vmatpush1.bf16.msra.mxu0 %v9703
    %10056 = vmatprep.subr.bf16.mxu0 %v9688
    %10057 = vmatpush1.bf16.msra.mxu0 %v9687
    %10058 = vmatprep.subr.bf16.mxu0 %v9672
    %10059 = vmatpush1.bf16.msra.mxu0 %v9671
    %10060 = vmatprep.subr.bf16.mxu0 0
    %10061 = vmatpush2.bf16.msra.mxu0 0
    %10062 = vmatprep.subr.bf16.mxu0 0
    %10063 = vmatpush2.bf16.msra.mxu0 0
    %10064 = vmatprep.subr.bf16.mxu0 0
    %10065 = vmatpush2.bf16.msra.mxu0 0
    %10066 = vmatprep.subr.bf16.mxu0 0
    %10067 = vmatpush2.bf16.msra.mxu0 0
    %10068 = vmatprep.subr.bf16.mxu0 0
    %10069 = vmatpush2.bf16.msra.mxu0 0
    %10070 = vmatprep.subr.bf16.mxu0 0
    %10071 = vmatpush2.bf16.msra.mxu0 0
    %10072 = vmatprep.subr.bf16.mxu0 0
    %10073 = vmatpush2.bf16.msra.mxu0 0
    %10074 = vmatprep.subr.bf16.mxu0 0
    %10075 = vmatpush2.bf16.msra.mxu0 0
    %10076 = vmatprep.mubr.bf16.mxu0 0
    %10077 = vmatmul.mubr.bf16.gmra.mxu0 %v6404
    %v10078 = vpop.f32.mrf.mxu0
    %v10079 = vadd.f32 %v9228, %v10078
    %v10080 = vpop.f32.mrf.mxu0
    %v10081 = vadd.f32 %v9232, %v10080
    %v10082 = vpop.f32.mrf.mxu0
    %v10083 = vpop.f32.mrf.mxu0
    %10084 = vdwg.mxu0
    %10085 = vmatprep.subr.bf16.mxu0 %v9786
    %10086 = vmatpush1.bf16.msra.mxu0 %v9785
    %10087 = vmatprep.subr.bf16.mxu0 %v9770
    %10088 = vmatpush1.bf16.msra.mxu0 %v9769
    %10089 = vmatprep.subr.bf16.mxu0 %v9754
    %10090 = vmatpush1.bf16.msra.mxu0 %v9753
    %10091 = vmatprep.subr.bf16.mxu0 %v9738
    %10092 = vmatpush1.bf16.msra.mxu0 %v9737
    %10093 = vmatprep.subr.bf16.mxu0 %v9722
    %10094 = vmatpush1.bf16.msra.mxu0 %v9721
    %10095 = vmatprep.subr.bf16.mxu0 %v9706
    %10096 = vmatpush1.bf16.msra.mxu0 %v9705
    %10097 = vmatprep.subr.bf16.mxu0 %v9690
    %10098 = vmatpush1.bf16.msra.mxu0 %v9689
    %10099 = vmatprep.subr.bf16.mxu0 %v9674
    %10100 = vmatpush1.bf16.msra.mxu0 %v9673
    %10101 = vmatprep.subr.bf16.mxu0 0
    %10102 = vmatpush2.bf16.msra.mxu0 0
    %10103 = vmatprep.subr.bf16.mxu0 0
    %10104 = vmatpush2.bf16.msra.mxu0 0
    %10105 = vmatprep.subr.bf16.mxu0 0
    %10106 = vmatpush2.bf16.msra.mxu0 0
    %10107 = vmatprep.subr.bf16.mxu0 0
    %10108 = vmatpush2.bf16.msra.mxu0 0
    %10109 = vmatprep.subr.bf16.mxu0 0
    %10110 = vmatpush2.bf16.msra.mxu0 0
    %10111 = vmatprep.subr.bf16.mxu0 0
    %10112 = vmatpush2.bf16.msra.mxu0 0
    %10113 = vmatprep.subr.bf16.mxu0 0
    %10114 = vmatpush2.bf16.msra.mxu0 0
    %10115 = vmatprep.subr.bf16.mxu0 0
    %10116 = vmatpush2.bf16.msra.mxu0 0
    %10117 = vmatprep.mubr.bf16.mxu0 0
    %10118 = vmatmul.mubr.bf16.gmra.mxu0 %v6404
    %v10119 = vpop.f32.mrf.mxu0
    %v10120 = vadd.f32 %v9236, %v10119
    %v10121 = vpop.f32.mrf.mxu0
    %v10122 = vadd.f32 %v9240, %v10121
    %v10123 = vpop.f32.mrf.mxu0
    %v10124 = vpop.f32.mrf.mxu0
    %10125 = vdwg.mxu0
    %10126 = vmatprep.subr.bf16.mxu0 %v9788
    %10127 = vmatpush1.bf16.msra.mxu0 %v9787
    %10128 = vmatprep.subr.bf16.mxu0 %v9772
    %10129 = vmatpush1.bf16.msra.mxu0 %v9771
    %10130 = vmatprep.subr.bf16.mxu0 %v9756
    %10131 = vmatpush1.bf16.msra.mxu0 %v9755
    %10132 = vmatprep.subr.bf16.mxu0 %v9740
    %10133 = vmatpush1.bf16.msra.mxu0 %v9739
    %10134 = vmatprep.subr.bf16.mxu0 %v9724
    %10135 = vmatpush1.bf16.msra.mxu0 %v9723
    %10136 = vmatprep.subr.bf16.mxu0 %v9708
    %10137 = vmatpush1.bf16.msra.mxu0 %v9707
    %10138 = vmatprep.subr.bf16.mxu0 %v9692
    %10139 = vmatpush1.bf16.msra.mxu0 %v9691
    %10140 = vmatprep.subr.bf16.mxu0 %v9676
    %10141 = vmatpush1.bf16.msra.mxu0 %v9675
    %10142 = vmatprep.subr.bf16.mxu0 0
    %10143 = vmatpush2.bf16.msra.mxu0 0
    %10144 = vmatprep.subr.bf16.mxu0 0
    %10145 = vmatpush2.bf16.msra.mxu0 0
    %10146 = vmatprep.subr.bf16.mxu0 0
    %10147 = vmatpush2.bf16.msra.mxu0 0
    %10148 = vmatprep.subr.bf16.mxu0 0
    %10149 = vmatpush2.bf16.msra.mxu0 0
    %10150 = vmatprep.subr.bf16.mxu0 0
    %10151 = vmatpush2.bf16.msra.mxu0 0
    %10152 = vmatprep.subr.bf16.mxu0 0
    %10153 = vmatpush2.bf16.msra.mxu0 0
    %10154 = vmatprep.subr.bf16.mxu0 0
    %10155 = vmatpush2.bf16.msra.mxu0 0
    %10156 = vmatprep.subr.bf16.mxu0 0
    %10157 = vmatpush2.bf16.msra.mxu0 0
    %10158 = vmatprep.mubr.bf16.mxu0 0
    %10159 = vmatmul.mubr.bf16.gmra.mxu0 %v6404
    %v10160 = vpop.f32.mrf.mxu0
    %v10161 = vadd.f32 %v9244, %v10160
    %v10162 = vpop.f32.mrf.mxu0
    %v10163 = vadd.f32 %v9248, %v10162
    %v10164 = vpop.f32.mrf.mxu0
    %v10165 = vpop.f32.mrf.mxu0
    %10166 = vdwg.mxu0
    %10167 = vmatprep.subr.bf16.mxu0 %v9790
    %10168 = vmatpush1.bf16.msra.mxu0 %v9789
    %10169 = vmatprep.subr.bf16.mxu0 %v9774
    %10170 = vmatpush1.bf16.msra.mxu0 %v9773
    %10171 = vmatprep.subr.bf16.mxu0 %v9758
    %10172 = vmatpush1.bf16.msra.mxu0 %v9757
    %10173 = vmatprep.subr.bf16.mxu0 %v9742
    %10174 = vmatpush1.bf16.msra.mxu0 %v9741
    %10175 = vmatprep.subr.bf16.mxu0 %v9726
    %10176 = vmatpush1.bf16.msra.mxu0 %v9725
    %10177 = vmatprep.subr.bf16.mxu0 %v9710
    %10178 = vmatpush1.bf16.msra.mxu0 %v9709
    %10179 = vmatprep.subr.bf16.mxu0 %v9694
    %10180 = vmatpush1.bf16.msra.mxu0 %v9693
    %10181 = vmatprep.subr.bf16.mxu0 %v9678
    %10182 = vmatpush1.bf16.msra.mxu0 %v9677
    %10183 = vmatprep.subr.bf16.mxu0 0
    %10184 = vmatpush2.bf16.msra.mxu0 0
    %10185 = vmatprep.subr.bf16.mxu0 0
    %10186 = vmatpush2.bf16.msra.mxu0 0
    %10187 = vmatprep.subr.bf16.mxu0 0
    %10188 = vmatpush2.bf16.msra.mxu0 0
    %10189 = vmatprep.subr.bf16.mxu0 0
    %10190 = vmatpush2.bf16.msra.mxu0 0
    %10191 = vmatprep.subr.bf16.mxu0 0
    %10192 = vmatpush2.bf16.msra.mxu0 0
    %10193 = vmatprep.subr.bf16.mxu0 0
    %10194 = vmatpush2.bf16.msra.mxu0 0
    %10195 = vmatprep.subr.bf16.mxu0 0
    %10196 = vmatpush2.bf16.msra.mxu0 0
    %10197 = vmatprep.subr.bf16.mxu0 0
    %10198 = vmatpush2.bf16.msra.mxu0 0
    %10199 = vmatprep.mubr.bf16.mxu0 0
    %10200 = vmatmul.mubr.bf16.gmra.mxu0 %v6404
    %v10201 = vpop.f32.mrf.mxu0
    %v10202 = vadd.f32 %v9252, %v10201
    %v10203 = vpop.f32.mrf.mxu0
    %v10204 = vadd.f32 %v9256, %v10203
    %v10205 = vpop.f32.mrf.mxu0
    %v10206 = vpop.f32.mrf.mxu0
    %10207 = vdwg.mxu0
    %10208 = vmatprep.subr.bf16.mxu0 %v9792
    %10209 = vmatpush1.bf16.msra.mxu0 %v9791
    %10210 = vmatprep.subr.bf16.mxu0 %v9776
    %10211 = vmatpush1.bf16.msra.mxu0 %v9775
    %10212 = vmatprep.subr.bf16.mxu0 %v9760
    %10213 = vmatpush1.bf16.msra.mxu0 %v9759
    %10214 = vmatprep.subr.bf16.mxu0 %v9744
    %10215 = vmatpush1.bf16.msra.mxu0 %v9743
    %10216 = vmatprep.subr.bf16.mxu0 %v9728
    %10217 = vmatpush1.bf16.msra.mxu0 %v9727
    %10218 = vmatprep.subr.bf16.mxu0 %v9712
    %10219 = vmatpush1.bf16.msra.mxu0 %v9711
    %10220 = vmatprep.subr.bf16.mxu0 %v9696
    %10221 = vmatpush1.bf16.msra.mxu0 %v9695
    %10222 = vmatprep.subr.bf16.mxu0 %v9680
    %10223 = vmatpush1.bf16.msra.mxu0 %v9679
    %10224 = vmatprep.subr.bf16.mxu0 0
    %10225 = vmatpush2.bf16.msra.mxu0 0
    %10226 = vmatprep.subr.bf16.mxu0 0
    %10227 = vmatpush2.bf16.msra.mxu0 0
    %10228 = vmatprep.subr.bf16.mxu0 0
    %10229 = vmatpush2.bf16.msra.mxu0 0
    %10230 = vmatprep.subr.bf16.mxu0 0
    %10231 = vmatpush2.bf16.msra.mxu0 0
    %10232 = vmatprep.subr.bf16.mxu0 0
    %10233 = vmatpush2.bf16.msra.mxu0 0
    %10234 = vmatprep.subr.bf16.mxu0 0
    %10235 = vmatpush2.bf16.msra.mxu0 0
    %10236 = vmatprep.subr.bf16.mxu0 0
    %10237 = vmatpush2.bf16.msra.mxu0 0
    %10238 = vmatprep.subr.bf16.mxu0 0
    %10239 = vmatpush2.bf16.msra.mxu0 0
    %10240 = vmatprep.mubr.bf16.mxu0 0
    %10241 = vmatmul.mubr.bf16.gmra.mxu0 %v6404
    %v10242 = vpop.f32.mrf.mxu0
    %v10243 = vadd.f32 %v9260, %v10242
    %v10244 = vpop.f32.mrf.mxu0
    %v10245 = vadd.f32 %v9264, %v10244
    %v10246 = vpop.f32.mrf.mxu0
    %v10247 = vpop.f32.mrf.mxu0
    %10248 = vdwg.mxu0
    %v10249 = vsub.f32 0.0, %v9956
    %v10250 = vsub.f32 0.0, %v9958
    %v10251 = vsub.f32 0.0, %v9997
    %v10252 = vsub.f32 0.0, %v9999
    %v10253 = vsub.f32 0.0, %v10038
    %v10254 = vsub.f32 0.0, %v10040
    %v10255 = vsub.f32 0.0, %v10079
    %v10256 = vsub.f32 0.0, %v10081
    %v10257 = vsub.f32 0.0, %v10120
    %v10258 = vsub.f32 0.0, %v10122
    %v10259 = vsub.f32 0.0, %v10161
    %v10260 = vsub.f32 0.0, %v10163
    %v10261 = vsub.f32 0.0, %v10202
    %v10262 = vsub.f32 0.0, %v10204
    %v10263 = vsub.f32 0.0, %v10243
    %v10264 = vsub.f32 0.0, %v10245
    %v10265 = vmul.f32 %v10249, 1.442695
    %v10266 = vpow.pop %v10265
    %v10267 = vmul.f32 %v10250, 1.442695
    %v10268 = vpow.pop %v10267
    %v10269 = vmul.f32 %v10251, 1.442695
    %v10270 = vpow.pop %v10269
    %v10271 = vmul.f32 %v10252, 1.442695
    %v10272 = vpow.pop %v10271
    %v10273 = vmul.f32 %v10253, 1.442695
    %v10274 = vpow.pop %v10273
    %v10275 = vmul.f32 %v10254, 1.442695
    %v10276 = vpow.pop %v10275
    %v10277 = vmul.f32 %v10255, 1.442695
    %v10278 = vpow.pop %v10277
    %v10279 = vmul.f32 %v10256, 1.442695
    %v10280 = vpow.pop %v10279
    %v10281 = vmul.f32 %v10257, 1.442695
    %v10282 = vpow.pop %v10281
    %v10283 = vmul.f32 %v10258, 1.442695
    %v10284 = vpow.pop %v10283
    %v10285 = vmul.f32 %v10259, 1.442695
    %v10286 = vpow.pop %v10285
    %v10287 = vmul.f32 %v10260, 1.442695
    %v10288 = vpow.pop %v10287
    %v10289 = vmul.f32 %v10261, 1.442695
    %v10290 = vpow.pop %v10289
    %v10291 = vmul.f32 %v10262, 1.442695
    %v10292 = vpow.pop %v10291
    %v10293 = vmul.f32 %v10263, 1.442695
    %v10294 = vpow.pop %v10293
    %v10295 = vmul.f32 %v10264, 1.442695
    %v10296 = vpow.pop %v10295
    %v10297 = vadd.f32 %v10266, 1.0
    %v10298 = vadd.f32 %v10268, 1.0
    %v10299 = vadd.f32 %v10270, 1.0
    %v10300 = vadd.f32 %v10272, 1.0
    %v10301 = vadd.f32 %v10274, 1.0
    %v10302 = vadd.f32 %v10276, 1.0
    %v10303 = vadd.f32 %v10278, 1.0
    %v10304 = vadd.f32 %v10280, 1.0
    %v10305 = vadd.f32 %v10282, 1.0
    %v10306 = vadd.f32 %v10284, 1.0
    %v10307 = vadd.f32 %v10286, 1.0
    %v10308 = vadd.f32 %v10288, 1.0
    %v10309 = vadd.f32 %v10290, 1.0
    %v10310 = vadd.f32 %v10292, 1.0
    %v10311 = vadd.f32 %v10294, 1.0
    %v10312 = vadd.f32 %v10296, 1.0
    %v10313 = vrcp.pop %v10297
    %v10314 = vrcp.pop %v10298
    %v10315 = vrcp.pop %v10299
    %v10316 = vrcp.pop %v10300
    %v10317 = vrcp.pop %v10301
    %v10318 = vrcp.pop %v10302
    %v10319 = vrcp.pop %v10303
    %v10320 = vrcp.pop %v10304
    %v10321 = vrcp.pop %v10305
    %v10322 = vrcp.pop %v10306
    %v10323 = vrcp.pop %v10307
    %v10324 = vrcp.pop %v10308
    %v10325 = vrcp.pop %v10309
    %v10326 = vrcp.pop %v10310
    %v10327 = vrcp.pop %v10311
    %v10328 = vrcp.pop %v10312
    %v10329 = vpack.c.bf16 %v10313, %v10313
    %v10330 = vpack.c.bf16 %v10314, %v10314
    %v10331 = vpack.c.bf16 %v10315, %v10315
    %v10332 = vpack.c.bf16 %v10316, %v10316
    %v10333 = vpack.c.bf16 %v10317, %v10317
    %v10334 = vpack.c.bf16 %v10318, %v10318
    %v10335 = vpack.c.bf16 %v10319, %v10319
    %v10336 = vpack.c.bf16 %v10320, %v10320
    %v10337 = vpack.c.bf16 %v10321, %v10321
    %v10338 = vpack.c.bf16 %v10322, %v10322
    %v10339 = vpack.c.bf16 %v10323, %v10323
    %v10340 = vpack.c.bf16 %v10324, %v10324
    %v10341 = vpack.c.bf16 %v10325, %v10325
    %v10342 = vpack.c.bf16 %v10326, %v10326
    %v10343 = vpack.c.bf16 %v10327, %v10327
    %v10344 = vpack.c.bf16 %v10328, %v10328
    %v10361 = vunpack.c.l.b16 %v10329
    %v10362 = vunpack.c.l.b16 %v10330
    %v10363 = vunpack.c.l.b16 %v10331
    %v10364 = vunpack.c.l.b16 %v10332
    %v10365 = vunpack.c.l.b16 %v10333
    %v10366 = vunpack.c.l.b16 %v10334
    %v10367 = vunpack.c.l.b16 %v10335
    %v10368 = vunpack.c.l.b16 %v10336
    %v10369 = vunpack.c.l.b16 %v10337
    %v10370 = vunpack.c.l.b16 %v10338
    %v10371 = vunpack.c.l.b16 %v10339
    %v10372 = vunpack.c.l.b16 %v10340
    %v10373 = vunpack.c.l.b16 %v10341
    %v10374 = vunpack.c.l.b16 %v10342
    %v10375 = vunpack.c.l.b16 %v10343
    %v10376 = vunpack.c.l.b16 %v10344
    %v10377 = vpack.c.b16 %v10362, %v10361
    %v10378 = vpack.c.b16 %v10364, %v10363
    %v10379 = vpack.c.b16 %v10366, %v10365
    %v10380 = vpack.c.b16 %v10368, %v10367
    %v10381 = vpack.c.b16 %v10370, %v10369
    %v10382 = vpack.c.b16 %v10372, %v10371
    %v10383 = vpack.c.b16 %v10374, %v10373
    %v10384 = vpack.c.b16 %v10376, %v10375
    %10393 = vst [vmem:[#allocation25 + $0x80] sm:$0xff] %v10377
    %10394 = vst [vmem:[#allocation25 + $0x88] sm:$0xff] %v10378
    %10395 = vst [vmem:[#allocation25 + $0x90] sm:$0xff] %v10379
    %10396 = vst [vmem:[#allocation25 + $0x98] sm:$0xff] %v10380
    %10397 = vst [vmem:[#allocation25 + $0xa0] sm:$0xff] %v10381
    %10398 = vst [vmem:[#allocation25 + $0xa8] sm:$0xff] %v10382
    %10399 = vst [vmem:[#allocation25 + $0xb0] sm:$0xff] %v10383
    %10400 = vst [vmem:[#allocation25 + $0xb8] sm:$0xff] %v10384
    %v10401 = vld [vmem:[#allocation22 + $0xc0] sm:$0xff]
    %v10402 = vld [vmem:[#allocation22 + $0xc8] sm:$0xff]
    %v10403 = vld [vmem:[#allocation22 + $0xd0] sm:$0xff]
    %v10404 = vld [vmem:[#allocation22 + $0xd8] sm:$0xff]
    %v10405 = vld [vmem:[#allocation22 + $0xe0] sm:$0xff]
    %v10406 = vld [vmem:[#allocation22 + $0xe8] sm:$0xff]
    %v10407 = vld [vmem:[#allocation22 + $0xf0] sm:$0xff]
    %v10408 = vld [vmem:[#allocation22 + $0xf8] sm:$0xff]
    %v10409 = vld [vmem:[#allocation22 + $0x1c0] sm:$0xff]
    %v10410 = vld [vmem:[#allocation22 + $0x1c8] sm:$0xff]
    %v10411 = vld [vmem:[#allocation22 + $0x1d0] sm:$0xff]
    %v10412 = vld [vmem:[#allocation22 + $0x1d8] sm:$0xff]
    %v10413 = vld [vmem:[#allocation22 + $0x1e0] sm:$0xff]
    %v10414 = vld [vmem:[#allocation22 + $0x1e8] sm:$0xff]
    %v10415 = vld [vmem:[#allocation22 + $0x1f0] sm:$0xff]
    %v10416 = vld [vmem:[#allocation22 + $0x1f8] sm:$0xff]
    %v10417 = vld [vmem:[#allocation22 + $0x2c0] sm:$0xff]
    %v10418 = vld [vmem:[#allocation22 + $0x2c8] sm:$0xff]
    %v10419 = vld [vmem:[#allocation22 + $0x2d0] sm:$0xff]
    %v10420 = vld [vmem:[#allocation22 + $0x2d8] sm:$0xff]
    %v10421 = vld [vmem:[#allocation22 + $0x2e0] sm:$0xff]
    %v10422 = vld [vmem:[#allocation22 + $0x2e8] sm:$0xff]
    %v10423 = vld [vmem:[#allocation22 + $0x2f0] sm:$0xff]
    %v10424 = vld [vmem:[#allocation22 + $0x2f8] sm:$0xff]
    %v10425 = vld [vmem:[#allocation22 + $0x3c0] sm:$0xff]
    %v10426 = vld [vmem:[#allocation22 + $0x3c8] sm:$0xff]
    %v10427 = vld [vmem:[#allocation22 + $0x3d0] sm:$0xff]
    %v10428 = vld [vmem:[#allocation22 + $0x3d8] sm:$0xff]
    %v10429 = vld [vmem:[#allocation22 + $0x3e0] sm:$0xff]
    %v10430 = vld [vmem:[#allocation22 + $0x3e8] sm:$0xff]
    %v10431 = vld [vmem:[#allocation22 + $0x3f0] sm:$0xff]
    %v10432 = vld [vmem:[#allocation22 + $0x3f8] sm:$0xff]
    %v10433 = vld [vmem:[#allocation22 + $0x4c0] sm:$0xff]
    %v10434 = vld [vmem:[#allocation22 + $0x4c8] sm:$0xff]
    %v10435 = vld [vmem:[#allocation22 + $0x4d0] sm:$0xff]
    %v10436 = vld [vmem:[#allocation22 + $0x4d8] sm:$0xff]
    %v10437 = vld [vmem:[#allocation22 + $0x4e0] sm:$0xff]
    %v10438 = vld [vmem:[#allocation22 + $0x4e8] sm:$0xff]
    %v10439 = vld [vmem:[#allocation22 + $0x4f0] sm:$0xff]
    %v10440 = vld [vmem:[#allocation22 + $0x4f8] sm:$0xff]
    %v10441 = vld [vmem:[#allocation22 + $0x5c0] sm:$0xff]
    %v10442 = vld [vmem:[#allocation22 + $0x5c8] sm:$0xff]
    %v10443 = vld [vmem:[#allocation22 + $0x5d0] sm:$0xff]
    %v10444 = vld [vmem:[#allocation22 + $0x5d8] sm:$0xff]
    %v10445 = vld [vmem:[#allocation22 + $0x5e0] sm:$0xff]
    %v10446 = vld [vmem:[#allocation22 + $0x5e8] sm:$0xff]
    %v10447 = vld [vmem:[#allocation22 + $0x5f0] sm:$0xff]
    %v10448 = vld [vmem:[#allocation22 + $0x5f8] sm:$0xff]
    %v10449 = vld [vmem:[#allocation22 + $0x6c0] sm:$0xff]
    %v10450 = vld [vmem:[#allocation22 + $0x6c8] sm:$0xff]
    %v10451 = vld [vmem:[#allocation22 + $0x6d0] sm:$0xff]
    %v10452 = vld [vmem:[#allocation22 + $0x6d8] sm:$0xff]
    %v10453 = vld [vmem:[#allocation22 + $0x6e0] sm:$0xff]
    %v10454 = vld [vmem:[#allocation22 + $0x6e8] sm:$0xff]
    %v10455 = vld [vmem:[#allocation22 + $0x6f0] sm:$0xff]
    %v10456 = vld [vmem:[#allocation22 + $0x6f8] sm:$0xff]
    %v10457 = vld [vmem:[#allocation22 + $0x7c0] sm:$0xff]
    %v10458 = vld [vmem:[#allocation22 + $0x7c8] sm:$0xff]
    %v10459 = vld [vmem:[#allocation22 + $0x7d0] sm:$0xff]
    %v10460 = vld [vmem:[#allocation22 + $0x7d8] sm:$0xff]
    %v10461 = vld [vmem:[#allocation22 + $0x7e0] sm:$0xff]
    %v10462 = vld [vmem:[#allocation22 + $0x7e8] sm:$0xff]
    %v10463 = vld [vmem:[#allocation22 + $0x7f0] sm:$0xff]
    %v10464 = vld [vmem:[#allocation22 + $0x7f8] sm:$0xff]
    %v10465 = vld [vmem:[#allocation22 + $0x8c0] sm:$0xff]
    %v10466 = vld [vmem:[#allocation22 + $0x8c8] sm:$0xff]
    %v10467 = vld [vmem:[#allocation22 + $0x8d0] sm:$0xff]
    %v10468 = vld [vmem:[#allocation22 + $0x8d8] sm:$0xff]
    %v10469 = vld [vmem:[#allocation22 + $0x8e0] sm:$0xff]
    %v10470 = vld [vmem:[#allocation22 + $0x8e8] sm:$0xff]
    %v10471 = vld [vmem:[#allocation22 + $0x8f0] sm:$0xff]
    %v10472 = vld [vmem:[#allocation22 + $0x8f8] sm:$0xff]
    %v10473 = vld [vmem:[#allocation22 + $0x9c0] sm:$0xff]
    %v10474 = vld [vmem:[#allocation22 + $0x9c8] sm:$0xff]
    %v10475 = vld [vmem:[#allocation22 + $0x9d0] sm:$0xff]
    %v10476 = vld [vmem:[#allocation22 + $0x9d8] sm:$0xff]
    %v10477 = vld [vmem:[#allocation22 + $0x9e0] sm:$0xff]
    %v10478 = vld [vmem:[#allocation22 + $0x9e8] sm:$0xff]
    %v10479 = vld [vmem:[#allocation22 + $0x9f0] sm:$0xff]
    %v10480 = vld [vmem:[#allocation22 + $0x9f8] sm:$0xff]
    %v10481 = vld [vmem:[#allocation22 + $0xac0] sm:$0xff]
    %v10482 = vld [vmem:[#allocation22 + $0xac8] sm:$0xff]
    %v10483 = vld [vmem:[#allocation22 + $0xad0] sm:$0xff]
    %v10484 = vld [vmem:[#allocation22 + $0xad8] sm:$0xff]
    %v10485 = vld [vmem:[#allocation22 + $0xae0] sm:$0xff]
    %v10486 = vld [vmem:[#allocation22 + $0xae8] sm:$0xff]
    %v10487 = vld [vmem:[#allocation22 + $0xaf0] sm:$0xff]
    %v10488 = vld [vmem:[#allocation22 + $0xaf8] sm:$0xff]
    %v10489 = vld [vmem:[#allocation22 + $0xbc0] sm:$0xff]
    %v10490 = vld [vmem:[#allocation22 + $0xbc8] sm:$0xff]
    %v10491 = vld [vmem:[#allocation22 + $0xbd0] sm:$0xff]
    %v10492 = vld [vmem:[#allocation22 + $0xbd8] sm:$0xff]
    %v10493 = vld [vmem:[#allocation22 + $0xbe0] sm:$0xff]
    %v10494 = vld [vmem:[#allocation22 + $0xbe8] sm:$0xff]
    %v10495 = vld [vmem:[#allocation22 + $0xbf0] sm:$0xff]
    %v10496 = vld [vmem:[#allocation22 + $0xbf8] sm:$0xff]
    %v10497 = vld [vmem:[#allocation22 + $0xcc0] sm:$0xff]
    %v10498 = vld [vmem:[#allocation22 + $0xcc8] sm:$0xff]
    %v10499 = vld [vmem:[#allocation22 + $0xcd0] sm:$0xff]
    %v10500 = vld [vmem:[#allocation22 + $0xcd8] sm:$0xff]
    %v10501 = vld [vmem:[#allocation22 + $0xce0] sm:$0xff]
    %v10502 = vld [vmem:[#allocation22 + $0xce8] sm:$0xff]
    %v10503 = vld [vmem:[#allocation22 + $0xcf0] sm:$0xff]
    %v10504 = vld [vmem:[#allocation22 + $0xcf8] sm:$0xff]
    %v10505 = vld [vmem:[#allocation22 + $0xdc0] sm:$0xff]
    %v10506 = vld [vmem:[#allocation22 + $0xdc8] sm:$0xff]
    %v10507 = vld [vmem:[#allocation22 + $0xdd0] sm:$0xff]
    %v10508 = vld [vmem:[#allocation22 + $0xdd8] sm:$0xff]
    %v10509 = vld [vmem:[#allocation22 + $0xde0] sm:$0xff]
    %v10510 = vld [vmem:[#allocation22 + $0xde8] sm:$0xff]
    %v10511 = vld [vmem:[#allocation22 + $0xdf0] sm:$0xff]
    %v10512 = vld [vmem:[#allocation22 + $0xdf8] sm:$0xff]
    %v10513 = vld [vmem:[#allocation22 + $0xec0] sm:$0xff]
    %v10514 = vld [vmem:[#allocation22 + $0xec8] sm:$0xff]
    %v10515 = vld [vmem:[#allocation22 + $0xed0] sm:$0xff]
    %v10516 = vld [vmem:[#allocation22 + $0xed8] sm:$0xff]
    %v10517 = vld [vmem:[#allocation22 + $0xee0] sm:$0xff]
    %v10518 = vld [vmem:[#allocation22 + $0xee8] sm:$0xff]
    %v10519 = vld [vmem:[#allocation22 + $0xef0] sm:$0xff]
    %v10520 = vld [vmem:[#allocation22 + $0xef8] sm:$0xff]
    %v10521 = vld [vmem:[#allocation22 + $0xfc0] sm:$0xff]
    %v10522 = vld [vmem:[#allocation22 + $0xfc8] sm:$0xff]
    %v10523 = vld [vmem:[#allocation22 + $0xfd0] sm:$0xff]
    %v10524 = vld [vmem:[#allocation22 + $0xfd8] sm:$0xff]
    %v10525 = vld [vmem:[#allocation22 + $0xfe0] sm:$0xff]
    %v10526 = vld [vmem:[#allocation22 + $0xfe8] sm:$0xff]
    %v10527 = vld [vmem:[#allocation22 + $0xff0] sm:$0xff]
    %v10528 = vld [vmem:[#allocation22 + $0xff8] sm:$0xff]
    %v10529 = vld [vmem:[#allocation23 + $0x30] sm:$0xff]
    %v10530 = vld [vmem:[#allocation23 + $0x38] sm:$0xff]
    %v10533 = vlaneseq
    %v10534 = vshrl.u32 %v10533, 7
    %v10535 = vsub.s32 0, %v10534
    %v10536 = vrot.slane %v10529, %v10535
    %v10537 = vlaneseq
    %v10538 = vshrl.u32 %v10537, 7
    %v10539 = vsub.s32 1, %v10538
    %v10540 = vrot.slane %v10529, %v10539
    %v10541 = vlaneseq
    %v10542 = vshrl.u32 %v10541, 7
    %v10543 = vsub.s32 2, %v10542
    %v10544 = vrot.slane %v10529, %v10543
    %v10545 = vlaneseq
    %v10546 = vshrl.u32 %v10545, 7
    %v10547 = vsub.s32 3, %v10546
    %v10548 = vrot.slane %v10529, %v10547
    %v10549 = vlaneseq
    %v10550 = vshrl.u32 %v10549, 7
    %v10551 = vsub.s32 4, %v10550
    %v10552 = vrot.slane %v10529, %v10551
    %v10553 = vlaneseq
    %v10554 = vshrl.u32 %v10553, 7
    %v10555 = vsub.s32 5, %v10554
    %v10556 = vrot.slane %v10529, %v10555
    %v10557 = vlaneseq
    %v10558 = vshrl.u32 %v10557, 7
    %v10559 = vsub.s32 6, %v10558
    %v10560 = vrot.slane %v10529, %v10559
    %v10561 = vlaneseq
    %v10562 = vshrl.u32 %v10561, 7
    %v10563 = vsub.s32 7, %v10562
    %v10564 = vrot.slane %v10529, %v10563
    %v10565 = vlaneseq
    %v10566 = vshrl.u32 %v10565, 7
    %v10567 = vsub.s32 0, %v10566
    %v10568 = vrot.slane %v10530, %v10567
    %v10569 = vlaneseq
    %v10570 = vshrl.u32 %v10569, 7
    %v10571 = vsub.s32 1, %v10570
    %v10572 = vrot.slane %v10530, %v10571
    %v10573 = vlaneseq
    %v10574 = vshrl.u32 %v10573, 7
    %v10575 = vsub.s32 2, %v10574
    %v10576 = vrot.slane %v10530, %v10575
    %v10577 = vlaneseq
    %v10578 = vshrl.u32 %v10577, 7
    %v10579 = vsub.s32 3, %v10578
    %v10580 = vrot.slane %v10530, %v10579
    %v10581 = vlaneseq
    %v10582 = vshrl.u32 %v10581, 7
    %v10583 = vsub.s32 4, %v10582
    %v10584 = vrot.slane %v10530, %v10583
    %v10585 = vlaneseq
    %v10586 = vshrl.u32 %v10585, 7
    %v10587 = vsub.s32 5, %v10586
    %v10588 = vrot.slane %v10530, %v10587
    %v10589 = vlaneseq
    %v10590 = vshrl.u32 %v10589, 7
    %v10591 = vsub.s32 6, %v10590
    %v10592 = vrot.slane %v10530, %v10591
    %v10593 = vlaneseq
    %v10594 = vshrl.u32 %v10593, 7
    %v10595 = vsub.s32 7, %v10594
    %v10596 = vrot.slane %v10530, %v10595
    %v10741 = vunpack.c.l.b16 %v10401
    %v10742 = vunpack.c.h.b16 %v10401
    %v10743 = vunpack.c.l.b16 %v10402
    %v10744 = vunpack.c.h.b16 %v10402
    %v10745 = vunpack.c.l.b16 %v10403
    %v10746 = vunpack.c.h.b16 %v10403
    %v10747 = vunpack.c.l.b16 %v10404
    %v10748 = vunpack.c.h.b16 %v10404
    %v10749 = vunpack.c.l.b16 %v10405
    %v10750 = vunpack.c.h.b16 %v10405
    %v10751 = vunpack.c.l.b16 %v10406
    %v10752 = vunpack.c.h.b16 %v10406
    %v10753 = vunpack.c.l.b16 %v10407
    %v10754 = vunpack.c.h.b16 %v10407
    %v10755 = vunpack.c.l.b16 %v10408
    %v10756 = vunpack.c.h.b16 %v10408
    %v10757 = vunpack.c.l.b16 %v10409
    %v10758 = vunpack.c.h.b16 %v10409
    %v10759 = vunpack.c.l.b16 %v10410
    %v10760 = vunpack.c.h.b16 %v10410
    %v10761 = vunpack.c.l.b16 %v10411
    %v10762 = vunpack.c.h.b16 %v10411
    %v10763 = vunpack.c.l.b16 %v10412
    %v10764 = vunpack.c.h.b16 %v10412
    %v10765 = vunpack.c.l.b16 %v10413
    %v10766 = vunpack.c.h.b16 %v10413
    %v10767 = vunpack.c.l.b16 %v10414
    %v10768 = vunpack.c.h.b16 %v10414
    %v10769 = vunpack.c.l.b16 %v10415
    %v10770 = vunpack.c.h.b16 %v10415
    %v10771 = vunpack.c.l.b16 %v10416
    %v10772 = vunpack.c.h.b16 %v10416
    %v10773 = vunpack.c.l.b16 %v10417
    %v10774 = vunpack.c.h.b16 %v10417
    %v10775 = vunpack.c.l.b16 %v10418
    %v10776 = vunpack.c.h.b16 %v10418
    %v10777 = vunpack.c.l.b16 %v10419
    %v10778 = vunpack.c.h.b16 %v10419
    %v10779 = vunpack.c.l.b16 %v10420
    %v10780 = vunpack.c.h.b16 %v10420
    %v10781 = vunpack.c.l.b16 %v10421
    %v10782 = vunpack.c.h.b16 %v10421
    %v10783 = vunpack.c.l.b16 %v10422
    %v10784 = vunpack.c.h.b16 %v10422
    %v10785 = vunpack.c.l.b16 %v10423
    %v10786 = vunpack.c.h.b16 %v10423
    %v10787 = vunpack.c.l.b16 %v10424
    %v10788 = vunpack.c.h.b16 %v10424
    %v10789 = vunpack.c.l.b16 %v10425
    %v10790 = vunpack.c.h.b16 %v10425
    %v10791 = vunpack.c.l.b16 %v10426
    %v10792 = vunpack.c.h.b16 %v10426
    %v10793 = vunpack.c.l.b16 %v10427
    %v10794 = vunpack.c.h.b16 %v10427
    %v10795 = vunpack.c.l.b16 %v10428
    %v10796 = vunpack.c.h.b16 %v10428
    %v10797 = vunpack.c.l.b16 %v10429
    %v10798 = vunpack.c.h.b16 %v10429
    %v10799 = vunpack.c.l.b16 %v10430
    %v10800 = vunpack.c.h.b16 %v10430
    %v10801 = vunpack.c.l.b16 %v10431
    %v10802 = vunpack.c.h.b16 %v10431
    %v10803 = vunpack.c.l.b16 %v10432
    %v10804 = vunpack.c.h.b16 %v10432
    %v10805 = vunpack.c.l.b16 %v10433
    %v10806 = vunpack.c.h.b16 %v10433
    %v10807 = vunpack.c.l.b16 %v10434
    %v10808 = vunpack.c.h.b16 %v10434
    %v10809 = vunpack.c.l.b16 %v10435
    %v10810 = vunpack.c.h.b16 %v10435
    %v10811 = vunpack.c.l.b16 %v10436
    %v10812 = vunpack.c.h.b16 %v10436
    %v10813 = vunpack.c.l.b16 %v10437
    %v10814 = vunpack.c.h.b16 %v10437
    %v10815 = vunpack.c.l.b16 %v10438
    %v10816 = vunpack.c.h.b16 %v10438
    %v10817 = vunpack.c.l.b16 %v10439
    %v10818 = vunpack.c.h.b16 %v10439
    %v10819 = vunpack.c.l.b16 %v10440
    %v10820 = vunpack.c.h.b16 %v10440
    %v10821 = vunpack.c.l.b16 %v10441
    %v10822 = vunpack.c.h.b16 %v10441
    %v10823 = vunpack.c.l.b16 %v10442
    %v10824 = vunpack.c.h.b16 %v10442
    %v10825 = vunpack.c.l.b16 %v10443
    %v10826 = vunpack.c.h.b16 %v10443
    %v10827 = vunpack.c.l.b16 %v10444
    %v10828 = vunpack.c.h.b16 %v10444
    %v10829 = vunpack.c.l.b16 %v10445
    %v10830 = vunpack.c.h.b16 %v10445
    %v10831 = vunpack.c.l.b16 %v10446
    %v10832 = vunpack.c.h.b16 %v10446
    %v10833 = vunpack.c.l.b16 %v10447
    %v10834 = vunpack.c.h.b16 %v10447
    %v10835 = vunpack.c.l.b16 %v10448
    %v10836 = vunpack.c.h.b16 %v10448
    %v10837 = vunpack.c.l.b16 %v10449
    %v10838 = vunpack.c.h.b16 %v10449
    %v10839 = vunpack.c.l.b16 %v10450
    %v10840 = vunpack.c.h.b16 %v10450
    %v10841 = vunpack.c.l.b16 %v10451
    %v10842 = vunpack.c.h.b16 %v10451
    %v10843 = vunpack.c.l.b16 %v10452
    %v10844 = vunpack.c.h.b16 %v10452
    %v10845 = vunpack.c.l.b16 %v10453
    %v10846 = vunpack.c.h.b16 %v10453
    %v10847 = vunpack.c.l.b16 %v10454
    %v10848 = vunpack.c.h.b16 %v10454
    %v10849 = vunpack.c.l.b16 %v10455
    %v10850 = vunpack.c.h.b16 %v10455
    %v10851 = vunpack.c.l.b16 %v10456
    %v10852 = vunpack.c.h.b16 %v10456
    %v10853 = vunpack.c.l.b16 %v10457
    %v10854 = vunpack.c.h.b16 %v10457
    %v10855 = vunpack.c.l.b16 %v10458
    %v10856 = vunpack.c.h.b16 %v10458
    %v10857 = vunpack.c.l.b16 %v10459
    %v10858 = vunpack.c.h.b16 %v10459
    %v10859 = vunpack.c.l.b16 %v10460
    %v10860 = vunpack.c.h.b16 %v10460
    %v10861 = vunpack.c.l.b16 %v10461
    %v10862 = vunpack.c.h.b16 %v10461
    %v10863 = vunpack.c.l.b16 %v10462
    %v10864 = vunpack.c.h.b16 %v10462
    %v10865 = vunpack.c.l.b16 %v10463
    %v10866 = vunpack.c.h.b16 %v10463
    %v10867 = vunpack.c.l.b16 %v10464
    %v10868 = vunpack.c.h.b16 %v10464
    %v10869 = vunpack.c.l.b16 %v10465
    %v10870 = vunpack.c.h.b16 %v10465
    %v10871 = vunpack.c.l.b16 %v10466
    %v10872 = vunpack.c.h.b16 %v10466
    %v10873 = vunpack.c.l.b16 %v10467
    %v10874 = vunpack.c.h.b16 %v10467
    %v10875 = vunpack.c.l.b16 %v10468
    %v10876 = vunpack.c.h.b16 %v10468
    %v10877 = vunpack.c.l.b16 %v10469
    %v10878 = vunpack.c.h.b16 %v10469
    %v10879 = vunpack.c.l.b16 %v10470
    %v10880 = vunpack.c.h.b16 %v10470
    %v10881 = vunpack.c.l.b16 %v10471
    %v10882 = vunpack.c.h.b16 %v10471
    %v10883 = vunpack.c.l.b16 %v10472
    %v10884 = vunpack.c.h.b16 %v10472
    %v10885 = vunpack.c.l.b16 %v10473
    %v10886 = vunpack.c.h.b16 %v10473
    %v10887 = vunpack.c.l.b16 %v10474
    %v10888 = vunpack.c.h.b16 %v10474
    %v10889 = vunpack.c.l.b16 %v10475
    %v10890 = vunpack.c.h.b16 %v10475
    %v10891 = vunpack.c.l.b16 %v10476
    %v10892 = vunpack.c.h.b16 %v10476
    %v10893 = vunpack.c.l.b16 %v10477
    %v10894 = vunpack.c.h.b16 %v10477
    %v10895 = vunpack.c.l.b16 %v10478
    %v10896 = vunpack.c.h.b16 %v10478
    %v10897 = vunpack.c.l.b16 %v10479
    %v10898 = vunpack.c.h.b16 %v10479
    %v10899 = vunpack.c.l.b16 %v10480
    %v10900 = vunpack.c.h.b16 %v10480
    %v10901 = vunpack.c.l.b16 %v10481
    %v10902 = vunpack.c.h.b16 %v10481
    %v10903 = vunpack.c.l.b16 %v10482
    %v10904 = vunpack.c.h.b16 %v10482
    %v10905 = vunpack.c.l.b16 %v10483
    %v10906 = vunpack.c.h.b16 %v10483
    %v10907 = vunpack.c.l.b16 %v10484
    %v10908 = vunpack.c.h.b16 %v10484
    %v10909 = vunpack.c.l.b16 %v10485
    %v10910 = vunpack.c.h.b16 %v10485
    %v10911 = vunpack.c.l.b16 %v10486
    %v10912 = vunpack.c.h.b16 %v10486
    %v10913 = vunpack.c.l.b16 %v10487
    %v10914 = vunpack.c.h.b16 %v10487
    %v10915 = vunpack.c.l.b16 %v10488
    %v10916 = vunpack.c.h.b16 %v10488
    %v10917 = vunpack.c.l.b16 %v10489
    %v10918 = vunpack.c.h.b16 %v10489
    %v10919 = vunpack.c.l.b16 %v10490
    %v10920 = vunpack.c.h.b16 %v10490
    %v10921 = vunpack.c.l.b16 %v10491
    %v10922 = vunpack.c.h.b16 %v10491
    %v10923 = vunpack.c.l.b16 %v10492
    %v10924 = vunpack.c.h.b16 %v10492
    %v10925 = vunpack.c.l.b16 %v10493
    %v10926 = vunpack.c.h.b16 %v10493
    %v10927 = vunpack.c.l.b16 %v10494
    %v10928 = vunpack.c.h.b16 %v10494
    %v10929 = vunpack.c.l.b16 %v10495
    %v10930 = vunpack.c.h.b16 %v10495
    %v10931 = vunpack.c.l.b16 %v10496
    %v10932 = vunpack.c.h.b16 %v10496
    %v10933 = vunpack.c.l.b16 %v10497
    %v10934 = vunpack.c.h.b16 %v10497
    %v10935 = vunpack.c.l.b16 %v10498
    %v10936 = vunpack.c.h.b16 %v10498
    %v10937 = vunpack.c.l.b16 %v10499
    %v10938 = vunpack.c.h.b16 %v10499
    %v10939 = vunpack.c.l.b16 %v10500
    %v10940 = vunpack.c.h.b16 %v10500
    %v10941 = vunpack.c.l.b16 %v10501
    %v10942 = vunpack.c.h.b16 %v10501
    %v10943 = vunpack.c.l.b16 %v10502
    %v10944 = vunpack.c.h.b16 %v10502
    %v10945 = vunpack.c.l.b16 %v10503
    %v10946 = vunpack.c.h.b16 %v10503
    %v10947 = vunpack.c.l.b16 %v10504
    %v10948 = vunpack.c.h.b16 %v10504
    %v10949 = vunpack.c.l.b16 %v10505
    %v10950 = vunpack.c.h.b16 %v10505
    %v10951 = vunpack.c.l.b16 %v10506
    %v10952 = vunpack.c.h.b16 %v10506
    %v10953 = vunpack.c.l.b16 %v10507
    %v10954 = vunpack.c.h.b16 %v10507
    %v10955 = vunpack.c.l.b16 %v10508
    %v10956 = vunpack.c.h.b16 %v10508
    %v10957 = vunpack.c.l.b16 %v10509
    %v10958 = vunpack.c.h.b16 %v10509
    %v10959 = vunpack.c.l.b16 %v10510
    %v10960 = vunpack.c.h.b16 %v10510
    %v10961 = vunpack.c.l.b16 %v10511
    %v10962 = vunpack.c.h.b16 %v10511
    %v10963 = vunpack.c.l.b16 %v10512
    %v10964 = vunpack.c.h.b16 %v10512
    %v10965 = vunpack.c.l.b16 %v10513
    %v10966 = vunpack.c.h.b16 %v10513
    %v10967 = vunpack.c.l.b16 %v10514
    %v10968 = vunpack.c.h.b16 %v10514
    %v10969 = vunpack.c.l.b16 %v10515
    %v10970 = vunpack.c.h.b16 %v10515
    %v10971 = vunpack.c.l.b16 %v10516
    %v10972 = vunpack.c.h.b16 %v10516
    %v10973 = vunpack.c.l.b16 %v10517
    %v10974 = vunpack.c.h.b16 %v10517
    %v10975 = vunpack.c.l.b16 %v10518
    %v10976 = vunpack.c.h.b16 %v10518
    %v10977 = vunpack.c.l.b16 %v10519
    %v10978 = vunpack.c.h.b16 %v10519
    %v10979 = vunpack.c.l.b16 %v10520
    %v10980 = vunpack.c.h.b16 %v10520
    %v10981 = vunpack.c.l.b16 %v10521
    %v10982 = vunpack.c.h.b16 %v10521
    %v10983 = vunpack.c.l.b16 %v10522
    %v10984 = vunpack.c.h.b16 %v10522
    %v10985 = vunpack.c.l.b16 %v10523
    %v10986 = vunpack.c.h.b16 %v10523
    %v10987 = vunpack.c.l.b16 %v10524
    %v10988 = vunpack.c.h.b16 %v10524
    %v10989 = vunpack.c.l.b16 %v10525
    %v10990 = vunpack.c.h.b16 %v10525
    %v10991 = vunpack.c.l.b16 %v10526
    %v10992 = vunpack.c.h.b16 %v10526
    %v10993 = vunpack.c.l.b16 %v10527
    %v10994 = vunpack.c.h.b16 %v10527
    %v10995 = vunpack.c.l.b16 %v10528
    %v10996 = vunpack.c.h.b16 %v10528
    %v10997 = vpack.c.b16 %v10757, %v10741
    %v10998 = vpack.c.b16 %v10758, %v10742
    %v10999 = vpack.c.b16 %v10759, %v10743
    %v11000 = vpack.c.b16 %v10760, %v10744
    %v11001 = vpack.c.b16 %v10761, %v10745
    %v11002 = vpack.c.b16 %v10762, %v10746
    %v11003 = vpack.c.b16 %v10763, %v10747
    %v11004 = vpack.c.b16 %v10764, %v10748
    %v11005 = vpack.c.b16 %v10765, %v10749
    %v11006 = vpack.c.b16 %v10766, %v10750
    %v11007 = vpack.c.b16 %v10767, %v10751
    %v11008 = vpack.c.b16 %v10768, %v10752
    %v11009 = vpack.c.b16 %v10769, %v10753
    %v11010 = vpack.c.b16 %v10770, %v10754
    %v11011 = vpack.c.b16 %v10771, %v10755
    %v11012 = vpack.c.b16 %v10772, %v10756
    %v11013 = vpack.c.b16 %v10789, %v10773
    %v11014 = vpack.c.b16 %v10790, %v10774
    %v11015 = vpack.c.b16 %v10791, %v10775
    %v11016 = vpack.c.b16 %v10792, %v10776
    %v11017 = vpack.c.b16 %v10793, %v10777
    %v11018 = vpack.c.b16 %v10794, %v10778
    %v11019 = vpack.c.b16 %v10795, %v10779
    %v11020 = vpack.c.b16 %v10796, %v10780
    %v11021 = vpack.c.b16 %v10797, %v10781
    %v11022 = vpack.c.b16 %v10798, %v10782
    %v11023 = vpack.c.b16 %v10799, %v10783
    %v11024 = vpack.c.b16 %v10800, %v10784
    %v11025 = vpack.c.b16 %v10801, %v10785
    %v11026 = vpack.c.b16 %v10802, %v10786
    %v11027 = vpack.c.b16 %v10803, %v10787
    %v11028 = vpack.c.b16 %v10804, %v10788
    %v11029 = vpack.c.b16 %v10821, %v10805
    %v11030 = vpack.c.b16 %v10822, %v10806
    %v11031 = vpack.c.b16 %v10823, %v10807
    %v11032 = vpack.c.b16 %v10824, %v10808
    %v11033 = vpack.c.b16 %v10825, %v10809
    %v11034 = vpack.c.b16 %v10826, %v10810
    %v11035 = vpack.c.b16 %v10827, %v10811
    %v11036 = vpack.c.b16 %v10828, %v10812
    %v11037 = vpack.c.b16 %v10829, %v10813
    %v11038 = vpack.c.b16 %v10830, %v10814
    %v11039 = vpack.c.b16 %v10831, %v10815
    %v11040 = vpack.c.b16 %v10832, %v10816
    %v11041 = vpack.c.b16 %v10833, %v10817
    %v11042 = vpack.c.b16 %v10834, %v10818
    %v11043 = vpack.c.b16 %v10835, %v10819
    %v11044 = vpack.c.b16 %v10836, %v10820
    %v11045 = vpack.c.b16 %v10853, %v10837
    %v11046 = vpack.c.b16 %v10854, %v10838
    %v11047 = vpack.c.b16 %v10855, %v10839
    %v11048 = vpack.c.b16 %v10856, %v10840
    %v11049 = vpack.c.b16 %v10857, %v10841
    %v11050 = vpack.c.b16 %v10858, %v10842
    %v11051 = vpack.c.b16 %v10859, %v10843
    %v11052 = vpack.c.b16 %v10860, %v10844
    %v11053 = vpack.c.b16 %v10861, %v10845
    %v11054 = vpack.c.b16 %v10862, %v10846
    %v11055 = vpack.c.b16 %v10863, %v10847
    %v11056 = vpack.c.b16 %v10864, %v10848
    %v11057 = vpack.c.b16 %v10865, %v10849
    %v11058 = vpack.c.b16 %v10866, %v10850
    %v11059 = vpack.c.b16 %v10867, %v10851
    %v11060 = vpack.c.b16 %v10868, %v10852
    %v11061 = vpack.c.b16 %v10885, %v10869
    %v11062 = vpack.c.b16 %v10886, %v10870
    %v11063 = vpack.c.b16 %v10887, %v10871
    %v11064 = vpack.c.b16 %v10888, %v10872
    %v11065 = vpack.c.b16 %v10889, %v10873
    %v11066 = vpack.c.b16 %v10890, %v10874
    %v11067 = vpack.c.b16 %v10891, %v10875
    %v11068 = vpack.c.b16 %v10892, %v10876
    %v11069 = vpack.c.b16 %v10893, %v10877
    %v11070 = vpack.c.b16 %v10894, %v10878
    %v11071 = vpack.c.b16 %v10895, %v10879
    %v11072 = vpack.c.b16 %v10896, %v10880
    %v11073 = vpack.c.b16 %v10897, %v10881
    %v11074 = vpack.c.b16 %v10898, %v10882
    %v11075 = vpack.c.b16 %v10899, %v10883
    %v11076 = vpack.c.b16 %v10900, %v10884
    %v11077 = vpack.c.b16 %v10917, %v10901
    %v11078 = vpack.c.b16 %v10918, %v10902
    %v11079 = vpack.c.b16 %v10919, %v10903
    %v11080 = vpack.c.b16 %v10920, %v10904
    %v11081 = vpack.c.b16 %v10921, %v10905
    %v11082 = vpack.c.b16 %v10922, %v10906
    %v11083 = vpack.c.b16 %v10923, %v10907
    %v11084 = vpack.c.b16 %v10924, %v10908
    %v11085 = vpack.c.b16 %v10925, %v10909
    %v11086 = vpack.c.b16 %v10926, %v10910
    %v11087 = vpack.c.b16 %v10927, %v10911
    %v11088 = vpack.c.b16 %v10928, %v10912
    %v11089 = vpack.c.b16 %v10929, %v10913
    %v11090 = vpack.c.b16 %v10930, %v10914
    %v11091 = vpack.c.b16 %v10931, %v10915
    %v11092 = vpack.c.b16 %v10932, %v10916
    %v11093 = vpack.c.b16 %v10949, %v10933
    %v11094 = vpack.c.b16 %v10950, %v10934
    %v11095 = vpack.c.b16 %v10951, %v10935
    %v11096 = vpack.c.b16 %v10952, %v10936
    %v11097 = vpack.c.b16 %v10953, %v10937
    %v11098 = vpack.c.b16 %v10954, %v10938
    %v11099 = vpack.c.b16 %v10955, %v10939
    %v11100 = vpack.c.b16 %v10956, %v10940
    %v11101 = vpack.c.b16 %v10957, %v10941
    %v11102 = vpack.c.b16 %v10958, %v10942
    %v11103 = vpack.c.b16 %v10959, %v10943
    %v11104 = vpack.c.b16 %v10960, %v10944
    %v11105 = vpack.c.b16 %v10961, %v10945
    %v11106 = vpack.c.b16 %v10962, %v10946
    %v11107 = vpack.c.b16 %v10963, %v10947
    %v11108 = vpack.c.b16 %v10964, %v10948
    %v11109 = vpack.c.b16 %v10981, %v10965
    %v11110 = vpack.c.b16 %v10982, %v10966
    %v11111 = vpack.c.b16 %v10983, %v10967
    %v11112 = vpack.c.b16 %v10984, %v10968
    %v11113 = vpack.c.b16 %v10985, %v10969
    %v11114 = vpack.c.b16 %v10986, %v10970
    %v11115 = vpack.c.b16 %v10987, %v10971
    %v11116 = vpack.c.b16 %v10988, %v10972
    %v11117 = vpack.c.b16 %v10989, %v10973
    %v11118 = vpack.c.b16 %v10990, %v10974
    %v11119 = vpack.c.b16 %v10991, %v10975
    %v11120 = vpack.c.b16 %v10992, %v10976
    %v11121 = vpack.c.b16 %v10993, %v10977
    %v11122 = vpack.c.b16 %v10994, %v10978
    %v11123 = vpack.c.b16 %v10995, %v10979
    %v11124 = vpack.c.b16 %v10996, %v10980
    %11253 = vmatprep.subr.bf16.mxu0 %v11110
    %11254 = vmatpush1.bf16.msra.mxu0 %v11109
    %11255 = vmatprep.subr.bf16.mxu0 %v11094
    %11256 = vmatpush1.bf16.msra.mxu0 %v11093
    %11257 = vmatprep.subr.bf16.mxu0 %v11078
    %11258 = vmatpush1.bf16.msra.mxu0 %v11077
    %11259 = vmatprep.subr.bf16.mxu0 %v11062
    %11260 = vmatpush1.bf16.msra.mxu0 %v11061
    %11261 = vmatprep.subr.bf16.mxu0 %v11046
    %11262 = vmatpush1.bf16.msra.mxu0 %v11045
    %11263 = vmatprep.subr.bf16.mxu0 %v11030
    %11264 = vmatpush1.bf16.msra.mxu0 %v11029
    %11265 = vmatprep.subr.bf16.mxu0 %v11014
    %11266 = vmatpush1.bf16.msra.mxu0 %v11013
    %11267 = vmatprep.subr.bf16.mxu0 %v10998
    %11268 = vmatpush1.bf16.msra.mxu0 %v10997
    %11269 = vmatprep.subr.bf16.mxu0 0
    %11270 = vmatpush2.bf16.msra.mxu0 0
    %11271 = vmatprep.subr.bf16.mxu0 0
    %11272 = vmatpush2.bf16.msra.mxu0 0
    %11273 = vmatprep.subr.bf16.mxu0 0
    %11274 = vmatpush2.bf16.msra.mxu0 0
    %11275 = vmatprep.subr.bf16.mxu0 0
    %11276 = vmatpush2.bf16.msra.mxu0 0
    %11277 = vmatprep.subr.bf16.mxu0 0
    %11278 = vmatpush2.bf16.msra.mxu0 0
    %11279 = vmatprep.subr.bf16.mxu0 0
    %11280 = vmatpush2.bf16.msra.mxu0 0
    %11281 = vmatprep.subr.bf16.mxu0 0
    %11282 = vmatpush2.bf16.msra.mxu0 0
    %11283 = vmatprep.subr.bf16.mxu0 0
    %11284 = vmatpush2.bf16.msra.mxu0 0
    %11285 = vmatprep.mubr.bf16.mxu0 0
    %11286 = vmatmul.mubr.bf16.gmra.mxu0 %v6404
    %v11287 = vpop.f32.mrf.mxu0
    %v11288 = vadd.f32 %v10536, %v11287
    %v11289 = vpop.f32.mrf.mxu0
    %v11290 = vadd.f32 %v10540, %v11289
    %v11291 = vpop.f32.mrf.mxu0
    %v11292 = vpop.f32.mrf.mxu0
    %11293 = vdwg.mxu0
    %11294 = vmatprep.subr.bf16.mxu0 %v11112
    %11295 = vmatpush1.bf16.msra.mxu0 %v11111
    %11296 = vmatprep.subr.bf16.mxu0 %v11096
    %11297 = vmatpush1.bf16.msra.mxu0 %v11095
    %11298 = vmatprep.subr.bf16.mxu0 %v11080
    %11299 = vmatpush1.bf16.msra.mxu0 %v11079
    %11300 = vmatprep.subr.bf16.mxu0 %v11064
    %11301 = vmatpush1.bf16.msra.mxu0 %v11063
    %11302 = vmatprep.subr.bf16.mxu0 %v11048
    %11303 = vmatpush1.bf16.msra.mxu0 %v11047
    %11304 = vmatprep.subr.bf16.mxu0 %v11032
    %11305 = vmatpush1.bf16.msra.mxu0 %v11031
    %11306 = vmatprep.subr.bf16.mxu0 %v11016
    %11307 = vmatpush1.bf16.msra.mxu0 %v11015
    %11308 = vmatprep.subr.bf16.mxu0 %v11000
    %11309 = vmatpush1.bf16.msra.mxu0 %v10999
    %11310 = vmatprep.subr.bf16.mxu0 0
    %11311 = vmatpush2.bf16.msra.mxu0 0
    %11312 = vmatprep.subr.bf16.mxu0 0
    %11313 = vmatpush2.bf16.msra.mxu0 0
    %11314 = vmatprep.subr.bf16.mxu0 0
    %11315 = vmatpush2.bf16.msra.mxu0 0
    %11316 = vmatprep.subr.bf16.mxu0 0
    %11317 = vmatpush2.bf16.msra.mxu0 0
    %11318 = vmatprep.subr.bf16.mxu0 0
    %11319 = vmatpush2.bf16.msra.mxu0 0
    %11320 = vmatprep.subr.bf16.mxu0 0
    %11321 = vmatpush2.bf16.msra.mxu0 0
    %11322 = vmatprep.subr.bf16.mxu0 0
    %11323 = vmatpush2.bf16.msra.mxu0 0
    %11324 = vmatprep.subr.bf16.mxu0 0
    %11325 = vmatpush2.bf16.msra.mxu0 0
    %11326 = vmatprep.mubr.bf16.mxu0 0
    %11327 = vmatmul.mubr.bf16.gmra.mxu0 %v6404
    %v11328 = vpop.f32.mrf.mxu0
    %v11329 = vadd.f32 %v10544, %v11328
    %v11330 = vpop.f32.mrf.mxu0
    %v11331 = vadd.f32 %v10548, %v11330
    %v11332 = vpop.f32.mrf.mxu0
    %v11333 = vpop.f32.mrf.mxu0
    %11334 = vdwg.mxu0
    %11335 = vmatprep.subr.bf16.mxu0 %v11114
    %11336 = vmatpush1.bf16.msra.mxu0 %v11113
    %11337 = vmatprep.subr.bf16.mxu0 %v11098
    %11338 = vmatpush1.bf16.msra.mxu0 %v11097
    %11339 = vmatprep.subr.bf16.mxu0 %v11082
    %11340 = vmatpush1.bf16.msra.mxu0 %v11081
    %11341 = vmatprep.subr.bf16.mxu0 %v11066
    %11342 = vmatpush1.bf16.msra.mxu0 %v11065
    %11343 = vmatprep.subr.bf16.mxu0 %v11050
    %11344 = vmatpush1.bf16.msra.mxu0 %v11049
    %11345 = vmatprep.subr.bf16.mxu0 %v11034
    %11346 = vmatpush1.bf16.msra.mxu0 %v11033
    %11347 = vmatprep.subr.bf16.mxu0 %v11018
    %11348 = vmatpush1.bf16.msra.mxu0 %v11017
    %11349 = vmatprep.subr.bf16.mxu0 %v11002
    %11350 = vmatpush1.bf16.msra.mxu0 %v11001
    %11351 = vmatprep.subr.bf16.mxu0 0
    %11352 = vmatpush2.bf16.msra.mxu0 0
    %11353 = vmatprep.subr.bf16.mxu0 0
    %11354 = vmatpush2.bf16.msra.mxu0 0
    %11355 = vmatprep.subr.bf16.mxu0 0
    %11356 = vmatpush2.bf16.msra.mxu0 0
    %11357 = vmatprep.subr.bf16.mxu0 0
    %11358 = vmatpush2.bf16.msra.mxu0 0
    %11359 = vmatprep.subr.bf16.mxu0 0
    %11360 = vmatpush2.bf16.msra.mxu0 0
    %11361 = vmatprep.subr.bf16.mxu0 0
    %11362 = vmatpush2.bf16.msra.mxu0 0
    %11363 = vmatprep.subr.bf16.mxu0 0
    %11364 = vmatpush2.bf16.msra.mxu0 0
    %11365 = vmatprep.subr.bf16.mxu0 0
    %11366 = vmatpush2.bf16.msra.mxu0 0
    %11367 = vmatprep.mubr.bf16.mxu0 0
    %11368 = vmatmul.mubr.bf16.gmra.mxu0 %v6404
    %v11369 = vpop.f32.mrf.mxu0
    %v11370 = vadd.f32 %v10552, %v11369
    %v11371 = vpop.f32.mrf.mxu0
    %v11372 = vadd.f32 %v10556, %v11371
    %v11373 = vpop.f32.mrf.mxu0
    %v11374 = vpop.f32.mrf.mxu0
    %11375 = vdwg.mxu0
    %11376 = vmatprep.subr.bf16.mxu0 %v11116
    %11377 = vmatpush1.bf16.msra.mxu0 %v11115
    %11378 = vmatprep.subr.bf16.mxu0 %v11100
    %11379 = vmatpush1.bf16.msra.mxu0 %v11099
    %11380 = vmatprep.subr.bf16.mxu0 %v11084
    %11381 = vmatpush1.bf16.msra.mxu0 %v11083
    %11382 = vmatprep.subr.bf16.mxu0 %v11068
    %11383 = vmatpush1.bf16.msra.mxu0 %v11067
    %11384 = vmatprep.subr.bf16.mxu0 %v11052
    %11385 = vmatpush1.bf16.msra.mxu0 %v11051
    %11386 = vmatprep.subr.bf16.mxu0 %v11036
    %11387 = vmatpush1.bf16.msra.mxu0 %v11035
    %11388 = vmatprep.subr.bf16.mxu0 %v11020
    %11389 = vmatpush1.bf16.msra.mxu0 %v11019
    %11390 = vmatprep.subr.bf16.mxu0 %v11004
    %11391 = vmatpush1.bf16.msra.mxu0 %v11003
    %11392 = vmatprep.subr.bf16.mxu0 0
    %11393 = vmatpush2.bf16.msra.mxu0 0
    %11394 = vmatprep.subr.bf16.mxu0 0
    %11395 = vmatpush2.bf16.msra.mxu0 0
    %11396 = vmatprep.subr.bf16.mxu0 0
    %11397 = vmatpush2.bf16.msra.mxu0 0
    %11398 = vmatprep.subr.bf16.mxu0 0
    %11399 = vmatpush2.bf16.msra.mxu0 0
    %11400 = vmatprep.subr.bf16.mxu0 0
    %11401 = vmatpush2.bf16.msra.mxu0 0
    %11402 = vmatprep.subr.bf16.mxu0 0
    %11403 = vmatpush2.bf16.msra.mxu0 0
    %11404 = vmatprep.subr.bf16.mxu0 0
    %11405 = vmatpush2.bf16.msra.mxu0 0
    %11406 = vmatprep.subr.bf16.mxu0 0
    %11407 = vmatpush2.bf16.msra.mxu0 0
    %11408 = vmatprep.mubr.bf16.mxu0 0
    %11409 = vmatmul.mubr.bf16.gmra.mxu0 %v6404
    %v11410 = vpop.f32.mrf.mxu0
    %v11411 = vadd.f32 %v10560, %v11410
    %v11412 = vpop.f32.mrf.mxu0
    %v11413 = vadd.f32 %v10564, %v11412
    %v11414 = vpop.f32.mrf.mxu0
    %v11415 = vpop.f32.mrf.mxu0
    %11416 = vdwg.mxu0
    %11417 = vmatprep.subr.bf16.mxu0 %v11118
    %11418 = vmatpush1.bf16.msra.mxu0 %v11117
    %11419 = vmatprep.subr.bf16.mxu0 %v11102
    %11420 = vmatpush1.bf16.msra.mxu0 %v11101
    %11421 = vmatprep.subr.bf16.mxu0 %v11086
    %11422 = vmatpush1.bf16.msra.mxu0 %v11085
    %11423 = vmatprep.subr.bf16.mxu0 %v11070
    %11424 = vmatpush1.bf16.msra.mxu0 %v11069
    %11425 = vmatprep.subr.bf16.mxu0 %v11054
    %11426 = vmatpush1.bf16.msra.mxu0 %v11053
    %11427 = vmatprep.subr.bf16.mxu0 %v11038
    %11428 = vmatpush1.bf16.msra.mxu0 %v11037
    %11429 = vmatprep.subr.bf16.mxu0 %v11022
    %11430 = vmatpush1.bf16.msra.mxu0 %v11021
    %11431 = vmatprep.subr.bf16.mxu0 %v11006
    %11432 = vmatpush1.bf16.msra.mxu0 %v11005
    %11433 = vmatprep.subr.bf16.mxu0 0
    %11434 = vmatpush2.bf16.msra.mxu0 0
    %11435 = vmatprep.subr.bf16.mxu0 0
    %11436 = vmatpush2.bf16.msra.mxu0 0
    %11437 = vmatprep.subr.bf16.mxu0 0
    %11438 = vmatpush2.bf16.msra.mxu0 0
    %11439 = vmatprep.subr.bf16.mxu0 0
    %11440 = vmatpush2.bf16.msra.mxu0 0
    %11441 = vmatprep.subr.bf16.mxu0 0
    %11442 = vmatpush2.bf16.msra.mxu0 0
    %11443 = vmatprep.subr.bf16.mxu0 0
    %11444 = vmatpush2.bf16.msra.mxu0 0
    %11445 = vmatprep.subr.bf16.mxu0 0
    %11446 = vmatpush2.bf16.msra.mxu0 0
    %11447 = vmatprep.subr.bf16.mxu0 0
    %11448 = vmatpush2.bf16.msra.mxu0 0
    %11449 = vmatprep.mubr.bf16.mxu0 0
    %11450 = vmatmul.mubr.bf16.gmra.mxu0 %v6404
    %v11451 = vpop.f32.mrf.mxu0
    %v11452 = vadd.f32 %v10568, %v11451
    %v11453 = vpop.f32.mrf.mxu0
    %v11454 = vadd.f32 %v10572, %v11453
    %v11455 = vpop.f32.mrf.mxu0
    %v11456 = vpop.f32.mrf.mxu0
    %11457 = vdwg.mxu0
    %11458 = vmatprep.subr.bf16.mxu0 %v11120
    %11459 = vmatpush1.bf16.msra.mxu0 %v11119
    %11460 = vmatprep.subr.bf16.mxu0 %v11104
    %11461 = vmatpush1.bf16.msra.mxu0 %v11103
    %11462 = vmatprep.subr.bf16.mxu0 %v11088
    %11463 = vmatpush1.bf16.msra.mxu0 %v11087
    %11464 = vmatprep.subr.bf16.mxu0 %v11072
    %11465 = vmatpush1.bf16.msra.mxu0 %v11071
    %11466 = vmatprep.subr.bf16.mxu0 %v11056
    %11467 = vmatpush1.bf16.msra.mxu0 %v11055
    %11468 = vmatprep.subr.bf16.mxu0 %v11040
    %11469 = vmatpush1.bf16.msra.mxu0 %v11039
    %11470 = vmatprep.subr.bf16.mxu0 %v11024
    %11471 = vmatpush1.bf16.msra.mxu0 %v11023
    %11472 = vmatprep.subr.bf16.mxu0 %v11008
    %11473 = vmatpush1.bf16.msra.mxu0 %v11007
    %11474 = vmatprep.subr.bf16.mxu0 0
    %11475 = vmatpush2.bf16.msra.mxu0 0
    %11476 = vmatprep.subr.bf16.mxu0 0
    %11477 = vmatpush2.bf16.msra.mxu0 0
    %11478 = vmatprep.subr.bf16.mxu0 0
    %11479 = vmatpush2.bf16.msra.mxu0 0
    %11480 = vmatprep.subr.bf16.mxu0 0
    %11481 = vmatpush2.bf16.msra.mxu0 0
    %11482 = vmatprep.subr.bf16.mxu0 0
    %11483 = vmatpush2.bf16.msra.mxu0 0
    %11484 = vmatprep.subr.bf16.mxu0 0
    %11485 = vmatpush2.bf16.msra.mxu0 0
    %11486 = vmatprep.subr.bf16.mxu0 0
    %11487 = vmatpush2.bf16.msra.mxu0 0
    %11488 = vmatprep.subr.bf16.mxu0 0
    %11489 = vmatpush2.bf16.msra.mxu0 0
    %11490 = vmatprep.mubr.bf16.mxu0 0
    %11491 = vmatmul.mubr.bf16.gmra.mxu0 %v6404
    %v11492 = vpop.f32.mrf.mxu0
    %v11493 = vadd.f32 %v10576, %v11492
    %v11494 = vpop.f32.mrf.mxu0
    %v11495 = vadd.f32 %v10580, %v11494
    %v11496 = vpop.f32.mrf.mxu0
    %v11497 = vpop.f32.mrf.mxu0
    %11498 = vdwg.mxu0
    %11499 = vmatprep.subr.bf16.mxu0 %v11122
    %11500 = vmatpush1.bf16.msra.mxu0 %v11121
    %11501 = vmatprep.subr.bf16.mxu0 %v11106
    %11502 = vmatpush1.bf16.msra.mxu0 %v11105
    %11503 = vmatprep.subr.bf16.mxu0 %v11090
    %11504 = vmatpush1.bf16.msra.mxu0 %v11089
    %11505 = vmatprep.subr.bf16.mxu0 %v11074
    %11506 = vmatpush1.bf16.msra.mxu0 %v11073
    %11507 = vmatprep.subr.bf16.mxu0 %v11058
    %11508 = vmatpush1.bf16.msra.mxu0 %v11057
    %11509 = vmatprep.subr.bf16.mxu0 %v11042
    %11510 = vmatpush1.bf16.msra.mxu0 %v11041
    %11511 = vmatprep.subr.bf16.mxu0 %v11026
    %11512 = vmatpush1.bf16.msra.mxu0 %v11025
    %11513 = vmatprep.subr.bf16.mxu0 %v11010
    %11514 = vmatpush1.bf16.msra.mxu0 %v11009
    %11515 = vmatprep.subr.bf16.mxu0 0
    %11516 = vmatpush2.bf16.msra.mxu0 0
    %11517 = vmatprep.subr.bf16.mxu0 0
    %11518 = vmatpush2.bf16.msra.mxu0 0
    %11519 = vmatprep.subr.bf16.mxu0 0
    %11520 = vmatpush2.bf16.msra.mxu0 0
    %11521 = vmatprep.subr.bf16.mxu0 0
    %11522 = vmatpush2.bf16.msra.mxu0 0
    %11523 = vmatprep.subr.bf16.mxu0 0
    %11524 = vmatpush2.bf16.msra.mxu0 0
    %11525 = vmatprep.subr.bf16.mxu0 0
    %11526 = vmatpush2.bf16.msra.mxu0 0
    %11527 = vmatprep.subr.bf16.mxu0 0
    %11528 = vmatpush2.bf16.msra.mxu0 0
    %11529 = vmatprep.subr.bf16.mxu0 0
    %11530 = vmatpush2.bf16.msra.mxu0 0
    %11531 = vmatprep.mubr.bf16.mxu0 0
    %11532 = vmatmul.mubr.bf16.gmra.mxu0 %v6404
    %v11533 = vpop.f32.mrf.mxu0
    %v11534 = vadd.f32 %v10584, %v11533
    %v11535 = vpop.f32.mrf.mxu0
    %v11536 = vadd.f32 %v10588, %v11535
    %v11537 = vpop.f32.mrf.mxu0
    %v11538 = vpop.f32.mrf.mxu0
    %11539 = vdwg.mxu0
    %11540 = vmatprep.subr.bf16.mxu0 %v11124
    %11541 = vmatpush1.bf16.msra.mxu0 %v11123
    %11542 = vmatprep.subr.bf16.mxu0 %v11108
    %11543 = vmatpush1.bf16.msra.mxu0 %v11107
    %11544 = vmatprep.subr.bf16.mxu0 %v11092
    %11545 = vmatpush1.bf16.msra.mxu0 %v11091
    %11546 = vmatprep.subr.bf16.mxu0 %v11076
    %11547 = vmatpush1.bf16.msra.mxu0 %v11075
    %11548 = vmatprep.subr.bf16.mxu0 %v11060
    %11549 = vmatpush1.bf16.msra.mxu0 %v11059
    %11550 = vmatprep.subr.bf16.mxu0 %v11044
    %11551 = vmatpush1.bf16.msra.mxu0 %v11043
    %11552 = vmatprep.subr.bf16.mxu0 %v11028
    %11553 = vmatpush1.bf16.msra.mxu0 %v11027
    %11554 = vmatprep.subr.bf16.mxu0 %v11012
    %11555 = vmatpush1.bf16.msra.mxu0 %v11011
    %11556 = vmatprep.subr.bf16.mxu0 0
    %11557 = vmatpush2.bf16.msra.mxu0 0
    %11558 = vmatprep.subr.bf16.mxu0 0
    %11559 = vmatpush2.bf16.msra.mxu0 0
    %11560 = vmatprep.subr.bf16.mxu0 0
    %11561 = vmatpush2.bf16.msra.mxu0 0
    %11562 = vmatprep.subr.bf16.mxu0 0
    %11563 = vmatpush2.bf16.msra.mxu0 0
    %11564 = vmatprep.subr.bf16.mxu0 0
    %11565 = vmatpush2.bf16.msra.mxu0 0
    %11566 = vmatprep.subr.bf16.mxu0 0
    %11567 = vmatpush2.bf16.msra.mxu0 0
    %11568 = vmatprep.subr.bf16.mxu0 0
    %11569 = vmatpush2.bf16.msra.mxu0 0
    %11570 = vmatprep.subr.bf16.mxu0 0
    %11571 = vmatpush2.bf16.msra.mxu0 0
    %11572 = vmatprep.mubr.bf16.mxu0 0
    %11573 = vmatmul.mubr.bf16.gmra.mxu0 %v6404
    %v11574 = vpop.f32.mrf.mxu0
    %v11575 = vadd.f32 %v10592, %v11574
    %v11576 = vpop.f32.mrf.mxu0
    %v11577 = vadd.f32 %v10596, %v11576
    %v11578 = vpop.f32.mrf.mxu0
    %v11579 = vpop.f32.mrf.mxu0
    %11580 = vdwg.mxu0
    %v11581 = vsub.f32 0.0, %v11288
    %v11582 = vsub.f32 0.0, %v11290
    %v11583 = vsub.f32 0.0, %v11329
    %v11584 = vsub.f32 0.0, %v11331
    %v11585 = vsub.f32 0.0, %v11370
    %v11586 = vsub.f32 0.0, %v11372
    %v11587 = vsub.f32 0.0, %v11411
    %v11588 = vsub.f32 0.0, %v11413
    %v11589 = vsub.f32 0.0, %v11452
    %v11590 = vsub.f32 0.0, %v11454
    %v11591 = vsub.f32 0.0, %v11493
    %v11592 = vsub.f32 0.0, %v11495
    %v11593 = vsub.f32 0.0, %v11534
    %v11594 = vsub.f32 0.0, %v11536
    %v11595 = vsub.f32 0.0, %v11575
    %v11596 = vsub.f32 0.0, %v11577
    %v11597 = vmul.f32 %v11581, 1.442695
    %v11598 = vpow.pop %v11597
    %v11599 = vmul.f32 %v11582, 1.442695
    %v11600 = vpow.pop %v11599
    %v11601 = vmul.f32 %v11583, 1.442695
    %v11602 = vpow.pop %v11601
    %v11603 = vmul.f32 %v11584, 1.442695
    %v11604 = vpow.pop %v11603
    %v11605 = vmul.f32 %v11585, 1.442695
    %v11606 = vpow.pop %v11605
    %v11607 = vmul.f32 %v11586, 1.442695
    %v11608 = vpow.pop %v11607
    %v11609 = vmul.f32 %v11587, 1.442695
    %v11610 = vpow.pop %v11609
    %v11611 = vmul.f32 %v11588, 1.442695
    %v11612 = vpow.pop %v11611
    %v11613 = vmul.f32 %v11589, 1.442695
    %v11614 = vpow.pop %v11613
    %v11615 = vmul.f32 %v11590, 1.442695
    %v11616 = vpow.pop %v11615
    %v11617 = vmul.f32 %v11591, 1.442695
    %v11618 = vpow.pop %v11617
    %v11619 = vmul.f32 %v11592, 1.442695
    %v11620 = vpow.pop %v11619
    %v11621 = vmul.f32 %v11593, 1.442695
    %v11622 = vpow.pop %v11621
    %v11623 = vmul.f32 %v11594, 1.442695
    %v11624 = vpow.pop %v11623
    %v11625 = vmul.f32 %v11595, 1.442695
    %v11626 = vpow.pop %v11625
    %v11627 = vmul.f32 %v11596, 1.442695
    %v11628 = vpow.pop %v11627
    %v11629 = vadd.f32 %v11598, 1.0
    %v11630 = vadd.f32 %v11600, 1.0
    %v11631 = vadd.f32 %v11602, 1.0
    %v11632 = vadd.f32 %v11604, 1.0
    %v11633 = vadd.f32 %v11606, 1.0
    %v11634 = vadd.f32 %v11608, 1.0
    %v11635 = vadd.f32 %v11610, 1.0
    %v11636 = vadd.f32 %v11612, 1.0
    %v11637 = vadd.f32 %v11614, 1.0
    %v11638 = vadd.f32 %v11616, 1.0
    %v11639 = vadd.f32 %v11618, 1.0
    %v11640 = vadd.f32 %v11620, 1.0
    %v11641 = vadd.f32 %v11622, 1.0
    %v11642 = vadd.f32 %v11624, 1.0
    %v11643 = vadd.f32 %v11626, 1.0
    %v11644 = vadd.f32 %v11628, 1.0
    %v11645 = vrcp.pop %v11629
    %v11646 = vrcp.pop %v11630
    %v11647 = vrcp.pop %v11631
    %v11648 = vrcp.pop %v11632
    %v11649 = vrcp.pop %v11633
    %v11650 = vrcp.pop %v11634
    %v11651 = vrcp.pop %v11635
    %v11652 = vrcp.pop %v11636
    %v11653 = vrcp.pop %v11637
    %v11654 = vrcp.pop %v11638
    %v11655 = vrcp.pop %v11639
    %v11656 = vrcp.pop %v11640
    %v11657 = vrcp.pop %v11641
    %v11658 = vrcp.pop %v11642
    %v11659 = vrcp.pop %v11643
    %v11660 = vrcp.pop %v11644
    %v11661 = vpack.c.bf16 %v11645, %v11645
    %v11662 = vpack.c.bf16 %v11646, %v11646
    %v11663 = vpack.c.bf16 %v11647, %v11647
    %v11664 = vpack.c.bf16 %v11648, %v11648
    %v11665 = vpack.c.bf16 %v11649, %v11649
    %v11666 = vpack.c.bf16 %v11650, %v11650
    %v11667 = vpack.c.bf16 %v11651, %v11651
    %v11668 = vpack.c.bf16 %v11652, %v11652
    %v11669 = vpack.c.bf16 %v11653, %v11653
    %v11670 = vpack.c.bf16 %v11654, %v11654
    %v11671 = vpack.c.bf16 %v11655, %v11655
    %v11672 = vpack.c.bf16 %v11656, %v11656
    %v11673 = vpack.c.bf16 %v11657, %v11657
    %v11674 = vpack.c.bf16 %v11658, %v11658
    %v11675 = vpack.c.bf16 %v11659, %v11659
    %v11676 = vpack.c.bf16 %v11660, %v11660
    %v11693 = vunpack.c.l.b16 %v11661
    %v11694 = vunpack.c.l.b16 %v11662
    %v11695 = vunpack.c.l.b16 %v11663
    %v11696 = vunpack.c.l.b16 %v11664
    %v11697 = vunpack.c.l.b16 %v11665
    %v11698 = vunpack.c.l.b16 %v11666
    %v11699 = vunpack.c.l.b16 %v11667
    %v11700 = vunpack.c.l.b16 %v11668
    %v11701 = vunpack.c.l.b16 %v11669
    %v11702 = vunpack.c.l.b16 %v11670
    %v11703 = vunpack.c.l.b16 %v11671
    %v11704 = vunpack.c.l.b16 %v11672
    %v11705 = vunpack.c.l.b16 %v11673
    %v11706 = vunpack.c.l.b16 %v11674
    %v11707 = vunpack.c.l.b16 %v11675
    %v11708 = vunpack.c.l.b16 %v11676
    %v11709 = vpack.c.b16 %v11694, %v11693
    %v11710 = vpack.c.b16 %v11696, %v11695
    %v11711 = vpack.c.b16 %v11698, %v11697
    %v11712 = vpack.c.b16 %v11700, %v11699
    %v11713 = vpack.c.b16 %v11702, %v11701
    %v11714 = vpack.c.b16 %v11704, %v11703
    %v11715 = vpack.c.b16 %v11706, %v11705
    %v11716 = vpack.c.b16 %v11708, %v11707
    %11725 = vst [vmem:[#allocation25 + $0xc0] sm:$0xff] %v11709
    %11726 = vst [vmem:[#allocation25 + $0xc8] sm:$0xff] %v11710
    %11727 = vst [vmem:[#allocation25 + $0xd0] sm:$0xff] %v11711
    %11728 = vst [vmem:[#allocation25 + $0xd8] sm:$0xff] %v11712
    %11729 = vst [vmem:[#allocation25 + $0xe0] sm:$0xff] %v11713
    %11730 = vst [vmem:[#allocation25 + $0xe8] sm:$0xff] %v11714
    %11731 = vst [vmem:[#allocation25 + $0xf0] sm:$0xff] %v11715
    %11732 = vst [vmem:[#allocation25 + $0xf8] sm:$0xff] %v11716
    // Predicated region
    $region126: #{tpu_custom_call.1} parent=1 // pred_check
      _
    $region127: #{tpu_custom_call.1} parent=1 // pred_check_branch
      %11734 = sbr.rel (0) target = $region129
    $region128: #{tpu_custom_call.1} parent=1 // pred_region
      _
    $region129: #{tpu_custom_call.1} parent=1 // pred_fallthru
      _
    // Predicated region
    $region130: #{tpu_custom_call.1} parent=1 // pred_check
      _
    $region131: #{tpu_custom_call.1} parent=1 // pred_check_branch
      %11736 = sbr.rel (0) target = $region133
    $region132: #{tpu_custom_call.1} parent=1 // pred_region
      %s11738 = ssub.s32 4096, 4096
      %11739 = vsyncadd [#allocation4], %s11738
      %s11741 = sshll.u32 [#allocation25], 4
      %s11742 = int_to_ptr.vmem [resolvable:$true] %s11741
      %11744 = dma.vmem_to_hbm [thread:$0]  %s11742, 4096, %s18, [#allocation4]
    $region133: #{tpu_custom_call.1} parent=1 // pred_fallthru
      _
    // Predicated region
    $region134: #{tpu_custom_call.1} parent=1 // pred_check
      _
    $region135: #{tpu_custom_call.1} parent=1 // pred_check_branch
      %11746 = sbr.rel (0) target = $region137
    $region136: #{tpu_custom_call.1} parent=1 // pred_region
      _
    $region137: #{tpu_custom_call.1} parent=1 // pred_fallthru
      _
    // Predicated region
    $region138: #{tpu_custom_call.1} parent=1 // pred_check
      _
    $region139: #{tpu_custom_call.1} parent=1 // pred_check_branch
      %11748 = sbr.rel (0) target = $region141
    $region140: #{tpu_custom_call.1} parent=1 // pred_region
      %11749 = dma.done [#allocation4], 4096
    $region141: #{tpu_custom_call.1} parent=1 // pred_fallthru
      _
    %11750 = vsyncpa [#allocation3], 1
    %11751 = vsyncpa [#allocation6], 1
    %11752 = vsyncpa [#allocation9], 1
    %11753 = vsyncpa [#allocation12], 1
    %11754 = vsyncpa [#allocation15], 1
    %11755 = vsyncpa [#allocation18], 1
    %11756 = vsyncpa [#allocation21], 1
    %11757 = vsyncpa [#allocation24], 1
    %11758 = vsyncpa [#allocation4], 1

</llo_original>
